<compile_context>
chip_gen: v5e
topology: v5e:2x2
jax: 0.10.0
libtpu: 0.0.40
codegen_flags: <defaults>
</compile_context>

<pallas_src>
import functools
import math

import numpy as np
import jax
import jax.numpy as jnp
from jax.experimental import pallas as pl
from jax.experimental.pallas import tpu as pltpu


# ----------------------------------------------------------------------------
# Fused decoder kernel.  grid=(B,): one grid step = one batch element's full
# decode.  All weights stay VMEM-resident; all intermediates stay in vregs/VMEM.
# ----------------------------------------------------------------------------
def _make_decoder_kernel(n_blocks, n_convs, kernel_size, seq_len):
    K = kernel_size
    pad_l = (K - 1) // 2
    T = seq_len

    def kernel(*refs):
        x_ref = refs[0]
        out_ref = refs[-1]
        blk_refs = refs[1:-1]                       # 8 refs per block

        x = x_ref[...].astype(jnp.float32)          # [T, C_in]

        for b in range(n_blocks):
            (u_ref, ws_ref, wt_ref, p_ref,
             bs_ref, bt_ref, g_ref, be_ref) = blk_refs[8 * b: 8 * b + 8]

            # STUnpool folded into a 0/1 bf16 matmul (exact weights).
            x = jnp.dot(x.astype(jnp.bfloat16), u_ref[...],
                        preferred_element_type=jnp.float32)          # [T, C]
            p_mat = p_ref[...]                                       # [C, C] f32

            # Hoisted per-block temporal edge masks (row t of col k reads y[t+d],
            # d = k - pad_l; rows reading outside [0, T) are zeroed — exactly the
            # zero "same" padding, local to this batch element).
            C = ws_ref.shape[-1]
            row = jax.lax.broadcasted_iota(jnp.int32, (T, C), 0)
            keeps = []
            for k in range(K):
                d = k - pad_l
                keeps.append(None if d == 0 else (row >= -d) & (row < T - d))

            for c in range(n_convs):
                bs    = bs_ref[c:c + 1]                              # [1, C] f32
                bt    = bt_ref[c:c + 1]
                gamma = g_ref[c:c + 1]
                beta  = be_ref[c:c + 1]

                # Spatial graph conv:  A_hat @ (x @ Ws)  ==  x @ (A_hat ⊗ Ws).
                # bf16 operands, f32 accumulation (MXU-native).
                y = jnp.dot(x.astype(jnp.bfloat16), ws_ref[c],
                            preferred_element_type=jnp.float32) + bs  # [T, C] f32

                # Temporal "same" conv: XLU rolls + edge masks (no shift-matrix
                # matmuls), lane-concat to [T, K*C], ONE deep im2col matmul
                # against the block-diagonal temporal weight.
                cols = []
                for k in range(K):
                    d = k - pad_l
                    if d == 0:
                        cols.append(y)
                    else:
                        shifted = pltpu.roll(y, shift=(-d) % T, axis=0)
                        cols.append(jnp.where(keeps[k], shifted, 0.0))
                ycol = jnp.concatenate(cols, axis=-1).astype(jnp.bfloat16)
                h = jnp.dot(ycol, wt_ref[c],
                            preferred_element_type=jnp.float32) + bt  # [T, C] f32

                # LayerNorm over D within each joint block (lane-dense via P).
                # Both stats from ONE fat [2T, C] @ P matmul, f32 HIGHEST.
                stats = jnp.dot(jnp.concatenate([h, h * h], axis=0), p_mat,
                                precision=jax.lax.Precision.HIGHEST,
                                preferred_element_type=jnp.float32)   # [2T, C]
                mu = stats[:T]
                var = jnp.maximum(stats[T:] - mu * mu, 0.0)
                hn = (h - mu) * jax.lax.rsqrt(var + 1e-5) * gamma + beta

                # LeakyReLU(0.2) + residual (dropout = identity in eval mode).
                hn = jnp.where(hn > 0.0, hn, 0.2 * hn)
                x = x + hn

        out_ref[...] = x.astype(out_ref.dtype)

    return kernel


def _const_index_map(ndim):
    zeros = (0,) * ndim
    return lambda b: zeros


@functools.partial(jax.jit, static_argnames=("kernel_size",))
def _decoder_forward(x, blocks, *, kernel_size):
    B, T, J_in, D = x.shape
    c_in = J_in * D
    x3 = x.reshape(B, T, c_in)

    n_blocks = len(blocks)
    n_convs = int(blocks[0]["ws"].shape[0])
    c_out = int(blocks[-1]["ws"].shape[-1])

    inputs = [x3]
    in_specs = [pl.BlockSpec((None, T, c_in), lambda b: (b, 0, 0))]
    for blk in blocks:
        for name in ("u", "ws", "wt", "p", "bs", "bt", "gamma", "beta"):
            arr = blk[name]
            inputs.append(arr)
            # Full-array block + constant index map => fetched once, VMEM-resident.
            in_specs.append(pl.BlockSpec(arr.shape, _const_index_map(arr.ndim)))

    kernel = _make_decoder_kernel(n_blocks, n_convs, kernel_size, T)

    out = pl.pallas_call(
        kernel,
        out_shape=jax.ShapeDtypeStruct((B, T, c_out), jnp.float32),
        grid=(B,),
        in_specs=in_specs,
        out_specs=pl.BlockSpec((None, T, c_out), lambda b: (b, 0, 0)),
        compiler_params=pltpu.CompilerParams(
            dimension_semantics=("parallel",),
            # weights (~2 MiB bf16) + per-step activations + double-buffer
            # headroom; comfortably under every generation's physical VMEM.
            vmem_limit_bytes=32 * 1024 * 1024),
    )(*inputs)
    return out.reshape(B, T, c_out // D, D)


# ----------------------------------------------------------------------------
# Host-side weight expansion (computed once at construction)
# ----------------------------------------------------------------------------
def _expand_spatial(a_hat, ws):
    """W_big[(j,d),(i,e)] = A_hat[i,j] * Ws[d,e]   -> [J*D, J*D]."""
    J = a_hat.shape[0]
    D = ws.shape[0]
    return jnp.einsum("ij,de->jdie", a_hat, ws).reshape(J * D, J * D)


def _expand_temporal(wt, n_joints):
    """W_big[(k,j,d),(j',e)] = delta(j,j') * Wt[k,d,e]  -> [K*J*D, J*D]."""
    K, D, _ = wt.shape
    eye_j = jnp.eye(n_joints, dtype=wt.dtype)
    return jnp.einsum("kde,jl->kjdle", wt, eye_j).reshape(K * n_joints * D,
                                                          n_joints * D)


def _expand_unpool(inv_map, n_coarse, feat_dim):
    """U_big[(jc,d),(jf,e)] = [inv_map[jf]==jc] * delta(d,e) -> [Jc*D, Jf*D]."""
    u = jax.nn.one_hot(inv_map, n_coarse, dtype=jnp.float32)       # [Jf, Jc]
    eye_d = jnp.eye(feat_dim, dtype=jnp.float32)
    n_fine = u.shape[0]
    return jnp.einsum("fc,de->cdfe", u, eye_d).reshape(n_coarse * feat_dim,
                                                       n_fine * feat_dim)


def _block_mean_matrix(n_joints, feat_dim):
    """P[(j,d),(j',e)] = delta(j,j') / D  (per-joint mean, broadcast back)."""
    return jnp.kron(jnp.eye(n_joints, dtype=jnp.float32),
                    jnp.full((feat_dim, feat_dim), 1.0 / feat_dim, jnp.float32))


# ----------------------------------------------------------------------------
# Skeleton / graph helpers (synthetic chain skeleton + pairwise pooling)
# ----------------------------------------------------------------------------
def chain_adjacency(num_joints):
    a = np.zeros((num_joints, num_joints), np.float32)
    for j in range(num_joints - 1):
        a[j, j + 1] = 1.0
        a[j + 1, j] = 1.0
    a_hat = a + np.eye(num_joints, dtype=np.float32)
    deg = a_hat.sum(axis=1)
    d_inv_sqrt = 1.0 / np.sqrt(deg)
    a_norm = a_hat * d_inv_sqrt[:, None] * d_inv_sqrt[None, :]
    return jnp.asarray(a_norm, jnp.float32)


def make_res_st_conv_params(key, latent_dim, kernel_size):
    k1, k2, k3, k4 = jax.random.split(key, 4)
    D, K = latent_dim, kernel_size
    return {
        "ws": jax.random.normal(k1, (D, D), jnp.float32) / math.sqrt(D),
        "bs": 0.01 * jax.random.normal(k2, (1, D), jnp.float32),
        "wt": jax.random.normal(k3, (K, D, D), jnp.float32) / math.sqrt(D * K),
        "bt": 0.01 * jax.random.normal(k4, (1, D), jnp.float32),
        "gamma": jnp.ones((1, D), jnp.float32),
        "beta": jnp.zeros((1, D), jnp.float32),
    }


# ----------------------------------------------------------------------------
# STConvDecoder
# ----------------------------------------------------------------------------
class STConvDecoderPallas:
    def __init__(self, key, *, n_layers=2, n_extra_layers=1, latent_dim=32,
                 kernel_size=3, joint_levels=(8, 4, 2)):
        # joint_levels[0] = finest skeleton, joint_levels[-1] = most-pooled.
        assert len(joint_levels) == n_layers + 1
        self.n_layers = n_layers
        self.n_extra = n_extra_layers
        self.kernel_size = kernel_size
        self.latent_dim = latent_dim

        # Encoder-side bookkeeping (what STConvEncoder would have produced).
        self.adjs = [chain_adjacency(j) for j in joint_levels]
        self.inv_maps = []
        for i in range(n_layers):
            fine, coarse = joint_levels[i], joint_levels[i + 1]
            ratio = fine // coarse
            self.inv_maps.append(jnp.asarray(
                [min(j // ratio, coarse - 1) for j in range(fine)], jnp.int32))

        D = latent_dim
        self.blocks = []       # fused / expanded parameters fed to the kernel
        self.raw_blocks = []   # raw per-conv parameters (pure-JAX reference)
        keys = jax.random.split(key, n_layers * (n_extra_layers + 1))
        kidx = 0
        for i in range(n_layers):
            level = n_layers - 1 - i          # fine level this block decodes to
            J = joint_levels[level]
            J_coarse = joint_levels[level + 1]
            inv_map = self.inv_maps[level]
            adj = self.adjs[level]

            convs = []
            for _ in range(n_extra_layers + 1):
                convs.append(make_res_st_conv_params(keys[kidx], D, kernel_size))
                kidx += 1

            # bf16 storage for MXU operands (0/1 unpool & products are only
            # rounded once here); P and the per-channel vectors stay f32.
            ws_stack = jnp.stack([_expand_spatial(adj, p["ws"])
                                  for p in convs]).astype(jnp.bfloat16)
            wt_stack = jnp.stack([_expand_temporal(p["wt"], J)
                                  for p in convs]).astype(jnp.bfloat16)
            bs_stack = jnp.stack([jnp.tile(p["bs"].reshape(-1), J) for p in convs])
            bt_stack = jnp.stack([jnp.tile(p["bt"].reshape(-1), J) for p in convs])
            g_stack = jnp.stack([jnp.tile(p["gamma"].reshape(-1), J) for p in convs])
            be_stack = jnp.stack([jnp.tile(p["beta"].reshape(-1), J) for p in convs])

            self.blocks.append({
                "u": _expand_unpool(inv_map, J_coarse, D).astype(jnp.bfloat16),
                "ws": ws_stack,                   # [n_conv, J*D, J*D]    bf16
                "wt": wt_stack,                   # [n_conv, K*J*D, J*D]  bf16
                "p": _block_mean_matrix(J, D),    # [J*D, J*D]            f32
                "bs": bs_stack,                   # [n_conv, J*D]         f32
                "bt": bt_stack,
                "gamma": g_stack,
                "beta": be_stack,
            })
            self.raw_blocks.append({"inv_map": inv_map, "adj": adj, "convs": convs})

    def __call__(self, x):
        """x: [B, T, J_in, D]  ->  [B, T, J_out, D]"""
        B, T, _, D = x.shape
        assert D == self.latent_dim
        return _decoder_forward(x, self.blocks, kernel_size=self.kernel_size)


# ----------------------------------------------------------------------------
# Pure-JAX reference (unfused, per-joint, f32 HIGHEST) — structural sanity check
# ----------------------------------------------------------------------------
def reference_forward(x, raw_blocks, kernel_size):
    pad_l = (kernel_size - 1) // 2
    pad_r = kernel_size - 1 - pad_l
    hp = jax.lax.Precision.HIGHEST
    for blk in raw_blocks:
        x = jnp.take(x, blk["inv_map"], axis=2)                       # STUnpool
        for p in blk["convs"]:
            xw = jnp.einsum("btjd,de->btje", x, p["ws"], precision=hp)
            y = jnp.einsum("ij,btje->btie", blk["adj"], xw, precision=hp) + p["bs"][0]
            y_pad = jnp.pad(y, ((0, 0), (pad_l, pad_r), (0, 0), (0, 0)))
            T = x.shape[1]
            acc = jnp.zeros_like(y) + p["bt"][0]
            for k in range(kernel_size):
                acc = acc + jnp.einsum("btjd,de->btje", y_pad[:, k:k + T],
                                       p["wt"][k], precision=hp)
            mu = acc.mean(-1, keepdims=True)
            var = ((acc - mu) ** 2).mean(-1, keepdims=True)
            h = (acc - mu) * jax.lax.rsqrt(var + 1e-5)
            h = h * p["gamma"][0] + p["beta"][0]
            h = jnp.where(h > 0, h, 0.2 * h)
            x = x + h
    return x


# ----------------------------------------------------------------------------
if __name__ == "__main__":
    key = jax.random.PRNGKey(0)
    k_param, k_x = jax.random.split(key)

    B, T, D = 2, 8, 32
    decoder = STConvDecoderPallas(
        k_param, n_layers=2, n_extra_layers=1, latent_dim=D,
        kernel_size=3, joint_levels=(8, 4, 2))

    # decoder input lives at the most-pooled skeleton level (J_in = 2)
    x = jax.random.normal(k_x, (B, T, 2, D), jnp.float32)

    out = jax.block_until_ready(decoder(x))
    assert out.shape == (B, T, 8, D), out.shape
    assert bool(jnp.all(jnp.isfinite(out)))

    # Structural (wiring/layout) check vs the unfused f32-HIGHEST per-joint
    # reference.  The kernel's MXU path uses bf16 weights/activations, so the
    # comparison carries ~1e-2-level rounding after 4 residual conv layers;
    # wiring bugs would show up as O(1) max errors / O(30%+) mean errors.
    ref = jax.block_until_ready(
        reference_forward(x, decoder.raw_blocks, decoder.kernel_size))
    abs_diff = jnp.abs(out - ref)
    max_diff = float(jnp.max(abs_diff))
    rel_diff = float(jnp.mean(abs_diff) / (jnp.mean(jnp.abs(ref)) + 1e-6))
    assert max_diff < 5e-1, f"kernel/reference mismatch: max|diff|={max_diff}"
    assert rel_diff < 1e-1, f"kernel/reference mismatch: mean rel diff={rel_diff}"

    print("KERNEL_OK")
</pallas_src>

<mosaic_0001>
module attributes {stable_mosaic.version = 11 : i64} {
  func.func @kernel(%arg0: i32, %arg1: memref<1x8x64xf32, #tpu.memory_space<vmem>>, %arg2: memref<64x128xbf16, #tpu.memory_space<vmem>>, %arg3: memref<2x128x128xbf16, #tpu.memory_space<vmem>>, %arg4: memref<2x384x128xbf16, #tpu.memory_space<vmem>>, %arg5: memref<128x128xf32, #tpu.memory_space<vmem>>, %arg6: memref<2x128xf32, #tpu.memory_space<vmem>>, %arg7: memref<2x128xf32, #tpu.memory_space<vmem>>, %arg8: memref<2x128xf32, #tpu.memory_space<vmem>>, %arg9: memref<2x128xf32, #tpu.memory_space<vmem>>, %arg10: memref<128x256xbf16, #tpu.memory_space<vmem>>, %arg11: memref<2x256x256xbf16, #tpu.memory_space<vmem>>, %arg12: memref<2x768x256xbf16, #tpu.memory_space<vmem>>, %arg13: memref<256x256xf32, #tpu.memory_space<vmem>>, %arg14: memref<2x256xf32, #tpu.memory_space<vmem>>, %arg15: memref<2x256xf32, #tpu.memory_space<vmem>>, %arg16: memref<2x256xf32, #tpu.memory_space<vmem>>, %arg17: memref<2x256xf32, #tpu.memory_space<vmem>>, %arg18: memref<1x8x256xf32, #tpu.memory_space<vmem>>) attributes {dimension_semantics = [#tpu.dimension_semantics<parallel>], iteration_bounds = array<i64: 2>, scalar_prefetch = 0 : i64, scratch_operands = 0 : i64, tpu.core_type = #tpu.core_type<tc>, window_params = [{transform_indices = @transform_0, window_bounds = array<i64: 1, 8, 64>}, {pipeline_mode = #tpu.pipeline_mode<synchronous>, transform_indices = @transform_1, window_bounds = array<i64: 64, 128>}, {pipeline_mode = #tpu.pipeline_mode<synchronous>, transform_indices = @transform_2, window_bounds = array<i64: 2, 128, 128>}, {pipeline_mode = #tpu.pipeline_mode<synchronous>, transform_indices = @transform_3, window_bounds = array<i64: 2, 384, 128>}, {pipeline_mode = #tpu.pipeline_mode<synchronous>, transform_indices = @transform_4, window_bounds = array<i64: 128, 128>}, {pipeline_mode = #tpu.pipeline_mode<synchronous>, transform_indices = @transform_5, window_bounds = array<i64: 2, 128>}, {pipeline_mode = #tpu.pipeline_mode<synchronous>, transform_indices = @transform_6, window_bounds = array<i64: 2, 128>}, {pipeline_mode = #tpu.pipeline_mode<synchronous>, transform_indices = @transform_7, window_bounds = array<i64: 2, 128>}, {pipeline_mode = #tpu.pipeline_mode<synchronous>, transform_indices = @transform_8, window_bounds = array<i64: 2, 128>}, {pipeline_mode = #tpu.pipeline_mode<synchronous>, transform_indices = @transform_9, window_bounds = array<i64: 128, 256>}, {pipeline_mode = #tpu.pipeline_mode<synchronous>, transform_indices = @transform_10, window_bounds = array<i64: 2, 256, 256>}, {pipeline_mode = #tpu.pipeline_mode<synchronous>, transform_indices = @transform_11, window_bounds = array<i64: 2, 768, 256>}, {pipeline_mode = #tpu.pipeline_mode<synchronous>, transform_indices = @transform_12, window_bounds = array<i64: 256, 256>}, {pipeline_mode = #tpu.pipeline_mode<synchronous>, transform_indices = @transform_13, window_bounds = array<i64: 2, 256>}, {pipeline_mode = #tpu.pipeline_mode<synchronous>, transform_indices = @transform_14, window_bounds = array<i64: 2, 256>}, {pipeline_mode = #tpu.pipeline_mode<synchronous>, transform_indices = @transform_15, window_bounds = array<i64: 2, 256>}, {pipeline_mode = #tpu.pipeline_mode<synchronous>, transform_indices = @transform_16, window_bounds = array<i64: 2, 256>}, {transform_indices = @transform_17, window_bounds = array<i64: 1, 8, 256>}]} {
    %c0 = arith.constant 0 : index
    %c0_0 = arith.constant 0 : index
    %c0_1 = arith.constant 0 : index
    %0 = vector.load %arg1[%c0, %c0_0, %c0_1] : memref<1x8x64xf32, #tpu.memory_space<vmem>>, vector<1x8x64xf32>
    %1 = vector.shape_cast %0 : vector<1x8x64xf32> to vector<8x64xf32>
    %2 = arith.truncf %1 : vector<8x64xf32> to vector<8x64xbf16>
    %c0_2 = arith.constant 0 : index
    %c0_3 = arith.constant 0 : index
    %3 = vector.load %arg2[%c0_2, %c0_3] : memref<64x128xbf16, #tpu.memory_space<vmem>>, vector<64x128xbf16>
    %cst = arith.constant dense<0.000000e+00> : vector<8x128xf32>
    %4 = tpu.matmul %2, %3, %cst {dimension_numbers = #tpu.dot_dimension_numbers<[1], [0], [0], [1], [0, 0, 1, 1], [], []>} : vector<8x64xbf16>, vector<64x128xbf16>, vector<8x128xf32> -> vector<8x128xf32>
    %c0_4 = arith.constant 0 : index
    %c0_5 = arith.constant 0 : index
    %5 = vector.load %arg5[%c0_4, %c0_5] : memref<128x128xf32, #tpu.memory_space<vmem>>, vector<128x128xf32>
    %6 = tpu.iota {dimensions = array<i32: 0>} : vector<8x128xi32>
    %c1_i32 = arith.constant 1 : i32
    %7 = vector.broadcast %c1_i32 : i32 to vector<8x128xi32>
    %8 = arith.cmpi sge, %6, %7 : vector<8x128xi32>
    %c9_i32 = arith.constant 9 : i32
    %9 = vector.broadcast %c9_i32 : i32 to vector<8x128xi32>
    %10 = arith.cmpi slt, %6, %9 : vector<8x128xi32>
    %11 = arith.andi %8, %10 : vector<8x128xi1>
    %c-1_i32 = arith.constant -1 : i32
    %12 = vector.broadcast %c-1_i32 : i32 to vector<8x128xi32>
    %13 = arith.cmpi sge, %6, %12 : vector<8x128xi32>
    %c7_i32 = arith.constant 7 : i32
    %14 = vector.broadcast %c7_i32 : i32 to vector<8x128xi32>
    %15 = arith.cmpi slt, %6, %14 : vector<8x128xi32>
    %16 = arith.andi %13, %15 : vector<8x128xi1>
    %c0_6 = arith.constant 0 : index
    %c0_7 = arith.constant 0 : index
    %17 = vector.load %arg6[%c0_6, %c0_7] : memref<2x128xf32, #tpu.memory_space<vmem>>, vector<1x128xf32>
    %c0_8 = arith.constant 0 : index
    %c0_9 = arith.constant 0 : index
    %18 = vector.load %arg7[%c0_8, %c0_9] : memref<2x128xf32, #tpu.memory_space<vmem>>, vector<1x128xf32>
    %c0_10 = arith.constant 0 : index
    %c0_11 = arith.constant 0 : index
    %19 = vector.load %arg8[%c0_10, %c0_11] : memref<2x128xf32, #tpu.memory_space<vmem>>, vector<1x128xf32>
    %c0_12 = arith.constant 0 : index
    %c0_13 = arith.constant 0 : index
    %20 = vector.load %arg9[%c0_12, %c0_13] : memref<2x128xf32, #tpu.memory_space<vmem>>, vector<1x128xf32>
    %21 = arith.truncf %4 : vector<8x128xf32> to vector<8x128xbf16>
    %c0_14 = arith.constant 0 : index
    %c0_15 = arith.constant 0 : index
    %c0_16 = arith.constant 0 : index
    %22 = vector.load %arg3[%c0_14, %c0_15, %c0_16] : memref<2x128x128xbf16, #tpu.memory_space<vmem>>, vector<1x128x128xbf16>
    %23 = vector.shape_cast %22 : vector<1x128x128xbf16> to vector<128x128xbf16>
    %cst_17 = arith.constant dense<0.000000e+00> : vector<8x128xf32>
    %24 = tpu.matmul %21, %23, %cst_17 {dimension_numbers = #tpu.dot_dimension_numbers<[1], [0], [0], [1], [0, 0, 1, 1], [], []>} : vector<8x128xbf16>, vector<128x128xbf16>, vector<8x128xf32> -> vector<8x128xf32>
    %25 = vector.broadcast %17 : vector<1x128xf32> to vector<8x128xf32>
    %26 = arith.addf %24, %25 : vector<8x128xf32>
    %c1_i32_18 = arith.constant 1 : i32
    %27 = tpu.dynamic_rotate %26 by %c1_i32_18 dim 0 : vector<8x128xf32>, i32 -> vector<8x128xf32>
    %cst_19 = arith.constant 0.000000e+00 : f32
    %28 = vector.broadcast %cst_19 : f32 to vector<8x128xf32>
    %29 = arith.select %11, %27, %28 : vector<8x128xi1>, vector<8x128xf32>
    %c7_i32_20 = arith.constant 7 : i32
    %30 = tpu.dynamic_rotate %26 by %c7_i32_20 dim 0 : vector<8x128xf32>, i32 -> vector<8x128xf32>
    %cst_21 = arith.constant 0.000000e+00 : f32
    %31 = vector.broadcast %cst_21 : f32 to vector<8x128xf32>
    %32 = arith.select %16, %30, %31 : vector<8x128xi1>, vector<8x128xf32>
    %33 = tpu.concatenate %29, %26, %32 in 1 : vector<8x128xf32>, vector<8x128xf32>, vector<8x128xf32> -> vector<8x384xf32>
    %34 = arith.truncf %33 : vector<8x384xf32> to vector<8x384xbf16>
    %c0_22 = arith.constant 0 : index
    %c0_23 = arith.constant 0 : index
    %c0_24 = arith.constant 0 : index
    %35 = vector.load %arg4[%c0_22, %c0_23, %c0_24] : memref<2x384x128xbf16, #tpu.memory_space<vmem>>, vector<1x384x128xbf16>
    %36 = vector.shape_cast %35 : vector<1x384x128xbf16> to vector<384x128xbf16>
    %cst_25 = arith.constant dense<0.000000e+00> : vector<8x128xf32>
    %37 = tpu.matmul %34, %36, %cst_25 {dimension_numbers = #tpu.dot_dimension_numbers<[1], [0], [0], [1], [0, 0, 1, 1], [], []>} : vector<8x384xbf16>, vector<384x128xbf16>, vector<8x128xf32> -> vector<8x128xf32>
    %38 = vector.broadcast %18 : vector<1x128xf32> to vector<8x128xf32>
    %39 = arith.addf %37, %38 : vector<8x128xf32>
    %40 = arith.mulf %39, %39 : vector<8x128xf32>
    %41 = tpu.concatenate %39, %40 in 0 : vector<8x128xf32>, vector<8x128xf32> -> vector<16x128xf32>
    %cst_26 = arith.constant dense<0.000000e+00> : vector<16x128xf32>
    %42 = tpu.matmul %41, %5, %cst_26 {dimension_numbers = #tpu.dot_dimension_numbers<[1], [0], [0], [1], [0, 0, 1, 1], [], []>, precision = #tpu.contract_precision<fp32>} : vector<16x128xf32>, vector<128x128xf32>, vector<16x128xf32> -> vector<16x128xf32>
    %43 = vector.extract_strided_slice %42 {offsets = [0, 0], sizes = [8, 128], strides = [1, 1]} : vector<16x128xf32> to vector<8x128xf32>
    %44 = vector.extract_strided_slice %42 {offsets = [8, 0], sizes = [8, 128], strides = [1, 1]} : vector<16x128xf32> to vector<8x128xf32>
    %45 = arith.mulf %43, %43 : vector<8x128xf32>
    %46 = arith.subf %44, %45 : vector<8x128xf32>
    %cst_27 = arith.constant 0.000000e+00 : f32
    %47 = vector.broadcast %cst_27 : f32 to vector<8x128xf32>
    %48 = arith.maximumf %46, %47 : vector<8x128xf32>
    %49 = arith.subf %39, %43 : vector<8x128xf32>
    %cst_28 = arith.constant 9.99999974E-6 : f32
    %50 = vector.broadcast %cst_28 : f32 to vector<8x128xf32>
    %51 = arith.addf %48, %50 : vector<8x128xf32>
    %52 = math.rsqrt %51 : vector<8x128xf32>
    %53 = arith.mulf %49, %52 : vector<8x128xf32>
    %54 = vector.broadcast %19 : vector<1x128xf32> to vector<8x128xf32>
    %55 = arith.mulf %53, %54 : vector<8x128xf32>
    %56 = vector.broadcast %20 : vector<1x128xf32> to vector<8x128xf32>
    %57 = arith.addf %55, %56 : vector<8x128xf32>
    %cst_29 = arith.constant 0.000000e+00 : f32
    %58 = vector.broadcast %cst_29 : f32 to vector<8x128xf32>
    %59 = arith.cmpf ogt, %57, %58 : vector<8x128xf32>
    %cst_30 = arith.constant 2.000000e-01 : f32
    %60 = vector.broadcast %cst_30 : f32 to vector<8x128xf32>
    %61 = arith.mulf %60, %57 : vector<8x128xf32>
    %62 = arith.select %59, %57, %61 : vector<8x128xi1>, vector<8x128xf32>
    %63 = arith.addf %4, %62 : vector<8x128xf32>
    %c1 = arith.constant 1 : index
    %c0_31 = arith.constant 0 : index
    %64 = vector.load %arg6[%c1, %c0_31] : memref<2x128xf32, #tpu.memory_space<vmem>>, vector<1x128xf32>
    %c1_32 = arith.constant 1 : index
    %c0_33 = arith.constant 0 : index
    %65 = vector.load %arg7[%c1_32, %c0_33] : memref<2x128xf32, #tpu.memory_space<vmem>>, vector<1x128xf32>
    %c1_34 = arith.constant 1 : index
    %c0_35 = arith.constant 0 : index
    %66 = vector.load %arg8[%c1_34, %c0_35] : memref<2x128xf32, #tpu.memory_space<vmem>>, vector<1x128xf32>
    %c1_36 = arith.constant 1 : index
    %c0_37 = arith.constant 0 : index
    %67 = vector.load %arg9[%c1_36, %c0_37] : memref<2x128xf32, #tpu.memory_space<vmem>>, vector<1x128xf32>
    %68 = arith.truncf %63 : vector<8x128xf32> to vector<8x128xbf16>
    %c1_38 = arith.constant 1 : index
    %c0_39 = arith.constant 0 : index
    %c0_40 = arith.constant 0 : index
    %69 = vector.load %arg3[%c1_38, %c0_39, %c0_40] : memref<2x128x128xbf16, #tpu.memory_space<vmem>>, vector<1x128x128xbf16>
    %70 = vector.shape_cast %69 : vector<1x128x128xbf16> to vector<128x128xbf16>
    %cst_41 = arith.constant dense<0.000000e+00> : vector<8x128xf32>
    %71 = tpu.matmul %68, %70, %cst_41 {dimension_numbers = #tpu.dot_dimension_numbers<[1], [0], [0], [1], [0, 0, 1, 1], [], []>} : vector<8x128xbf16>, vector<128x128xbf16>, vector<8x128xf32> -> vector<8x128xf32>
    %72 = vector.broadcast %64 : vector<1x128xf32> to vector<8x128xf32>
    %73 = arith.addf %71, %72 : vector<8x128xf32>
    %c1_i32_42 = arith.constant 1 : i32
    %74 = tpu.dynamic_rotate %73 by %c1_i32_42 dim 0 : vector<8x128xf32>, i32 -> vector<8x128xf32>
    %cst_43 = arith.constant 0.000000e+00 : f32
    %75 = vector.broadcast %cst_43 : f32 to vector<8x128xf32>
    %76 = arith.select %11, %74, %75 : vector<8x128xi1>, vector<8x128xf32>
    %c7_i32_44 = arith.constant 7 : i32
    %77 = tpu.dynamic_rotate %73 by %c7_i32_44 dim 0 : vector<8x128xf32>, i32 -> vector<8x128xf32>
    %cst_45 = arith.constant 0.000000e+00 : f32
    %78 = vector.broadcast %cst_45 : f32 to vector<8x128xf32>
    %79 = arith.select %16, %77, %78 : vector<8x128xi1>, vector<8x128xf32>
    %80 = tpu.concatenate %76, %73, %79 in 1 : vector<8x128xf32>, vector<8x128xf32>, vector<8x128xf32> -> vector<8x384xf32>
    %81 = arith.truncf %80 : vector<8x384xf32> to vector<8x384xbf16>
    %c1_46 = arith.constant 1 : index
    %c0_47 = arith.constant 0 : index
    %c0_48 = arith.constant 0 : index
    %82 = vector.load %arg4[%c1_46, %c0_47, %c0_48] : memref<2x384x128xbf16, #tpu.memory_space<vmem>>, vector<1x384x128xbf16>
    %83 = vector.shape_cast %82 : vector<1x384x128xbf16> to vector<384x128xbf16>
    %cst_49 = arith.constant dense<0.000000e+00> : vector<8x128xf32>
    %84 = tpu.matmul %81, %83, %cst_49 {dimension_numbers = #tpu.dot_dimension_numbers<[1], [0], [0], [1], [0, 0, 1, 1], [], []>} : vector<8x384xbf16>, vector<384x128xbf16>, vector<8x128xf32> -> vector<8x128xf32>
    %85 = vector.broadcast %65 : vector<1x128xf32> to vector<8x128xf32>
    %86 = arith.addf %84, %85 : vector<8x128xf32>
    %87 = arith.mulf %86, %86 : vector<8x128xf32>
    %88 = tpu.concatenate %86, %87 in 0 : vector<8x128xf32>, vector<8x128xf32> -> vector<16x128xf32>
    %cst_50 = arith.constant dense<0.000000e+00> : vector<16x128xf32>
    %89 = tpu.matmul %88, %5, %cst_50 {dimension_numbers = #tpu.dot_dimension_numbers<[1], [0], [0], [1], [0, 0, 1, 1], [], []>, precision = #tpu.contract_precision<fp32>} : vector<16x128xf32>, vector<128x128xf32>, vector<16x128xf32> -> vector<16x128xf32>
    %90 = vector.extract_strided_slice %89 {offsets = [0, 0], sizes = [8, 128], strides = [1, 1]} : vector<16x128xf32> to vector<8x128xf32>
    %91 = vector.extract_strided_slice %89 {offsets = [8, 0], sizes = [8, 128], strides = [1, 1]} : vector<16x128xf32> to vector<8x128xf32>
    %92 = arith.mulf %90, %90 : vector<8x128xf32>
    %93 = arith.subf %91, %92 : vector<8x128xf32>
    %cst_51 = arith.constant 0.000000e+00 : f32
    %94 = vector.broadcast %cst_51 : f32 to vector<8x128xf32>
    %95 = arith.maximumf %93, %94 : vector<8x128xf32>
    %96 = arith.subf %86, %90 : vector<8x128xf32>
    %cst_52 = arith.constant 9.99999974E-6 : f32
    %97 = vector.broadcast %cst_52 : f32 to vector<8x128xf32>
    %98 = arith.addf %95, %97 : vector<8x128xf32>
    %99 = math.rsqrt %98 : vector<8x128xf32>
    %100 = arith.mulf %96, %99 : vector<8x128xf32>
    %101 = vector.broadcast %66 : vector<1x128xf32> to vector<8x128xf32>
    %102 = arith.mulf %100, %101 : vector<8x128xf32>
    %103 = vector.broadcast %67 : vector<1x128xf32> to vector<8x128xf32>
    %104 = arith.addf %102, %103 : vector<8x128xf32>
    %cst_53 = arith.constant 0.000000e+00 : f32
    %105 = vector.broadcast %cst_53 : f32 to vector<8x128xf32>
    %106 = arith.cmpf ogt, %104, %105 : vector<8x128xf32>
    %cst_54 = arith.constant 2.000000e-01 : f32
    %107 = vector.broadcast %cst_54 : f32 to vector<8x128xf32>
    %108 = arith.mulf %107, %104 : vector<8x128xf32>
    %109 = arith.select %106, %104, %108 : vector<8x128xi1>, vector<8x128xf32>
    %110 = arith.addf %63, %109 : vector<8x128xf32>
    %111 = arith.truncf %110 : vector<8x128xf32> to vector<8x128xbf16>
    %c0_55 = arith.constant 0 : index
    %c0_56 = arith.constant 0 : index
    %112 = vector.load %arg10[%c0_55, %c0_56] : memref<128x256xbf16, #tpu.memory_space<vmem>>, vector<128x256xbf16>
    %cst_57 = arith.constant dense<0.000000e+00> : vector<8x256xf32>
    %113 = tpu.matmul %111, %112, %cst_57 {dimension_numbers = #tpu.dot_dimension_numbers<[1], [0], [0], [1], [0, 0, 1, 1], [], []>} : vector<8x128xbf16>, vector<128x256xbf16>, vector<8x256xf32> -> vector<8x256xf32>
    %c0_58 = arith.constant 0 : index
    %c0_59 = arith.constant 0 : index
    %114 = vector.load %arg13[%c0_58, %c0_59] : memref<256x256xf32, #tpu.memory_space<vmem>>, vector<256x256xf32>
    %115 = tpu.iota {dimensions = array<i32: 0>} : vector<8x256xi32>
    %c1_i32_60 = arith.constant 1 : i32
    %116 = vector.broadcast %c1_i32_60 : i32 to vector<8x256xi32>
    %117 = arith.cmpi sge, %115, %116 : vector<8x256xi32>
    %c9_i32_61 = arith.constant 9 : i32
    %118 = vector.broadcast %c9_i32_61 : i32 to vector<8x256xi32>
    %119 = arith.cmpi slt, %115, %118 : vector<8x256xi32>
    %120 = arith.andi %117, %119 : vector<8x256xi1>
    %c-1_i32_62 = arith.constant -1 : i32
    %121 = vector.broadcast %c-1_i32_62 : i32 to vector<8x256xi32>
    %122 = arith.cmpi sge, %115, %121 : vector<8x256xi32>
    %c7_i32_63 = arith.constant 7 : i32
    %123 = vector.broadcast %c7_i32_63 : i32 to vector<8x256xi32>
    %124 = arith.cmpi slt, %115, %123 : vector<8x256xi32>
    %125 = arith.andi %122, %124 : vector<8x256xi1>
    %c0_64 = arith.constant 0 : index
    %c0_65 = arith.constant 0 : index
    %126 = vector.load %arg14[%c0_64, %c0_65] : memref<2x256xf32, #tpu.memory_space<vmem>>, vector<1x256xf32>
    %c0_66 = arith.constant 0 : index
    %c0_67 = arith.constant 0 : index
    %127 = vector.load %arg15[%c0_66, %c0_67] : memref<2x256xf32, #tpu.memory_space<vmem>>, vector<1x256xf32>
    %c0_68 = arith.constant 0 : index
    %c0_69 = arith.constant 0 : index
    %128 = vector.load %arg16[%c0_68, %c0_69] : memref<2x256xf32, #tpu.memory_space<vmem>>, vector<1x256xf32>
    %c0_70 = arith.constant 0 : index
    %c0_71 = arith.constant 0 : index
    %129 = vector.load %arg17[%c0_70, %c0_71] : memref<2x256xf32, #tpu.memory_space<vmem>>, vector<1x256xf32>
    %130 = arith.truncf %113 : vector<8x256xf32> to vector<8x256xbf16>
    %c0_72 = arith.constant 0 : index
    %c0_73 = arith.constant 0 : index
    %c0_74 = arith.constant 0 : index
    %131 = vector.load %arg11[%c0_72, %c0_73, %c0_74] : memref<2x256x256xbf16, #tpu.memory_space<vmem>>, vector<1x256x256xbf16>
    %132 = vector.shape_cast %131 : vector<1x256x256xbf16> to vector<256x256xbf16>
    %cst_75 = arith.constant dense<0.000000e+00> : vector<8x256xf32>
    %133 = tpu.matmul %130, %132, %cst_75 {dimension_numbers = #tpu.dot_dimension_numbers<[1], [0], [0], [1], [0, 0, 1, 1], [], []>} : vector<8x256xbf16>, vector<256x256xbf16>, vector<8x256xf32> -> vector<8x256xf32>
    %134 = vector.broadcast %126 : vector<1x256xf32> to vector<8x256xf32>
    %135 = arith.addf %133, %134 : vector<8x256xf32>
    %c1_i32_76 = arith.constant 1 : i32
    %136 = tpu.dynamic_rotate %135 by %c1_i32_76 dim 0 : vector<8x256xf32>, i32 -> vector<8x256xf32>
    %cst_77 = arith.constant 0.000000e+00 : f32
    %137 = vector.broadcast %cst_77 : f32 to vector<8x256xf32>
    %138 = arith.select %120, %136, %137 : vector<8x256xi1>, vector<8x256xf32>
    %c7_i32_78 = arith.constant 7 : i32
    %139 = tpu.dynamic_rotate %135 by %c7_i32_78 dim 0 : vector<8x256xf32>, i32 -> vector<8x256xf32>
    %cst_79 = arith.constant 0.000000e+00 : f32
    %140 = vector.broadcast %cst_79 : f32 to vector<8x256xf32>
    %141 = arith.select %125, %139, %140 : vector<8x256xi1>, vector<8x256xf32>
    %142 = tpu.concatenate %138, %135, %141 in 1 : vector<8x256xf32>, vector<8x256xf32>, vector<8x256xf32> -> vector<8x768xf32>
    %143 = arith.truncf %142 : vector<8x768xf32> to vector<8x768xbf16>
    %c0_80 = arith.constant 0 : index
    %c0_81 = arith.constant 0 : index
    %c0_82 = arith.constant 0 : index
    %144 = vector.load %arg12[%c0_80, %c0_81, %c0_82] : memref<2x768x256xbf16, #tpu.memory_space<vmem>>, vector<1x768x256xbf16>
    %145 = vector.shape_cast %144 : vector<1x768x256xbf16> to vector<768x256xbf16>
    %cst_83 = arith.constant dense<0.000000e+00> : vector<8x256xf32>
    %146 = tpu.matmul %143, %145, %cst_83 {dimension_numbers = #tpu.dot_dimension_numbers<[1], [0], [0], [1], [0, 0, 1, 1], [], []>} : vector<8x768xbf16>, vector<768x256xbf16>, vector<8x256xf32> -> vector<8x256xf32>
    %147 = vector.broadcast %127 : vector<1x256xf32> to vector<8x256xf32>
    %148 = arith.addf %146, %147 : vector<8x256xf32>
    %149 = arith.mulf %148, %148 : vector<8x256xf32>
    %150 = tpu.concatenate %148, %149 in 0 : vector<8x256xf32>, vector<8x256xf32> -> vector<16x256xf32>
    %cst_84 = arith.constant dense<0.000000e+00> : vector<16x256xf32>
    %151 = tpu.matmul %150, %114, %cst_84 {dimension_numbers = #tpu.dot_dimension_numbers<[1], [0], [0], [1], [0, 0, 1, 1], [], []>, precision = #tpu.contract_precision<fp32>} : vector<16x256xf32>, vector<256x256xf32>, vector<16x256xf32> -> vector<16x256xf32>
    %152 = vector.extract_strided_slice %151 {offsets = [0, 0], sizes = [8, 256], strides = [1, 1]} : vector<16x256xf32> to vector<8x256xf32>
    %153 = vector.extract_strided_slice %151 {offsets = [8, 0], sizes = [8, 256], strides = [1, 1]} : vector<16x256xf32> to vector<8x256xf32>
    %154 = arith.mulf %152, %152 : vector<8x256xf32>
    %155 = arith.subf %153, %154 : vector<8x256xf32>
    %cst_85 = arith.constant 0.000000e+00 : f32
    %156 = vector.broadcast %cst_85 : f32 to vector<8x256xf32>
    %157 = arith.maximumf %155, %156 : vector<8x256xf32>
    %158 = arith.subf %148, %152 : vector<8x256xf32>
    %cst_86 = arith.constant 9.99999974E-6 : f32
    %159 = vector.broadcast %cst_86 : f32 to vector<8x256xf32>
    %160 = arith.addf %157, %159 : vector<8x256xf32>
    %161 = math.rsqrt %160 : vector<8x256xf32>
    %162 = arith.mulf %158, %161 : vector<8x256xf32>
    %163 = vector.broadcast %128 : vector<1x256xf32> to vector<8x256xf32>
    %164 = arith.mulf %162, %163 : vector<8x256xf32>
    %165 = vector.broadcast %129 : vector<1x256xf32> to vector<8x256xf32>
    %166 = arith.addf %164, %165 : vector<8x256xf32>
    %cst_87 = arith.constant 0.000000e+00 : f32
    %167 = vector.broadcast %cst_87 : f32 to vector<8x256xf32>
    %168 = arith.cmpf ogt, %166, %167 : vector<8x256xf32>
    %cst_88 = arith.constant 2.000000e-01 : f32
    %169 = vector.broadcast %cst_88 : f32 to vector<8x256xf32>
    %170 = arith.mulf %169, %166 : vector<8x256xf32>
    %171 = arith.select %168, %166, %170 : vector<8x256xi1>, vector<8x256xf32>
    %172 = arith.addf %113, %171 : vector<8x256xf32>
    %c1_89 = arith.constant 1 : index
    %c0_90 = arith.constant 0 : index
    %173 = vector.load %arg14[%c1_89, %c0_90] : memref<2x256xf32, #tpu.memory_space<vmem>>, vector<1x256xf32>
    %c1_91 = arith.constant 1 : index
    %c0_92 = arith.constant 0 : index
    %174 = vector.load %arg15[%c1_91, %c0_92] : memref<2x256xf32, #tpu.memory_space<vmem>>, vector<1x256xf32>
    %c1_93 = arith.constant 1 : index
    %c0_94 = arith.constant 0 : index
    %175 = vector.load %arg16[%c1_93, %c0_94] : memref<2x256xf32, #tpu.memory_space<vmem>>, vector<1x256xf32>
    %c1_95 = arith.constant 1 : index
    %c0_96 = arith.constant 0 : index
    %176 = vector.load %arg17[%c1_95, %c0_96] : memref<2x256xf32, #tpu.memory_space<vmem>>, vector<1x256xf32>
    %177 = arith.truncf %172 : vector<8x256xf32> to vector<8x256xbf16>
    %c1_97 = arith.constant 1 : index
    %c0_98 = arith.constant 0 : index
    %c0_99 = arith.constant 0 : index
    %178 = vector.load %arg11[%c1_97, %c0_98, %c0_99] : memref<2x256x256xbf16, #tpu.memory_space<vmem>>, vector<1x256x256xbf16>
    %179 = vector.shape_cast %178 : vector<1x256x256xbf16> to vector<256x256xbf16>
    %cst_100 = arith.constant dense<0.000000e+00> : vector<8x256xf32>
    %180 = tpu.matmul %177, %179, %cst_100 {dimension_numbers = #tpu.dot_dimension_numbers<[1], [0], [0], [1], [0, 0, 1, 1], [], []>} : vector<8x256xbf16>, vector<256x256xbf16>, vector<8x256xf32> -> vector<8x256xf32>
    %181 = vector.broadcast %173 : vector<1x256xf32> to vector<8x256xf32>
    %182 = arith.addf %180, %181 : vector<8x256xf32>
    %c1_i32_101 = arith.constant 1 : i32
    %183 = tpu.dynamic_rotate %182 by %c1_i32_101 dim 0 : vector<8x256xf32>, i32 -> vector<8x256xf32>
    %cst_102 = arith.constant 0.000000e+00 : f32
    %184 = vector.broadcast %cst_102 : f32 to vector<8x256xf32>
    %185 = arith.select %120, %183, %184 : vector<8x256xi1>, vector<8x256xf32>
    %c7_i32_103 = arith.constant 7 : i32
    %186 = tpu.dynamic_rotate %182 by %c7_i32_103 dim 0 : vector<8x256xf32>, i32 -> vector<8x256xf32>
    %cst_104 = arith.constant 0.000000e+00 : f32
    %187 = vector.broadcast %cst_104 : f32 to vector<8x256xf32>
    %188 = arith.select %125, %186, %187 : vector<8x256xi1>, vector<8x256xf32>
    %189 = tpu.concatenate %185, %182, %188 in 1 : vector<8x256xf32>, vector<8x256xf32>, vector<8x256xf32> -> vector<8x768xf32>
    %190 = arith.truncf %189 : vector<8x768xf32> to vector<8x768xbf16>
    %c1_105 = arith.constant 1 : index
    %c0_106 = arith.constant 0 : index
    %c0_107 = arith.constant 0 : index
    %191 = vector.load %arg12[%c1_105, %c0_106, %c0_107] : memref<2x768x256xbf16, #tpu.memory_space<vmem>>, vector<1x768x256xbf16>
    %192 = vector.shape_cast %191 : vector<1x768x256xbf16> to vector<768x256xbf16>
    %cst_108 = arith.constant dense<0.000000e+00> : vector<8x256xf32>
    %193 = tpu.matmul %190, %192, %cst_108 {dimension_numbers = #tpu.dot_dimension_numbers<[1], [0], [0], [1], [0, 0, 1, 1], [], []>} : vector<8x768xbf16>, vector<768x256xbf16>, vector<8x256xf32> -> vector<8x256xf32>
    %194 = vector.broadcast %174 : vector<1x256xf32> to vector<8x256xf32>
    %195 = arith.addf %193, %194 : vector<8x256xf32>
    %196 = arith.mulf %195, %195 : vector<8x256xf32>
    %197 = tpu.concatenate %195, %196 in 0 : vector<8x256xf32>, vector<8x256xf32> -> vector<16x256xf32>
    %cst_109 = arith.constant dense<0.000000e+00> : vector<16x256xf32>
    %198 = tpu.matmul %197, %114, %cst_109 {dimension_numbers = #tpu.dot_dimension_numbers<[1], [0], [0], [1], [0, 0, 1, 1], [], []>, precision = #tpu.contract_precision<fp32>} : vector<16x256xf32>, vector<256x256xf32>, vector<16x256xf32> -> vector<16x256xf32>
    %199 = vector.extract_strided_slice %198 {offsets = [0, 0], sizes = [8, 256], strides = [1, 1]} : vector<16x256xf32> to vector<8x256xf32>
    %200 = vector.extract_strided_slice %198 {offsets = [8, 0], sizes = [8, 256], strides = [1, 1]} : vector<16x256xf32> to vector<8x256xf32>
    %201 = arith.mulf %199, %199 : vector<8x256xf32>
    %202 = arith.subf %200, %201 : vector<8x256xf32>
    %cst_110 = arith.constant 0.000000e+00 : f32
    %203 = vector.broadcast %cst_110 : f32 to vector<8x256xf32>
    %204 = arith.maximumf %202, %203 : vector<8x256xf32>
    %205 = arith.subf %195, %199 : vector<8x256xf32>
    %cst_111 = arith.constant 9.99999974E-6 : f32
    %206 = vector.broadcast %cst_111 : f32 to vector<8x256xf32>
    %207 = arith.addf %204, %206 : vector<8x256xf32>
    %208 = math.rsqrt %207 : vector<8x256xf32>
    %209 = arith.mulf %205, %208 : vector<8x256xf32>
    %210 = vector.broadcast %175 : vector<1x256xf32> to vector<8x256xf32>
    %211 = arith.mulf %209, %210 : vector<8x256xf32>
    %212 = vector.broadcast %176 : vector<1x256xf32> to vector<8x256xf32>
    %213 = arith.addf %211, %212 : vector<8x256xf32>
    %cst_112 = arith.constant 0.000000e+00 : f32
    %214 = vector.broadcast %cst_112 : f32 to vector<8x256xf32>
    %215 = arith.cmpf ogt, %213, %214 : vector<8x256xf32>
    %cst_113 = arith.constant 2.000000e-01 : f32
    %216 = vector.broadcast %cst_113 : f32 to vector<8x256xf32>
    %217 = arith.mulf %216, %213 : vector<8x256xf32>
    %218 = arith.select %215, %213, %217 : vector<8x256xi1>, vector<8x256xf32>
    %219 = arith.addf %172, %218 : vector<8x256xf32>
    %c0_114 = arith.constant 0 : index
    %c0_115 = arith.constant 0 : index
    %c0_116 = arith.constant 0 : index
    %220 = vector.load %arg18[%c0_114, %c0_115, %c0_116] : memref<1x8x256xf32, #tpu.memory_space<vmem>>, vector<1x8x256xf32>
    %221 = vector.shape_cast %220 : vector<1x8x256xf32> to vector<8x256xf32>
    %222 = vector.shape_cast %219 : vector<8x256xf32> to vector<1x8x256xf32>
    tpu.vector_store %arg18[%c0_114, %c0_115, %c0_116], %222 {strides = array<i32>} : memref<1x8x256xf32, #tpu.memory_space<vmem>>, vector<1x8x256xf32>,
    return
  }
  func.func @transform_0(%arg0: i32) -> (i32, i32, i32) {
    %c0_i32 = arith.constant 0 : i32
    %c0_i32_0 = arith.constant 0 : i32
    %c0_i32_1 = arith.constant 0 : i32
    return %arg0, %c0_i32, %c0_i32_0 : i32, i32, i32
  }
  func.func @transform_1(%arg0: i32) -> (i32, i32) {
    %c0_i32 = arith.constant 0 : i32
    %c0_i32_0 = arith.constant 0 : i32
    %c0_i32_1 = arith.constant 0 : i32
    return %c0_i32, %c0_i32_0 : i32, i32
  }
  func.func @transform_2(%arg0: i32) -> (i32, i32, i32) {
    %c0_i32 = arith.constant 0 : i32
    %c0_i32_0 = arith.constant 0 : i32
    %c0_i32_1 = arith.constant 0 : i32
    %c0_i32_2 = arith.constant 0 : i32
    return %c0_i32, %c0_i32_0, %c0_i32_1 : i32, i32, i32
  }
  func.func @transform_3(%arg0: i32) -> (i32, i32, i32) {
    %c0_i32 = arith.constant 0 : i32
    %c0_i32_0 = arith.constant 0 : i32
    %c0_i32_1 = arith.constant 0 : i32
    %c0_i32_2 = arith.constant 0 : i32
    return %c0_i32, %c0_i32_0, %c0_i32_1 : i32, i32, i32
  }
  func.func @transform_4(%arg0: i32) -> (i32, i32) {
    %c0_i32 = arith.constant 0 : i32
    %c0_i32_0 = arith.constant 0 : i32
    %c0_i32_1 = arith.constant 0 : i32
    return %c0_i32, %c0_i32_0 : i32, i32
  }
  func.func @transform_5(%arg0: i32) -> (i32, i32) {
    %c0_i32 = arith.constant 0 : i32
    %c0_i32_0 = arith.constant 0 : i32
    %c0_i32_1 = arith.constant 0 : i32
    return %c0_i32, %c0_i32_0 : i32, i32
  }
  func.func @transform_6(%arg0: i32) -> (i32, i32) {
    %c0_i32 = arith.constant 0 : i32
    %c0_i32_0 = arith.constant 0 : i32
    %c0_i32_1 = arith.constant 0 : i32
    return %c0_i32, %c0_i32_0 : i32, i32
  }
  func.func @transform_7(%arg0: i32) -> (i32, i32) {
    %c0_i32 = arith.constant 0 : i32
    %c0_i32_0 = arith.constant 0 : i32
    %c0_i32_1 = arith.constant 0 : i32
    return %c0_i32, %c0_i32_0 : i32, i32
  }
  func.func @transform_8(%arg0: i32) -> (i32, i32) {
    %c0_i32 = arith.constant 0 : i32
    %c0_i32_0 = arith.constant 0 : i32
    %c0_i32_1 = arith.constant 0 : i32
    return %c0_i32, %c0_i32_0 : i32, i32
  }
  func.func @transform_9(%arg0: i32) -> (i32, i32) {
    %c0_i32 = arith.constant 0 : i32
    %c0_i32_0 = arith.constant 0 : i32
    %c0_i32_1 = arith.constant 0 : i32
    return %c0_i32, %c0_i32_0 : i32, i32
  }
  func.func @transform_10(%arg0: i32) -> (i32, i32, i32) {
    %c0_i32 = arith.constant 0 : i32
    %c0_i32_0 = arith.constant 0 : i32
    %c0_i32_1 = arith.constant 0 : i32
    %c0_i32_2 = arith.constant 0 : i32
    return %c0_i32, %c0_i32_0, %c0_i32_1 : i32, i32, i32
  }
  func.func @transform_11(%arg0: i32) -> (i32, i32, i32) {
    %c0_i32 = arith.constant 0 : i32
    %c0_i32_0 = arith.constant 0 : i32
    %c0_i32_1 = arith.constant 0 : i32
    %c0_i32_2 = arith.constant 0 : i32
    return %c0_i32, %c0_i32_0, %c0_i32_1 : i32, i32, i32
  }
  func.func @transform_12(%arg0: i32) -> (i32, i32) {
    %c0_i32 = arith.constant 0 : i32
    %c0_i32_0 = arith.constant 0 : i32
    %c0_i32_1 = arith.constant 0 : i32
    return %c0_i32, %c0_i32_0 : i32, i32
  }
  func.func @transform_13(%arg0: i32) -> (i32, i32) {
    %c0_i32 = arith.constant 0 : i32
    %c0_i32_0 = arith.constant 0 : i32
    %c0_i32_1 = arith.constant 0 : i32
    return %c0_i32, %c0_i32_0 : i32, i32
  }
  func.func @transform_14(%arg0: i32) -> (i32, i32) {
    %c0_i32 = arith.constant 0 : i32
    %c0_i32_0 = arith.constant 0 : i32
    %c0_i32_1 = arith.constant 0 : i32
    return %c0_i32, %c0_i32_0 : i32, i32
  }
  func.func @transform_15(%arg0: i32) -> (i32, i32) {
    %c0_i32 = arith.constant 0 : i32
    %c0_i32_0 = arith.constant 0 : i32
    %c0_i32_1 = arith.constant 0 : i32
    return %c0_i32, %c0_i32_0 : i32, i32
  }
  func.func @transform_16(%arg0: i32) -> (i32, i32) {
    %c0_i32 = arith.constant 0 : i32
    %c0_i32_0 = arith.constant 0 : i32
    %c0_i32_1 = arith.constant 0 : i32
    return %c0_i32, %c0_i32_0 : i32, i32
  }
  func.func @transform_17(%arg0: i32) -> (i32, i32, i32) {
    %c0_i32 = arith.constant 0 : i32
    %c0_i32_0 = arith.constant 0 : i32
    %c0_i32_1 = arith.constant 0 : i32
    return %arg0, %c0_i32, %c0_i32_0 : i32, i32, i32
  }
}

</mosaic_0001>

<llo_original>
// kernel: _decoder_forward.1
$region0: #{_decoder_forward.1}
  #allocation0 [shape = 'u32[]', space=smem, size = 0x4, offset = 0x4, fixed_abs, tag = 'smem constant byte address 0x4 - core index']
  #allocation1 [shape = 'u32[72,128]{1,0:T(1,128)}', space=vmem, size = 0x9000, scoped, tag = 'internal scratch']
  %s0 = inlined_call_operand.vmem [shape: f32[2,8,64], index: 0, kind: input, shape index: {}]
  %s1 = inlined_call_operand.vmem [shape: bf16[64,128], index: 1, kind: input, shape index: {}]
  %s2 = inlined_call_operand.hbm [shape: bf16[2,128,128], index: 2, kind: input, shape index: {}]
  %s3 = inlined_call_operand.hbm [shape: bf16[2,384,128], index: 3, kind: input, shape index: {}]
  %s4 = inlined_call_operand.hbm [shape: f32[128,128], index: 4, kind: input, shape index: {}]
  %s5 = inlined_call_operand.vmem [shape: f32[2,128], index: 5, kind: input, shape index: {}]
  %s6 = inlined_call_operand.vmem [shape: f32[2,128], index: 6, kind: input, shape index: {}]
  %s7 = inlined_call_operand.hbm [shape: f32[2,128], index: 7, kind: input, shape index: {}]
  %s8 = inlined_call_operand.hbm [shape: f32[2,128], index: 8, kind: input, shape index: {}]
  %s9 = inlined_call_operand.hbm [shape: bf16[128,256], index: 9, kind: input, shape index: {}]
  %s10 = inlined_call_operand.hbm [shape: bf16[2,256,256], index: 10, kind: input, shape index: {}]
  %s11 = inlined_call_operand.hbm [shape: bf16[2,768,256], index: 11, kind: input, shape index: {}]
  %s12 = inlined_call_operand.hbm [shape: f32[256,256], index: 12, kind: input, shape index: {}]
  %s13 = inlined_call_operand.vmem [shape: f32[2,256], index: 13, kind: input, shape index: {}]
  %s14 = inlined_call_operand.vmem [shape: f32[2,256], index: 14, kind: input, shape index: {}]
  %s15 = inlined_call_operand.vmem [shape: f32[2,256], index: 15, kind: input, shape index: {}]
  %s16 = inlined_call_operand.vmem [shape: f32[2,256], index: 16, kind: input, shape index: {}]
  %s17 = inlined_call_operand.vmem [shape: f32[2,8,256], index: 17, kind: output, shape index: {}]
  %s18 = sld [smem:[#allocation0]]
  $region137: #{_decoder_forward.1} parent=0
    _
  %s20 = ssub.s32 1, %s18
  %s21 = scalar_select 0, %s20, %s18
  $region1: #{_decoder_forward.1} parent=0
    #allocation2 [shape = 'u8[65536]{0}', space=vmem, size = 0x10000, scoped, tag = 'input window, operand 2, single buffered']
    #allocation3 [shape = 's32[2]{0}', space=sflag, size = 0x8, scoped, tag = 'scoped memory for _decoder_forward.1']
    #allocation4 [shape = 'u8[196608]{0}', space=vmem, size = 0x30000, scoped, tag = 'input window, operand 3, single buffered']
    #allocation5 [shape = 's32[1]{0}', space=sflag, size = 0x4, scoped, tag = 'scoped memory for _decoder_forward.1']
    #allocation6 [shape = 'u8[65536]{0}', space=vmem, size = 0x10000, scoped, tag = 'input window, operand 4, single buffered']
    #allocation7 [shape = 'u8[1024]{0}', space=vmem, size = 0x400, scoped, tag = 'input window, operand 7, single buffered']
    #allocation8 [shape = 's32[1]{0}', space=sflag, size = 0x4, scoped, tag = 'scoped memory for _decoder_forward.1']
    #allocation9 [shape = 'u8[1024]{0}', space=vmem, size = 0x400, scoped, tag = 'input window, operand 8, single buffered']
    #allocation10 [shape = 'u8[65536]{0}', space=vmem, size = 0x10000, scoped, tag = 'input window, operand 9, single buffered']
    #allocation11 [shape = 's32[1]{0}', space=sflag, size = 0x4, scoped, tag = 'scoped memory for _decoder_forward.1']
    #allocation12 [shape = 'u8[262144]{0}', space=vmem, size = 0x40000, scoped, tag = 'input window, operand 10, single buffered']
    #allocation13 [shape = 'u8[786432]{0}', space=vmem, size = 0xc0000, scoped, tag = 'input window, operand 11, single buffered']
    #allocation14 [shape = 's32[1]{0}', space=sflag, size = 0x4, scoped, tag = 'scoped memory for _decoder_forward.1']
    #allocation15 [shape = 'u8[262144]{0}', space=vmem, size = 0x40000, scoped, tag = 'input window, operand 12, single buffered']
    %22 = vsyncpa [#allocation3], 0
    %23 = vsyncpa [#allocation5], 0
    %24 = vsyncpa [#allocation8], 0
    %25 = vsyncpa [#allocation11], 0
    %26 = vsyncpa [#allocation14], 0
    loop: start=0, step=1, limit=4
    $region2: #{_decoder_forward.1} parent=1 // loop_pre_header
      _
    $region3: #{_decoder_forward.1} parent=1 // loop_header
      %s28 = sphi 0, %s32
      %p29 = scmp.ge.s32.totalorder %s28, 4
      %s38 = sphi 0, %s40
      %s41 = sphi 0, %s38
      %s42 = sphi 0, %s41
      %s58 = sphi 0, %s42
      %s62 = sphi 0, %s62
      %s64 = sphi 0, %s62
      %s65 = sphi 0, %s64
      %s79 = sphi 0, %s65
      %s83 = sphi 0, %s83
      %s85 = sphi 0, %s83
      %s86 = sphi 0, %s85
      %s100 = sphi 0, %s86
      %s104 = sphi 0, %s104
      %s106 = sphi 0, %s104
      %s107 = sphi 0, %s106
      %s121 = sphi 0, %s107
      %s125 = sphi 0, %s125
      %s127 = sphi 0, %s125
      %s128 = sphi 0, %s127
      %s142 = sphi 0, %s128
      %s146 = sphi 0, %s146
      %s148 = sphi 0, %s146
      %s149 = sphi 0, %s148
      %s163 = sphi 0, %s149
      %s167 = sphi 0, %s167
      %s169 = sphi 0, %s167
      %s170 = sphi 0, %s169
      %s184 = sphi 0, %s170
      %s188 = sphi 0, %s188
      %s190 = sphi 0, %s188
      %s191 = sphi 0, %s190
      %s205 = sphi 0, %s191
      %s209 = sphi 0, %s209
      %s211 = sphi 0, %s209
      %s212 = sphi 0, %s211
      %s226 = sphi 0, %s212
      %s230 = sphi 0, %s230
      %s232 = sphi 0, %s230
      %s233 = sphi 0, %s232
      %s247 = sphi 0, %s233
      %s251 = sphi 0, %s251
      %s253 = sphi 0, %s251
      %s254 = sphi 0, %s253
      %s268 = sphi 0, %s254
      %s272 = sphi 0, %s272
      %s274 = sphi 0, %s272
      %s275 = sphi 0, %s274
      %s289 = sphi 0, %s275
      %s293 = sphi 0, %s293
      %s295 = sphi 0, %s293
      %s296 = sphi 0, %s295
      %s310 = sphi 0, %s296
      %s314 = sphi 0, %s314
      %s316 = sphi 0, %s314
      %s317 = sphi 0, %s316
      %s331 = sphi 0, %s317
      %s335 = sphi 0, %s335
      %s337 = sphi 0, %s335
      %s338 = sphi 0, %s337
      %s352 = sphi 0, %s338
      %s356 = sphi 0, %s356
      %s358 = sphi 0, %s356
      %s359 = sphi 0, %s358
      %s373 = sphi 0, %s359
      %s377 = sphi 0, %s377
      %s379 = sphi 0, %s377
      %s380 = sphi 0, %s379
      %s394 = sphi 0, %s380
      %s400 = sphi 0, %s402
      %s403 = sphi 0, %s400
      %s404 = sphi 0, %s403
      %s420 = sphi 0, %s404
    $region4: #{_decoder_forward.1} parent=1 // loop_header_branch
      %31 = sbr.rel (%p29) target = $region8
    $region5: #{_decoder_forward.1} parent=1 // loop_body
      %s33 = ssub.s32 %s28, 1
      %s34 = ssub.s32 %s28, 2
      %s35 = sadd.s32 %s28, 1
      %s36 = ssub.s32 %s28, %s35
      %p37 = scmp.eq.s32.totalorder %s36, 0
      %s39 = sadd.s32 %s38, 1
      %s40 = scalar_select %p37, %s38, %s39
      %p43 = pneg %p37
      %p44 = scmp.eq.s32.totalorder %s28, 1
      %p45 = por %p43, %p44
      %p46 = scmp.ne.s32.totalorder %s38, %s41
      %p47 = scmp.eq.s32.totalorder %s28, 0
      %p48 = por %p46, %p47
      %p49 = scmp.ne.s32.totalorder %s38, %s41
      %p50 = scmp.eq.s32.totalorder %s33, 1
      %p51 = por %p49, %p50
      %p52 = scmp.ne.s32.totalorder %s41, %s42
      %p53 = scmp.eq.s32.totalorder %s33, 0
      %p54 = por %p52, %p53
      %p55 = scmp.ne.s32.totalorder %s41, %s42
      %p56 = scmp.eq.s32.totalorder %s34, 1
      %p57 = por %p55, %p56
      %p59 = scmp.ne.s32.totalorder %s42, %s58
      %p60 = scmp.eq.s32.totalorder %s34, 0
      %p61 = por %p59, %p60
      %s63 = sadd.s32 %s62, 1
      %p66 = scmp.eq.s32.totalorder %s28, 1
      %p67 = scmp.ne.s32.totalorder %s62, %s64
      %p68 = scmp.eq.s32.totalorder %s28, 0
      %p69 = por %p67, %p68
      %p70 = scmp.ne.s32.totalorder %s62, %s64
      %p71 = scmp.eq.s32.totalorder %s33, 1
      %p72 = por %p70, %p71
      %p73 = scmp.ne.s32.totalorder %s64, %s65
      %p74 = scmp.eq.s32.totalorder %s33, 0
      %p75 = por %p73, %p74
      %p76 = scmp.ne.s32.totalorder %s64, %s65
      %p77 = scmp.eq.s32.totalorder %s34, 1
      %p78 = por %p76, %p77
      %p80 = scmp.ne.s32.totalorder %s65, %s79
      %p81 = scmp.eq.s32.totalorder %s34, 0
      %p82 = por %p80, %p81
      %s84 = sadd.s32 %s83, 1
      %p87 = scmp.eq.s32.totalorder %s28, 1
      %p88 = scmp.ne.s32.totalorder %s83, %s85
      %p89 = scmp.eq.s32.totalorder %s28, 0
      %p90 = por %p88, %p89
      %p91 = scmp.ne.s32.totalorder %s83, %s85
      %p92 = scmp.eq.s32.totalorder %s33, 1
      %p93 = por %p91, %p92
      %p94 = scmp.ne.s32.totalorder %s85, %s86
      %p95 = scmp.eq.s32.totalorder %s33, 0
      %p96 = por %p94, %p95
      %p97 = scmp.ne.s32.totalorder %s85, %s86
      %p98 = scmp.eq.s32.totalorder %s34, 1
      %p99 = por %p97, %p98
      %p101 = scmp.ne.s32.totalorder %s86, %s100
      %p102 = scmp.eq.s32.totalorder %s34, 0
      %p103 = por %p101, %p102
      %s105 = sadd.s32 %s104, 1
      %p108 = scmp.eq.s32.totalorder %s28, 1
      %p109 = scmp.ne.s32.totalorder %s104, %s106
      %p110 = scmp.eq.s32.totalorder %s28, 0
      %p111 = por %p109, %p110
      %p112 = scmp.ne.s32.totalorder %s104, %s106
      %p113 = scmp.eq.s32.totalorder %s33, 1
      %p114 = por %p112, %p113
      %p115 = scmp.ne.s32.totalorder %s106, %s107
      %p116 = scmp.eq.s32.totalorder %s33, 0
      %p117 = por %p115, %p116
      %p118 = scmp.ne.s32.totalorder %s106, %s107
      %p119 = scmp.eq.s32.totalorder %s34, 1
      %p120 = por %p118, %p119
      %p122 = scmp.ne.s32.totalorder %s107, %s121
      %p123 = scmp.eq.s32.totalorder %s34, 0
      %p124 = por %p122, %p123
      %s126 = sadd.s32 %s125, 1
      %p129 = scmp.eq.s32.totalorder %s28, 1
      %p130 = scmp.ne.s32.totalorder %s125, %s127
      %p131 = scmp.eq.s32.totalorder %s28, 0
      %p132 = por %p130, %p131
      %p133 = scmp.ne.s32.totalorder %s125, %s127
      %p134 = scmp.eq.s32.totalorder %s33, 1
      %p135 = por %p133, %p134
      %p136 = scmp.ne.s32.totalorder %s127, %s128
      %p137 = scmp.eq.s32.totalorder %s33, 0
      %p138 = por %p136, %p137
      %p139 = scmp.ne.s32.totalorder %s127, %s128
      %p140 = scmp.eq.s32.totalorder %s34, 1
      %p141 = por %p139, %p140
      %p143 = scmp.ne.s32.totalorder %s128, %s142
      %p144 = scmp.eq.s32.totalorder %s34, 0
      %p145 = por %p143, %p144
      %s147 = sadd.s32 %s146, 1
      %p150 = scmp.eq.s32.totalorder %s28, 1
      %p151 = scmp.ne.s32.totalorder %s146, %s148
      %p152 = scmp.eq.s32.totalorder %s28, 0
      %p153 = por %p151, %p152
      %p154 = scmp.ne.s32.totalorder %s146, %s148
      %p155 = scmp.eq.s32.totalorder %s33, 1
      %p156 = por %p154, %p155
      %p157 = scmp.ne.s32.totalorder %s148, %s149
      %p158 = scmp.eq.s32.totalorder %s33, 0
      %p159 = por %p157, %p158
      %p160 = scmp.ne.s32.totalorder %s148, %s149
      %p161 = scmp.eq.s32.totalorder %s34, 1
      %p162 = por %p160, %p161
      %p164 = scmp.ne.s32.totalorder %s149, %s163
      %p165 = scmp.eq.s32.totalorder %s34, 0
      %p166 = por %p164, %p165
      %s168 = sadd.s32 %s167, 1
      %p171 = scmp.eq.s32.totalorder %s28, 1
      %p172 = scmp.ne.s32.totalorder %s167, %s169
      %p173 = scmp.eq.s32.totalorder %s28, 0
      %p174 = por %p172, %p173
      %p175 = scmp.ne.s32.totalorder %s167, %s169
      %p176 = scmp.eq.s32.totalorder %s33, 1
      %p177 = por %p175, %p176
      %p178 = scmp.ne.s32.totalorder %s169, %s170
      %p179 = scmp.eq.s32.totalorder %s33, 0
      %p180 = por %p178, %p179
      %p181 = scmp.ne.s32.totalorder %s169, %s170
      %p182 = scmp.eq.s32.totalorder %s34, 1
      %p183 = por %p181, %p182
      %p185 = scmp.ne.s32.totalorder %s170, %s184
      %p186 = scmp.eq.s32.totalorder %s34, 0
      %p187 = por %p185, %p186
      %s189 = sadd.s32 %s188, 1
      %p192 = scmp.eq.s32.totalorder %s28, 1
      %p193 = scmp.ne.s32.totalorder %s188, %s190
      %p194 = scmp.eq.s32.totalorder %s28, 0
      %p195 = por %p193, %p194
      %p196 = scmp.ne.s32.totalorder %s188, %s190
      %p197 = scmp.eq.s32.totalorder %s33, 1
      %p198 = por %p196, %p197
      %p199 = scmp.ne.s32.totalorder %s190, %s191
      %p200 = scmp.eq.s32.totalorder %s33, 0
      %p201 = por %p199, %p200
      %p202 = scmp.ne.s32.totalorder %s190, %s191
      %p203 = scmp.eq.s32.totalorder %s34, 1
      %p204 = por %p202, %p203
      %p206 = scmp.ne.s32.totalorder %s191, %s205
      %p207 = scmp.eq.s32.totalorder %s34, 0
      %p208 = por %p206, %p207
      %s210 = sadd.s32 %s209, 1
      %p213 = scmp.eq.s32.totalorder %s28, 1
      %p214 = scmp.ne.s32.totalorder %s209, %s211
      %p215 = scmp.eq.s32.totalorder %s28, 0
      %p216 = por %p214, %p215
      %p217 = scmp.ne.s32.totalorder %s209, %s211
      %p218 = scmp.eq.s32.totalorder %s33, 1
      %p219 = por %p217, %p218
      %p220 = scmp.ne.s32.totalorder %s211, %s212
      %p221 = scmp.eq.s32.totalorder %s33, 0
      %p222 = por %p220, %p221
      %p223 = scmp.ne.s32.totalorder %s211, %s212
      %p224 = scmp.eq.s32.totalorder %s34, 1
      %p225 = por %p223, %p224
      %p227 = scmp.ne.s32.totalorder %s212, %s226
      %p228 = scmp.eq.s32.totalorder %s34, 0
      %p229 = por %p227, %p228
      %s231 = sadd.s32 %s230, 1
      %p234 = scmp.eq.s32.totalorder %s28, 1
      %p235 = scmp.ne.s32.totalorder %s230, %s232
      %p236 = scmp.eq.s32.totalorder %s28, 0
      %p237 = por %p235, %p236
      %p238 = scmp.ne.s32.totalorder %s230, %s232
      %p239 = scmp.eq.s32.totalorder %s33, 1
      %p240 = por %p238, %p239
      %p241 = scmp.ne.s32.totalorder %s232, %s233
      %p242 = scmp.eq.s32.totalorder %s33, 0
      %p243 = por %p241, %p242
      %p244 = scmp.ne.s32.totalorder %s232, %s233
      %p245 = scmp.eq.s32.totalorder %s34, 1
      %p246 = por %p244, %p245
      %p248 = scmp.ne.s32.totalorder %s233, %s247
      %p249 = scmp.eq.s32.totalorder %s34, 0
      %p250 = por %p248, %p249
      %s252 = sadd.s32 %s251, 1
      %p255 = scmp.eq.s32.totalorder %s28, 1
      %p256 = scmp.ne.s32.totalorder %s251, %s253
      %p257 = scmp.eq.s32.totalorder %s28, 0
      %p258 = por %p256, %p257
      %p259 = scmp.ne.s32.totalorder %s251, %s253
      %p260 = scmp.eq.s32.totalorder %s33, 1
      %p261 = por %p259, %p260
      %p262 = scmp.ne.s32.totalorder %s253, %s254
      %p263 = scmp.eq.s32.totalorder %s33, 0
      %p264 = por %p262, %p263
      %p265 = scmp.ne.s32.totalorder %s253, %s254
      %p266 = scmp.eq.s32.totalorder %s34, 1
      %p267 = por %p265, %p266
      %p269 = scmp.ne.s32.totalorder %s254, %s268
      %p270 = scmp.eq.s32.totalorder %s34, 0
      %p271 = por %p269, %p270
      %s273 = sadd.s32 %s272, 1
      %p276 = scmp.eq.s32.totalorder %s28, 1
      %p277 = scmp.ne.s32.totalorder %s272, %s274
      %p278 = scmp.eq.s32.totalorder %s28, 0
      %p279 = por %p277, %p278
      %p280 = scmp.ne.s32.totalorder %s272, %s274
      %p281 = scmp.eq.s32.totalorder %s33, 1
      %p282 = por %p280, %p281
      %p283 = scmp.ne.s32.totalorder %s274, %s275
      %p284 = scmp.eq.s32.totalorder %s33, 0
      %p285 = por %p283, %p284
      %p286 = scmp.ne.s32.totalorder %s274, %s275
      %p287 = scmp.eq.s32.totalorder %s34, 1
      %p288 = por %p286, %p287
      %p290 = scmp.ne.s32.totalorder %s275, %s289
      %p291 = scmp.eq.s32.totalorder %s34, 0
      %p292 = por %p290, %p291
      %s294 = sadd.s32 %s293, 1
      %p297 = scmp.eq.s32.totalorder %s28, 1
      %p298 = scmp.ne.s32.totalorder %s293, %s295
      %p299 = scmp.eq.s32.totalorder %s28, 0
      %p300 = por %p298, %p299
      %p301 = scmp.ne.s32.totalorder %s293, %s295
      %p302 = scmp.eq.s32.totalorder %s33, 1
      %p303 = por %p301, %p302
      %p304 = scmp.ne.s32.totalorder %s295, %s296
      %p305 = scmp.eq.s32.totalorder %s33, 0
      %p306 = por %p304, %p305
      %p307 = scmp.ne.s32.totalorder %s295, %s296
      %p308 = scmp.eq.s32.totalorder %s34, 1
      %p309 = por %p307, %p308
      %p311 = scmp.ne.s32.totalorder %s296, %s310
      %p312 = scmp.eq.s32.totalorder %s34, 0
      %p313 = por %p311, %p312
      %s315 = sadd.s32 %s314, 1
      %p318 = scmp.eq.s32.totalorder %s28, 1
      %p319 = scmp.ne.s32.totalorder %s314, %s316
      %p320 = scmp.eq.s32.totalorder %s28, 0
      %p321 = por %p319, %p320
      %p322 = scmp.ne.s32.totalorder %s314, %s316
      %p323 = scmp.eq.s32.totalorder %s33, 1
      %p324 = por %p322, %p323
      %p325 = scmp.ne.s32.totalorder %s316, %s317
      %p326 = scmp.eq.s32.totalorder %s33, 0
      %p327 = por %p325, %p326
      %p328 = scmp.ne.s32.totalorder %s316, %s317
      %p329 = scmp.eq.s32.totalorder %s34, 1
      %p330 = por %p328, %p329
      %p332 = scmp.ne.s32.totalorder %s317, %s331
      %p333 = scmp.eq.s32.totalorder %s34, 0
      %p334 = por %p332, %p333
      %s336 = sadd.s32 %s335, 1
      %p339 = scmp.eq.s32.totalorder %s28, 1
      %p340 = scmp.ne.s32.totalorder %s335, %s337
      %p341 = scmp.eq.s32.totalorder %s28, 0
      %p342 = por %p340, %p341
      %p343 = scmp.ne.s32.totalorder %s335, %s337
      %p344 = scmp.eq.s32.totalorder %s33, 1
      %p345 = por %p343, %p344
      %p346 = scmp.ne.s32.totalorder %s337, %s338
      %p347 = scmp.eq.s32.totalorder %s33, 0
      %p348 = por %p346, %p347
      %p349 = scmp.ne.s32.totalorder %s337, %s338
      %p350 = scmp.eq.s32.totalorder %s34, 1
      %p351 = por %p349, %p350
      %p353 = scmp.ne.s32.totalorder %s338, %s352
      %p354 = scmp.eq.s32.totalorder %s34, 0
      %p355 = por %p353, %p354
      %s357 = sadd.s32 %s356, 1
      %p360 = scmp.eq.s32.totalorder %s28, 1
      %p361 = scmp.ne.s32.totalorder %s356, %s358
      %p362 = scmp.eq.s32.totalorder %s28, 0
      %p363 = por %p361, %p362
      %p364 = scmp.ne.s32.totalorder %s356, %s358
      %p365 = scmp.eq.s32.totalorder %s33, 1
      %p366 = por %p364, %p365
      %p367 = scmp.ne.s32.totalorder %s358, %s359
      %p368 = scmp.eq.s32.totalorder %s33, 0
      %p369 = por %p367, %p368
      %p370 = scmp.ne.s32.totalorder %s358, %s359
      %p371 = scmp.eq.s32.totalorder %s34, 1
      %p372 = por %p370, %p371
      %p374 = scmp.ne.s32.totalorder %s359, %s373
      %p375 = scmp.eq.s32.totalorder %s34, 0
      %p376 = por %p374, %p375
      %s378 = sadd.s32 %s377, 1
      %p381 = scmp.eq.s32.totalorder %s28, 1
      %p382 = scmp.ne.s32.totalorder %s377, %s379
      %p383 = scmp.eq.s32.totalorder %s28, 0
      %p384 = por %p382, %p383
      %p385 = scmp.ne.s32.totalorder %s377, %s379
      %p386 = scmp.eq.s32.totalorder %s33, 1
      %p387 = por %p385, %p386
      %p388 = scmp.ne.s32.totalorder %s379, %s380
      %p389 = scmp.eq.s32.totalorder %s33, 0
      %p390 = por %p388, %p389
      %p391 = scmp.ne.s32.totalorder %s379, %s380
      %p392 = scmp.eq.s32.totalorder %s34, 1
      %p393 = por %p391, %p392
      %p395 = scmp.ne.s32.totalorder %s380, %s394
      %p396 = scmp.eq.s32.totalorder %s34, 0
      %p397 = por %p395, %p396
      %s398 = ssub.s32 %s28, %s35
      %p399 = scmp.eq.s32.totalorder %s398, 0
      %s401 = sadd.s32 %s400, 1
      %s402 = scalar_select %p399, %s400, %s401
      %p405 = pneg %p399
      %p406 = scmp.eq.s32.totalorder %s28, 1
      %p407 = por %p405, %p406
      %p408 = scmp.ne.s32.totalorder %s400, %s403
      %p409 = scmp.eq.s32.totalorder %s28, 0
      %p410 = por %p408, %p409
      %p411 = scmp.ne.s32.totalorder %s400, %s403
      %p412 = scmp.eq.s32.totalorder %s33, 1
      %p413 = por %p411, %p412
      %p414 = scmp.ne.s32.totalorder %s403, %s404
      %p415 = scmp.eq.s32.totalorder %s33, 0
      %p416 = por %p414, %p415
      %p417 = scmp.ne.s32.totalorder %s403, %s404
      %p418 = scmp.eq.s32.totalorder %s34, 1
      %p419 = por %p417, %p418
      %p421 = scmp.ne.s32.totalorder %s404, %s420
      %p422 = scmp.eq.s32.totalorder %s34, 0
      %p423 = por %p421, %p422
      %p424 = scmp.le.s32.totalorder 1, %s28
      %p425 = scmp.lt.s32.totalorder %s28, 3
      %p426 = pnand %p424, %p425
      %p427 = pneg %p426
      // Predicated region
      $region9: #{_decoder_forward.1} parent=5 // pred_check
        _
      $region10: #{_decoder_forward.1} parent=5 // pred_check_branch
        %429 = sbr.rel (%p426) target = $region12
      $region11: #{_decoder_forward.1} parent=5 // pred_region
        %s430 = ssub.s32 %s28, 1
        // Predicated region
        $region13: #{_decoder_forward.1} parent=11 // pred_check
          %p431 = pneg %p75
        $region14: #{_decoder_forward.1} parent=11 // pred_check_branch
          %433 = sbr.rel (%p431) target = $region16
        $region15: #{_decoder_forward.1} parent=11 // pred_region
          _
        $region16: #{_decoder_forward.1} parent=11 // pred_fallthru
          _
        // Predicated region
        $region17: #{_decoder_forward.1} parent=11 // pred_check
          %p434 = pneg %p96
        $region18: #{_decoder_forward.1} parent=11 // pred_check_branch
          %436 = sbr.rel (%p434) target = $region20
        $region19: #{_decoder_forward.1} parent=11 // pred_region
          %438 = vsyncadd [#allocation3], 0
          %s439 = sshll.u32 %s2, 4
          %s440 = int_to_ptr.hbm [resolvable:$true] %s439
          %s441 = sshll.u32 [#allocation2], 4
          %s442 = int_to_ptr.vmem [resolvable:$true] %s441
          %447 = dma.hbm_to_vmem [thread:$0]  %s440, 2048, %s442, [#allocation3], 64, 64, 4
        $region20: #{_decoder_forward.1} parent=11 // pred_fallthru
          _
        // Predicated region
        $region21: #{_decoder_forward.1} parent=11 // pred_check
          %p448 = pneg %p117
        $region22: #{_decoder_forward.1} parent=11 // pred_check_branch
          %450 = sbr.rel (%p448) target = $region24
        $region23: #{_decoder_forward.1} parent=11 // pred_region
          %452 = vsyncadd [#allocation5], 0
          %s453 = sshll.u32 %s3, 4
          %s454 = int_to_ptr.hbm [resolvable:$true] %s453
          %s455 = sshll.u32 [#allocation4], 4
          %s456 = int_to_ptr.vmem [resolvable:$true] %s455
          %461 = dma.hbm_to_vmem [thread:$0]  %s454, 6144, %s456, [#allocation5], 64, 64, 4
        $region24: #{_decoder_forward.1} parent=11 // pred_fallthru
          _
        // Predicated region
        $region25: #{_decoder_forward.1} parent=11 // pred_check
          %p462 = pneg %p138
        $region26: #{_decoder_forward.1} parent=11 // pred_check_branch
          %464 = sbr.rel (%p462) target = $region28
        $region27: #{_decoder_forward.1} parent=11 // pred_region
          %466 = vsyncadd [#allocation5], 0
          %s467 = sshll.u32 %s4, 4
          %s468 = int_to_ptr.hbm [resolvable:$true] %s467
          %s469 = sshll.u32 [#allocation6], 4
          %s470 = int_to_ptr.vmem [resolvable:$true] %s469
          %475 = dma.hbm_to_vmem [thread:$0]  %s468, 2048, %s470, [#allocation5], 128, 128, 8
        $region28: #{_decoder_forward.1} parent=11 // pred_fallthru
          _
        // Predicated region
        $region29: #{_decoder_forward.1} parent=11 // pred_check
          %p476 = pneg %p159
        $region30: #{_decoder_forward.1} parent=11 // pred_check_branch
          %478 = sbr.rel (%p476) target = $region32
        $region31: #{_decoder_forward.1} parent=11 // pred_region
          _
        $region32: #{_decoder_forward.1} parent=11 // pred_fallthru
          _
        // Predicated region
        $region33: #{_decoder_forward.1} parent=11 // pred_check
          %p479 = pneg %p180
        $region34: #{_decoder_forward.1} parent=11 // pred_check_branch
          %481 = sbr.rel (%p479) target = $region36
        $region35: #{_decoder_forward.1} parent=11 // pred_region
          _
        $region36: #{_decoder_forward.1} parent=11 // pred_fallthru
          _
        // Predicated region
        $region37: #{_decoder_forward.1} parent=11 // pred_check
          %p482 = pneg %p201
        $region38: #{_decoder_forward.1} parent=11 // pred_check_branch
          %484 = sbr.rel (%p482) target = $region40
        $region39: #{_decoder_forward.1} parent=11 // pred_region
          %486 = vsyncadd [#allocation8], 0
          %s488 = sshll.u32 %s7, 4
          %s489 = int_to_ptr.hbm [resolvable:$true] %s488
          %s490 = sshll.u32 [#allocation7], 4
          %s491 = int_to_ptr.vmem [resolvable:$true] %s490
          %493 = dma.hbm_to_vmem [thread:$0]  %s489, 32, %s491, [#allocation8]
        $region40: #{_decoder_forward.1} parent=11 // pred_fallthru
          _
        // Predicated region
        $region41: #{_decoder_forward.1} parent=11 // pred_check
          %p494 = pneg %p222
        $region42: #{_decoder_forward.1} parent=11 // pred_check_branch
          %496 = sbr.rel (%p494) target = $region44
        $region43: #{_decoder_forward.1} parent=11 // pred_region
          %498 = vsyncadd [#allocation8], 0
          %s500 = sshll.u32 %s8, 4
          %s501 = int_to_ptr.hbm [resolvable:$true] %s500
          %s502 = sshll.u32 [#allocation9], 4
          %s503 = int_to_ptr.vmem [resolvable:$true] %s502
          %505 = dma.hbm_to_vmem [thread:$0]  %s501, 32, %s503, [#allocation8]
        $region44: #{_decoder_forward.1} parent=11 // pred_fallthru
          _
        // Predicated region
        $region45: #{_decoder_forward.1} parent=11 // pred_check
          %p506 = pneg %p243
        $region46: #{_decoder_forward.1} parent=11 // pred_check_branch
          %508 = sbr.rel (%p506) target = $region48
        $region47: #{_decoder_forward.1} parent=11 // pred_region
          %510 = vsyncadd [#allocation11], 0
          %s511 = sshll.u32 %s9, 4
          %s512 = int_to_ptr.hbm [resolvable:$true] %s511
          %s513 = sshll.u32 [#allocation10], 4
          %s514 = int_to_ptr.vmem [resolvable:$true] %s513
          %519 = dma.hbm_to_vmem [thread:$0]  %s512, 2048, %s514, [#allocation11], 128, 128, 8
        $region48: #{_decoder_forward.1} parent=11 // pred_fallthru
          _
        // Predicated region
        $region49: #{_decoder_forward.1} parent=11 // pred_check
          %p520 = pneg %p264
        $region50: #{_decoder_forward.1} parent=11 // pred_check_branch
          %522 = sbr.rel (%p520) target = $region52
        $region51: #{_decoder_forward.1} parent=11 // pred_region
          %524 = vsyncadd [#allocation11], 0
          %s525 = sshll.u32 %s10, 4
          %s526 = int_to_ptr.hbm [resolvable:$true] %s525
          %s527 = sshll.u32 [#allocation12], 4
          %s528 = int_to_ptr.vmem [resolvable:$true] %s527
          %533 = dma.hbm_to_vmem [thread:$0]  %s526, 8192, %s528, [#allocation11], 128, 128, 8
        $region52: #{_decoder_forward.1} parent=11 // pred_fallthru
          _
        // Predicated region
        $region53: #{_decoder_forward.1} parent=11 // pred_check
          %p534 = pneg %p285
        $region54: #{_decoder_forward.1} parent=11 // pred_check_branch
          %536 = sbr.rel (%p534) target = $region56
        $region55: #{_decoder_forward.1} parent=11 // pred_region
          %538 = vsyncadd [#allocation14], 0
          %s539 = sshll.u32 %s11, 4
          %s540 = int_to_ptr.hbm [resolvable:$true] %s539
          %s541 = sshll.u32 [#allocation13], 4
          %s542 = int_to_ptr.vmem [resolvable:$true] %s541
          %547 = dma.hbm_to_vmem [thread:$0]  %s540, 24576, %s542, [#allocation14], 128, 128, 8
        $region56: #{_decoder_forward.1} parent=11 // pred_fallthru
          _
        // Predicated region
        $region57: #{_decoder_forward.1} parent=11 // pred_check
          %p548 = pneg %p306
        $region58: #{_decoder_forward.1} parent=11 // pred_check_branch
          %550 = sbr.rel (%p548) target = $region60
        $region59: #{_decoder_forward.1} parent=11 // pred_region
          %552 = vsyncadd [#allocation14], 0
          %s553 = sshll.u32 %s12, 4
          %s554 = int_to_ptr.hbm [resolvable:$true] %s553
          %s555 = sshll.u32 [#allocation15], 4
          %s556 = int_to_ptr.vmem [resolvable:$true] %s555
          %561 = dma.hbm_to_vmem [thread:$0]  %s554, 8192, %s556, [#allocation14], 256, 256, 16
        $region60: #{_decoder_forward.1} parent=11 // pred_fallthru
          _
        // Predicated region
        $region61: #{_decoder_forward.1} parent=11 // pred_check
          %p562 = pneg %p327
        $region62: #{_decoder_forward.1} parent=11 // pred_check_branch
          %564 = sbr.rel (%p562) target = $region64
        $region63: #{_decoder_forward.1} parent=11 // pred_region
          _
        $region64: #{_decoder_forward.1} parent=11 // pred_fallthru
          _
        // Predicated region
        $region65: #{_decoder_forward.1} parent=11 // pred_check
          %p565 = pneg %p348
        $region66: #{_decoder_forward.1} parent=11 // pred_check_branch
          %567 = sbr.rel (%p565) target = $region68
        $region67: #{_decoder_forward.1} parent=11 // pred_region
          _
        $region68: #{_decoder_forward.1} parent=11 // pred_fallthru
          _
        // Predicated region
        $region69: #{_decoder_forward.1} parent=11 // pred_check
          %p568 = pneg %p369
        $region70: #{_decoder_forward.1} parent=11 // pred_check_branch
          %570 = sbr.rel (%p568) target = $region72
        $region71: #{_decoder_forward.1} parent=11 // pred_region
          _
        $region72: #{_decoder_forward.1} parent=11 // pred_fallthru
          _
        // Predicated region
        $region73: #{_decoder_forward.1} parent=11 // pred_check
          %p571 = pneg %p390
        $region74: #{_decoder_forward.1} parent=11 // pred_check_branch
          %573 = sbr.rel (%p571) target = $region76
        $region75: #{_decoder_forward.1} parent=11 // pred_region
          _
        $region76: #{_decoder_forward.1} parent=11 // pred_fallthru
          _
      $region12: #{_decoder_forward.1} parent=5 // pred_fallthru
        _
      %p574 = scmp.lt.s32.totalorder %s28, 2
      // Predicated region
      $region77: #{_decoder_forward.1} parent=5 // pred_check
        %p575 = pneg %p574
      $region78: #{_decoder_forward.1} parent=5 // pred_check_branch
        %577 = sbr.rel (%p575) target = $region80
      $region79: #{_decoder_forward.1} parent=5 // pred_region
        // Predicated region
        $region81: #{_decoder_forward.1} parent=79 // pred_check
          %p578 = pneg %p48
        $region82: #{_decoder_forward.1} parent=79 // pred_check_branch
          %580 = sbr.rel (%p578) target = $region84
        $region83: #{_decoder_forward.1} parent=79 // pred_region
          %p581 = scmp.lt.s32.totalorder %s28, 1
          %s582 = scalar_select %p581, %s28, 1
          %s583 = smul.addr %s582, 8
          %s584 = scalar_lea.vmem %s0, %s583
        $region84: #{_decoder_forward.1} parent=79 // pred_fallthru
          _
      $region80: #{_decoder_forward.1} parent=5 // pred_fallthru
        _
      %p585 = scmp.le.s32.totalorder 1, %s28
      %p586 = scmp.lt.s32.totalorder %s28, 3
      %p587 = pnand %p585, %p586
      %p588 = pneg %p587
      // Predicated region
      $region85: #{_decoder_forward.1} parent=5 // pred_check
        _
      $region86: #{_decoder_forward.1} parent=5 // pred_check_branch
        %590 = sbr.rel (%p587) target = $region88
      $region87: #{_decoder_forward.1} parent=5 // pred_region
        %s591 = ssub.s32 %s28, 1
        // Predicated region
        $region89: #{_decoder_forward.1} parent=87 // pred_check
          %p592 = pneg %p96
        $region90: #{_decoder_forward.1} parent=87 // pred_check_branch
          %594 = sbr.rel (%p592) target = $region92
        $region91: #{_decoder_forward.1} parent=87 // pred_region
          %596 = dma.done [#allocation3], 2048
        $region92: #{_decoder_forward.1} parent=87 // pred_fallthru
          _
        // Predicated region
        $region93: #{_decoder_forward.1} parent=87 // pred_check
          %p597 = pneg %p117
        $region94: #{_decoder_forward.1} parent=87 // pred_check_branch
          %599 = sbr.rel (%p597) target = $region96
        $region95: #{_decoder_forward.1} parent=87 // pred_region
          %601 = dma.done [#allocation5], 6144
        $region96: #{_decoder_forward.1} parent=87 // pred_fallthru
          _
        // Predicated region
        $region97: #{_decoder_forward.1} parent=87 // pred_check
          %p602 = pneg %p138
        $region98: #{_decoder_forward.1} parent=87 // pred_check_branch
          %604 = sbr.rel (%p602) target = $region100
        $region99: #{_decoder_forward.1} parent=87 // pred_region
          %606 = dma.done [#allocation5], 2048
        $region100: #{_decoder_forward.1} parent=87 // pred_fallthru
          _
        // Predicated region
        $region101: #{_decoder_forward.1} parent=87 // pred_check
          %p607 = pneg %p201
        $region102: #{_decoder_forward.1} parent=87 // pred_check_branch
          %609 = sbr.rel (%p607) target = $region104
        $region103: #{_decoder_forward.1} parent=87 // pred_region
          %611 = dma.done [#allocation8], 32
        $region104: #{_decoder_forward.1} parent=87 // pred_fallthru
          _
        // Predicated region
        $region105: #{_decoder_forward.1} parent=87 // pred_check
          %p612 = pneg %p222
        $region106: #{_decoder_forward.1} parent=87 // pred_check_branch
          %614 = sbr.rel (%p612) target = $region108
        $region107: #{_decoder_forward.1} parent=87 // pred_region
          %616 = dma.done [#allocation8], 32
        $region108: #{_decoder_forward.1} parent=87 // pred_fallthru
          _
        // Predicated region
        $region109: #{_decoder_forward.1} parent=87 // pred_check
          %p617 = pneg %p243
        $region110: #{_decoder_forward.1} parent=87 // pred_check_branch
          %619 = sbr.rel (%p617) target = $region112
        $region111: #{_decoder_forward.1} parent=87 // pred_region
          %621 = dma.done [#allocation11], 2048
        $region112: #{_decoder_forward.1} parent=87 // pred_fallthru
          _
        // Predicated region
        $region113: #{_decoder_forward.1} parent=87 // pred_check
          %p622 = pneg %p264
        $region114: #{_decoder_forward.1} parent=87 // pred_check_branch
          %624 = sbr.rel (%p622) target = $region116
        $region115: #{_decoder_forward.1} parent=87 // pred_region
          %626 = dma.done [#allocation11], 8192
        $region116: #{_decoder_forward.1} parent=87 // pred_fallthru
          _
        // Predicated region
        $region117: #{_decoder_forward.1} parent=87 // pred_check
          %p627 = pneg %p285
        $region118: #{_decoder_forward.1} parent=87 // pred_check_branch
          %629 = sbr.rel (%p627) target = $region120
        $region119: #{_decoder_forward.1} parent=87 // pred_region
          %631 = dma.done [#allocation14], 24576
        $region120: #{_decoder_forward.1} parent=87 // pred_fallthru
          _
        // Predicated region
        $region121: #{_decoder_forward.1} parent=87 // pred_check
          %p632 = pneg %p306
        $region122: #{_decoder_forward.1} parent=87 // pred_check_branch
          %634 = sbr.rel (%p632) target = $region124
        $region123: #{_decoder_forward.1} parent=87 // pred_region
          %636 = dma.done [#allocation14], 8192
        $region124: #{_decoder_forward.1} parent=87 // pred_fallthru
          _
        %p637 = scmp.lt.s32.totalorder %s33, 1
        %s638 = scalar_select %p637, %s33, 1
        %s639 = smul.addr %s638, 8
        %s640 = scalar_lea.vmem %s0, %s639
        %p641 = pneg %p54
        %p642 = pneg %p51
        %p643 = pneg %p75
        %p644 = pneg %p72
        %p645 = pneg %p96
        %p646 = pneg %p93
        %p647 = pneg %p117
        %p648 = pneg %p114
        %p649 = pneg %p138
        %p650 = pneg %p135
        %p651 = pneg %p159
        %p652 = pneg %p156
        %p653 = pneg %p180
        %p654 = pneg %p177
        %p655 = pneg %p201
        %p656 = pneg %p198
        %p657 = pneg %p222
        %p658 = pneg %p219
        %p659 = pneg %p243
        %p660 = pneg %p240
        %p661 = pneg %p264
        %p662 = pneg %p261
        %p663 = pneg %p285
        %p664 = pneg %p282
        %p665 = pneg %p306
        %p666 = pneg %p303
        %p667 = pneg %p327
        %p668 = pneg %p324
        %p669 = pneg %p348
        %p670 = pneg %p345
        %p671 = pneg %p369
        %p672 = pneg %p366
        %p673 = pneg %p390
        %p674 = pneg %p387
        %p675 = pneg %p416
        %p676 = pneg %p413
        %p677 = scmp.lt.s32.totalorder %s33, 1
        %s678 = scalar_select %p677, %s33, 1
        %s679 = smul.addr %s678, 2
        %s680 = smul.addr %s679, 8
        %s681 = scalar_lea.vmem %s17, %s680
        %p682 = scmp.lt.s32.totalorder %s33, 1
        %s683 = scalar_select %p682, %s33, 1
        %s684 = smul.addr %s683, 8
        %s685 = scalar_lea.vmem %s0, %s684
        %p686 = scmp.lt.s32.totalorder %s33, 1
        %s687 = scalar_select %p686, %s33, 1
        %s688 = smul.addr %s687, 2
        %s689 = smul.addr %s688, 8
        %s690 = scalar_lea.vmem %s17, %s689
        %v692 = vld [vmem:[%s685] sm:$0xff]
        %v693 = vpack.c.bf16 %v692, %v692
        %v694 = vld [vmem:[%s1] sm:$0xf]
        %v695 = vld [vmem:[%s1 + $0x4] sm:$0xf]
        %v696 = vld [vmem:[%s1 + $0x8] sm:$0xf]
        %v697 = vld [vmem:[%s1 + $0xc] sm:$0xf]
        %v698 = vld [vmem:[%s1 + $0x10] sm:$0xf]
        %v699 = vld [vmem:[%s1 + $0x14] sm:$0xf]
        %v700 = vld [vmem:[%s1 + $0x18] sm:$0xf]
        %v701 = vld [vmem:[%s1 + $0x1c] sm:$0xf]
        %v710 = vunpack.c.l.b16 %v694
        %v711 = vunpack.c.l.b16 %v695
        %v712 = vunpack.c.l.b16 %v696
        %v713 = vunpack.c.l.b16 %v697
        %v714 = vunpack.c.l.b16 %v698
        %v715 = vunpack.c.l.b16 %v699
        %v716 = vunpack.c.l.b16 %v700
        %v717 = vunpack.c.l.b16 %v701
        %v718 = vpack.c.b16 %v711, %v710
        %v719 = vpack.c.b16 %v713, %v712
        %v720 = vpack.c.b16 %v715, %v714
        %v721 = vpack.c.b16 %v717, %v716
        %vm726 = vcmask 523264
        %v728 = vsel %vm726, %v693, 0
        %730 = vmatpush.bf16.msra.mxu0 0
        %731 = vmatpush.bf16.msra.mxu0 0
        %732 = vmatpush.bf16.msra.mxu0 0
        %733 = vmatpush.bf16.msra.mxu0 0
        %734 = vmatpush.bf16.msra.mxu0 %v721
        %735 = vmatpush.bf16.msra.mxu0 %v720
        %736 = vmatpush.bf16.msra.mxu0 %v719
        %737 = vmatpush.bf16.msra.mxu0 %v718
        %738 = vmatmul.bf16.gmra.mxu0 %v728
        %v739 = vpop.f32.mrf.mxu0
        %v740 = vadd.f32 0.0, %v739
        %v741 = vpop.f32.mrf.mxu0
        %742 = vdwg.mxu0
        %v743 = vld [vmem:[#allocation6] sm:$0xff]
        %v744 = vld [vmem:[#allocation6 + $0x8] sm:$0xff]
        %v745 = vld [vmem:[#allocation6 + $0x10] sm:$0xff]
        %v746 = vld [vmem:[#allocation6 + $0x18] sm:$0xff]
        %v747 = vld [vmem:[#allocation6 + $0x20] sm:$0xff]
        %v748 = vld [vmem:[#allocation6 + $0x28] sm:$0xff]
        %v749 = vld [vmem:[#allocation6 + $0x30] sm:$0xff]
        %v750 = vld [vmem:[#allocation6 + $0x38] sm:$0xff]
        %v751 = vld [vmem:[#allocation6 + $0x40] sm:$0xff]
        %v752 = vld [vmem:[#allocation6 + $0x48] sm:$0xff]
        %v753 = vld [vmem:[#allocation6 + $0x50] sm:$0xff]
        %v754 = vld [vmem:[#allocation6 + $0x58] sm:$0xff]
        %v755 = vld [vmem:[#allocation6 + $0x60] sm:$0xff]
        %v756 = vld [vmem:[#allocation6 + $0x68] sm:$0xff]
        %v757 = vld [vmem:[#allocation6 + $0x70] sm:$0xff]
        %v758 = vld [vmem:[#allocation6 + $0x78] sm:$0xff]
        %v759 = vlaneseq
        %v760 = vshrl.u32 %v759, 7
        %vm761 = vcmp.ge.s32.totalorder %v760, 1
        %vm762 = vcmp.lt.s32.totalorder %v760, 9
        %vm763 = vmand %vm761, %vm762
        %vm764 = vcmp.ge.s32.totalorder %v760, 4294967295
        %vm765 = vcmp.lt.s32.totalorder %v760, 7
        %vm766 = vmand %vm764, %vm765
        %v767 = vld [vmem:[%s5] sm:$0x1]
        %v768 = vld [vmem:[%s6] sm:$0x1]
        %v769 = vld [vmem:[#allocation7] sm:$0x1]
        %v770 = vld [vmem:[#allocation9] sm:$0x1]
        %v771 = vpack.c.bf16 %v740, %v740
        %v772 = vld [vmem:[#allocation2] sm:$0xf]
        %v773 = vld [vmem:[#allocation2 + $0x4] sm:$0xf]
        %v774 = vld [vmem:[#allocation2 + $0x8] sm:$0xf]
        %v775 = vld [vmem:[#allocation2 + $0xc] sm:$0xf]
        %v776 = vld [vmem:[#allocation2 + $0x10] sm:$0xf]
        %v777 = vld [vmem:[#allocation2 + $0x14] sm:$0xf]
        %v778 = vld [vmem:[#allocation2 + $0x18] sm:$0xf]
        %v779 = vld [vmem:[#allocation2 + $0x1c] sm:$0xf]
        %v780 = vld [vmem:[#allocation2 + $0x20] sm:$0xf]
        %v781 = vld [vmem:[#allocation2 + $0x24] sm:$0xf]
        %v782 = vld [vmem:[#allocation2 + $0x28] sm:$0xf]
        %v783 = vld [vmem:[#allocation2 + $0x2c] sm:$0xf]
        %v784 = vld [vmem:[#allocation2 + $0x30] sm:$0xf]
        %v785 = vld [vmem:[#allocation2 + $0x34] sm:$0xf]
        %v786 = vld [vmem:[#allocation2 + $0x38] sm:$0xf]
        %v787 = vld [vmem:[#allocation2 + $0x3c] sm:$0xf]
        %v788 = vperm.slane %v767, 0
        %v805 = vunpack.c.l.b16 %v772
        %v806 = vunpack.c.l.b16 %v773
        %v807 = vunpack.c.l.b16 %v774
        %v808 = vunpack.c.l.b16 %v775
        %v809 = vunpack.c.l.b16 %v776
        %v810 = vunpack.c.l.b16 %v777
        %v811 = vunpack.c.l.b16 %v778
        %v812 = vunpack.c.l.b16 %v779
        %v813 = vunpack.c.l.b16 %v780
        %v814 = vunpack.c.l.b16 %v781
        %v815 = vunpack.c.l.b16 %v782
        %v816 = vunpack.c.l.b16 %v783
        %v817 = vunpack.c.l.b16 %v784
        %v818 = vunpack.c.l.b16 %v785
        %v819 = vunpack.c.l.b16 %v786
        %v820 = vunpack.c.l.b16 %v787
        %v821 = vpack.c.b16 %v806, %v805
        %v822 = vpack.c.b16 %v808, %v807
        %v823 = vpack.c.b16 %v810, %v809
        %v824 = vpack.c.b16 %v812, %v811
        %v825 = vpack.c.b16 %v814, %v813
        %v826 = vpack.c.b16 %v816, %v815
        %v827 = vpack.c.b16 %v818, %v817
        %v828 = vpack.c.b16 %v820, %v819
        %837 = vmatpush.bf16.msra.mxu0 %v828
        %838 = vmatpush.bf16.msra.mxu0 %v827
        %839 = vmatpush.bf16.msra.mxu0 %v826
        %840 = vmatpush.bf16.msra.mxu0 %v825
        %841 = vmatpush.bf16.msra.mxu0 %v824
        %842 = vmatpush.bf16.msra.mxu0 %v823
        %843 = vmatpush.bf16.msra.mxu0 %v822
        %844 = vmatpush.bf16.msra.mxu0 %v821
        %845 = vmatmul.bf16.gmra.mxu0 %v771
        %v846 = vpop.f32.mrf.mxu0
        %v847 = vadd.f32 %v788, %v846
        %v848 = vpop.f32.mrf.mxu0
        %849 = vdwg.mxu0
        %v850 = vrot.slane %v847, 7
        %v851 = vsel %vm763, %v850, 0.0
        %v852 = vrot.slane %v847, 1
        %v853 = vsel %vm766, %v852, 0.0
        %v854 = vpack.c.bf16 %v851, %v851
        %v855 = vpack.c.bf16 %v847, %v847
        %v856 = vpack.c.bf16 %v853, %v853
        %v857 = vld [vmem:[#allocation4] sm:$0xf]
        %v858 = vld [vmem:[#allocation4 + $0x4] sm:$0xf]
        %v859 = vld [vmem:[#allocation4 + $0x8] sm:$0xf]
        %v860 = vld [vmem:[#allocation4 + $0xc] sm:$0xf]
        %v861 = vld [vmem:[#allocation4 + $0x10] sm:$0xf]
        %v862 = vld [vmem:[#allocation4 + $0x14] sm:$0xf]
        %v863 = vld [vmem:[#allocation4 + $0x18] sm:$0xf]
        %v864 = vld [vmem:[#allocation4 + $0x1c] sm:$0xf]
        %v865 = vld [vmem:[#allocation4 + $0x20] sm:$0xf]
        %v866 = vld [vmem:[#allocation4 + $0x24] sm:$0xf]
        %v867 = vld [vmem:[#allocation4 + $0x28] sm:$0xf]
        %v868 = vld [vmem:[#allocation4 + $0x2c] sm:$0xf]
        %v869 = vld [vmem:[#allocation4 + $0x30] sm:$0xf]
        %v870 = vld [vmem:[#allocation4 + $0x34] sm:$0xf]
        %v871 = vld [vmem:[#allocation4 + $0x38] sm:$0xf]
        %v872 = vld [vmem:[#allocation4 + $0x3c] sm:$0xf]
        %v873 = vld [vmem:[#allocation4 + $0x40] sm:$0xf]
        %v874 = vld [vmem:[#allocation4 + $0x44] sm:$0xf]
        %v875 = vld [vmem:[#allocation4 + $0x48] sm:$0xf]
        %v876 = vld [vmem:[#allocation4 + $0x4c] sm:$0xf]
        %v877 = vld [vmem:[#allocation4 + $0x50] sm:$0xf]
        %v878 = vld [vmem:[#allocation4 + $0x54] sm:$0xf]
        %v879 = vld [vmem:[#allocation4 + $0x58] sm:$0xf]
        %v880 = vld [vmem:[#allocation4 + $0x5c] sm:$0xf]
        %v881 = vld [vmem:[#allocation4 + $0x60] sm:$0xf]
        %v882 = vld [vmem:[#allocation4 + $0x64] sm:$0xf]
        %v883 = vld [vmem:[#allocation4 + $0x68] sm:$0xf]
        %v884 = vld [vmem:[#allocation4 + $0x6c] sm:$0xf]
        %v885 = vld [vmem:[#allocation4 + $0x70] sm:$0xf]
        %v886 = vld [vmem:[#allocation4 + $0x74] sm:$0xf]
        %v887 = vld [vmem:[#allocation4 + $0x78] sm:$0xf]
        %v888 = vld [vmem:[#allocation4 + $0x7c] sm:$0xf]
        %v889 = vld [vmem:[#allocation4 + $0x80] sm:$0xf]
        %v890 = vld [vmem:[#allocation4 + $0x84] sm:$0xf]
        %v891 = vld [vmem:[#allocation4 + $0x88] sm:$0xf]
        %v892 = vld [vmem:[#allocation4 + $0x8c] sm:$0xf]
        %v893 = vld [vmem:[#allocation4 + $0x90] sm:$0xf]
        %v894 = vld [vmem:[#allocation4 + $0x94] sm:$0xf]
        %v895 = vld [vmem:[#allocation4 + $0x98] sm:$0xf]
        %v896 = vld [vmem:[#allocation4 + $0x9c] sm:$0xf]
        %v897 = vld [vmem:[#allocation4 + $0xa0] sm:$0xf]
        %v898 = vld [vmem:[#allocation4 + $0xa4] sm:$0xf]
        %v899 = vld [vmem:[#allocation4 + $0xa8] sm:$0xf]
        %v900 = vld [vmem:[#allocation4 + $0xac] sm:$0xf]
        %v901 = vld [vmem:[#allocation4 + $0xb0] sm:$0xf]
        %v902 = vld [vmem:[#allocation4 + $0xb4] sm:$0xf]
        %v903 = vld [vmem:[#allocation4 + $0xb8] sm:$0xf]
        %v904 = vld [vmem:[#allocation4 + $0xbc] sm:$0xf]
        %v905 = vperm.slane %v768, 0
        %v954 = vunpack.c.l.b16 %v857
        %v955 = vunpack.c.l.b16 %v858
        %v956 = vunpack.c.l.b16 %v859
        %v957 = vunpack.c.l.b16 %v860
        %v958 = vunpack.c.l.b16 %v861
        %v959 = vunpack.c.l.b16 %v862
        %v960 = vunpack.c.l.b16 %v863
        %v961 = vunpack.c.l.b16 %v864
        %v962 = vunpack.c.l.b16 %v865
        %v963 = vunpack.c.l.b16 %v866
        %v964 = vunpack.c.l.b16 %v867
        %v965 = vunpack.c.l.b16 %v868
        %v966 = vunpack.c.l.b16 %v869
        %v967 = vunpack.c.l.b16 %v870
        %v968 = vunpack.c.l.b16 %v871
        %v969 = vunpack.c.l.b16 %v872
        %v970 = vunpack.c.l.b16 %v873
        %v971 = vunpack.c.l.b16 %v874
        %v972 = vunpack.c.l.b16 %v875
        %v973 = vunpack.c.l.b16 %v876
        %v974 = vunpack.c.l.b16 %v877
        %v975 = vunpack.c.l.b16 %v878
        %v976 = vunpack.c.l.b16 %v879
        %v977 = vunpack.c.l.b16 %v880
        %v978 = vunpack.c.l.b16 %v881
        %v979 = vunpack.c.l.b16 %v882
        %v980 = vunpack.c.l.b16 %v883
        %v981 = vunpack.c.l.b16 %v884
        %v982 = vunpack.c.l.b16 %v885
        %v983 = vunpack.c.l.b16 %v886
        %v984 = vunpack.c.l.b16 %v887
        %v985 = vunpack.c.l.b16 %v888
        %v986 = vunpack.c.l.b16 %v889
        %v987 = vunpack.c.l.b16 %v890
        %v988 = vunpack.c.l.b16 %v891
        %v989 = vunpack.c.l.b16 %v892
        %v990 = vunpack.c.l.b16 %v893
        %v991 = vunpack.c.l.b16 %v894
        %v992 = vunpack.c.l.b16 %v895
        %v993 = vunpack.c.l.b16 %v896
        %v994 = vunpack.c.l.b16 %v897
        %v995 = vunpack.c.l.b16 %v898
        %v996 = vunpack.c.l.b16 %v899
        %v997 = vunpack.c.l.b16 %v900
        %v998 = vunpack.c.l.b16 %v901
        %v999 = vunpack.c.l.b16 %v902
        %v1000 = vunpack.c.l.b16 %v903
        %v1001 = vunpack.c.l.b16 %v904
        %v1002 = vpack.c.b16 %v955, %v954
        %v1003 = vpack.c.b16 %v957, %v956
        %v1004 = vpack.c.b16 %v959, %v958
        %v1005 = vpack.c.b16 %v961, %v960
        %v1006 = vpack.c.b16 %v963, %v962
        %v1007 = vpack.c.b16 %v965, %v964
        %v1008 = vpack.c.b16 %v967, %v966
        %v1009 = vpack.c.b16 %v969, %v968
        %v1010 = vpack.c.b16 %v971, %v970
        %v1011 = vpack.c.b16 %v973, %v972
        %v1012 = vpack.c.b16 %v975, %v974
        %v1013 = vpack.c.b16 %v977, %v976
        %v1014 = vpack.c.b16 %v979, %v978
        %v1015 = vpack.c.b16 %v981, %v980
        %v1016 = vpack.c.b16 %v983, %v982
        %v1017 = vpack.c.b16 %v985, %v984
        %v1018 = vpack.c.b16 %v987, %v986
        %v1019 = vpack.c.b16 %v989, %v988
        %v1020 = vpack.c.b16 %v991, %v990
        %v1021 = vpack.c.b16 %v993, %v992
        %v1022 = vpack.c.b16 %v995, %v994
        %v1023 = vpack.c.b16 %v997, %v996
        %v1024 = vpack.c.b16 %v999, %v998
        %v1025 = vpack.c.b16 %v1001, %v1000
        %1050 = vmatpush.bf16.msra.mxu0 %v1009
        %1051 = vmatpush.bf16.msra.mxu0 %v1008
        %1052 = vmatpush.bf16.msra.mxu0 %v1007
        %1053 = vmatpush.bf16.msra.mxu0 %v1006
        %1054 = vmatpush.bf16.msra.mxu0 %v1005
        %1055 = vmatpush.bf16.msra.mxu0 %v1004
        %1056 = vmatpush.bf16.msra.mxu0 %v1003
        %1057 = vmatpush.bf16.msra.mxu0 %v1002
        %1058 = vmatmul.bf16.gmra.mxu0 %v854
        %v1059 = vpop.f32.mrf.mxu0
        %v1060 = vadd.f32 %v905, %v1059
        %v1061 = vpop.f32.mrf.mxu0
        %1062 = vdwg.mxu0
        %1063 = vmatpush.bf16.msra.mxu0 %v1017
        %1064 = vmatpush.bf16.msra.mxu0 %v1016
        %1065 = vmatpush.bf16.msra.mxu0 %v1015
        %1066 = vmatpush.bf16.msra.mxu0 %v1014
        %1067 = vmatpush.bf16.msra.mxu0 %v1013
        %1068 = vmatpush.bf16.msra.mxu0 %v1012
        %1069 = vmatpush.bf16.msra.mxu0 %v1011
        %1070 = vmatpush.bf16.msra.mxu0 %v1010
        %1071 = vmatmul.bf16.gmra.mxu0 %v855
        %v1072 = vpop.f32.mrf.mxu0
        %v1073 = vadd.f32 %v1060, %v1072
        %v1074 = vpop.f32.mrf.mxu0
        %1075 = vdwg.mxu0
        %1076 = vmatpush.bf16.msra.mxu0 %v1025
        %1077 = vmatpush.bf16.msra.mxu0 %v1024
        %1078 = vmatpush.bf16.msra.mxu0 %v1023
        %1079 = vmatpush.bf16.msra.mxu0 %v1022
        %1080 = vmatpush.bf16.msra.mxu0 %v1021
        %1081 = vmatpush.bf16.msra.mxu0 %v1020
        %1082 = vmatpush.bf16.msra.mxu0 %v1019
        %1083 = vmatpush.bf16.msra.mxu0 %v1018
        %1084 = vmatmul.bf16.gmra.mxu0 %v856
        %v1085 = vpop.f32.mrf.mxu0
        %v1086 = vadd.f32 %v1073, %v1085
        %v1087 = vpop.f32.mrf.mxu0
        %1088 = vdwg.mxu0
        %v1089 = vmul.f32 %v1086, %v1086
        %v1090 = vand.u32 %v758, 4294901760
        %1091 = vmatpush.msra.mxu0 %v1090
        %v1092 = vand.u32 %v757, 4294901760
        %1093 = vmatpush.msra.mxu0 %v1092
        %v1094 = vand.u32 %v756, 4294901760
        %1095 = vmatpush.msra.mxu0 %v1094
        %v1096 = vand.u32 %v755, 4294901760
        %1097 = vmatpush.msra.mxu0 %v1096
        %v1098 = vand.u32 %v754, 4294901760
        %1099 = vmatpush.msra.mxu0 %v1098
        %v1100 = vand.u32 %v753, 4294901760
        %1101 = vmatpush.msra.mxu0 %v1100
        %v1102 = vand.u32 %v752, 4294901760
        %1103 = vmatpush.msra.mxu0 %v1102
        %v1104 = vand.u32 %v751, 4294901760
        %1105 = vmatpush.msra.mxu0 %v1104
        %v1106 = vand.u32 %v750, 4294901760
        %1107 = vmatpush.msra.mxu0 %v1106
        %v1108 = vand.u32 %v749, 4294901760
        %1109 = vmatpush.msra.mxu0 %v1108
        %v1110 = vand.u32 %v748, 4294901760
        %1111 = vmatpush.msra.mxu0 %v1110
        %v1112 = vand.u32 %v747, 4294901760
        %1113 = vmatpush.msra.mxu0 %v1112
        %v1114 = vand.u32 %v746, 4294901760
        %1115 = vmatpush.msra.mxu0 %v1114
        %v1116 = vand.u32 %v745, 4294901760
        %1117 = vmatpush.msra.mxu0 %v1116
        %v1118 = vand.u32 %v744, 4294901760
        %1119 = vmatpush.msra.mxu0 %v1118
        %v1120 = vand.u32 %v743, 4294901760
        %1121 = vmatpush.msra.mxu0 %v1120
        %v1122 = vand.u32 %v1086, 4294901760
        %v1123 = vsub.f32 %v1086, %v1122
        %v1124 = vand.u32 %v1123, 4294901760
        %v1125 = vsub.f32 %v1123, %v1124
        %v1126 = vand.u32 %v1125, 4294901760
        %1127 = vmatmul.f32.gmra.mxu0 %v1126
        %v1128 = vpop.f32.mrf.mxu0
        %v1129 = vadd.f32 0.0, %v1128
        %v1130 = vand.u32 %v1089, 4294901760
        %v1131 = vsub.f32 %v1089, %v1130
        %v1132 = vand.u32 %v1131, 4294901760
        %v1133 = vsub.f32 %v1131, %v1132
        %v1134 = vand.u32 %v1133, 4294901760
        %1135 = vmatmul.f32.gmra.mxu0 %v1134
        %v1136 = vpop.f32.mrf.mxu0
        %v1137 = vadd.f32 0.0, %v1136
        %1138 = vdwg.mxu0
        %v1139 = vand.u32 %v758, 4294901760
        %v1140 = vsub.f32 %v758, %v1139
        %v1141 = vand.u32 %v1140, 4294901760
        %v1142 = vsub.f32 %v1140, %v1141
        %v1143 = vand.u32 %v1142, 4294901760
        %1144 = vmatpush.msra.mxu0 %v1143
        %v1145 = vand.u32 %v757, 4294901760
        %v1146 = vsub.f32 %v757, %v1145
        %v1147 = vand.u32 %v1146, 4294901760
        %v1148 = vsub.f32 %v1146, %v1147
        %v1149 = vand.u32 %v1148, 4294901760
        %1150 = vmatpush.msra.mxu0 %v1149
        %v1151 = vand.u32 %v756, 4294901760
        %v1152 = vsub.f32 %v756, %v1151
        %v1153 = vand.u32 %v1152, 4294901760
        %v1154 = vsub.f32 %v1152, %v1153
        %v1155 = vand.u32 %v1154, 4294901760
        %1156 = vmatpush.msra.mxu0 %v1155
        %v1157 = vand.u32 %v755, 4294901760
        %v1158 = vsub.f32 %v755, %v1157
        %v1159 = vand.u32 %v1158, 4294901760
        %v1160 = vsub.f32 %v1158, %v1159
        %v1161 = vand.u32 %v1160, 4294901760
        %1162 = vmatpush.msra.mxu0 %v1161
        %v1163 = vand.u32 %v754, 4294901760
        %v1164 = vsub.f32 %v754, %v1163
        %v1165 = vand.u32 %v1164, 4294901760
        %v1166 = vsub.f32 %v1164, %v1165
        %v1167 = vand.u32 %v1166, 4294901760
        %1168 = vmatpush.msra.mxu0 %v1167
        %v1169 = vand.u32 %v753, 4294901760
        %v1170 = vsub.f32 %v753, %v1169
        %v1171 = vand.u32 %v1170, 4294901760
        %v1172 = vsub.f32 %v1170, %v1171
        %v1173 = vand.u32 %v1172, 4294901760
        %1174 = vmatpush.msra.mxu0 %v1173
        %v1175 = vand.u32 %v752, 4294901760
        %v1176 = vsub.f32 %v752, %v1175
        %v1177 = vand.u32 %v1176, 4294901760
        %v1178 = vsub.f32 %v1176, %v1177
        %v1179 = vand.u32 %v1178, 4294901760
        %1180 = vmatpush.msra.mxu0 %v1179
        %v1181 = vand.u32 %v751, 4294901760
        %v1182 = vsub.f32 %v751, %v1181
        %v1183 = vand.u32 %v1182, 4294901760
        %v1184 = vsub.f32 %v1182, %v1183
        %v1185 = vand.u32 %v1184, 4294901760
        %1186 = vmatpush.msra.mxu0 %v1185
        %v1187 = vand.u32 %v750, 4294901760
        %v1188 = vsub.f32 %v750, %v1187
        %v1189 = vand.u32 %v1188, 4294901760
        %v1190 = vsub.f32 %v1188, %v1189
        %v1191 = vand.u32 %v1190, 4294901760
        %1192 = vmatpush.msra.mxu0 %v1191
        %v1193 = vand.u32 %v749, 4294901760
        %v1194 = vsub.f32 %v749, %v1193
        %v1195 = vand.u32 %v1194, 4294901760
        %v1196 = vsub.f32 %v1194, %v1195
        %v1197 = vand.u32 %v1196, 4294901760
        %1198 = vmatpush.msra.mxu0 %v1197
        %v1199 = vand.u32 %v748, 4294901760
        %v1200 = vsub.f32 %v748, %v1199
        %v1201 = vand.u32 %v1200, 4294901760
        %v1202 = vsub.f32 %v1200, %v1201
        %v1203 = vand.u32 %v1202, 4294901760
        %1204 = vmatpush.msra.mxu0 %v1203
        %v1205 = vand.u32 %v747, 4294901760
        %v1206 = vsub.f32 %v747, %v1205
        %v1207 = vand.u32 %v1206, 4294901760
        %v1208 = vsub.f32 %v1206, %v1207
        %v1209 = vand.u32 %v1208, 4294901760
        %1210 = vmatpush.msra.mxu0 %v1209
        %v1211 = vand.u32 %v746, 4294901760
        %v1212 = vsub.f32 %v746, %v1211
        %v1213 = vand.u32 %v1212, 4294901760
        %v1214 = vsub.f32 %v1212, %v1213
        %v1215 = vand.u32 %v1214, 4294901760
        %1216 = vmatpush.msra.mxu0 %v1215
        %v1217 = vand.u32 %v745, 4294901760
        %v1218 = vsub.f32 %v745, %v1217
        %v1219 = vand.u32 %v1218, 4294901760
        %v1220 = vsub.f32 %v1218, %v1219
        %v1221 = vand.u32 %v1220, 4294901760
        %1222 = vmatpush.msra.mxu0 %v1221
        %v1223 = vand.u32 %v744, 4294901760
        %v1224 = vsub.f32 %v744, %v1223
        %v1225 = vand.u32 %v1224, 4294901760
        %v1226 = vsub.f32 %v1224, %v1225
        %v1227 = vand.u32 %v1226, 4294901760
        %1228 = vmatpush.msra.mxu0 %v1227
        %v1229 = vand.u32 %v743, 4294901760
        %v1230 = vsub.f32 %v743, %v1229
        %v1231 = vand.u32 %v1230, 4294901760
        %v1232 = vsub.f32 %v1230, %v1231
        %v1233 = vand.u32 %v1232, 4294901760
        %1234 = vmatpush.msra.mxu0 %v1233
        %v1235 = vand.u32 %v1086, 4294901760
        %1236 = vmatmul.f32.gmra.mxu0 %v1235
        %v1237 = vpop.f32.mrf.mxu0
        %v1238 = vadd.f32 %v1129, %v1237
        %v1239 = vand.u32 %v1089, 4294901760
        %1240 = vmatmul.f32.gmra.mxu0 %v1239
        %v1241 = vpop.f32.mrf.mxu0
        %v1242 = vadd.f32 %v1137, %v1241
        %1243 = vdwg.mxu0
        %v1244 = vand.u32 %v758, 4294901760
        %v1245 = vsub.f32 %v758, %v1244
        %1246 = vmatpush.msra.mxu0 %v1245
        %v1247 = vand.u32 %v757, 4294901760
        %v1248 = vsub.f32 %v757, %v1247
        %1249 = vmatpush.msra.mxu0 %v1248
        %v1250 = vand.u32 %v756, 4294901760
        %v1251 = vsub.f32 %v756, %v1250
        %1252 = vmatpush.msra.mxu0 %v1251
        %v1253 = vand.u32 %v755, 4294901760
        %v1254 = vsub.f32 %v755, %v1253
        %1255 = vmatpush.msra.mxu0 %v1254
        %v1256 = vand.u32 %v754, 4294901760
        %v1257 = vsub.f32 %v754, %v1256
        %1258 = vmatpush.msra.mxu0 %v1257
        %v1259 = vand.u32 %v753, 4294901760
        %v1260 = vsub.f32 %v753, %v1259
        %1261 = vmatpush.msra.mxu0 %v1260
        %v1262 = vand.u32 %v752, 4294901760
        %v1263 = vsub.f32 %v752, %v1262
        %1264 = vmatpush.msra.mxu0 %v1263
        %v1265 = vand.u32 %v751, 4294901760
        %v1266 = vsub.f32 %v751, %v1265
        %1267 = vmatpush.msra.mxu0 %v1266
        %v1268 = vand.u32 %v750, 4294901760
        %v1269 = vsub.f32 %v750, %v1268
        %1270 = vmatpush.msra.mxu0 %v1269
        %v1271 = vand.u32 %v749, 4294901760
        %v1272 = vsub.f32 %v749, %v1271
        %1273 = vmatpush.msra.mxu0 %v1272
        %v1274 = vand.u32 %v748, 4294901760
        %v1275 = vsub.f32 %v748, %v1274
        %1276 = vmatpush.msra.mxu0 %v1275
        %v1277 = vand.u32 %v747, 4294901760
        %v1278 = vsub.f32 %v747, %v1277
        %1279 = vmatpush.msra.mxu0 %v1278
        %v1280 = vand.u32 %v746, 4294901760
        %v1281 = vsub.f32 %v746, %v1280
        %1282 = vmatpush.msra.mxu0 %v1281
        %v1283 = vand.u32 %v745, 4294901760
        %v1284 = vsub.f32 %v745, %v1283
        %1285 = vmatpush.msra.mxu0 %v1284
        %v1286 = vand.u32 %v744, 4294901760
        %v1287 = vsub.f32 %v744, %v1286
        %1288 = vmatpush.msra.mxu0 %v1287
        %v1289 = vand.u32 %v743, 4294901760
        %v1290 = vsub.f32 %v743, %v1289
        %1291 = vmatpush.msra.mxu0 %v1290
        %v1292 = vand.u32 %v1086, 4294901760
        %v1293 = vsub.f32 %v1086, %v1292
        %1294 = vmatmul.f32.gmra.mxu0 %v1293
        %v1295 = vpop.f32.mrf.mxu0
        %v1296 = vadd.f32 %v1238, %v1295
        %v1297 = vand.u32 %v1089, 4294901760
        %v1298 = vsub.f32 %v1089, %v1297
        %1299 = vmatmul.f32.gmra.mxu0 %v1298
        %v1300 = vpop.f32.mrf.mxu0
        %v1301 = vadd.f32 %v1242, %v1300
        %1302 = vdwg.mxu0
        %v1303 = vand.u32 %v758, 4294901760
        %1304 = vmatpush.msra.mxu0 %v1303
        %v1305 = vand.u32 %v757, 4294901760
        %1306 = vmatpush.msra.mxu0 %v1305
        %v1307 = vand.u32 %v756, 4294901760
        %1308 = vmatpush.msra.mxu0 %v1307
        %v1309 = vand.u32 %v755, 4294901760
        %1310 = vmatpush.msra.mxu0 %v1309
        %v1311 = vand.u32 %v754, 4294901760
        %1312 = vmatpush.msra.mxu0 %v1311
        %v1313 = vand.u32 %v753, 4294901760
        %1314 = vmatpush.msra.mxu0 %v1313
        %v1315 = vand.u32 %v752, 4294901760
        %1316 = vmatpush.msra.mxu0 %v1315
        %v1317 = vand.u32 %v751, 4294901760
        %1318 = vmatpush.msra.mxu0 %v1317
        %v1319 = vand.u32 %v750, 4294901760
        %1320 = vmatpush.msra.mxu0 %v1319
        %v1321 = vand.u32 %v749, 4294901760
        %1322 = vmatpush.msra.mxu0 %v1321
        %v1323 = vand.u32 %v748, 4294901760
        %1324 = vmatpush.msra.mxu0 %v1323
        %v1325 = vand.u32 %v747, 4294901760
        %1326 = vmatpush.msra.mxu0 %v1325
        %v1327 = vand.u32 %v746, 4294901760
        %1328 = vmatpush.msra.mxu0 %v1327
        %v1329 = vand.u32 %v745, 4294901760
        %1330 = vmatpush.msra.mxu0 %v1329
        %v1331 = vand.u32 %v744, 4294901760
        %1332 = vmatpush.msra.mxu0 %v1331
        %v1333 = vand.u32 %v743, 4294901760
        %1334 = vmatpush.msra.mxu0 %v1333
        %v1335 = vand.u32 %v1086, 4294901760
        %v1336 = vsub.f32 %v1086, %v1335
        %v1337 = vand.u32 %v1336, 4294901760
        %1338 = vmatmul.f32.gmra.mxu0 %v1337
        %v1339 = vpop.f32.mrf.mxu0
        %v1340 = vadd.f32 %v1296, %v1339
        %v1341 = vand.u32 %v1089, 4294901760
        %v1342 = vsub.f32 %v1089, %v1341
        %v1343 = vand.u32 %v1342, 4294901760
        %1344 = vmatmul.f32.gmra.mxu0 %v1343
        %v1345 = vpop.f32.mrf.mxu0
        %v1346 = vadd.f32 %v1301, %v1345
        %1347 = vdwg.mxu0
        %v1348 = vand.u32 %v758, 4294901760
        %v1349 = vsub.f32 %v758, %v1348
        %v1350 = vand.u32 %v1349, 4294901760
        %1351 = vmatpush.msra.mxu0 %v1350
        %v1352 = vand.u32 %v757, 4294901760
        %v1353 = vsub.f32 %v757, %v1352
        %v1354 = vand.u32 %v1353, 4294901760
        %1355 = vmatpush.msra.mxu0 %v1354
        %v1356 = vand.u32 %v756, 4294901760
        %v1357 = vsub.f32 %v756, %v1356
        %v1358 = vand.u32 %v1357, 4294901760
        %1359 = vmatpush.msra.mxu0 %v1358
        %v1360 = vand.u32 %v755, 4294901760
        %v1361 = vsub.f32 %v755, %v1360
        %v1362 = vand.u32 %v1361, 4294901760
        %1363 = vmatpush.msra.mxu0 %v1362
        %v1364 = vand.u32 %v754, 4294901760
        %v1365 = vsub.f32 %v754, %v1364
        %v1366 = vand.u32 %v1365, 4294901760
        %1367 = vmatpush.msra.mxu0 %v1366
        %v1368 = vand.u32 %v753, 4294901760
        %v1369 = vsub.f32 %v753, %v1368
        %v1370 = vand.u32 %v1369, 4294901760
        %1371 = vmatpush.msra.mxu0 %v1370
        %v1372 = vand.u32 %v752, 4294901760
        %v1373 = vsub.f32 %v752, %v1372
        %v1374 = vand.u32 %v1373, 4294901760
        %1375 = vmatpush.msra.mxu0 %v1374
        %v1376 = vand.u32 %v751, 4294901760
        %v1377 = vsub.f32 %v751, %v1376
        %v1378 = vand.u32 %v1377, 4294901760
        %1379 = vmatpush.msra.mxu0 %v1378
        %v1380 = vand.u32 %v750, 4294901760
        %v1381 = vsub.f32 %v750, %v1380
        %v1382 = vand.u32 %v1381, 4294901760
        %1383 = vmatpush.msra.mxu0 %v1382
        %v1384 = vand.u32 %v749, 4294901760
        %v1385 = vsub.f32 %v749, %v1384
        %v1386 = vand.u32 %v1385, 4294901760
        %1387 = vmatpush.msra.mxu0 %v1386
        %v1388 = vand.u32 %v748, 4294901760
        %v1389 = vsub.f32 %v748, %v1388
        %v1390 = vand.u32 %v1389, 4294901760
        %1391 = vmatpush.msra.mxu0 %v1390
        %v1392 = vand.u32 %v747, 4294901760
        %v1393 = vsub.f32 %v747, %v1392
        %v1394 = vand.u32 %v1393, 4294901760
        %1395 = vmatpush.msra.mxu0 %v1394
        %v1396 = vand.u32 %v746, 4294901760
        %v1397 = vsub.f32 %v746, %v1396
        %v1398 = vand.u32 %v1397, 4294901760
        %1399 = vmatpush.msra.mxu0 %v1398
        %v1400 = vand.u32 %v745, 4294901760
        %v1401 = vsub.f32 %v745, %v1400
        %v1402 = vand.u32 %v1401, 4294901760
        %1403 = vmatpush.msra.mxu0 %v1402
        %v1404 = vand.u32 %v744, 4294901760
        %v1405 = vsub.f32 %v744, %v1404
        %v1406 = vand.u32 %v1405, 4294901760
        %1407 = vmatpush.msra.mxu0 %v1406
        %v1408 = vand.u32 %v743, 4294901760
        %v1409 = vsub.f32 %v743, %v1408
        %v1410 = vand.u32 %v1409, 4294901760
        %1411 = vmatpush.msra.mxu0 %v1410
        %v1412 = vand.u32 %v1086, 4294901760
        %1413 = vmatmul.f32.gmra.mxu0 %v1412
        %v1414 = vpop.f32.mrf.mxu0
        %v1415 = vadd.f32 %v1340, %v1414
        %v1416 = vand.u32 %v1089, 4294901760
        %1417 = vmatmul.f32.gmra.mxu0 %v1416
        %v1418 = vpop.f32.mrf.mxu0
        %v1419 = vadd.f32 %v1346, %v1418
        %1420 = vdwg.mxu0
        %v1421 = vand.u32 %v758, 4294901760
        %1422 = vmatpush.msra.mxu0 %v1421
        %v1423 = vand.u32 %v757, 4294901760
        %1424 = vmatpush.msra.mxu0 %v1423
        %v1425 = vand.u32 %v756, 4294901760
        %1426 = vmatpush.msra.mxu0 %v1425
        %v1427 = vand.u32 %v755, 4294901760
        %1428 = vmatpush.msra.mxu0 %v1427
        %v1429 = vand.u32 %v754, 4294901760
        %1430 = vmatpush.msra.mxu0 %v1429
        %v1431 = vand.u32 %v753, 4294901760
        %1432 = vmatpush.msra.mxu0 %v1431
        %v1433 = vand.u32 %v752, 4294901760
        %1434 = vmatpush.msra.mxu0 %v1433
        %v1435 = vand.u32 %v751, 4294901760
        %1436 = vmatpush.msra.mxu0 %v1435
        %v1437 = vand.u32 %v750, 4294901760
        %1438 = vmatpush.msra.mxu0 %v1437
        %v1439 = vand.u32 %v749, 4294901760
        %1440 = vmatpush.msra.mxu0 %v1439
        %v1441 = vand.u32 %v748, 4294901760
        %1442 = vmatpush.msra.mxu0 %v1441
        %v1443 = vand.u32 %v747, 4294901760
        %1444 = vmatpush.msra.mxu0 %v1443
        %v1445 = vand.u32 %v746, 4294901760
        %1446 = vmatpush.msra.mxu0 %v1445
        %v1447 = vand.u32 %v745, 4294901760
        %1448 = vmatpush.msra.mxu0 %v1447
        %v1449 = vand.u32 %v744, 4294901760
        %1450 = vmatpush.msra.mxu0 %v1449
        %v1451 = vand.u32 %v743, 4294901760
        %1452 = vmatpush.msra.mxu0 %v1451
        %v1453 = vand.u32 %v1086, 4294901760
        %1454 = vmatmul.f32.gmra.mxu0 %v1453
        %v1455 = vpop.f32.mrf.mxu0
        %v1456 = vadd.f32 %v1415, %v1455
        %v1457 = vand.u32 %v1089, 4294901760
        %1458 = vmatmul.f32.gmra.mxu0 %v1457
        %v1459 = vpop.f32.mrf.mxu0
        %v1460 = vadd.f32 %v1419, %v1459
        %1461 = vdwg.mxu0
        %v1462 = vmul.f32 %v1456, %v1456
        %v1463 = vsub.f32 %v1460, %v1462
        %v1464 = vmax.f32 %v1463, 0.0
        %v1465 = vsub.f32 %v1086, %v1456
        %v1466 = vadd.f32 %v1464, 1e-05
        %v1467 = vrsqrt.pop %v1466
        %v1468 = vmul.f32 %v1467, %v1466
        %v1469 = vmul.f32 %v1468, %v1467
        %v1470 = vmul.f32 0.5, %v1469
        %v1471 = vsub.f32 1.5, %v1470
        %v1472 = vmul.f32 %v1467, %v1471
        %vm1473 = vweird.f32 %v1466
        %vm1474 = vweird.f32 %v1467
        %vm1475 = vmor %vm1473, %vm1474
        %v1476 = vsel %vm1475, %v1467, %v1472
        %v1477 = vmul.f32 %v1465, %v1476
        %v1478 = vperm.slane %v769, 0
        %v1479 = vmul.f32 %v1477, %v1478
        %v1480 = vperm.slane %v770, 0
        %v1481 = vadd.f32 %v1479, %v1480
        %vm1482 = vcmp.gt.f32.partialorder %v1481, 0.0
        %v1483 = vmul.f32 %v1481, 0.2
        %v1484 = vsel %vm1482, %v1481, %v1483
        %v1485 = vadd.f32 %v740, %v1484
        %v1486 = vld [vmem:[%s5 + $0x1] sm:$0x1]
        %v1487 = vld [vmem:[%s6 + $0x1] sm:$0x1]
        %v1488 = vld [vmem:[#allocation7 + $0x1] sm:$0x1]
        %v1489 = vld [vmem:[#allocation9 + $0x1] sm:$0x1]
        %v1490 = vpack.c.bf16 %v1485, %v1485
        %s1491 = scalar_lea.vmem [#allocation2], 64
        %v1492 = vld [vmem:[%s1491] sm:$0xf]
        %v1493 = vld [vmem:[%s1491 + $0x4] sm:$0xf]
        %v1494 = vld [vmem:[%s1491 + $0x8] sm:$0xf]
        %v1495 = vld [vmem:[%s1491 + $0xc] sm:$0xf]
        %v1496 = vld [vmem:[%s1491 + $0x10] sm:$0xf]
        %v1497 = vld [vmem:[%s1491 + $0x14] sm:$0xf]
        %v1498 = vld [vmem:[%s1491 + $0x18] sm:$0xf]
        %v1499 = vld [vmem:[%s1491 + $0x1c] sm:$0xf]
        %v1500 = vld [vmem:[%s1491 + $0x20] sm:$0xf]
        %v1501 = vld [vmem:[%s1491 + $0x24] sm:$0xf]
        %v1502 = vld [vmem:[%s1491 + $0x28] sm:$0xf]
        %v1503 = vld [vmem:[%s1491 + $0x2c] sm:$0xf]
        %v1504 = vld [vmem:[%s1491 + $0x30] sm:$0xf]
        %v1505 = vld [vmem:[%s1491 + $0x34] sm:$0xf]
        %v1506 = vld [vmem:[%s1491 + $0x38] sm:$0xf]
        %v1507 = vld [vmem:[%s1491 + $0x3c] sm:$0xf]
        %v1508 = vperm.slane %v1486, 0
        %v1525 = vunpack.c.l.b16 %v1492
        %v1526 = vunpack.c.l.b16 %v1493
        %v1527 = vunpack.c.l.b16 %v1494
        %v1528 = vunpack.c.l.b16 %v1495
        %v1529 = vunpack.c.l.b16 %v1496
        %v1530 = vunpack.c.l.b16 %v1497
        %v1531 = vunpack.c.l.b16 %v1498
        %v1532 = vunpack.c.l.b16 %v1499
        %v1533 = vunpack.c.l.b16 %v1500
        %v1534 = vunpack.c.l.b16 %v1501
        %v1535 = vunpack.c.l.b16 %v1502
        %v1536 = vunpack.c.l.b16 %v1503
        %v1537 = vunpack.c.l.b16 %v1504
        %v1538 = vunpack.c.l.b16 %v1505
        %v1539 = vunpack.c.l.b16 %v1506
        %v1540 = vunpack.c.l.b16 %v1507
        %v1541 = vpack.c.b16 %v1526, %v1525
        %v1542 = vpack.c.b16 %v1528, %v1527
        %v1543 = vpack.c.b16 %v1530, %v1529
        %v1544 = vpack.c.b16 %v1532, %v1531
        %v1545 = vpack.c.b16 %v1534, %v1533
        %v1546 = vpack.c.b16 %v1536, %v1535
        %v1547 = vpack.c.b16 %v1538, %v1537
        %v1548 = vpack.c.b16 %v1540, %v1539
        %1557 = vmatpush.bf16.msra.mxu0 %v1548
        %1558 = vmatpush.bf16.msra.mxu0 %v1547
        %1559 = vmatpush.bf16.msra.mxu0 %v1546
        %1560 = vmatpush.bf16.msra.mxu0 %v1545
        %1561 = vmatpush.bf16.msra.mxu0 %v1544
        %1562 = vmatpush.bf16.msra.mxu0 %v1543
        %1563 = vmatpush.bf16.msra.mxu0 %v1542
        %1564 = vmatpush.bf16.msra.mxu0 %v1541
        %1565 = vmatmul.bf16.gmra.mxu0 %v1490
        %v1566 = vpop.f32.mrf.mxu0
        %v1567 = vadd.f32 %v1508, %v1566
        %v1568 = vpop.f32.mrf.mxu0
        %1569 = vdwg.mxu0
        %v1570 = vrot.slane %v1567, 7
        %v1571 = vsel %vm763, %v1570, 0.0
        %v1572 = vrot.slane %v1567, 1
        %v1573 = vsel %vm766, %v1572, 0.0
        %v1574 = vpack.c.bf16 %v1571, %v1571
        %v1575 = vpack.c.bf16 %v1567, %v1567
        %v1576 = vpack.c.bf16 %v1573, %v1573
        %s1577 = scalar_lea.vmem [#allocation4], 192
        %v1578 = vld [vmem:[%s1577] sm:$0xf]
        %v1579 = vld [vmem:[%s1577 + $0x4] sm:$0xf]
        %v1580 = vld [vmem:[%s1577 + $0x8] sm:$0xf]
        %v1581 = vld [vmem:[%s1577 + $0xc] sm:$0xf]
        %v1582 = vld [vmem:[%s1577 + $0x10] sm:$0xf]
        %v1583 = vld [vmem:[%s1577 + $0x14] sm:$0xf]
        %v1584 = vld [vmem:[%s1577 + $0x18] sm:$0xf]
        %v1585 = vld [vmem:[%s1577 + $0x1c] sm:$0xf]
        %v1586 = vld [vmem:[%s1577 + $0x20] sm:$0xf]
        %v1587 = vld [vmem:[%s1577 + $0x24] sm:$0xf]
        %v1588 = vld [vmem:[%s1577 + $0x28] sm:$0xf]
        %v1589 = vld [vmem:[%s1577 + $0x2c] sm:$0xf]
        %v1590 = vld [vmem:[%s1577 + $0x30] sm:$0xf]
        %v1591 = vld [vmem:[%s1577 + $0x34] sm:$0xf]
        %v1592 = vld [vmem:[%s1577 + $0x38] sm:$0xf]
        %v1593 = vld [vmem:[%s1577 + $0x3c] sm:$0xf]
        %v1594 = vld [vmem:[%s1577 + $0x40] sm:$0xf]
        %v1595 = vld [vmem:[%s1577 + $0x44] sm:$0xf]
        %v1596 = vld [vmem:[%s1577 + $0x48] sm:$0xf]
        %v1597 = vld [vmem:[%s1577 + $0x4c] sm:$0xf]
        %v1598 = vld [vmem:[%s1577 + $0x50] sm:$0xf]
        %v1599 = vld [vmem:[%s1577 + $0x54] sm:$0xf]
        %v1600 = vld [vmem:[%s1577 + $0x58] sm:$0xf]
        %v1601 = vld [vmem:[%s1577 + $0x5c] sm:$0xf]
        %v1602 = vld [vmem:[%s1577 + $0x60] sm:$0xf]
        %v1603 = vld [vmem:[%s1577 + $0x64] sm:$0xf]
        %v1604 = vld [vmem:[%s1577 + $0x68] sm:$0xf]
        %v1605 = vld [vmem:[%s1577 + $0x6c] sm:$0xf]
        %v1606 = vld [vmem:[%s1577 + $0x70] sm:$0xf]
        %v1607 = vld [vmem:[%s1577 + $0x74] sm:$0xf]
        %v1608 = vld [vmem:[%s1577 + $0x78] sm:$0xf]
        %v1609 = vld [vmem:[%s1577 + $0x7c] sm:$0xf]
        %v1610 = vld [vmem:[%s1577 + $0x80] sm:$0xf]
        %v1611 = vld [vmem:[%s1577 + $0x84] sm:$0xf]
        %v1612 = vld [vmem:[%s1577 + $0x88] sm:$0xf]
        %v1613 = vld [vmem:[%s1577 + $0x8c] sm:$0xf]
        %v1614 = vld [vmem:[%s1577 + $0x90] sm:$0xf]
        %v1615 = vld [vmem:[%s1577 + $0x94] sm:$0xf]
        %v1616 = vld [vmem:[%s1577 + $0x98] sm:$0xf]
        %v1617 = vld [vmem:[%s1577 + $0x9c] sm:$0xf]
        %v1618 = vld [vmem:[%s1577 + $0xa0] sm:$0xf]
        %v1619 = vld [vmem:[%s1577 + $0xa4] sm:$0xf]
        %v1620 = vld [vmem:[%s1577 + $0xa8] sm:$0xf]
        %v1621 = vld [vmem:[%s1577 + $0xac] sm:$0xf]
        %v1622 = vld [vmem:[%s1577 + $0xb0] sm:$0xf]
        %v1623 = vld [vmem:[%s1577 + $0xb4] sm:$0xf]
        %v1624 = vld [vmem:[%s1577 + $0xb8] sm:$0xf]
        %v1625 = vld [vmem:[%s1577 + $0xbc] sm:$0xf]
        %v1626 = vperm.slane %v1487, 0
        %v1675 = vunpack.c.l.b16 %v1578
        %v1676 = vunpack.c.l.b16 %v1579
        %v1677 = vunpack.c.l.b16 %v1580
        %v1678 = vunpack.c.l.b16 %v1581
        %v1679 = vunpack.c.l.b16 %v1582
        %v1680 = vunpack.c.l.b16 %v1583
        %v1681 = vunpack.c.l.b16 %v1584
        %v1682 = vunpack.c.l.b16 %v1585
        %v1683 = vunpack.c.l.b16 %v1586
        %v1684 = vunpack.c.l.b16 %v1587
        %v1685 = vunpack.c.l.b16 %v1588
        %v1686 = vunpack.c.l.b16 %v1589
        %v1687 = vunpack.c.l.b16 %v1590
        %v1688 = vunpack.c.l.b16 %v1591
        %v1689 = vunpack.c.l.b16 %v1592
        %v1690 = vunpack.c.l.b16 %v1593
        %v1691 = vunpack.c.l.b16 %v1594
        %v1692 = vunpack.c.l.b16 %v1595
        %v1693 = vunpack.c.l.b16 %v1596
        %v1694 = vunpack.c.l.b16 %v1597
        %v1695 = vunpack.c.l.b16 %v1598
        %v1696 = vunpack.c.l.b16 %v1599
        %v1697 = vunpack.c.l.b16 %v1600
        %v1698 = vunpack.c.l.b16 %v1601
        %v1699 = vunpack.c.l.b16 %v1602
        %v1700 = vunpack.c.l.b16 %v1603
        %v1701 = vunpack.c.l.b16 %v1604
        %v1702 = vunpack.c.l.b16 %v1605
        %v1703 = vunpack.c.l.b16 %v1606
        %v1704 = vunpack.c.l.b16 %v1607
        %v1705 = vunpack.c.l.b16 %v1608
        %v1706 = vunpack.c.l.b16 %v1609
        %v1707 = vunpack.c.l.b16 %v1610
        %v1708 = vunpack.c.l.b16 %v1611
        %v1709 = vunpack.c.l.b16 %v1612
        %v1710 = vunpack.c.l.b16 %v1613
        %v1711 = vunpack.c.l.b16 %v1614
        %v1712 = vunpack.c.l.b16 %v1615
        %v1713 = vunpack.c.l.b16 %v1616
        %v1714 = vunpack.c.l.b16 %v1617
        %v1715 = vunpack.c.l.b16 %v1618
        %v1716 = vunpack.c.l.b16 %v1619
        %v1717 = vunpack.c.l.b16 %v1620
        %v1718 = vunpack.c.l.b16 %v1621
        %v1719 = vunpack.c.l.b16 %v1622
        %v1720 = vunpack.c.l.b16 %v1623
        %v1721 = vunpack.c.l.b16 %v1624
        %v1722 = vunpack.c.l.b16 %v1625
        %v1723 = vpack.c.b16 %v1676, %v1675
        %v1724 = vpack.c.b16 %v1678, %v1677
        %v1725 = vpack.c.b16 %v1680, %v1679
        %v1726 = vpack.c.b16 %v1682, %v1681
        %v1727 = vpack.c.b16 %v1684, %v1683
        %v1728 = vpack.c.b16 %v1686, %v1685
        %v1729 = vpack.c.b16 %v1688, %v1687
        %v1730 = vpack.c.b16 %v1690, %v1689
        %v1731 = vpack.c.b16 %v1692, %v1691
        %v1732 = vpack.c.b16 %v1694, %v1693
        %v1733 = vpack.c.b16 %v1696, %v1695
        %v1734 = vpack.c.b16 %v1698, %v1697
        %v1735 = vpack.c.b16 %v1700, %v1699
        %v1736 = vpack.c.b16 %v1702, %v1701
        %v1737 = vpack.c.b16 %v1704, %v1703
        %v1738 = vpack.c.b16 %v1706, %v1705
        %v1739 = vpack.c.b16 %v1708, %v1707
        %v1740 = vpack.c.b16 %v1710, %v1709
        %v1741 = vpack.c.b16 %v1712, %v1711
        %v1742 = vpack.c.b16 %v1714, %v1713
        %v1743 = vpack.c.b16 %v1716, %v1715
        %v1744 = vpack.c.b16 %v1718, %v1717
        %v1745 = vpack.c.b16 %v1720, %v1719
        %v1746 = vpack.c.b16 %v1722, %v1721
        %1771 = vmatpush.bf16.msra.mxu0 %v1730
        %1772 = vmatpush.bf16.msra.mxu0 %v1729
        %1773 = vmatpush.bf16.msra.mxu0 %v1728
        %1774 = vmatpush.bf16.msra.mxu0 %v1727
        %1775 = vmatpush.bf16.msra.mxu0 %v1726
        %1776 = vmatpush.bf16.msra.mxu0 %v1725
        %1777 = vmatpush.bf16.msra.mxu0 %v1724
        %1778 = vmatpush.bf16.msra.mxu0 %v1723
        %1779 = vmatmul.bf16.gmra.mxu0 %v1574
        %v1780 = vpop.f32.mrf.mxu0
        %v1781 = vadd.f32 %v1626, %v1780
        %v1782 = vpop.f32.mrf.mxu0
        %1783 = vdwg.mxu0
        %1784 = vmatpush.bf16.msra.mxu0 %v1738
        %1785 = vmatpush.bf16.msra.mxu0 %v1737
        %1786 = vmatpush.bf16.msra.mxu0 %v1736
        %1787 = vmatpush.bf16.msra.mxu0 %v1735
        %1788 = vmatpush.bf16.msra.mxu0 %v1734
        %1789 = vmatpush.bf16.msra.mxu0 %v1733
        %1790 = vmatpush.bf16.msra.mxu0 %v1732
        %1791 = vmatpush.bf16.msra.mxu0 %v1731
        %1792 = vmatmul.bf16.gmra.mxu0 %v1575
        %v1793 = vpop.f32.mrf.mxu0
        %v1794 = vadd.f32 %v1781, %v1793
        %v1795 = vpop.f32.mrf.mxu0
        %1796 = vdwg.mxu0
        %1797 = vmatpush.bf16.msra.mxu0 %v1746
        %1798 = vmatpush.bf16.msra.mxu0 %v1745
        %1799 = vmatpush.bf16.msra.mxu0 %v1744
        %1800 = vmatpush.bf16.msra.mxu0 %v1743
        %1801 = vmatpush.bf16.msra.mxu0 %v1742
        %1802 = vmatpush.bf16.msra.mxu0 %v1741
        %1803 = vmatpush.bf16.msra.mxu0 %v1740
        %1804 = vmatpush.bf16.msra.mxu0 %v1739
        %1805 = vmatmul.bf16.gmra.mxu0 %v1576
        %v1806 = vpop.f32.mrf.mxu0
        %v1807 = vadd.f32 %v1794, %v1806
        %v1808 = vpop.f32.mrf.mxu0
        %1809 = vdwg.mxu0
        %v1810 = vmul.f32 %v1807, %v1807
        %v1811 = vand.u32 %v758, 4294901760
        %1812 = vmatpush.msra.mxu0 %v1811
        %v1813 = vand.u32 %v757, 4294901760
        %1814 = vmatpush.msra.mxu0 %v1813
        %v1815 = vand.u32 %v756, 4294901760
        %1816 = vmatpush.msra.mxu0 %v1815
        %v1817 = vand.u32 %v755, 4294901760
        %1818 = vmatpush.msra.mxu0 %v1817
        %v1819 = vand.u32 %v754, 4294901760
        %1820 = vmatpush.msra.mxu0 %v1819
        %v1821 = vand.u32 %v753, 4294901760
        %1822 = vmatpush.msra.mxu0 %v1821
        %v1823 = vand.u32 %v752, 4294901760
        %1824 = vmatpush.msra.mxu0 %v1823
        %v1825 = vand.u32 %v751, 4294901760
        %1826 = vmatpush.msra.mxu0 %v1825
        %v1827 = vand.u32 %v750, 4294901760
        %1828 = vmatpush.msra.mxu0 %v1827
        %v1829 = vand.u32 %v749, 4294901760
        %1830 = vmatpush.msra.mxu0 %v1829
        %v1831 = vand.u32 %v748, 4294901760
        %1832 = vmatpush.msra.mxu0 %v1831
        %v1833 = vand.u32 %v747, 4294901760
        %1834 = vmatpush.msra.mxu0 %v1833
        %v1835 = vand.u32 %v746, 4294901760
        %1836 = vmatpush.msra.mxu0 %v1835
        %v1837 = vand.u32 %v745, 4294901760
        %1838 = vmatpush.msra.mxu0 %v1837
        %v1839 = vand.u32 %v744, 4294901760
        %1840 = vmatpush.msra.mxu0 %v1839
        %v1841 = vand.u32 %v743, 4294901760
        %1842 = vmatpush.msra.mxu0 %v1841
        %v1843 = vand.u32 %v1807, 4294901760
        %v1844 = vsub.f32 %v1807, %v1843
        %v1845 = vand.u32 %v1844, 4294901760
        %v1846 = vsub.f32 %v1844, %v1845
        %v1847 = vand.u32 %v1846, 4294901760
        %1848 = vmatmul.f32.gmra.mxu0 %v1847
        %v1849 = vpop.f32.mrf.mxu0
        %v1850 = vadd.f32 0.0, %v1849
        %v1851 = vand.u32 %v1810, 4294901760
        %v1852 = vsub.f32 %v1810, %v1851
        %v1853 = vand.u32 %v1852, 4294901760
        %v1854 = vsub.f32 %v1852, %v1853
        %v1855 = vand.u32 %v1854, 4294901760
        %1856 = vmatmul.f32.gmra.mxu0 %v1855
        %v1857 = vpop.f32.mrf.mxu0
        %v1858 = vadd.f32 0.0, %v1857
        %1859 = vdwg.mxu0
        %v1860 = vand.u32 %v758, 4294901760
        %v1861 = vsub.f32 %v758, %v1860
        %v1862 = vand.u32 %v1861, 4294901760
        %v1863 = vsub.f32 %v1861, %v1862
        %v1864 = vand.u32 %v1863, 4294901760
        %1865 = vmatpush.msra.mxu0 %v1864
        %v1866 = vand.u32 %v757, 4294901760
        %v1867 = vsub.f32 %v757, %v1866
        %v1868 = vand.u32 %v1867, 4294901760
        %v1869 = vsub.f32 %v1867, %v1868
        %v1870 = vand.u32 %v1869, 4294901760
        %1871 = vmatpush.msra.mxu0 %v1870
        %v1872 = vand.u32 %v756, 4294901760
        %v1873 = vsub.f32 %v756, %v1872
        %v1874 = vand.u32 %v1873, 4294901760
        %v1875 = vsub.f32 %v1873, %v1874
        %v1876 = vand.u32 %v1875, 4294901760
        %1877 = vmatpush.msra.mxu0 %v1876
        %v1878 = vand.u32 %v755, 4294901760
        %v1879 = vsub.f32 %v755, %v1878
        %v1880 = vand.u32 %v1879, 4294901760
        %v1881 = vsub.f32 %v1879, %v1880
        %v1882 = vand.u32 %v1881, 4294901760
        %1883 = vmatpush.msra.mxu0 %v1882
        %v1884 = vand.u32 %v754, 4294901760
        %v1885 = vsub.f32 %v754, %v1884
        %v1886 = vand.u32 %v1885, 4294901760
        %v1887 = vsub.f32 %v1885, %v1886
        %v1888 = vand.u32 %v1887, 4294901760
        %1889 = vmatpush.msra.mxu0 %v1888
        %v1890 = vand.u32 %v753, 4294901760
        %v1891 = vsub.f32 %v753, %v1890
        %v1892 = vand.u32 %v1891, 4294901760
        %v1893 = vsub.f32 %v1891, %v1892
        %v1894 = vand.u32 %v1893, 4294901760
        %1895 = vmatpush.msra.mxu0 %v1894
        %v1896 = vand.u32 %v752, 4294901760
        %v1897 = vsub.f32 %v752, %v1896
        %v1898 = vand.u32 %v1897, 4294901760
        %v1899 = vsub.f32 %v1897, %v1898
        %v1900 = vand.u32 %v1899, 4294901760
        %1901 = vmatpush.msra.mxu0 %v1900
        %v1902 = vand.u32 %v751, 4294901760
        %v1903 = vsub.f32 %v751, %v1902
        %v1904 = vand.u32 %v1903, 4294901760
        %v1905 = vsub.f32 %v1903, %v1904
        %v1906 = vand.u32 %v1905, 4294901760
        %1907 = vmatpush.msra.mxu0 %v1906
        %v1908 = vand.u32 %v750, 4294901760
        %v1909 = vsub.f32 %v750, %v1908
        %v1910 = vand.u32 %v1909, 4294901760
        %v1911 = vsub.f32 %v1909, %v1910
        %v1912 = vand.u32 %v1911, 4294901760
        %1913 = vmatpush.msra.mxu0 %v1912
        %v1914 = vand.u32 %v749, 4294901760
        %v1915 = vsub.f32 %v749, %v1914
        %v1916 = vand.u32 %v1915, 4294901760
        %v1917 = vsub.f32 %v1915, %v1916
        %v1918 = vand.u32 %v1917, 4294901760
        %1919 = vmatpush.msra.mxu0 %v1918
        %v1920 = vand.u32 %v748, 4294901760
        %v1921 = vsub.f32 %v748, %v1920
        %v1922 = vand.u32 %v1921, 4294901760
        %v1923 = vsub.f32 %v1921, %v1922
        %v1924 = vand.u32 %v1923, 4294901760
        %1925 = vmatpush.msra.mxu0 %v1924
        %v1926 = vand.u32 %v747, 4294901760
        %v1927 = vsub.f32 %v747, %v1926
        %v1928 = vand.u32 %v1927, 4294901760
        %v1929 = vsub.f32 %v1927, %v1928
        %v1930 = vand.u32 %v1929, 4294901760
        %1931 = vmatpush.msra.mxu0 %v1930
        %v1932 = vand.u32 %v746, 4294901760
        %v1933 = vsub.f32 %v746, %v1932
        %v1934 = vand.u32 %v1933, 4294901760
        %v1935 = vsub.f32 %v1933, %v1934
        %v1936 = vand.u32 %v1935, 4294901760
        %1937 = vmatpush.msra.mxu0 %v1936
        %v1938 = vand.u32 %v745, 4294901760
        %v1939 = vsub.f32 %v745, %v1938
        %v1940 = vand.u32 %v1939, 4294901760
        %v1941 = vsub.f32 %v1939, %v1940
        %v1942 = vand.u32 %v1941, 4294901760
        %1943 = vmatpush.msra.mxu0 %v1942
        %v1944 = vand.u32 %v744, 4294901760
        %v1945 = vsub.f32 %v744, %v1944
        %v1946 = vand.u32 %v1945, 4294901760
        %v1947 = vsub.f32 %v1945, %v1946
        %v1948 = vand.u32 %v1947, 4294901760
        %1949 = vmatpush.msra.mxu0 %v1948
        %v1950 = vand.u32 %v743, 4294901760
        %v1951 = vsub.f32 %v743, %v1950
        %v1952 = vand.u32 %v1951, 4294901760
        %v1953 = vsub.f32 %v1951, %v1952
        %v1954 = vand.u32 %v1953, 4294901760
        %1955 = vmatpush.msra.mxu0 %v1954
        %v1956 = vand.u32 %v1807, 4294901760
        %1957 = vmatmul.f32.gmra.mxu0 %v1956
        %v1958 = vpop.f32.mrf.mxu0
        %v1959 = vadd.f32 %v1850, %v1958
        %v1960 = vand.u32 %v1810, 4294901760
        %1961 = vmatmul.f32.gmra.mxu0 %v1960
        %v1962 = vpop.f32.mrf.mxu0
        %v1963 = vadd.f32 %v1858, %v1962
        %1964 = vdwg.mxu0
        %v1965 = vand.u32 %v758, 4294901760
        %v1966 = vsub.f32 %v758, %v1965
        %1967 = vmatpush.msra.mxu0 %v1966
        %v1968 = vand.u32 %v757, 4294901760
        %v1969 = vsub.f32 %v757, %v1968
        %1970 = vmatpush.msra.mxu0 %v1969
        %v1971 = vand.u32 %v756, 4294901760
        %v1972 = vsub.f32 %v756, %v1971
        %1973 = vmatpush.msra.mxu0 %v1972
        %v1974 = vand.u32 %v755, 4294901760
        %v1975 = vsub.f32 %v755, %v1974
        %1976 = vmatpush.msra.mxu0 %v1975
        %v1977 = vand.u32 %v754, 4294901760
        %v1978 = vsub.f32 %v754, %v1977
        %1979 = vmatpush.msra.mxu0 %v1978
        %v1980 = vand.u32 %v753, 4294901760
        %v1981 = vsub.f32 %v753, %v1980
        %1982 = vmatpush.msra.mxu0 %v1981
        %v1983 = vand.u32 %v752, 4294901760
        %v1984 = vsub.f32 %v752, %v1983
        %1985 = vmatpush.msra.mxu0 %v1984
        %v1986 = vand.u32 %v751, 4294901760
        %v1987 = vsub.f32 %v751, %v1986
        %1988 = vmatpush.msra.mxu0 %v1987
        %v1989 = vand.u32 %v750, 4294901760
        %v1990 = vsub.f32 %v750, %v1989
        %1991 = vmatpush.msra.mxu0 %v1990
        %v1992 = vand.u32 %v749, 4294901760
        %v1993 = vsub.f32 %v749, %v1992
        %1994 = vmatpush.msra.mxu0 %v1993
        %v1995 = vand.u32 %v748, 4294901760
        %v1996 = vsub.f32 %v748, %v1995
        %1997 = vmatpush.msra.mxu0 %v1996
        %v1998 = vand.u32 %v747, 4294901760
        %v1999 = vsub.f32 %v747, %v1998
        %2000 = vmatpush.msra.mxu0 %v1999
        %v2001 = vand.u32 %v746, 4294901760
        %v2002 = vsub.f32 %v746, %v2001
        %2003 = vmatpush.msra.mxu0 %v2002
        %v2004 = vand.u32 %v745, 4294901760
        %v2005 = vsub.f32 %v745, %v2004
        %2006 = vmatpush.msra.mxu0 %v2005
        %v2007 = vand.u32 %v744, 4294901760
        %v2008 = vsub.f32 %v744, %v2007
        %2009 = vmatpush.msra.mxu0 %v2008
        %v2010 = vand.u32 %v743, 4294901760
        %v2011 = vsub.f32 %v743, %v2010
        %2012 = vmatpush.msra.mxu0 %v2011
        %v2013 = vand.u32 %v1807, 4294901760
        %v2014 = vsub.f32 %v1807, %v2013
        %2015 = vmatmul.f32.gmra.mxu0 %v2014
        %v2016 = vpop.f32.mrf.mxu0
        %v2017 = vadd.f32 %v1959, %v2016
        %v2018 = vand.u32 %v1810, 4294901760
        %v2019 = vsub.f32 %v1810, %v2018
        %2020 = vmatmul.f32.gmra.mxu0 %v2019
        %v2021 = vpop.f32.mrf.mxu0
        %v2022 = vadd.f32 %v1963, %v2021
        %2023 = vdwg.mxu0
        %v2024 = vand.u32 %v758, 4294901760
        %2025 = vmatpush.msra.mxu0 %v2024
        %v2026 = vand.u32 %v757, 4294901760
        %2027 = vmatpush.msra.mxu0 %v2026
        %v2028 = vand.u32 %v756, 4294901760
        %2029 = vmatpush.msra.mxu0 %v2028
        %v2030 = vand.u32 %v755, 4294901760
        %2031 = vmatpush.msra.mxu0 %v2030
        %v2032 = vand.u32 %v754, 4294901760
        %2033 = vmatpush.msra.mxu0 %v2032
        %v2034 = vand.u32 %v753, 4294901760
        %2035 = vmatpush.msra.mxu0 %v2034
        %v2036 = vand.u32 %v752, 4294901760
        %2037 = vmatpush.msra.mxu0 %v2036
        %v2038 = vand.u32 %v751, 4294901760
        %2039 = vmatpush.msra.mxu0 %v2038
        %v2040 = vand.u32 %v750, 4294901760
        %2041 = vmatpush.msra.mxu0 %v2040
        %v2042 = vand.u32 %v749, 4294901760
        %2043 = vmatpush.msra.mxu0 %v2042
        %v2044 = vand.u32 %v748, 4294901760
        %2045 = vmatpush.msra.mxu0 %v2044
        %v2046 = vand.u32 %v747, 4294901760
        %2047 = vmatpush.msra.mxu0 %v2046
        %v2048 = vand.u32 %v746, 4294901760
        %2049 = vmatpush.msra.mxu0 %v2048
        %v2050 = vand.u32 %v745, 4294901760
        %2051 = vmatpush.msra.mxu0 %v2050
        %v2052 = vand.u32 %v744, 4294901760
        %2053 = vmatpush.msra.mxu0 %v2052
        %v2054 = vand.u32 %v743, 4294901760
        %2055 = vmatpush.msra.mxu0 %v2054
        %v2056 = vand.u32 %v1807, 4294901760
        %v2057 = vsub.f32 %v1807, %v2056
        %v2058 = vand.u32 %v2057, 4294901760
        %2059 = vmatmul.f32.gmra.mxu0 %v2058
        %v2060 = vpop.f32.mrf.mxu0
        %v2061 = vadd.f32 %v2017, %v2060
        %v2062 = vand.u32 %v1810, 4294901760
        %v2063 = vsub.f32 %v1810, %v2062
        %v2064 = vand.u32 %v2063, 4294901760
        %2065 = vmatmul.f32.gmra.mxu0 %v2064
        %v2066 = vpop.f32.mrf.mxu0
        %v2067 = vadd.f32 %v2022, %v2066
        %2068 = vdwg.mxu0
        %v2069 = vand.u32 %v758, 4294901760
        %v2070 = vsub.f32 %v758, %v2069
        %v2071 = vand.u32 %v2070, 4294901760
        %2072 = vmatpush.msra.mxu0 %v2071
        %v2073 = vand.u32 %v757, 4294901760
        %v2074 = vsub.f32 %v757, %v2073
        %v2075 = vand.u32 %v2074, 4294901760
        %2076 = vmatpush.msra.mxu0 %v2075
        %v2077 = vand.u32 %v756, 4294901760
        %v2078 = vsub.f32 %v756, %v2077
        %v2079 = vand.u32 %v2078, 4294901760
        %2080 = vmatpush.msra.mxu0 %v2079
        %v2081 = vand.u32 %v755, 4294901760
        %v2082 = vsub.f32 %v755, %v2081
        %v2083 = vand.u32 %v2082, 4294901760
        %2084 = vmatpush.msra.mxu0 %v2083
        %v2085 = vand.u32 %v754, 4294901760
        %v2086 = vsub.f32 %v754, %v2085
        %v2087 = vand.u32 %v2086, 4294901760
        %2088 = vmatpush.msra.mxu0 %v2087
        %v2089 = vand.u32 %v753, 4294901760
        %v2090 = vsub.f32 %v753, %v2089
        %v2091 = vand.u32 %v2090, 4294901760
        %2092 = vmatpush.msra.mxu0 %v2091
        %v2093 = vand.u32 %v752, 4294901760
        %v2094 = vsub.f32 %v752, %v2093
        %v2095 = vand.u32 %v2094, 4294901760
        %2096 = vmatpush.msra.mxu0 %v2095
        %v2097 = vand.u32 %v751, 4294901760
        %v2098 = vsub.f32 %v751, %v2097
        %v2099 = vand.u32 %v2098, 4294901760
        %2100 = vmatpush.msra.mxu0 %v2099
        %v2101 = vand.u32 %v750, 4294901760
        %v2102 = vsub.f32 %v750, %v2101
        %v2103 = vand.u32 %v2102, 4294901760
        %2104 = vmatpush.msra.mxu0 %v2103
        %v2105 = vand.u32 %v749, 4294901760
        %v2106 = vsub.f32 %v749, %v2105
        %v2107 = vand.u32 %v2106, 4294901760
        %2108 = vmatpush.msra.mxu0 %v2107
        %v2109 = vand.u32 %v748, 4294901760
        %v2110 = vsub.f32 %v748, %v2109
        %v2111 = vand.u32 %v2110, 4294901760
        %2112 = vmatpush.msra.mxu0 %v2111
        %v2113 = vand.u32 %v747, 4294901760
        %v2114 = vsub.f32 %v747, %v2113
        %v2115 = vand.u32 %v2114, 4294901760
        %2116 = vmatpush.msra.mxu0 %v2115
        %v2117 = vand.u32 %v746, 4294901760
        %v2118 = vsub.f32 %v746, %v2117
        %v2119 = vand.u32 %v2118, 4294901760
        %2120 = vmatpush.msra.mxu0 %v2119
        %v2121 = vand.u32 %v745, 4294901760
        %v2122 = vsub.f32 %v745, %v2121
        %v2123 = vand.u32 %v2122, 4294901760
        %2124 = vmatpush.msra.mxu0 %v2123
        %v2125 = vand.u32 %v744, 4294901760
        %v2126 = vsub.f32 %v744, %v2125
        %v2127 = vand.u32 %v2126, 4294901760
        %2128 = vmatpush.msra.mxu0 %v2127
        %v2129 = vand.u32 %v743, 4294901760
        %v2130 = vsub.f32 %v743, %v2129
        %v2131 = vand.u32 %v2130, 4294901760
        %2132 = vmatpush.msra.mxu0 %v2131
        %v2133 = vand.u32 %v1807, 4294901760
        %2134 = vmatmul.f32.gmra.mxu0 %v2133
        %v2135 = vpop.f32.mrf.mxu0
        %v2136 = vadd.f32 %v2061, %v2135
        %v2137 = vand.u32 %v1810, 4294901760
        %2138 = vmatmul.f32.gmra.mxu0 %v2137
        %v2139 = vpop.f32.mrf.mxu0
        %v2140 = vadd.f32 %v2067, %v2139
        %2141 = vdwg.mxu0
        %v2142 = vand.u32 %v758, 4294901760
        %2143 = vmatpush.msra.mxu0 %v2142
        %v2144 = vand.u32 %v757, 4294901760
        %2145 = vmatpush.msra.mxu0 %v2144
        %v2146 = vand.u32 %v756, 4294901760
        %2147 = vmatpush.msra.mxu0 %v2146
        %v2148 = vand.u32 %v755, 4294901760
        %2149 = vmatpush.msra.mxu0 %v2148
        %v2150 = vand.u32 %v754, 4294901760
        %2151 = vmatpush.msra.mxu0 %v2150
        %v2152 = vand.u32 %v753, 4294901760
        %2153 = vmatpush.msra.mxu0 %v2152
        %v2154 = vand.u32 %v752, 4294901760
        %2155 = vmatpush.msra.mxu0 %v2154
        %v2156 = vand.u32 %v751, 4294901760
        %2157 = vmatpush.msra.mxu0 %v2156
        %v2158 = vand.u32 %v750, 4294901760
        %2159 = vmatpush.msra.mxu0 %v2158
        %v2160 = vand.u32 %v749, 4294901760
        %2161 = vmatpush.msra.mxu0 %v2160
        %v2162 = vand.u32 %v748, 4294901760
        %2163 = vmatpush.msra.mxu0 %v2162
        %v2164 = vand.u32 %v747, 4294901760
        %2165 = vmatpush.msra.mxu0 %v2164
        %v2166 = vand.u32 %v746, 4294901760
        %2167 = vmatpush.msra.mxu0 %v2166
        %v2168 = vand.u32 %v745, 4294901760
        %2169 = vmatpush.msra.mxu0 %v2168
        %v2170 = vand.u32 %v744, 4294901760
        %2171 = vmatpush.msra.mxu0 %v2170
        %v2172 = vand.u32 %v743, 4294901760
        %2173 = vmatpush.msra.mxu0 %v2172
        %v2174 = vand.u32 %v1807, 4294901760
        %2175 = vmatmul.f32.gmra.mxu0 %v2174
        %v2176 = vpop.f32.mrf.mxu0
        %v2177 = vadd.f32 %v2136, %v2176
        %v2178 = vand.u32 %v1810, 4294901760
        %2179 = vmatmul.f32.gmra.mxu0 %v2178
        %v2180 = vpop.f32.mrf.mxu0
        %v2181 = vadd.f32 %v2140, %v2180
        %2182 = vdwg.mxu0
        %v2183 = vmul.f32 %v2177, %v2177
        %v2184 = vsub.f32 %v2181, %v2183
        %v2185 = vmax.f32 %v2184, 0.0
        %v2186 = vsub.f32 %v1807, %v2177
        %v2187 = vadd.f32 %v2185, 1e-05
        %v2188 = vrsqrt.pop %v2187
        %v2189 = vmul.f32 %v2188, %v2187
        %v2190 = vmul.f32 %v2189, %v2188
        %v2191 = vmul.f32 0.5, %v2190
        %v2192 = vsub.f32 1.5, %v2191
        %v2193 = vmul.f32 %v2188, %v2192
        %vm2194 = vweird.f32 %v2187
        %vm2195 = vweird.f32 %v2188
        %vm2196 = vmor %vm2194, %vm2195
        %v2197 = vsel %vm2196, %v2188, %v2193
        %v2198 = vmul.f32 %v2186, %v2197
        %v2199 = vperm.slane %v1488, 0
        %v2200 = vmul.f32 %v2198, %v2199
        %v2201 = vperm.slane %v1489, 0
        %v2202 = vadd.f32 %v2200, %v2201
        %vm2203 = vcmp.gt.f32.partialorder %v2202, 0.0
        %v2204 = vmul.f32 %v2202, 0.2
        %v2205 = vsel %vm2203, %v2202, %v2204
        %v2206 = vadd.f32 %v1485, %v2205
        %v2207 = vpack.c.bf16 %v2206, %v2206
        %v2208 = vld [vmem:[#allocation10] sm:$0xff]
        %v2209 = vld [vmem:[#allocation10 + $0x8] sm:$0xff]
        %v2210 = vld [vmem:[#allocation10 + $0x10] sm:$0xff]
        %v2211 = vld [vmem:[#allocation10 + $0x18] sm:$0xff]
        %v2212 = vld [vmem:[#allocation10 + $0x20] sm:$0xff]
        %v2213 = vld [vmem:[#allocation10 + $0x28] sm:$0xff]
        %v2214 = vld [vmem:[#allocation10 + $0x30] sm:$0xff]
        %v2215 = vld [vmem:[#allocation10 + $0x38] sm:$0xff]
        %v2216 = vld [vmem:[#allocation10 + $0x40] sm:$0xff]
        %v2217 = vld [vmem:[#allocation10 + $0x48] sm:$0xff]
        %v2218 = vld [vmem:[#allocation10 + $0x50] sm:$0xff]
        %v2219 = vld [vmem:[#allocation10 + $0x58] sm:$0xff]
        %v2220 = vld [vmem:[#allocation10 + $0x60] sm:$0xff]
        %v2221 = vld [vmem:[#allocation10 + $0x68] sm:$0xff]
        %v2222 = vld [vmem:[#allocation10 + $0x70] sm:$0xff]
        %v2223 = vld [vmem:[#allocation10 + $0x78] sm:$0xff]
        %v2240 = vunpack.c.l.b16 %v2208
        %v2241 = vunpack.c.h.b16 %v2208
        %v2242 = vunpack.c.l.b16 %v2209
        %v2243 = vunpack.c.h.b16 %v2209
        %v2244 = vunpack.c.l.b16 %v2210
        %v2245 = vunpack.c.h.b16 %v2210
        %v2246 = vunpack.c.l.b16 %v2211
        %v2247 = vunpack.c.h.b16 %v2211
        %v2248 = vunpack.c.l.b16 %v2212
        %v2249 = vunpack.c.h.b16 %v2212
        %v2250 = vunpack.c.l.b16 %v2213
        %v2251 = vunpack.c.h.b16 %v2213
        %v2252 = vunpack.c.l.b16 %v2214
        %v2253 = vunpack.c.h.b16 %v2214
        %v2254 = vunpack.c.l.b16 %v2215
        %v2255 = vunpack.c.h.b16 %v2215
        %v2256 = vunpack.c.l.b16 %v2216
        %v2257 = vunpack.c.h.b16 %v2216
        %v2258 = vunpack.c.l.b16 %v2217
        %v2259 = vunpack.c.h.b16 %v2217
        %v2260 = vunpack.c.l.b16 %v2218
        %v2261 = vunpack.c.h.b16 %v2218
        %v2262 = vunpack.c.l.b16 %v2219
        %v2263 = vunpack.c.h.b16 %v2219
        %v2264 = vunpack.c.l.b16 %v2220
        %v2265 = vunpack.c.h.b16 %v2220
        %v2266 = vunpack.c.l.b16 %v2221
        %v2267 = vunpack.c.h.b16 %v2221
        %v2268 = vunpack.c.l.b16 %v2222
        %v2269 = vunpack.c.h.b16 %v2222
        %v2270 = vunpack.c.l.b16 %v2223
        %v2271 = vunpack.c.h.b16 %v2223
        %v2272 = vpack.c.b16 %v2242, %v2240
        %v2273 = vpack.c.b16 %v2243, %v2241
        %v2274 = vpack.c.b16 %v2246, %v2244
        %v2275 = vpack.c.b16 %v2247, %v2245
        %v2276 = vpack.c.b16 %v2250, %v2248
        %v2277 = vpack.c.b16 %v2251, %v2249
        %v2278 = vpack.c.b16 %v2254, %v2252
        %v2279 = vpack.c.b16 %v2255, %v2253
        %v2280 = vpack.c.b16 %v2258, %v2256
        %v2281 = vpack.c.b16 %v2259, %v2257
        %v2282 = vpack.c.b16 %v2262, %v2260
        %v2283 = vpack.c.b16 %v2263, %v2261
        %v2284 = vpack.c.b16 %v2266, %v2264
        %v2285 = vpack.c.b16 %v2267, %v2265
        %v2286 = vpack.c.b16 %v2270, %v2268
        %v2287 = vpack.c.b16 %v2271, %v2269
        %2304 = vmatpush.bf16.msra.mxu0 %v2286
        %2305 = vmatpush.bf16.msra.mxu0 %v2284
        %2306 = vmatpush.bf16.msra.mxu0 %v2282
        %2307 = vmatpush.bf16.msra.mxu0 %v2280
        %2308 = vmatpush.bf16.msra.mxu0 %v2278
        %2309 = vmatpush.bf16.msra.mxu0 %v2276
        %2310 = vmatpush.bf16.msra.mxu0 %v2274
        %2311 = vmatpush.bf16.msra.mxu0 %v2272
        %2312 = vmatmul.bf16.gmra.mxu0 %v2207
        %v2313 = vpop.f32.mrf.mxu0
        %v2314 = vadd.f32 0.0, %v2313
        %v2315 = vpop.f32.mrf.mxu0
        %2316 = vdwg.mxu0
        %2317 = vmatpush.bf16.msra.mxu0 %v2287
        %2318 = vmatpush.bf16.msra.mxu0 %v2285
        %2319 = vmatpush.bf16.msra.mxu0 %v2283
        %2320 = vmatpush.bf16.msra.mxu0 %v2281
        %2321 = vmatpush.bf16.msra.mxu0 %v2279
        %2322 = vmatpush.bf16.msra.mxu0 %v2277
        %2323 = vmatpush.bf16.msra.mxu0 %v2275
        %2324 = vmatpush.bf16.msra.mxu0 %v2273
        %2325 = vmatmul.bf16.gmra.mxu0 %v2207
        %v2326 = vpop.f32.mrf.mxu0
        %v2327 = vadd.f32 0.0, %v2326
        %v2328 = vpop.f32.mrf.mxu0
        %2329 = vdwg.mxu0
        %v2330 = vld [vmem:[#allocation15] sm:$0xff]
        %v2331 = vld [vmem:[#allocation15 + $0x8] sm:$0xff]
        %v2332 = vld [vmem:[#allocation15 + $0x10] sm:$0xff]
        %v2333 = vld [vmem:[#allocation15 + $0x18] sm:$0xff]
        %v2334 = vld [vmem:[#allocation15 + $0x20] sm:$0xff]
        %v2335 = vld [vmem:[#allocation15 + $0x28] sm:$0xff]
        %v2336 = vld [vmem:[#allocation15 + $0x30] sm:$0xff]
        %v2337 = vld [vmem:[#allocation15 + $0x38] sm:$0xff]
        %v2338 = vld [vmem:[#allocation15 + $0x40] sm:$0xff]
        %v2339 = vld [vmem:[#allocation15 + $0x48] sm:$0xff]
        %v2340 = vld [vmem:[#allocation15 + $0x50] sm:$0xff]
        %v2341 = vld [vmem:[#allocation15 + $0x58] sm:$0xff]
        %v2342 = vld [vmem:[#allocation15 + $0x60] sm:$0xff]
        %v2343 = vld [vmem:[#allocation15 + $0x68] sm:$0xff]
        %v2344 = vld [vmem:[#allocation15 + $0x70] sm:$0xff]
        %v2345 = vld [vmem:[#allocation15 + $0x78] sm:$0xff]
        %v2346 = vld [vmem:[#allocation15 + $0x80] sm:$0xff]
        %v2347 = vld [vmem:[#allocation15 + $0x88] sm:$0xff]
        %v2348 = vld [vmem:[#allocation15 + $0x90] sm:$0xff]
        %v2349 = vld [vmem:[#allocation15 + $0x98] sm:$0xff]
        %v2350 = vld [vmem:[#allocation15 + $0xa0] sm:$0xff]
        %v2351 = vld [vmem:[#allocation15 + $0xa8] sm:$0xff]
        %v2352 = vld [vmem:[#allocation15 + $0xb0] sm:$0xff]
        %v2353 = vld [vmem:[#allocation15 + $0xb8] sm:$0xff]
        %v2354 = vld [vmem:[#allocation15 + $0xc0] sm:$0xff]
        %v2355 = vld [vmem:[#allocation15 + $0xc8] sm:$0xff]
        %v2356 = vld [vmem:[#allocation15 + $0xd0] sm:$0xff]
        %v2357 = vld [vmem:[#allocation15 + $0xd8] sm:$0xff]
        %v2358 = vld [vmem:[#allocation15 + $0xe0] sm:$0xff]
        %v2359 = vld [vmem:[#allocation15 + $0xe8] sm:$0xff]
        %v2360 = vld [vmem:[#allocation15 + $0xf0] sm:$0xff]
        %v2361 = vld [vmem:[#allocation15 + $0xf8] sm:$0xff]
        %v2362 = vld [vmem:[#allocation15 + $0x100] sm:$0xff]
        %v2363 = vld [vmem:[#allocation15 + $0x108] sm:$0xff]
        %v2364 = vld [vmem:[#allocation15 + $0x110] sm:$0xff]
        %v2365 = vld [vmem:[#allocation15 + $0x118] sm:$0xff]
        %v2366 = vld [vmem:[#allocation15 + $0x120] sm:$0xff]
        %v2367 = vld [vmem:[#allocation15 + $0x128] sm:$0xff]
        %v2368 = vld [vmem:[#allocation15 + $0x130] sm:$0xff]
        %v2369 = vld [vmem:[#allocation15 + $0x138] sm:$0xff]
        %v2370 = vld [vmem:[#allocation15 + $0x140] sm:$0xff]
        %v2371 = vld [vmem:[#allocation15 + $0x148] sm:$0xff]
        %v2372 = vld [vmem:[#allocation15 + $0x150] sm:$0xff]
        %v2373 = vld [vmem:[#allocation15 + $0x158] sm:$0xff]
        %v2374 = vld [vmem:[#allocation15 + $0x160] sm:$0xff]
        %v2375 = vld [vmem:[#allocation15 + $0x168] sm:$0xff]
        %v2376 = vld [vmem:[#allocation15 + $0x170] sm:$0xff]
        %v2377 = vld [vmem:[#allocation15 + $0x178] sm:$0xff]
        %v2378 = vld [vmem:[#allocation15 + $0x180] sm:$0xff]
        %v2379 = vld [vmem:[#allocation15 + $0x188] sm:$0xff]
        %v2380 = vld [vmem:[#allocation15 + $0x190] sm:$0xff]
        %v2381 = vld [vmem:[#allocation15 + $0x198] sm:$0xff]
        %v2382 = vld [vmem:[#allocation15 + $0x1a0] sm:$0xff]
        %v2383 = vld [vmem:[#allocation15 + $0x1a8] sm:$0xff]
        %v2384 = vld [vmem:[#allocation15 + $0x1b0] sm:$0xff]
        %v2385 = vld [vmem:[#allocation15 + $0x1b8] sm:$0xff]
        %v2386 = vld [vmem:[#allocation15 + $0x1c0] sm:$0xff]
        %v2387 = vld [vmem:[#allocation15 + $0x1c8] sm:$0xff]
        %v2388 = vld [vmem:[#allocation15 + $0x1d0] sm:$0xff]
        %v2389 = vld [vmem:[#allocation15 + $0x1d8] sm:$0xff]
        %v2390 = vld [vmem:[#allocation15 + $0x1e0] sm:$0xff]
        %v2391 = vld [vmem:[#allocation15 + $0x1e8] sm:$0xff]
        %v2392 = vld [vmem:[#allocation15 + $0x1f0] sm:$0xff]
        %v2393 = vld [vmem:[#allocation15 + $0x1f8] sm:$0xff]
        %v2394 = vld [vmem:[%s13] ss:$2 sm:$0x3]
        %v2395 = vld [vmem:[%s14] ss:$2 sm:$0x3]
        %v2396 = vld [vmem:[%s15] ss:$2 sm:$0x3]
        %v2397 = vld [vmem:[%s16] ss:$2 sm:$0x3]
        %v2398 = vpack.c.bf16 %v2314, %v2314
        %v2399 = vpack.c.bf16 %v2327, %v2327
        %v2400 = vld [vmem:[#allocation12] sm:$0xff]
        %v2401 = vld [vmem:[#allocation12 + $0x8] sm:$0xff]
        %v2402 = vld [vmem:[#allocation12 + $0x10] sm:$0xff]
        %v2403 = vld [vmem:[#allocation12 + $0x18] sm:$0xff]
        %v2404 = vld [vmem:[#allocation12 + $0x20] sm:$0xff]
        %v2405 = vld [vmem:[#allocation12 + $0x28] sm:$0xff]
        %v2406 = vld [vmem:[#allocation12 + $0x30] sm:$0xff]
        %v2407 = vld [vmem:[#allocation12 + $0x38] sm:$0xff]
        %v2408 = vld [vmem:[#allocation12 + $0x40] sm:$0xff]
        %v2409 = vld [vmem:[#allocation12 + $0x48] sm:$0xff]
        %v2410 = vld [vmem:[#allocation12 + $0x50] sm:$0xff]
        %v2411 = vld [vmem:[#allocation12 + $0x58] sm:$0xff]
        %v2412 = vld [vmem:[#allocation12 + $0x60] sm:$0xff]
        %v2413 = vld [vmem:[#allocation12 + $0x68] sm:$0xff]
        %v2414 = vld [vmem:[#allocation12 + $0x70] sm:$0xff]
        %v2415 = vld [vmem:[#allocation12 + $0x78] sm:$0xff]
        %v2416 = vld [vmem:[#allocation12 + $0x80] sm:$0xff]
        %v2417 = vld [vmem:[#allocation12 + $0x88] sm:$0xff]
        %v2418 = vld [vmem:[#allocation12 + $0x90] sm:$0xff]
        %v2419 = vld [vmem:[#allocation12 + $0x98] sm:$0xff]
        %v2420 = vld [vmem:[#allocation12 + $0xa0] sm:$0xff]
        %v2421 = vld [vmem:[#allocation12 + $0xa8] sm:$0xff]
        %v2422 = vld [vmem:[#allocation12 + $0xb0] sm:$0xff]
        %v2423 = vld [vmem:[#allocation12 + $0xb8] sm:$0xff]
        %v2424 = vld [vmem:[#allocation12 + $0xc0] sm:$0xff]
        %v2425 = vld [vmem:[#allocation12 + $0xc8] sm:$0xff]
        %v2426 = vld [vmem:[#allocation12 + $0xd0] sm:$0xff]
        %v2427 = vld [vmem:[#allocation12 + $0xd8] sm:$0xff]
        %v2428 = vld [vmem:[#allocation12 + $0xe0] sm:$0xff]
        %v2429 = vld [vmem:[#allocation12 + $0xe8] sm:$0xff]
        %v2430 = vld [vmem:[#allocation12 + $0xf0] sm:$0xff]
        %v2431 = vld [vmem:[#allocation12 + $0xf8] sm:$0xff]
        %v2433 = vperm.slane %v2394, 0
        %v2434 = vperm.slane %v2394, 1
        %v2469 = vunpack.c.l.b16 %v2400
        %v2470 = vunpack.c.h.b16 %v2400
        %v2471 = vunpack.c.l.b16 %v2401
        %v2472 = vunpack.c.h.b16 %v2401
        %v2473 = vunpack.c.l.b16 %v2402
        %v2474 = vunpack.c.h.b16 %v2402
        %v2475 = vunpack.c.l.b16 %v2403
        %v2476 = vunpack.c.h.b16 %v2403
        %v2477 = vunpack.c.l.b16 %v2404
        %v2478 = vunpack.c.h.b16 %v2404
        %v2479 = vunpack.c.l.b16 %v2405
        %v2480 = vunpack.c.h.b16 %v2405
        %v2481 = vunpack.c.l.b16 %v2406
        %v2482 = vunpack.c.h.b16 %v2406
        %v2483 = vunpack.c.l.b16 %v2407
        %v2484 = vunpack.c.h.b16 %v2407
        %v2485 = vunpack.c.l.b16 %v2408
        %v2486 = vunpack.c.h.b16 %v2408
        %v2487 = vunpack.c.l.b16 %v2409
        %v2488 = vunpack.c.h.b16 %v2409
        %v2489 = vunpack.c.l.b16 %v2410
        %v2490 = vunpack.c.h.b16 %v2410
        %v2491 = vunpack.c.l.b16 %v2411
        %v2492 = vunpack.c.h.b16 %v2411
        %v2493 = vunpack.c.l.b16 %v2412
        %v2494 = vunpack.c.h.b16 %v2412
        %v2495 = vunpack.c.l.b16 %v2413
        %v2496 = vunpack.c.h.b16 %v2413
        %v2497 = vunpack.c.l.b16 %v2414
        %v2498 = vunpack.c.h.b16 %v2414
        %v2499 = vunpack.c.l.b16 %v2415
        %v2500 = vunpack.c.h.b16 %v2415
        %v2501 = vunpack.c.l.b16 %v2416
        %v2502 = vunpack.c.h.b16 %v2416
        %v2503 = vunpack.c.l.b16 %v2417
        %v2504 = vunpack.c.h.b16 %v2417
        %v2505 = vunpack.c.l.b16 %v2418
        %v2506 = vunpack.c.h.b16 %v2418
        %v2507 = vunpack.c.l.b16 %v2419
        %v2508 = vunpack.c.h.b16 %v2419
        %v2509 = vunpack.c.l.b16 %v2420
        %v2510 = vunpack.c.h.b16 %v2420
        %v2511 = vunpack.c.l.b16 %v2421
        %v2512 = vunpack.c.h.b16 %v2421
        %v2513 = vunpack.c.l.b16 %v2422
        %v2514 = vunpack.c.h.b16 %v2422
        %v2515 = vunpack.c.l.b16 %v2423
        %v2516 = vunpack.c.h.b16 %v2423
        %v2517 = vunpack.c.l.b16 %v2424
        %v2518 = vunpack.c.h.b16 %v2424
        %v2519 = vunpack.c.l.b16 %v2425
        %v2520 = vunpack.c.h.b16 %v2425
        %v2521 = vunpack.c.l.b16 %v2426
        %v2522 = vunpack.c.h.b16 %v2426
        %v2523 = vunpack.c.l.b16 %v2427
        %v2524 = vunpack.c.h.b16 %v2427
        %v2525 = vunpack.c.l.b16 %v2428
        %v2526 = vunpack.c.h.b16 %v2428
        %v2527 = vunpack.c.l.b16 %v2429
        %v2528 = vunpack.c.h.b16 %v2429
        %v2529 = vunpack.c.l.b16 %v2430
        %v2530 = vunpack.c.h.b16 %v2430
        %v2531 = vunpack.c.l.b16 %v2431
        %v2532 = vunpack.c.h.b16 %v2431
        %v2533 = vpack.c.b16 %v2471, %v2469
        %v2534 = vpack.c.b16 %v2472, %v2470
        %v2535 = vpack.c.b16 %v2475, %v2473
        %v2536 = vpack.c.b16 %v2476, %v2474
        %v2537 = vpack.c.b16 %v2479, %v2477
        %v2538 = vpack.c.b16 %v2480, %v2478
        %v2539 = vpack.c.b16 %v2483, %v2481
        %v2540 = vpack.c.b16 %v2484, %v2482
        %v2541 = vpack.c.b16 %v2487, %v2485
        %v2542 = vpack.c.b16 %v2488, %v2486
        %v2543 = vpack.c.b16 %v2491, %v2489
        %v2544 = vpack.c.b16 %v2492, %v2490
        %v2545 = vpack.c.b16 %v2495, %v2493
        %v2546 = vpack.c.b16 %v2496, %v2494
        %v2547 = vpack.c.b16 %v2499, %v2497
        %v2548 = vpack.c.b16 %v2500, %v2498
        %v2549 = vpack.c.b16 %v2503, %v2501
        %v2550 = vpack.c.b16 %v2504, %v2502
        %v2551 = vpack.c.b16 %v2507, %v2505
        %v2552 = vpack.c.b16 %v2508, %v2506
        %v2553 = vpack.c.b16 %v2511, %v2509
        %v2554 = vpack.c.b16 %v2512, %v2510
        %v2555 = vpack.c.b16 %v2515, %v2513
        %v2556 = vpack.c.b16 %v2516, %v2514
        %v2557 = vpack.c.b16 %v2519, %v2517
        %v2558 = vpack.c.b16 %v2520, %v2518
        %v2559 = vpack.c.b16 %v2523, %v2521
        %v2560 = vpack.c.b16 %v2524, %v2522
        %v2561 = vpack.c.b16 %v2527, %v2525
        %v2562 = vpack.c.b16 %v2528, %v2526
        %v2563 = vpack.c.b16 %v2531, %v2529
        %v2564 = vpack.c.b16 %v2532, %v2530
        %2597 = vmatpush.bf16.msra.mxu0 %v2547
        %2598 = vmatpush.bf16.msra.mxu0 %v2545
        %2599 = vmatpush.bf16.msra.mxu0 %v2543
        %2600 = vmatpush.bf16.msra.mxu0 %v2541
        %2601 = vmatpush.bf16.msra.mxu0 %v2539
        %2602 = vmatpush.bf16.msra.mxu0 %v2537
        %2603 = vmatpush.bf16.msra.mxu0 %v2535
        %2604 = vmatpush.bf16.msra.mxu0 %v2533
        %2605 = vmatmul.bf16.gmra.mxu0 %v2398
        %v2606 = vpop.f32.mrf.mxu0
        %v2607 = vadd.f32 %v2433, %v2606
        %v2608 = vpop.f32.mrf.mxu0
        %2609 = vdwg.mxu0
        %2610 = vmatpush.bf16.msra.mxu0 %v2563
        %2611 = vmatpush.bf16.msra.mxu0 %v2561
        %2612 = vmatpush.bf16.msra.mxu0 %v2559
        %2613 = vmatpush.bf16.msra.mxu0 %v2557
        %2614 = vmatpush.bf16.msra.mxu0 %v2555
        %2615 = vmatpush.bf16.msra.mxu0 %v2553
        %2616 = vmatpush.bf16.msra.mxu0 %v2551
        %2617 = vmatpush.bf16.msra.mxu0 %v2549
        %2618 = vmatmul.bf16.gmra.mxu0 %v2399
        %v2619 = vpop.f32.mrf.mxu0
        %v2620 = vadd.f32 %v2607, %v2619
        %v2621 = vpop.f32.mrf.mxu0
        %2622 = vdwg.mxu0
        %2623 = vmatpush.bf16.msra.mxu0 %v2548
        %2624 = vmatpush.bf16.msra.mxu0 %v2546
        %2625 = vmatpush.bf16.msra.mxu0 %v2544
        %2626 = vmatpush.bf16.msra.mxu0 %v2542
        %2627 = vmatpush.bf16.msra.mxu0 %v2540
        %2628 = vmatpush.bf16.msra.mxu0 %v2538
        %2629 = vmatpush.bf16.msra.mxu0 %v2536
        %2630 = vmatpush.bf16.msra.mxu0 %v2534
        %2631 = vmatmul.bf16.gmra.mxu0 %v2398
        %v2632 = vpop.f32.mrf.mxu0
        %v2633 = vadd.f32 %v2434, %v2632
        %v2634 = vpop.f32.mrf.mxu0
        %2635 = vdwg.mxu0
        %2636 = vmatpush.bf16.msra.mxu0 %v2564
        %2637 = vmatpush.bf16.msra.mxu0 %v2562
        %2638 = vmatpush.bf16.msra.mxu0 %v2560
        %2639 = vmatpush.bf16.msra.mxu0 %v2558
        %2640 = vmatpush.bf16.msra.mxu0 %v2556
        %2641 = vmatpush.bf16.msra.mxu0 %v2554
        %2642 = vmatpush.bf16.msra.mxu0 %v2552
        %2643 = vmatpush.bf16.msra.mxu0 %v2550
        %2644 = vmatmul.bf16.gmra.mxu0 %v2399
        %v2645 = vpop.f32.mrf.mxu0
        %v2646 = vadd.f32 %v2633, %v2645
        %v2647 = vpop.f32.mrf.mxu0
        %2648 = vdwg.mxu0
        %v2649 = vrot.slane %v2620, 7
        %v2650 = vrot.slane %v2646, 7
        %v2651 = vsel %vm763, %v2649, 0.0
        %v2652 = vsel %vm763, %v2650, 0.0
        %v2653 = vrot.slane %v2620, 1
        %v2654 = vrot.slane %v2646, 1
        %v2655 = vsel %vm766, %v2653, 0.0
        %v2656 = vsel %vm766, %v2654, 0.0
        %v2657 = vpack.c.bf16 %v2651, %v2651
        %v2658 = vpack.c.bf16 %v2652, %v2652
        %v2659 = vpack.c.bf16 %v2620, %v2620
        %v2660 = vpack.c.bf16 %v2646, %v2646
        %v2661 = vpack.c.bf16 %v2655, %v2655
        %v2662 = vpack.c.bf16 %v2656, %v2656
        %v2663 = vld [vmem:[#allocation13] sm:$0xff]
        %v2664 = vld [vmem:[#allocation13 + $0x8] sm:$0xff]
        %v2665 = vld [vmem:[#allocation13 + $0x10] sm:$0xff]
        %v2666 = vld [vmem:[#allocation13 + $0x18] sm:$0xff]
        %v2667 = vld [vmem:[#allocation13 + $0x20] sm:$0xff]
        %v2668 = vld [vmem:[#allocation13 + $0x28] sm:$0xff]
        %v2669 = vld [vmem:[#allocation13 + $0x30] sm:$0xff]
        %v2670 = vld [vmem:[#allocation13 + $0x38] sm:$0xff]
        %v2671 = vld [vmem:[#allocation13 + $0x40] sm:$0xff]
        %v2672 = vld [vmem:[#allocation13 + $0x48] sm:$0xff]
        %v2673 = vld [vmem:[#allocation13 + $0x50] sm:$0xff]
        %v2674 = vld [vmem:[#allocation13 + $0x58] sm:$0xff]
        %v2675 = vld [vmem:[#allocation13 + $0x60] sm:$0xff]
        %v2676 = vld [vmem:[#allocation13 + $0x68] sm:$0xff]
        %v2677 = vld [vmem:[#allocation13 + $0x70] sm:$0xff]
        %v2678 = vld [vmem:[#allocation13 + $0x78] sm:$0xff]
        %v2679 = vld [vmem:[#allocation13 + $0x80] sm:$0xff]
        %v2680 = vld [vmem:[#allocation13 + $0x88] sm:$0xff]
        %v2681 = vld [vmem:[#allocation13 + $0x90] sm:$0xff]
        %v2682 = vld [vmem:[#allocation13 + $0x98] sm:$0xff]
        %v2683 = vld [vmem:[#allocation13 + $0xa0] sm:$0xff]
        %v2684 = vld [vmem:[#allocation13 + $0xa8] sm:$0xff]
        %v2685 = vld [vmem:[#allocation13 + $0xb0] sm:$0xff]
        %v2686 = vld [vmem:[#allocation13 + $0xb8] sm:$0xff]
        %v2687 = vld [vmem:[#allocation13 + $0xc0] sm:$0xff]
        %v2688 = vld [vmem:[#allocation13 + $0xc8] sm:$0xff]
        %v2689 = vld [vmem:[#allocation13 + $0xd0] sm:$0xff]
        %v2690 = vld [vmem:[#allocation13 + $0xd8] sm:$0xff]
        %v2691 = vld [vmem:[#allocation13 + $0xe0] sm:$0xff]
        %v2692 = vld [vmem:[#allocation13 + $0xe8] sm:$0xff]
        %v2693 = vld [vmem:[#allocation13 + $0xf0] sm:$0xff]
        %v2694 = vld [vmem:[#allocation13 + $0xf8] sm:$0xff]
        %v2695 = vld [vmem:[#allocation13 + $0x100] sm:$0xff]
        %v2696 = vld [vmem:[#allocation13 + $0x108] sm:$0xff]
        %v2697 = vld [vmem:[#allocation13 + $0x110] sm:$0xff]
        %v2698 = vld [vmem:[#allocation13 + $0x118] sm:$0xff]
        %v2699 = vld [vmem:[#allocation13 + $0x120] sm:$0xff]
        %v2700 = vld [vmem:[#allocation13 + $0x128] sm:$0xff]
        %v2701 = vld [vmem:[#allocation13 + $0x130] sm:$0xff]
        %v2702 = vld [vmem:[#allocation13 + $0x138] sm:$0xff]
        %v2703 = vld [vmem:[#allocation13 + $0x140] sm:$0xff]
        %v2704 = vld [vmem:[#allocation13 + $0x148] sm:$0xff]
        %v2705 = vld [vmem:[#allocation13 + $0x150] sm:$0xff]
        %v2706 = vld [vmem:[#allocation13 + $0x158] sm:$0xff]
        %v2707 = vld [vmem:[#allocation13 + $0x160] sm:$0xff]
        %v2708 = vld [vmem:[#allocation13 + $0x168] sm:$0xff]
        %v2709 = vld [vmem:[#allocation13 + $0x170] sm:$0xff]
        %v2710 = vld [vmem:[#allocation13 + $0x178] sm:$0xff]
        %v2711 = vld [vmem:[#allocation13 + $0x180] sm:$0xff]
        %v2712 = vld [vmem:[#allocation13 + $0x188] sm:$0xff]
        %v2713 = vld [vmem:[#allocation13 + $0x190] sm:$0xff]
        %v2714 = vld [vmem:[#allocation13 + $0x198] sm:$0xff]
        %v2715 = vld [vmem:[#allocation13 + $0x1a0] sm:$0xff]
        %v2716 = vld [vmem:[#allocation13 + $0x1a8] sm:$0xff]
        %v2717 = vld [vmem:[#allocation13 + $0x1b0] sm:$0xff]
        %v2718 = vld [vmem:[#allocation13 + $0x1b8] sm:$0xff]
        %v2719 = vld [vmem:[#allocation13 + $0x1c0] sm:$0xff]
        %v2720 = vld [vmem:[#allocation13 + $0x1c8] sm:$0xff]
        %v2721 = vld [vmem:[#allocation13 + $0x1d0] sm:$0xff]
        %v2722 = vld [vmem:[#allocation13 + $0x1d8] sm:$0xff]
        %v2723 = vld [vmem:[#allocation13 + $0x1e0] sm:$0xff]
        %v2724 = vld [vmem:[#allocation13 + $0x1e8] sm:$0xff]
        %v2725 = vld [vmem:[#allocation13 + $0x1f0] sm:$0xff]
        %v2726 = vld [vmem:[#allocation13 + $0x1f8] sm:$0xff]
        %v2727 = vld [vmem:[#allocation13 + $0x200] sm:$0xff]
        %v2728 = vld [vmem:[#allocation13 + $0x208] sm:$0xff]
        %v2729 = vld [vmem:[#allocation13 + $0x210] sm:$0xff]
        %v2730 = vld [vmem:[#allocation13 + $0x218] sm:$0xff]
        %v2731 = vld [vmem:[#allocation13 + $0x220] sm:$0xff]
        %v2732 = vld [vmem:[#allocation13 + $0x228] sm:$0xff]
        %v2733 = vld [vmem:[#allocation13 + $0x230] sm:$0xff]
        %v2734 = vld [vmem:[#allocation13 + $0x238] sm:$0xff]
        %v2735 = vld [vmem:[#allocation13 + $0x240] sm:$0xff]
        %v2736 = vld [vmem:[#allocation13 + $0x248] sm:$0xff]
        %v2737 = vld [vmem:[#allocation13 + $0x250] sm:$0xff]
        %v2738 = vld [vmem:[#allocation13 + $0x258] sm:$0xff]
        %v2739 = vld [vmem:[#allocation13 + $0x260] sm:$0xff]
        %v2740 = vld [vmem:[#allocation13 + $0x268] sm:$0xff]
        %v2741 = vld [vmem:[#allocation13 + $0x270] sm:$0xff]
        %v2742 = vld [vmem:[#allocation13 + $0x278] sm:$0xff]
        %v2743 = vld [vmem:[#allocation13 + $0x280] sm:$0xff]
        %v2744 = vld [vmem:[#allocation13 + $0x288] sm:$0xff]
        %v2745 = vld [vmem:[#allocation13 + $0x290] sm:$0xff]
        %v2746 = vld [vmem:[#allocation13 + $0x298] sm:$0xff]
        %v2747 = vld [vmem:[#allocation13 + $0x2a0] sm:$0xff]
        %v2748 = vld [vmem:[#allocation13 + $0x2a8] sm:$0xff]
        %v2749 = vld [vmem:[#allocation13 + $0x2b0] sm:$0xff]
        %v2750 = vld [vmem:[#allocation13 + $0x2b8] sm:$0xff]
        %v2751 = vld [vmem:[#allocation13 + $0x2c0] sm:$0xff]
        %v2752 = vld [vmem:[#allocation13 + $0x2c8] sm:$0xff]
        %v2753 = vld [vmem:[#allocation13 + $0x2d0] sm:$0xff]
        %v2754 = vld [vmem:[#allocation13 + $0x2d8] sm:$0xff]
        %v2755 = vld [vmem:[#allocation13 + $0x2e0] sm:$0xff]
        %v2756 = vld [vmem:[#allocation13 + $0x2e8] sm:$0xff]
        %v2757 = vld [vmem:[#allocation13 + $0x2f0] sm:$0xff]
        %v2758 = vld [vmem:[#allocation13 + $0x2f8] sm:$0xff]
        %v2760 = vperm.slane %v2395, 0
        %v2761 = vperm.slane %v2395, 1
        %v2860 = vunpack.c.l.b16 %v2663
        %v2861 = vunpack.c.h.b16 %v2663
        %v2862 = vunpack.c.l.b16 %v2664
        %v2863 = vunpack.c.h.b16 %v2664
        %v2864 = vunpack.c.l.b16 %v2665
        %v2865 = vunpack.c.h.b16 %v2665
        %v2866 = vunpack.c.l.b16 %v2666
        %v2867 = vunpack.c.h.b16 %v2666
        %v2868 = vunpack.c.l.b16 %v2667
        %v2869 = vunpack.c.h.b16 %v2667
        %v2870 = vunpack.c.l.b16 %v2668
        %v2871 = vunpack.c.h.b16 %v2668
        %v2872 = vunpack.c.l.b16 %v2669
        %v2873 = vunpack.c.h.b16 %v2669
        %v2874 = vunpack.c.l.b16 %v2670
        %v2875 = vunpack.c.h.b16 %v2670
        %v2876 = vunpack.c.l.b16 %v2671
        %v2877 = vunpack.c.h.b16 %v2671
        %v2878 = vunpack.c.l.b16 %v2672
        %v2879 = vunpack.c.h.b16 %v2672
        %v2880 = vunpack.c.l.b16 %v2673
        %v2881 = vunpack.c.h.b16 %v2673
        %v2882 = vunpack.c.l.b16 %v2674
        %v2883 = vunpack.c.h.b16 %v2674
        %v2884 = vunpack.c.l.b16 %v2675
        %v2885 = vunpack.c.h.b16 %v2675
        %v2886 = vunpack.c.l.b16 %v2676
        %v2887 = vunpack.c.h.b16 %v2676
        %v2888 = vunpack.c.l.b16 %v2677
        %v2889 = vunpack.c.h.b16 %v2677
        %v2890 = vunpack.c.l.b16 %v2678
        %v2891 = vunpack.c.h.b16 %v2678
        %v2892 = vunpack.c.l.b16 %v2679
        %v2893 = vunpack.c.h.b16 %v2679
        %v2894 = vunpack.c.l.b16 %v2680
        %v2895 = vunpack.c.h.b16 %v2680
        %v2896 = vunpack.c.l.b16 %v2681
        %v2897 = vunpack.c.h.b16 %v2681
        %v2898 = vunpack.c.l.b16 %v2682
        %v2899 = vunpack.c.h.b16 %v2682
        %v2900 = vunpack.c.l.b16 %v2683
        %v2901 = vunpack.c.h.b16 %v2683
        %v2902 = vunpack.c.l.b16 %v2684
        %v2903 = vunpack.c.h.b16 %v2684
        %v2904 = vunpack.c.l.b16 %v2685
        %v2905 = vunpack.c.h.b16 %v2685
        %v2906 = vunpack.c.l.b16 %v2686
        %v2907 = vunpack.c.h.b16 %v2686
        %v2908 = vunpack.c.l.b16 %v2687
        %v2909 = vunpack.c.h.b16 %v2687
        %v2910 = vunpack.c.l.b16 %v2688
        %v2911 = vunpack.c.h.b16 %v2688
        %v2912 = vunpack.c.l.b16 %v2689
        %v2913 = vunpack.c.h.b16 %v2689
        %v2914 = vunpack.c.l.b16 %v2690
        %v2915 = vunpack.c.h.b16 %v2690
        %v2916 = vunpack.c.l.b16 %v2691
        %v2917 = vunpack.c.h.b16 %v2691
        %v2918 = vunpack.c.l.b16 %v2692
        %v2919 = vunpack.c.h.b16 %v2692
        %v2920 = vunpack.c.l.b16 %v2693
        %v2921 = vunpack.c.h.b16 %v2693
        %v2922 = vunpack.c.l.b16 %v2694
        %v2923 = vunpack.c.h.b16 %v2694
        %v2924 = vunpack.c.l.b16 %v2695
        %v2925 = vunpack.c.h.b16 %v2695
        %v2926 = vunpack.c.l.b16 %v2696
        %v2927 = vunpack.c.h.b16 %v2696
        %v2928 = vunpack.c.l.b16 %v2697
        %v2929 = vunpack.c.h.b16 %v2697
        %v2930 = vunpack.c.l.b16 %v2698
        %v2931 = vunpack.c.h.b16 %v2698
        %v2932 = vunpack.c.l.b16 %v2699
        %v2933 = vunpack.c.h.b16 %v2699
        %v2934 = vunpack.c.l.b16 %v2700
        %v2935 = vunpack.c.h.b16 %v2700
        %v2936 = vunpack.c.l.b16 %v2701
        %v2937 = vunpack.c.h.b16 %v2701
        %v2938 = vunpack.c.l.b16 %v2702
        %v2939 = vunpack.c.h.b16 %v2702
        %v2940 = vunpack.c.l.b16 %v2703
        %v2941 = vunpack.c.h.b16 %v2703
        %v2942 = vunpack.c.l.b16 %v2704
        %v2943 = vunpack.c.h.b16 %v2704
        %v2944 = vunpack.c.l.b16 %v2705
        %v2945 = vunpack.c.h.b16 %v2705
        %v2946 = vunpack.c.l.b16 %v2706
        %v2947 = vunpack.c.h.b16 %v2706
        %v2948 = vunpack.c.l.b16 %v2707
        %v2949 = vunpack.c.h.b16 %v2707
        %v2950 = vunpack.c.l.b16 %v2708
        %v2951 = vunpack.c.h.b16 %v2708
        %v2952 = vunpack.c.l.b16 %v2709
        %v2953 = vunpack.c.h.b16 %v2709
        %v2954 = vunpack.c.l.b16 %v2710
        %v2955 = vunpack.c.h.b16 %v2710
        %v2956 = vunpack.c.l.b16 %v2711
        %v2957 = vunpack.c.h.b16 %v2711
        %v2958 = vunpack.c.l.b16 %v2712
        %v2959 = vunpack.c.h.b16 %v2712
        %v2960 = vunpack.c.l.b16 %v2713
        %v2961 = vunpack.c.h.b16 %v2713
        %v2962 = vunpack.c.l.b16 %v2714
        %v2963 = vunpack.c.h.b16 %v2714
        %v2964 = vunpack.c.l.b16 %v2715
        %v2965 = vunpack.c.h.b16 %v2715
        %v2966 = vunpack.c.l.b16 %v2716
        %v2967 = vunpack.c.h.b16 %v2716
        %v2968 = vunpack.c.l.b16 %v2717
        %v2969 = vunpack.c.h.b16 %v2717
        %v2970 = vunpack.c.l.b16 %v2718
        %v2971 = vunpack.c.h.b16 %v2718
        %v2972 = vunpack.c.l.b16 %v2719
        %v2973 = vunpack.c.h.b16 %v2719
        %v2974 = vunpack.c.l.b16 %v2720
        %v2975 = vunpack.c.h.b16 %v2720
        %v2976 = vunpack.c.l.b16 %v2721
        %v2977 = vunpack.c.h.b16 %v2721
        %v2978 = vunpack.c.l.b16 %v2722
        %v2979 = vunpack.c.h.b16 %v2722
        %v2980 = vunpack.c.l.b16 %v2723
        %v2981 = vunpack.c.h.b16 %v2723
        %v2982 = vunpack.c.l.b16 %v2724
        %v2983 = vunpack.c.h.b16 %v2724
        %v2984 = vunpack.c.l.b16 %v2725
        %v2985 = vunpack.c.h.b16 %v2725
        %v2986 = vunpack.c.l.b16 %v2726
        %v2987 = vunpack.c.h.b16 %v2726
        %v2988 = vunpack.c.l.b16 %v2727
        %v2989 = vunpack.c.h.b16 %v2727
        %v2990 = vunpack.c.l.b16 %v2728
        %v2991 = vunpack.c.h.b16 %v2728
        %v2992 = vunpack.c.l.b16 %v2729
        %v2993 = vunpack.c.h.b16 %v2729
        %v2994 = vunpack.c.l.b16 %v2730
        %v2995 = vunpack.c.h.b16 %v2730
        %v2996 = vunpack.c.l.b16 %v2731
        %v2997 = vunpack.c.h.b16 %v2731
        %v2998 = vunpack.c.l.b16 %v2732
        %v2999 = vunpack.c.h.b16 %v2732
        %v3000 = vunpack.c.l.b16 %v2733
        %v3001 = vunpack.c.h.b16 %v2733
        %v3002 = vunpack.c.l.b16 %v2734
        %v3003 = vunpack.c.h.b16 %v2734
        %v3004 = vunpack.c.l.b16 %v2735
        %v3005 = vunpack.c.h.b16 %v2735
        %v3006 = vunpack.c.l.b16 %v2736
        %v3007 = vunpack.c.h.b16 %v2736
        %v3008 = vunpack.c.l.b16 %v2737
        %v3009 = vunpack.c.h.b16 %v2737
        %v3010 = vunpack.c.l.b16 %v2738
        %v3011 = vunpack.c.h.b16 %v2738
        %v3012 = vunpack.c.l.b16 %v2739
        %v3013 = vunpack.c.h.b16 %v2739
        %v3014 = vunpack.c.l.b16 %v2740
        %v3015 = vunpack.c.h.b16 %v2740
        %v3016 = vunpack.c.l.b16 %v2741
        %v3017 = vunpack.c.h.b16 %v2741
        %v3018 = vunpack.c.l.b16 %v2742
        %v3019 = vunpack.c.h.b16 %v2742
        %v3020 = vunpack.c.l.b16 %v2743
        %v3021 = vunpack.c.h.b16 %v2743
        %v3022 = vunpack.c.l.b16 %v2744
        %v3023 = vunpack.c.h.b16 %v2744
        %v3024 = vunpack.c.l.b16 %v2745
        %v3025 = vunpack.c.h.b16 %v2745
        %v3026 = vunpack.c.l.b16 %v2746
        %v3027 = vunpack.c.h.b16 %v2746
        %v3028 = vunpack.c.l.b16 %v2747
        %v3029 = vunpack.c.h.b16 %v2747
        %v3030 = vunpack.c.l.b16 %v2748
        %v3031 = vunpack.c.h.b16 %v2748
        %v3032 = vunpack.c.l.b16 %v2749
        %v3033 = vunpack.c.h.b16 %v2749
        %v3034 = vunpack.c.l.b16 %v2750
        %v3035 = vunpack.c.h.b16 %v2750
        %v3036 = vunpack.c.l.b16 %v2751
        %v3037 = vunpack.c.h.b16 %v2751
        %v3038 = vunpack.c.l.b16 %v2752
        %v3039 = vunpack.c.h.b16 %v2752
        %v3040 = vunpack.c.l.b16 %v2753
        %v3041 = vunpack.c.h.b16 %v2753
        %v3042 = vunpack.c.l.b16 %v2754
        %v3043 = vunpack.c.h.b16 %v2754
        %v3044 = vunpack.c.l.b16 %v2755
        %v3045 = vunpack.c.h.b16 %v2755
        %v3046 = vunpack.c.l.b16 %v2756
        %v3047 = vunpack.c.h.b16 %v2756
        %v3048 = vunpack.c.l.b16 %v2757
        %v3049 = vunpack.c.h.b16 %v2757
        %v3050 = vunpack.c.l.b16 %v2758
        %v3051 = vunpack.c.h.b16 %v2758
        %v3052 = vpack.c.b16 %v2862, %v2860
        %v3053 = vpack.c.b16 %v2863, %v2861
        %v3054 = vpack.c.b16 %v2866, %v2864
        %v3055 = vpack.c.b16 %v2867, %v2865
        %v3056 = vpack.c.b16 %v2870, %v2868
        %v3057 = vpack.c.b16 %v2871, %v2869
        %v3058 = vpack.c.b16 %v2874, %v2872
        %v3059 = vpack.c.b16 %v2875, %v2873
        %v3060 = vpack.c.b16 %v2878, %v2876
        %v3061 = vpack.c.b16 %v2879, %v2877
        %v3062 = vpack.c.b16 %v2882, %v2880
        %v3063 = vpack.c.b16 %v2883, %v2881
        %v3064 = vpack.c.b16 %v2886, %v2884
        %v3065 = vpack.c.b16 %v2887, %v2885
        %v3066 = vpack.c.b16 %v2890, %v2888
        %v3067 = vpack.c.b16 %v2891, %v2889
        %v3068 = vpack.c.b16 %v2894, %v2892
        %v3069 = vpack.c.b16 %v2895, %v2893
        %v3070 = vpack.c.b16 %v2898, %v2896
        %v3071 = vpack.c.b16 %v2899, %v2897
        %v3072 = vpack.c.b16 %v2902, %v2900
        %v3073 = vpack.c.b16 %v2903, %v2901
        %v3074 = vpack.c.b16 %v2906, %v2904
        %v3075 = vpack.c.b16 %v2907, %v2905
        %v3076 = vpack.c.b16 %v2910, %v2908
        %v3077 = vpack.c.b16 %v2911, %v2909
        %v3078 = vpack.c.b16 %v2914, %v2912
        %v3079 = vpack.c.b16 %v2915, %v2913
        %v3080 = vpack.c.b16 %v2918, %v2916
        %v3081 = vpack.c.b16 %v2919, %v2917
        %v3082 = vpack.c.b16 %v2922, %v2920
        %v3083 = vpack.c.b16 %v2923, %v2921
        %v3084 = vpack.c.b16 %v2926, %v2924
        %v3085 = vpack.c.b16 %v2927, %v2925
        %v3086 = vpack.c.b16 %v2930, %v2928
        %v3087 = vpack.c.b16 %v2931, %v2929
        %v3088 = vpack.c.b16 %v2934, %v2932
        %v3089 = vpack.c.b16 %v2935, %v2933
        %v3090 = vpack.c.b16 %v2938, %v2936
        %v3091 = vpack.c.b16 %v2939, %v2937
        %v3092 = vpack.c.b16 %v2942, %v2940
        %v3093 = vpack.c.b16 %v2943, %v2941
        %v3094 = vpack.c.b16 %v2946, %v2944
        %v3095 = vpack.c.b16 %v2947, %v2945
        %v3096 = vpack.c.b16 %v2950, %v2948
        %v3097 = vpack.c.b16 %v2951, %v2949
        %v3098 = vpack.c.b16 %v2954, %v2952
        %v3099 = vpack.c.b16 %v2955, %v2953
        %v3100 = vpack.c.b16 %v2958, %v2956
        %v3101 = vpack.c.b16 %v2959, %v2957
        %v3102 = vpack.c.b16 %v2962, %v2960
        %v3103 = vpack.c.b16 %v2963, %v2961
        %v3104 = vpack.c.b16 %v2966, %v2964
        %v3105 = vpack.c.b16 %v2967, %v2965
        %v3106 = vpack.c.b16 %v2970, %v2968
        %v3107 = vpack.c.b16 %v2971, %v2969
        %v3108 = vpack.c.b16 %v2974, %v2972
        %v3109 = vpack.c.b16 %v2975, %v2973
        %v3110 = vpack.c.b16 %v2978, %v2976
        %v3111 = vpack.c.b16 %v2979, %v2977
        %v3112 = vpack.c.b16 %v2982, %v2980
        %v3113 = vpack.c.b16 %v2983, %v2981
        %v3114 = vpack.c.b16 %v2986, %v2984
        %v3115 = vpack.c.b16 %v2987, %v2985
        %v3116 = vpack.c.b16 %v2990, %v2988
        %v3117 = vpack.c.b16 %v2991, %v2989
        %v3118 = vpack.c.b16 %v2994, %v2992
        %v3119 = vpack.c.b16 %v2995, %v2993
        %v3120 = vpack.c.b16 %v2998, %v2996
        %v3121 = vpack.c.b16 %v2999, %v2997
        %v3122 = vpack.c.b16 %v3002, %v3000
        %v3123 = vpack.c.b16 %v3003, %v3001
        %v3124 = vpack.c.b16 %v3006, %v3004
        %v3125 = vpack.c.b16 %v3007, %v3005
        %v3126 = vpack.c.b16 %v3010, %v3008
        %v3127 = vpack.c.b16 %v3011, %v3009
        %v3128 = vpack.c.b16 %v3014, %v3012
        %v3129 = vpack.c.b16 %v3015, %v3013
        %v3130 = vpack.c.b16 %v3018, %v3016
        %v3131 = vpack.c.b16 %v3019, %v3017
        %v3132 = vpack.c.b16 %v3022, %v3020
        %v3133 = vpack.c.b16 %v3023, %v3021
        %v3134 = vpack.c.b16 %v3026, %v3024
        %v3135 = vpack.c.b16 %v3027, %v3025
        %v3136 = vpack.c.b16 %v3030, %v3028
        %v3137 = vpack.c.b16 %v3031, %v3029
        %v3138 = vpack.c.b16 %v3034, %v3032
        %v3139 = vpack.c.b16 %v3035, %v3033
        %v3140 = vpack.c.b16 %v3038, %v3036
        %v3141 = vpack.c.b16 %v3039, %v3037
        %v3142 = vpack.c.b16 %v3042, %v3040
        %v3143 = vpack.c.b16 %v3043, %v3041
        %v3144 = vpack.c.b16 %v3046, %v3044
        %v3145 = vpack.c.b16 %v3047, %v3045
        %v3146 = vpack.c.b16 %v3050, %v3048
        %v3147 = vpack.c.b16 %v3051, %v3049
        %3244 = vmatpush.bf16.msra.mxu0 %v3066
        %3245 = vmatpush.bf16.msra.mxu0 %v3064
        %3246 = vmatpush.bf16.msra.mxu0 %v3062
        %3247 = vmatpush.bf16.msra.mxu0 %v3060
        %3248 = vmatpush.bf16.msra.mxu0 %v3058
        %3249 = vmatpush.bf16.msra.mxu0 %v3056
        %3250 = vmatpush.bf16.msra.mxu0 %v3054
        %3251 = vmatpush.bf16.msra.mxu0 %v3052
        %3252 = vmatmul.bf16.gmra.mxu0 %v2657
        %v3253 = vpop.f32.mrf.mxu0
        %v3254 = vadd.f32 %v2760, %v3253
        %v3255 = vpop.f32.mrf.mxu0
        %3256 = vdwg.mxu0
        %3257 = vmatpush.bf16.msra.mxu0 %v3082
        %3258 = vmatpush.bf16.msra.mxu0 %v3080
        %3259 = vmatpush.bf16.msra.mxu0 %v3078
        %3260 = vmatpush.bf16.msra.mxu0 %v3076
        %3261 = vmatpush.bf16.msra.mxu0 %v3074
        %3262 = vmatpush.bf16.msra.mxu0 %v3072
        %3263 = vmatpush.bf16.msra.mxu0 %v3070
        %3264 = vmatpush.bf16.msra.mxu0 %v3068
        %3265 = vmatmul.bf16.gmra.mxu0 %v2658
        %v3266 = vpop.f32.mrf.mxu0
        %v3267 = vadd.f32 %v3254, %v3266
        %v3268 = vpop.f32.mrf.mxu0
        %3269 = vdwg.mxu0
        %3270 = vmatpush.bf16.msra.mxu0 %v3098
        %3271 = vmatpush.bf16.msra.mxu0 %v3096
        %3272 = vmatpush.bf16.msra.mxu0 %v3094
        %3273 = vmatpush.bf16.msra.mxu0 %v3092
        %3274 = vmatpush.bf16.msra.mxu0 %v3090
        %3275 = vmatpush.bf16.msra.mxu0 %v3088
        %3276 = vmatpush.bf16.msra.mxu0 %v3086
        %3277 = vmatpush.bf16.msra.mxu0 %v3084
        %3278 = vmatmul.bf16.gmra.mxu0 %v2659
        %v3279 = vpop.f32.mrf.mxu0
        %v3280 = vadd.f32 %v3267, %v3279
        %v3281 = vpop.f32.mrf.mxu0
        %3282 = vdwg.mxu0
        %3283 = vmatpush.bf16.msra.mxu0 %v3114
        %3284 = vmatpush.bf16.msra.mxu0 %v3112
        %3285 = vmatpush.bf16.msra.mxu0 %v3110
        %3286 = vmatpush.bf16.msra.mxu0 %v3108
        %3287 = vmatpush.bf16.msra.mxu0 %v3106
        %3288 = vmatpush.bf16.msra.mxu0 %v3104
        %3289 = vmatpush.bf16.msra.mxu0 %v3102
        %3290 = vmatpush.bf16.msra.mxu0 %v3100
        %3291 = vmatmul.bf16.gmra.mxu0 %v2660
        %v3292 = vpop.f32.mrf.mxu0
        %v3293 = vadd.f32 %v3280, %v3292
        %v3294 = vpop.f32.mrf.mxu0
        %3295 = vdwg.mxu0
        %3296 = vmatpush.bf16.msra.mxu0 %v3130
        %3297 = vmatpush.bf16.msra.mxu0 %v3128
        %3298 = vmatpush.bf16.msra.mxu0 %v3126
        %3299 = vmatpush.bf16.msra.mxu0 %v3124
        %3300 = vmatpush.bf16.msra.mxu0 %v3122
        %3301 = vmatpush.bf16.msra.mxu0 %v3120
        %3302 = vmatpush.bf16.msra.mxu0 %v3118
        %3303 = vmatpush.bf16.msra.mxu0 %v3116
        %3304 = vmatmul.bf16.gmra.mxu0 %v2661
        %v3305 = vpop.f32.mrf.mxu0
        %v3306 = vadd.f32 %v3293, %v3305
        %v3307 = vpop.f32.mrf.mxu0
        %3308 = vdwg.mxu0
        %3309 = vmatpush.bf16.msra.mxu0 %v3146
        %3310 = vmatpush.bf16.msra.mxu0 %v3144
        %3311 = vmatpush.bf16.msra.mxu0 %v3142
        %3312 = vmatpush.bf16.msra.mxu0 %v3140
        %3313 = vmatpush.bf16.msra.mxu0 %v3138
        %3314 = vmatpush.bf16.msra.mxu0 %v3136
        %3315 = vmatpush.bf16.msra.mxu0 %v3134
        %3316 = vmatpush.bf16.msra.mxu0 %v3132
        %3317 = vmatmul.bf16.gmra.mxu0 %v2662
        %v3318 = vpop.f32.mrf.mxu0
        %v3319 = vadd.f32 %v3306, %v3318
        %v3320 = vpop.f32.mrf.mxu0
        %3321 = vdwg.mxu0
        %3322 = vmatpush.bf16.msra.mxu0 %v3067
        %3323 = vmatpush.bf16.msra.mxu0 %v3065
        %3324 = vmatpush.bf16.msra.mxu0 %v3063
        %3325 = vmatpush.bf16.msra.mxu0 %v3061
        %3326 = vmatpush.bf16.msra.mxu0 %v3059
        %3327 = vmatpush.bf16.msra.mxu0 %v3057
        %3328 = vmatpush.bf16.msra.mxu0 %v3055
        %3329 = vmatpush.bf16.msra.mxu0 %v3053
        %3330 = vmatmul.bf16.gmra.mxu0 %v2657
        %v3331 = vpop.f32.mrf.mxu0
        %v3332 = vadd.f32 %v2761, %v3331
        %v3333 = vpop.f32.mrf.mxu0
        %3334 = vdwg.mxu0
        %3335 = vmatpush.bf16.msra.mxu0 %v3083
        %3336 = vmatpush.bf16.msra.mxu0 %v3081
        %3337 = vmatpush.bf16.msra.mxu0 %v3079
        %3338 = vmatpush.bf16.msra.mxu0 %v3077
        %3339 = vmatpush.bf16.msra.mxu0 %v3075
        %3340 = vmatpush.bf16.msra.mxu0 %v3073
        %3341 = vmatpush.bf16.msra.mxu0 %v3071
        %3342 = vmatpush.bf16.msra.mxu0 %v3069
        %3343 = vmatmul.bf16.gmra.mxu0 %v2658
        %v3344 = vpop.f32.mrf.mxu0
        %v3345 = vadd.f32 %v3332, %v3344
        %v3346 = vpop.f32.mrf.mxu0
        %3347 = vdwg.mxu0
        %3348 = vmatpush.bf16.msra.mxu0 %v3099
        %3349 = vmatpush.bf16.msra.mxu0 %v3097
        %3350 = vmatpush.bf16.msra.mxu0 %v3095
        %3351 = vmatpush.bf16.msra.mxu0 %v3093
        %3352 = vmatpush.bf16.msra.mxu0 %v3091
        %3353 = vmatpush.bf16.msra.mxu0 %v3089
        %3354 = vmatpush.bf16.msra.mxu0 %v3087
        %3355 = vmatpush.bf16.msra.mxu0 %v3085
        %3356 = vmatmul.bf16.gmra.mxu0 %v2659
        %v3357 = vpop.f32.mrf.mxu0
        %v3358 = vadd.f32 %v3345, %v3357
        %v3359 = vpop.f32.mrf.mxu0
        %3360 = vdwg.mxu0
        %3361 = vmatpush.bf16.msra.mxu0 %v3115
        %3362 = vmatpush.bf16.msra.mxu0 %v3113
        %3363 = vmatpush.bf16.msra.mxu0 %v3111
        %3364 = vmatpush.bf16.msra.mxu0 %v3109
        %3365 = vmatpush.bf16.msra.mxu0 %v3107
        %3366 = vmatpush.bf16.msra.mxu0 %v3105
        %3367 = vmatpush.bf16.msra.mxu0 %v3103
        %3368 = vmatpush.bf16.msra.mxu0 %v3101
        %3369 = vmatmul.bf16.gmra.mxu0 %v2660
        %v3370 = vpop.f32.mrf.mxu0
        %v3371 = vadd.f32 %v3358, %v3370
        %v3372 = vpop.f32.mrf.mxu0
        %3373 = vdwg.mxu0
        %3374 = vmatpush.bf16.msra.mxu0 %v3131
        %3375 = vmatpush.bf16.msra.mxu0 %v3129
        %3376 = vmatpush.bf16.msra.mxu0 %v3127
        %3377 = vmatpush.bf16.msra.mxu0 %v3125
        %3378 = vmatpush.bf16.msra.mxu0 %v3123
        %3379 = vmatpush.bf16.msra.mxu0 %v3121
        %3380 = vmatpush.bf16.msra.mxu0 %v3119
        %3381 = vmatpush.bf16.msra.mxu0 %v3117
        %3382 = vmatmul.bf16.gmra.mxu0 %v2661
        %v3383 = vpop.f32.mrf.mxu0
        %v3384 = vadd.f32 %v3371, %v3383
        %v3385 = vpop.f32.mrf.mxu0
        %3386 = vdwg.mxu0
        %3387 = vmatpush.bf16.msra.mxu0 %v3147
        %3388 = vmatpush.bf16.msra.mxu0 %v3145
        %3389 = vmatpush.bf16.msra.mxu0 %v3143
        %3390 = vmatpush.bf16.msra.mxu0 %v3141
        %3391 = vmatpush.bf16.msra.mxu0 %v3139
        %3392 = vmatpush.bf16.msra.mxu0 %v3137
        %3393 = vmatpush.bf16.msra.mxu0 %v3135
        %3394 = vmatpush.bf16.msra.mxu0 %v3133
        %3395 = vmatmul.bf16.gmra.mxu0 %v2662
        %v3396 = vpop.f32.mrf.mxu0
        %v3397 = vadd.f32 %v3384, %v3396
        %v3398 = vpop.f32.mrf.mxu0
        %3399 = vdwg.mxu0
        %v3400 = vmul.f32 %v3319, %v3319
        %v3401 = vmul.f32 %v3397, %v3397
        %v3402 = vand.u32 %v2360, 4294901760
        %3403 = vmatpush.msra.mxu0 %v3402
        %v3404 = vand.u32 %v2358, 4294901760
        %3405 = vmatpush.msra.mxu0 %v3404
        %v3406 = vand.u32 %v2356, 4294901760
        %3407 = vmatpush.msra.mxu0 %v3406
        %v3408 = vand.u32 %v2354, 4294901760
        %3409 = vmatpush.msra.mxu0 %v3408
        %v3410 = vand.u32 %v2352, 4294901760
        %3411 = vmatpush.msra.mxu0 %v3410
        %v3412 = vand.u32 %v2350, 4294901760
        %3413 = vmatpush.msra.mxu0 %v3412
        %v3414 = vand.u32 %v2348, 4294901760
        %3415 = vmatpush.msra.mxu0 %v3414
        %v3416 = vand.u32 %v2346, 4294901760
        %3417 = vmatpush.msra.mxu0 %v3416
        %v3418 = vand.u32 %v2344, 4294901760
        %3419 = vmatpush.msra.mxu0 %v3418
        %v3420 = vand.u32 %v2342, 4294901760
        %3421 = vmatpush.msra.mxu0 %v3420
        %v3422 = vand.u32 %v2340, 4294901760
        %3423 = vmatpush.msra.mxu0 %v3422
        %v3424 = vand.u32 %v2338, 4294901760
        %3425 = vmatpush.msra.mxu0 %v3424
        %v3426 = vand.u32 %v2336, 4294901760
        %3427 = vmatpush.msra.mxu0 %v3426
        %v3428 = vand.u32 %v2334, 4294901760
        %3429 = vmatpush.msra.mxu0 %v3428
        %v3430 = vand.u32 %v2332, 4294901760
        %3431 = vmatpush.msra.mxu0 %v3430
        %v3432 = vand.u32 %v2330, 4294901760
        %3433 = vmatpush.msra.mxu0 %v3432
        %v3434 = vand.u32 %v3319, 4294901760
        %v3435 = vsub.f32 %v3319, %v3434
        %v3436 = vand.u32 %v3435, 4294901760
        %v3437 = vsub.f32 %v3435, %v3436
        %v3438 = vand.u32 %v3437, 4294901760
        %3439 = vmatmul.f32.gmra.mxu0 %v3438
        %v3440 = vpop.f32.mrf.mxu0
        %v3441 = vadd.f32 0.0, %v3440
        %v3442 = vand.u32 %v3400, 4294901760
        %v3443 = vsub.f32 %v3400, %v3442
        %v3444 = vand.u32 %v3443, 4294901760
        %v3445 = vsub.f32 %v3443, %v3444
        %v3446 = vand.u32 %v3445, 4294901760
        %3447 = vmatmul.f32.gmra.mxu0 %v3446
        %v3448 = vpop.f32.mrf.mxu0
        %v3449 = vadd.f32 0.0, %v3448
        %3450 = vdwg.mxu0
        %v3451 = vand.u32 %v2360, 4294901760
        %v3452 = vsub.f32 %v2360, %v3451
        %v3453 = vand.u32 %v3452, 4294901760
        %v3454 = vsub.f32 %v3452, %v3453
        %v3455 = vand.u32 %v3454, 4294901760
        %3456 = vmatpush.msra.mxu0 %v3455
        %v3457 = vand.u32 %v2358, 4294901760
        %v3458 = vsub.f32 %v2358, %v3457
        %v3459 = vand.u32 %v3458, 4294901760
        %v3460 = vsub.f32 %v3458, %v3459
        %v3461 = vand.u32 %v3460, 4294901760
        %3462 = vmatpush.msra.mxu0 %v3461
        %v3463 = vand.u32 %v2356, 4294901760
        %v3464 = vsub.f32 %v2356, %v3463
        %v3465 = vand.u32 %v3464, 4294901760
        %v3466 = vsub.f32 %v3464, %v3465
        %v3467 = vand.u32 %v3466, 4294901760
        %3468 = vmatpush.msra.mxu0 %v3467
        %v3469 = vand.u32 %v2354, 4294901760
        %v3470 = vsub.f32 %v2354, %v3469
        %v3471 = vand.u32 %v3470, 4294901760
        %v3472 = vsub.f32 %v3470, %v3471
        %v3473 = vand.u32 %v3472, 4294901760
        %3474 = vmatpush.msra.mxu0 %v3473
        %v3475 = vand.u32 %v2352, 4294901760
        %v3476 = vsub.f32 %v2352, %v3475
        %v3477 = vand.u32 %v3476, 4294901760
        %v3478 = vsub.f32 %v3476, %v3477
        %v3479 = vand.u32 %v3478, 4294901760
        %3480 = vmatpush.msra.mxu0 %v3479
        %v3481 = vand.u32 %v2350, 4294901760
        %v3482 = vsub.f32 %v2350, %v3481
        %v3483 = vand.u32 %v3482, 4294901760
        %v3484 = vsub.f32 %v3482, %v3483
        %v3485 = vand.u32 %v3484, 4294901760
        %3486 = vmatpush.msra.mxu0 %v3485
        %v3487 = vand.u32 %v2348, 4294901760
        %v3488 = vsub.f32 %v2348, %v3487
        %v3489 = vand.u32 %v3488, 4294901760
        %v3490 = vsub.f32 %v3488, %v3489
        %v3491 = vand.u32 %v3490, 4294901760
        %3492 = vmatpush.msra.mxu0 %v3491
        %v3493 = vand.u32 %v2346, 4294901760
        %v3494 = vsub.f32 %v2346, %v3493
        %v3495 = vand.u32 %v3494, 4294901760
        %v3496 = vsub.f32 %v3494, %v3495
        %v3497 = vand.u32 %v3496, 4294901760
        %3498 = vmatpush.msra.mxu0 %v3497
        %v3499 = vand.u32 %v2344, 4294901760
        %v3500 = vsub.f32 %v2344, %v3499
        %v3501 = vand.u32 %v3500, 4294901760
        %v3502 = vsub.f32 %v3500, %v3501
        %v3503 = vand.u32 %v3502, 4294901760
        %3504 = vmatpush.msra.mxu0 %v3503
        %v3505 = vand.u32 %v2342, 4294901760
        %v3506 = vsub.f32 %v2342, %v3505
        %v3507 = vand.u32 %v3506, 4294901760
        %v3508 = vsub.f32 %v3506, %v3507
        %v3509 = vand.u32 %v3508, 4294901760
        %3510 = vmatpush.msra.mxu0 %v3509
        %v3511 = vand.u32 %v2340, 4294901760
        %v3512 = vsub.f32 %v2340, %v3511
        %v3513 = vand.u32 %v3512, 4294901760
        %v3514 = vsub.f32 %v3512, %v3513
        %v3515 = vand.u32 %v3514, 4294901760
        %3516 = vmatpush.msra.mxu0 %v3515
        %v3517 = vand.u32 %v2338, 4294901760
        %v3518 = vsub.f32 %v2338, %v3517
        %v3519 = vand.u32 %v3518, 4294901760
        %v3520 = vsub.f32 %v3518, %v3519
        %v3521 = vand.u32 %v3520, 4294901760
        %3522 = vmatpush.msra.mxu0 %v3521
        %v3523 = vand.u32 %v2336, 4294901760
        %v3524 = vsub.f32 %v2336, %v3523
        %v3525 = vand.u32 %v3524, 4294901760
        %v3526 = vsub.f32 %v3524, %v3525
        %v3527 = vand.u32 %v3526, 4294901760
        %3528 = vmatpush.msra.mxu0 %v3527
        %v3529 = vand.u32 %v2334, 4294901760
        %v3530 = vsub.f32 %v2334, %v3529
        %v3531 = vand.u32 %v3530, 4294901760
        %v3532 = vsub.f32 %v3530, %v3531
        %v3533 = vand.u32 %v3532, 4294901760
        %3534 = vmatpush.msra.mxu0 %v3533
        %v3535 = vand.u32 %v2332, 4294901760
        %v3536 = vsub.f32 %v2332, %v3535
        %v3537 = vand.u32 %v3536, 4294901760
        %v3538 = vsub.f32 %v3536, %v3537
        %v3539 = vand.u32 %v3538, 4294901760
        %3540 = vmatpush.msra.mxu0 %v3539
        %v3541 = vand.u32 %v2330, 4294901760
        %v3542 = vsub.f32 %v2330, %v3541
        %v3543 = vand.u32 %v3542, 4294901760
        %v3544 = vsub.f32 %v3542, %v3543
        %v3545 = vand.u32 %v3544, 4294901760
        %3546 = vmatpush.msra.mxu0 %v3545
        %v3547 = vand.u32 %v3319, 4294901760
        %3548 = vmatmul.f32.gmra.mxu0 %v3547
        %v3549 = vpop.f32.mrf.mxu0
        %v3550 = vadd.f32 %v3441, %v3549
        %v3551 = vand.u32 %v3400, 4294901760
        %3552 = vmatmul.f32.gmra.mxu0 %v3551
        %v3553 = vpop.f32.mrf.mxu0
        %v3554 = vadd.f32 %v3449, %v3553
        %3555 = vdwg.mxu0
        %v3556 = vand.u32 %v2360, 4294901760
        %v3557 = vsub.f32 %v2360, %v3556
        %3558 = vmatpush.msra.mxu0 %v3557
        %v3559 = vand.u32 %v2358, 4294901760
        %v3560 = vsub.f32 %v2358, %v3559
        %3561 = vmatpush.msra.mxu0 %v3560
        %v3562 = vand.u32 %v2356, 4294901760
        %v3563 = vsub.f32 %v2356, %v3562
        %3564 = vmatpush.msra.mxu0 %v3563
        %v3565 = vand.u32 %v2354, 4294901760
        %v3566 = vsub.f32 %v2354, %v3565
        %3567 = vmatpush.msra.mxu0 %v3566
        %v3568 = vand.u32 %v2352, 4294901760
        %v3569 = vsub.f32 %v2352, %v3568
        %3570 = vmatpush.msra.mxu0 %v3569
        %v3571 = vand.u32 %v2350, 4294901760
        %v3572 = vsub.f32 %v2350, %v3571
        %3573 = vmatpush.msra.mxu0 %v3572
        %v3574 = vand.u32 %v2348, 4294901760
        %v3575 = vsub.f32 %v2348, %v3574
        %3576 = vmatpush.msra.mxu0 %v3575
        %v3577 = vand.u32 %v2346, 4294901760
        %v3578 = vsub.f32 %v2346, %v3577
        %3579 = vmatpush.msra.mxu0 %v3578
        %v3580 = vand.u32 %v2344, 4294901760
        %v3581 = vsub.f32 %v2344, %v3580
        %3582 = vmatpush.msra.mxu0 %v3581
        %v3583 = vand.u32 %v2342, 4294901760
        %v3584 = vsub.f32 %v2342, %v3583
        %3585 = vmatpush.msra.mxu0 %v3584
        %v3586 = vand.u32 %v2340, 4294901760
        %v3587 = vsub.f32 %v2340, %v3586
        %3588 = vmatpush.msra.mxu0 %v3587
        %v3589 = vand.u32 %v2338, 4294901760
        %v3590 = vsub.f32 %v2338, %v3589
        %3591 = vmatpush.msra.mxu0 %v3590
        %v3592 = vand.u32 %v2336, 4294901760
        %v3593 = vsub.f32 %v2336, %v3592
        %3594 = vmatpush.msra.mxu0 %v3593
        %v3595 = vand.u32 %v2334, 4294901760
        %v3596 = vsub.f32 %v2334, %v3595
        %3597 = vmatpush.msra.mxu0 %v3596
        %v3598 = vand.u32 %v2332, 4294901760
        %v3599 = vsub.f32 %v2332, %v3598
        %3600 = vmatpush.msra.mxu0 %v3599
        %v3601 = vand.u32 %v2330, 4294901760
        %v3602 = vsub.f32 %v2330, %v3601
        %3603 = vmatpush.msra.mxu0 %v3602
        %v3604 = vand.u32 %v3319, 4294901760
        %v3605 = vsub.f32 %v3319, %v3604
        %3606 = vmatmul.f32.gmra.mxu0 %v3605
        %v3607 = vpop.f32.mrf.mxu0
        %v3608 = vadd.f32 %v3550, %v3607
        %v3609 = vand.u32 %v3400, 4294901760
        %v3610 = vsub.f32 %v3400, %v3609
        %3611 = vmatmul.f32.gmra.mxu0 %v3610
        %v3612 = vpop.f32.mrf.mxu0
        %v3613 = vadd.f32 %v3554, %v3612
        %3614 = vdwg.mxu0
        %v3615 = vand.u32 %v2360, 4294901760
        %3616 = vmatpush.msra.mxu0 %v3615
        %v3617 = vand.u32 %v2358, 4294901760
        %3618 = vmatpush.msra.mxu0 %v3617
        %v3619 = vand.u32 %v2356, 4294901760
        %3620 = vmatpush.msra.mxu0 %v3619
        %v3621 = vand.u32 %v2354, 4294901760
        %3622 = vmatpush.msra.mxu0 %v3621
        %v3623 = vand.u32 %v2352, 4294901760
        %3624 = vmatpush.msra.mxu0 %v3623
        %v3625 = vand.u32 %v2350, 4294901760
        %3626 = vmatpush.msra.mxu0 %v3625
        %v3627 = vand.u32 %v2348, 4294901760
        %3628 = vmatpush.msra.mxu0 %v3627
        %v3629 = vand.u32 %v2346, 4294901760
        %3630 = vmatpush.msra.mxu0 %v3629
        %v3631 = vand.u32 %v2344, 4294901760
        %3632 = vmatpush.msra.mxu0 %v3631
        %v3633 = vand.u32 %v2342, 4294901760
        %3634 = vmatpush.msra.mxu0 %v3633
        %v3635 = vand.u32 %v2340, 4294901760
        %3636 = vmatpush.msra.mxu0 %v3635
        %v3637 = vand.u32 %v2338, 4294901760
        %3638 = vmatpush.msra.mxu0 %v3637
        %v3639 = vand.u32 %v2336, 4294901760
        %3640 = vmatpush.msra.mxu0 %v3639
        %v3641 = vand.u32 %v2334, 4294901760
        %3642 = vmatpush.msra.mxu0 %v3641
        %v3643 = vand.u32 %v2332, 4294901760
        %3644 = vmatpush.msra.mxu0 %v3643
        %v3645 = vand.u32 %v2330, 4294901760
        %3646 = vmatpush.msra.mxu0 %v3645
        %v3647 = vand.u32 %v3319, 4294901760
        %v3648 = vsub.f32 %v3319, %v3647
        %v3649 = vand.u32 %v3648, 4294901760
        %3650 = vmatmul.f32.gmra.mxu0 %v3649
        %v3651 = vpop.f32.mrf.mxu0
        %v3652 = vadd.f32 %v3608, %v3651
        %v3653 = vand.u32 %v3400, 4294901760
        %v3654 = vsub.f32 %v3400, %v3653
        %v3655 = vand.u32 %v3654, 4294901760
        %3656 = vmatmul.f32.gmra.mxu0 %v3655
        %v3657 = vpop.f32.mrf.mxu0
        %v3658 = vadd.f32 %v3613, %v3657
        %3659 = vdwg.mxu0
        %v3660 = vand.u32 %v2360, 4294901760
        %v3661 = vsub.f32 %v2360, %v3660
        %v3662 = vand.u32 %v3661, 4294901760
        %3663 = vmatpush.msra.mxu0 %v3662
        %v3664 = vand.u32 %v2358, 4294901760
        %v3665 = vsub.f32 %v2358, %v3664
        %v3666 = vand.u32 %v3665, 4294901760
        %3667 = vmatpush.msra.mxu0 %v3666
        %v3668 = vand.u32 %v2356, 4294901760
        %v3669 = vsub.f32 %v2356, %v3668
        %v3670 = vand.u32 %v3669, 4294901760
        %3671 = vmatpush.msra.mxu0 %v3670
        %v3672 = vand.u32 %v2354, 4294901760
        %v3673 = vsub.f32 %v2354, %v3672
        %v3674 = vand.u32 %v3673, 4294901760
        %3675 = vmatpush.msra.mxu0 %v3674
        %v3676 = vand.u32 %v2352, 4294901760
        %v3677 = vsub.f32 %v2352, %v3676
        %v3678 = vand.u32 %v3677, 4294901760
        %3679 = vmatpush.msra.mxu0 %v3678
        %v3680 = vand.u32 %v2350, 4294901760
        %v3681 = vsub.f32 %v2350, %v3680
        %v3682 = vand.u32 %v3681, 4294901760
        %3683 = vmatpush.msra.mxu0 %v3682
        %v3684 = vand.u32 %v2348, 4294901760
        %v3685 = vsub.f32 %v2348, %v3684
        %v3686 = vand.u32 %v3685, 4294901760
        %3687 = vmatpush.msra.mxu0 %v3686
        %v3688 = vand.u32 %v2346, 4294901760
        %v3689 = vsub.f32 %v2346, %v3688
        %v3690 = vand.u32 %v3689, 4294901760
        %3691 = vmatpush.msra.mxu0 %v3690
        %v3692 = vand.u32 %v2344, 4294901760
        %v3693 = vsub.f32 %v2344, %v3692
        %v3694 = vand.u32 %v3693, 4294901760
        %3695 = vmatpush.msra.mxu0 %v3694
        %v3696 = vand.u32 %v2342, 4294901760
        %v3697 = vsub.f32 %v2342, %v3696
        %v3698 = vand.u32 %v3697, 4294901760
        %3699 = vmatpush.msra.mxu0 %v3698
        %v3700 = vand.u32 %v2340, 4294901760
        %v3701 = vsub.f32 %v2340, %v3700
        %v3702 = vand.u32 %v3701, 4294901760
        %3703 = vmatpush.msra.mxu0 %v3702
        %v3704 = vand.u32 %v2338, 4294901760
        %v3705 = vsub.f32 %v2338, %v3704
        %v3706 = vand.u32 %v3705, 4294901760
        %3707 = vmatpush.msra.mxu0 %v3706
        %v3708 = vand.u32 %v2336, 4294901760
        %v3709 = vsub.f32 %v2336, %v3708
        %v3710 = vand.u32 %v3709, 4294901760
        %3711 = vmatpush.msra.mxu0 %v3710
        %v3712 = vand.u32 %v2334, 4294901760
        %v3713 = vsub.f32 %v2334, %v3712
        %v3714 = vand.u32 %v3713, 4294901760
        %3715 = vmatpush.msra.mxu0 %v3714
        %v3716 = vand.u32 %v2332, 4294901760
        %v3717 = vsub.f32 %v2332, %v3716
        %v3718 = vand.u32 %v3717, 4294901760
        %3719 = vmatpush.msra.mxu0 %v3718
        %v3720 = vand.u32 %v2330, 4294901760
        %v3721 = vsub.f32 %v2330, %v3720
        %v3722 = vand.u32 %v3721, 4294901760
        %3723 = vmatpush.msra.mxu0 %v3722
        %v3724 = vand.u32 %v3319, 4294901760
        %3725 = vmatmul.f32.gmra.mxu0 %v3724
        %v3726 = vpop.f32.mrf.mxu0
        %v3727 = vadd.f32 %v3652, %v3726
        %v3728 = vand.u32 %v3400, 4294901760
        %3729 = vmatmul.f32.gmra.mxu0 %v3728
        %v3730 = vpop.f32.mrf.mxu0
        %v3731 = vadd.f32 %v3658, %v3730
        %3732 = vdwg.mxu0
        %v3733 = vand.u32 %v2360, 4294901760
        %3734 = vmatpush.msra.mxu0 %v3733
        %v3735 = vand.u32 %v2358, 4294901760
        %3736 = vmatpush.msra.mxu0 %v3735
        %v3737 = vand.u32 %v2356, 4294901760
        %3738 = vmatpush.msra.mxu0 %v3737
        %v3739 = vand.u32 %v2354, 4294901760
        %3740 = vmatpush.msra.mxu0 %v3739
        %v3741 = vand.u32 %v2352, 4294901760
        %3742 = vmatpush.msra.mxu0 %v3741
        %v3743 = vand.u32 %v2350, 4294901760
        %3744 = vmatpush.msra.mxu0 %v3743
        %v3745 = vand.u32 %v2348, 4294901760
        %3746 = vmatpush.msra.mxu0 %v3745
        %v3747 = vand.u32 %v2346, 4294901760
        %3748 = vmatpush.msra.mxu0 %v3747
        %v3749 = vand.u32 %v2344, 4294901760
        %3750 = vmatpush.msra.mxu0 %v3749
        %v3751 = vand.u32 %v2342, 4294901760
        %3752 = vmatpush.msra.mxu0 %v3751
        %v3753 = vand.u32 %v2340, 4294901760
        %3754 = vmatpush.msra.mxu0 %v3753
        %v3755 = vand.u32 %v2338, 4294901760
        %3756 = vmatpush.msra.mxu0 %v3755
        %v3757 = vand.u32 %v2336, 4294901760
        %3758 = vmatpush.msra.mxu0 %v3757
        %v3759 = vand.u32 %v2334, 4294901760
        %3760 = vmatpush.msra.mxu0 %v3759
        %v3761 = vand.u32 %v2332, 4294901760
        %3762 = vmatpush.msra.mxu0 %v3761
        %v3763 = vand.u32 %v2330, 4294901760
        %3764 = vmatpush.msra.mxu0 %v3763
        %v3765 = vand.u32 %v3319, 4294901760
        %3766 = vmatmul.f32.gmra.mxu0 %v3765
        %v3767 = vpop.f32.mrf.mxu0
        %v3768 = vadd.f32 %v3727, %v3767
        %v3769 = vand.u32 %v3400, 4294901760
        %3770 = vmatmul.f32.gmra.mxu0 %v3769
        %v3771 = vpop.f32.mrf.mxu0
        %v3772 = vadd.f32 %v3731, %v3771
        %3773 = vdwg.mxu0
        %v3774 = vand.u32 %v2392, 4294901760
        %3775 = vmatpush.msra.mxu0 %v3774
        %v3776 = vand.u32 %v2390, 4294901760
        %3777 = vmatpush.msra.mxu0 %v3776
        %v3778 = vand.u32 %v2388, 4294901760
        %3779 = vmatpush.msra.mxu0 %v3778
        %v3780 = vand.u32 %v2386, 4294901760
        %3781 = vmatpush.msra.mxu0 %v3780
        %v3782 = vand.u32 %v2384, 4294901760
        %3783 = vmatpush.msra.mxu0 %v3782
        %v3784 = vand.u32 %v2382, 4294901760
        %3785 = vmatpush.msra.mxu0 %v3784
        %v3786 = vand.u32 %v2380, 4294901760
        %3787 = vmatpush.msra.mxu0 %v3786
        %v3788 = vand.u32 %v2378, 4294901760
        %3789 = vmatpush.msra.mxu0 %v3788
        %v3790 = vand.u32 %v2376, 4294901760
        %3791 = vmatpush.msra.mxu0 %v3790
        %v3792 = vand.u32 %v2374, 4294901760
        %3793 = vmatpush.msra.mxu0 %v3792
        %v3794 = vand.u32 %v2372, 4294901760
        %3795 = vmatpush.msra.mxu0 %v3794
        %v3796 = vand.u32 %v2370, 4294901760
        %3797 = vmatpush.msra.mxu0 %v3796
        %v3798 = vand.u32 %v2368, 4294901760
        %3799 = vmatpush.msra.mxu0 %v3798
        %v3800 = vand.u32 %v2366, 4294901760
        %3801 = vmatpush.msra.mxu0 %v3800
        %v3802 = vand.u32 %v2364, 4294901760
        %3803 = vmatpush.msra.mxu0 %v3802
        %v3804 = vand.u32 %v2362, 4294901760
        %3805 = vmatpush.msra.mxu0 %v3804
        %v3806 = vand.u32 %v3397, 4294901760
        %v3807 = vsub.f32 %v3397, %v3806
        %v3808 = vand.u32 %v3807, 4294901760
        %v3809 = vsub.f32 %v3807, %v3808
        %v3810 = vand.u32 %v3809, 4294901760
        %3811 = vmatmul.f32.gmra.mxu0 %v3810
        %v3812 = vpop.f32.mrf.mxu0
        %v3813 = vadd.f32 %v3768, %v3812
        %v3814 = vand.u32 %v3401, 4294901760
        %v3815 = vsub.f32 %v3401, %v3814
        %v3816 = vand.u32 %v3815, 4294901760
        %v3817 = vsub.f32 %v3815, %v3816
        %v3818 = vand.u32 %v3817, 4294901760
        %3819 = vmatmul.f32.gmra.mxu0 %v3818
        %v3820 = vpop.f32.mrf.mxu0
        %v3821 = vadd.f32 %v3772, %v3820
        %3822 = vdwg.mxu0
        %v3823 = vand.u32 %v2392, 4294901760
        %v3824 = vsub.f32 %v2392, %v3823
        %v3825 = vand.u32 %v3824, 4294901760
        %v3826 = vsub.f32 %v3824, %v3825
        %v3827 = vand.u32 %v3826, 4294901760
        %3828 = vmatpush.msra.mxu0 %v3827
        %v3829 = vand.u32 %v2390, 4294901760
        %v3830 = vsub.f32 %v2390, %v3829
        %v3831 = vand.u32 %v3830, 4294901760
        %v3832 = vsub.f32 %v3830, %v3831
        %v3833 = vand.u32 %v3832, 4294901760
        %3834 = vmatpush.msra.mxu0 %v3833
        %v3835 = vand.u32 %v2388, 4294901760
        %v3836 = vsub.f32 %v2388, %v3835
        %v3837 = vand.u32 %v3836, 4294901760
        %v3838 = vsub.f32 %v3836, %v3837
        %v3839 = vand.u32 %v3838, 4294901760
        %3840 = vmatpush.msra.mxu0 %v3839
        %v3841 = vand.u32 %v2386, 4294901760
        %v3842 = vsub.f32 %v2386, %v3841
        %v3843 = vand.u32 %v3842, 4294901760
        %v3844 = vsub.f32 %v3842, %v3843
        %v3845 = vand.u32 %v3844, 4294901760
        %3846 = vmatpush.msra.mxu0 %v3845
        %v3847 = vand.u32 %v2384, 4294901760
        %v3848 = vsub.f32 %v2384, %v3847
        %v3849 = vand.u32 %v3848, 4294901760
        %v3850 = vsub.f32 %v3848, %v3849
        %v3851 = vand.u32 %v3850, 4294901760
        %3852 = vmatpush.msra.mxu0 %v3851
        %v3853 = vand.u32 %v2382, 4294901760
        %v3854 = vsub.f32 %v2382, %v3853
        %v3855 = vand.u32 %v3854, 4294901760
        %v3856 = vsub.f32 %v3854, %v3855
        %v3857 = vand.u32 %v3856, 4294901760
        %3858 = vmatpush.msra.mxu0 %v3857
        %v3859 = vand.u32 %v2380, 4294901760
        %v3860 = vsub.f32 %v2380, %v3859
        %v3861 = vand.u32 %v3860, 4294901760
        %v3862 = vsub.f32 %v3860, %v3861
        %v3863 = vand.u32 %v3862, 4294901760
        %3864 = vmatpush.msra.mxu0 %v3863
        %v3865 = vand.u32 %v2378, 4294901760
        %v3866 = vsub.f32 %v2378, %v3865
        %v3867 = vand.u32 %v3866, 4294901760
        %v3868 = vsub.f32 %v3866, %v3867
        %v3869 = vand.u32 %v3868, 4294901760
        %3870 = vmatpush.msra.mxu0 %v3869
        %v3871 = vand.u32 %v2376, 4294901760
        %v3872 = vsub.f32 %v2376, %v3871
        %v3873 = vand.u32 %v3872, 4294901760
        %v3874 = vsub.f32 %v3872, %v3873
        %v3875 = vand.u32 %v3874, 4294901760
        %3876 = vmatpush.msra.mxu0 %v3875
        %v3877 = vand.u32 %v2374, 4294901760
        %v3878 = vsub.f32 %v2374, %v3877
        %v3879 = vand.u32 %v3878, 4294901760
        %v3880 = vsub.f32 %v3878, %v3879
        %v3881 = vand.u32 %v3880, 4294901760
        %3882 = vmatpush.msra.mxu0 %v3881
        %v3883 = vand.u32 %v2372, 4294901760
        %v3884 = vsub.f32 %v2372, %v3883
        %v3885 = vand.u32 %v3884, 4294901760
        %v3886 = vsub.f32 %v3884, %v3885
        %v3887 = vand.u32 %v3886, 4294901760
        %3888 = vmatpush.msra.mxu0 %v3887
        %v3889 = vand.u32 %v2370, 4294901760
        %v3890 = vsub.f32 %v2370, %v3889
        %v3891 = vand.u32 %v3890, 4294901760
        %v3892 = vsub.f32 %v3890, %v3891
        %v3893 = vand.u32 %v3892, 4294901760
        %3894 = vmatpush.msra.mxu0 %v3893
        %v3895 = vand.u32 %v2368, 4294901760
        %v3896 = vsub.f32 %v2368, %v3895
        %v3897 = vand.u32 %v3896, 4294901760
        %v3898 = vsub.f32 %v3896, %v3897
        %v3899 = vand.u32 %v3898, 4294901760
        %3900 = vmatpush.msra.mxu0 %v3899
        %v3901 = vand.u32 %v2366, 4294901760
        %v3902 = vsub.f32 %v2366, %v3901
        %v3903 = vand.u32 %v3902, 4294901760
        %v3904 = vsub.f32 %v3902, %v3903
        %v3905 = vand.u32 %v3904, 4294901760
        %3906 = vmatpush.msra.mxu0 %v3905
        %v3907 = vand.u32 %v2364, 4294901760
        %v3908 = vsub.f32 %v2364, %v3907
        %v3909 = vand.u32 %v3908, 4294901760
        %v3910 = vsub.f32 %v3908, %v3909
        %v3911 = vand.u32 %v3910, 4294901760
        %3912 = vmatpush.msra.mxu0 %v3911
        %v3913 = vand.u32 %v2362, 4294901760
        %v3914 = vsub.f32 %v2362, %v3913
        %v3915 = vand.u32 %v3914, 4294901760
        %v3916 = vsub.f32 %v3914, %v3915
        %v3917 = vand.u32 %v3916, 4294901760
        %3918 = vmatpush.msra.mxu0 %v3917
        %v3919 = vand.u32 %v3397, 4294901760
        %3920 = vmatmul.f32.gmra.mxu0 %v3919
        %v3921 = vpop.f32.mrf.mxu0
        %v3922 = vadd.f32 %v3813, %v3921
        %v3923 = vand.u32 %v3401, 4294901760
        %3924 = vmatmul.f32.gmra.mxu0 %v3923
        %v3925 = vpop.f32.mrf.mxu0
        %v3926 = vadd.f32 %v3821, %v3925
        %3927 = vdwg.mxu0
        %v3928 = vand.u32 %v2392, 4294901760
        %v3929 = vsub.f32 %v2392, %v3928
        %3930 = vmatpush.msra.mxu0 %v3929
        %v3931 = vand.u32 %v2390, 4294901760
        %v3932 = vsub.f32 %v2390, %v3931
        %3933 = vmatpush.msra.mxu0 %v3932
        %v3934 = vand.u32 %v2388, 4294901760
        %v3935 = vsub.f32 %v2388, %v3934
        %3936 = vmatpush.msra.mxu0 %v3935
        %v3937 = vand.u32 %v2386, 4294901760
        %v3938 = vsub.f32 %v2386, %v3937
        %3939 = vmatpush.msra.mxu0 %v3938
        %v3940 = vand.u32 %v2384, 4294901760
        %v3941 = vsub.f32 %v2384, %v3940
        %3942 = vmatpush.msra.mxu0 %v3941
        %v3943 = vand.u32 %v2382, 4294901760
        %v3944 = vsub.f32 %v2382, %v3943
        %3945 = vmatpush.msra.mxu0 %v3944
        %v3946 = vand.u32 %v2380, 4294901760
        %v3947 = vsub.f32 %v2380, %v3946
        %3948 = vmatpush.msra.mxu0 %v3947
        %v3949 = vand.u32 %v2378, 4294901760
        %v3950 = vsub.f32 %v2378, %v3949
        %3951 = vmatpush.msra.mxu0 %v3950
        %v3952 = vand.u32 %v2376, 4294901760
        %v3953 = vsub.f32 %v2376, %v3952
        %3954 = vmatpush.msra.mxu0 %v3953
        %v3955 = vand.u32 %v2374, 4294901760
        %v3956 = vsub.f32 %v2374, %v3955
        %3957 = vmatpush.msra.mxu0 %v3956
        %v3958 = vand.u32 %v2372, 4294901760
        %v3959 = vsub.f32 %v2372, %v3958
        %3960 = vmatpush.msra.mxu0 %v3959
        %v3961 = vand.u32 %v2370, 4294901760
        %v3962 = vsub.f32 %v2370, %v3961
        %3963 = vmatpush.msra.mxu0 %v3962
        %v3964 = vand.u32 %v2368, 4294901760
        %v3965 = vsub.f32 %v2368, %v3964
        %3966 = vmatpush.msra.mxu0 %v3965
        %v3967 = vand.u32 %v2366, 4294901760
        %v3968 = vsub.f32 %v2366, %v3967
        %3969 = vmatpush.msra.mxu0 %v3968
        %v3970 = vand.u32 %v2364, 4294901760
        %v3971 = vsub.f32 %v2364, %v3970
        %3972 = vmatpush.msra.mxu0 %v3971
        %v3973 = vand.u32 %v2362, 4294901760
        %v3974 = vsub.f32 %v2362, %v3973
        %3975 = vmatpush.msra.mxu0 %v3974
        %v3976 = vand.u32 %v3397, 4294901760
        %v3977 = vsub.f32 %v3397, %v3976
        %3978 = vmatmul.f32.gmra.mxu0 %v3977
        %v3979 = vpop.f32.mrf.mxu0
        %v3980 = vadd.f32 %v3922, %v3979
        %v3981 = vand.u32 %v3401, 4294901760
        %v3982 = vsub.f32 %v3401, %v3981
        %3983 = vmatmul.f32.gmra.mxu0 %v3982
        %v3984 = vpop.f32.mrf.mxu0
        %v3985 = vadd.f32 %v3926, %v3984
        %3986 = vdwg.mxu0
        %v3987 = vand.u32 %v2392, 4294901760
        %3988 = vmatpush.msra.mxu0 %v3987
        %v3989 = vand.u32 %v2390, 4294901760
        %3990 = vmatpush.msra.mxu0 %v3989
        %v3991 = vand.u32 %v2388, 4294901760
        %3992 = vmatpush.msra.mxu0 %v3991
        %v3993 = vand.u32 %v2386, 4294901760
        %3994 = vmatpush.msra.mxu0 %v3993
        %v3995 = vand.u32 %v2384, 4294901760
        %3996 = vmatpush.msra.mxu0 %v3995
        %v3997 = vand.u32 %v2382, 4294901760
        %3998 = vmatpush.msra.mxu0 %v3997
        %v3999 = vand.u32 %v2380, 4294901760
        %4000 = vmatpush.msra.mxu0 %v3999
        %v4001 = vand.u32 %v2378, 4294901760
        %4002 = vmatpush.msra.mxu0 %v4001
        %v4003 = vand.u32 %v2376, 4294901760
        %4004 = vmatpush.msra.mxu0 %v4003
        %v4005 = vand.u32 %v2374, 4294901760
        %4006 = vmatpush.msra.mxu0 %v4005
        %v4007 = vand.u32 %v2372, 4294901760
        %4008 = vmatpush.msra.mxu0 %v4007
        %v4009 = vand.u32 %v2370, 4294901760
        %4010 = vmatpush.msra.mxu0 %v4009
        %v4011 = vand.u32 %v2368, 4294901760
        %4012 = vmatpush.msra.mxu0 %v4011
        %v4013 = vand.u32 %v2366, 4294901760
        %4014 = vmatpush.msra.mxu0 %v4013
        %v4015 = vand.u32 %v2364, 4294901760
        %4016 = vmatpush.msra.mxu0 %v4015
        %v4017 = vand.u32 %v2362, 4294901760
        %4018 = vmatpush.msra.mxu0 %v4017
        %v4019 = vand.u32 %v3397, 4294901760
        %v4020 = vsub.f32 %v3397, %v4019
        %v4021 = vand.u32 %v4020, 4294901760
        %4022 = vmatmul.f32.gmra.mxu0 %v4021
        %v4023 = vpop.f32.mrf.mxu0
        %v4024 = vadd.f32 %v3980, %v4023
        %v4025 = vand.u32 %v3401, 4294901760
        %v4026 = vsub.f32 %v3401, %v4025
        %v4027 = vand.u32 %v4026, 4294901760
        %4028 = vmatmul.f32.gmra.mxu0 %v4027
        %v4029 = vpop.f32.mrf.mxu0
        %v4030 = vadd.f32 %v3985, %v4029
        %4031 = vdwg.mxu0
        %v4032 = vand.u32 %v2392, 4294901760
        %v4033 = vsub.f32 %v2392, %v4032
        %v4034 = vand.u32 %v4033, 4294901760
        %4035 = vmatpush.msra.mxu0 %v4034
        %v4036 = vand.u32 %v2390, 4294901760
        %v4037 = vsub.f32 %v2390, %v4036
        %v4038 = vand.u32 %v4037, 4294901760
        %4039 = vmatpush.msra.mxu0 %v4038
        %v4040 = vand.u32 %v2388, 4294901760
        %v4041 = vsub.f32 %v2388, %v4040
        %v4042 = vand.u32 %v4041, 4294901760
        %4043 = vmatpush.msra.mxu0 %v4042
        %v4044 = vand.u32 %v2386, 4294901760
        %v4045 = vsub.f32 %v2386, %v4044
        %v4046 = vand.u32 %v4045, 4294901760
        %4047 = vmatpush.msra.mxu0 %v4046
        %v4048 = vand.u32 %v2384, 4294901760
        %v4049 = vsub.f32 %v2384, %v4048
        %v4050 = vand.u32 %v4049, 4294901760
        %4051 = vmatpush.msra.mxu0 %v4050
        %v4052 = vand.u32 %v2382, 4294901760
        %v4053 = vsub.f32 %v2382, %v4052
        %v4054 = vand.u32 %v4053, 4294901760
        %4055 = vmatpush.msra.mxu0 %v4054
        %v4056 = vand.u32 %v2380, 4294901760
        %v4057 = vsub.f32 %v2380, %v4056
        %v4058 = vand.u32 %v4057, 4294901760
        %4059 = vmatpush.msra.mxu0 %v4058
        %v4060 = vand.u32 %v2378, 4294901760
        %v4061 = vsub.f32 %v2378, %v4060
        %v4062 = vand.u32 %v4061, 4294901760
        %4063 = vmatpush.msra.mxu0 %v4062
        %v4064 = vand.u32 %v2376, 4294901760
        %v4065 = vsub.f32 %v2376, %v4064
        %v4066 = vand.u32 %v4065, 4294901760
        %4067 = vmatpush.msra.mxu0 %v4066
        %v4068 = vand.u32 %v2374, 4294901760
        %v4069 = vsub.f32 %v2374, %v4068
        %v4070 = vand.u32 %v4069, 4294901760
        %4071 = vmatpush.msra.mxu0 %v4070
        %v4072 = vand.u32 %v2372, 4294901760
        %v4073 = vsub.f32 %v2372, %v4072
        %v4074 = vand.u32 %v4073, 4294901760
        %4075 = vmatpush.msra.mxu0 %v4074
        %v4076 = vand.u32 %v2370, 4294901760
        %v4077 = vsub.f32 %v2370, %v4076
        %v4078 = vand.u32 %v4077, 4294901760
        %4079 = vmatpush.msra.mxu0 %v4078
        %v4080 = vand.u32 %v2368, 4294901760
        %v4081 = vsub.f32 %v2368, %v4080
        %v4082 = vand.u32 %v4081, 4294901760
        %4083 = vmatpush.msra.mxu0 %v4082
        %v4084 = vand.u32 %v2366, 4294901760
        %v4085 = vsub.f32 %v2366, %v4084
        %v4086 = vand.u32 %v4085, 4294901760
        %4087 = vmatpush.msra.mxu0 %v4086
        %v4088 = vand.u32 %v2364, 4294901760
        %v4089 = vsub.f32 %v2364, %v4088
        %v4090 = vand.u32 %v4089, 4294901760
        %4091 = vmatpush.msra.mxu0 %v4090
        %v4092 = vand.u32 %v2362, 4294901760
        %v4093 = vsub.f32 %v2362, %v4092
        %v4094 = vand.u32 %v4093, 4294901760
        %4095 = vmatpush.msra.mxu0 %v4094
        %v4096 = vand.u32 %v3397, 4294901760
        %4097 = vmatmul.f32.gmra.mxu0 %v4096
        %v4098 = vpop.f32.mrf.mxu0
        %v4099 = vadd.f32 %v4024, %v4098
        %v4100 = vand.u32 %v3401, 4294901760
        %4101 = vmatmul.f32.gmra.mxu0 %v4100
        %v4102 = vpop.f32.mrf.mxu0
        %v4103 = vadd.f32 %v4030, %v4102
        %4104 = vdwg.mxu0
        %v4105 = vand.u32 %v2392, 4294901760
        %4106 = vmatpush.msra.mxu0 %v4105
        %v4107 = vand.u32 %v2390, 4294901760
        %4108 = vmatpush.msra.mxu0 %v4107
        %v4109 = vand.u32 %v2388, 4294901760
        %4110 = vmatpush.msra.mxu0 %v4109
        %v4111 = vand.u32 %v2386, 4294901760
        %4112 = vmatpush.msra.mxu0 %v4111
        %v4113 = vand.u32 %v2384, 4294901760
        %4114 = vmatpush.msra.mxu0 %v4113
        %v4115 = vand.u32 %v2382, 4294901760
        %4116 = vmatpush.msra.mxu0 %v4115
        %v4117 = vand.u32 %v2380, 4294901760
        %4118 = vmatpush.msra.mxu0 %v4117
        %v4119 = vand.u32 %v2378, 4294901760
        %4120 = vmatpush.msra.mxu0 %v4119
        %v4121 = vand.u32 %v2376, 4294901760
        %4122 = vmatpush.msra.mxu0 %v4121
        %v4123 = vand.u32 %v2374, 4294901760
        %4124 = vmatpush.msra.mxu0 %v4123
        %v4125 = vand.u32 %v2372, 4294901760
        %4126 = vmatpush.msra.mxu0 %v4125
        %v4127 = vand.u32 %v2370, 4294901760
        %4128 = vmatpush.msra.mxu0 %v4127
        %v4129 = vand.u32 %v2368, 4294901760
        %4130 = vmatpush.msra.mxu0 %v4129
        %v4131 = vand.u32 %v2366, 4294901760
        %4132 = vmatpush.msra.mxu0 %v4131
        %v4133 = vand.u32 %v2364, 4294901760
        %4134 = vmatpush.msra.mxu0 %v4133
        %v4135 = vand.u32 %v2362, 4294901760
        %4136 = vmatpush.msra.mxu0 %v4135
        %v4137 = vand.u32 %v3397, 4294901760
        %4138 = vmatmul.f32.gmra.mxu0 %v4137
        %v4139 = vpop.f32.mrf.mxu0
        %v4140 = vadd.f32 %v4099, %v4139
        %v4141 = vand.u32 %v3401, 4294901760
        %4142 = vmatmul.f32.gmra.mxu0 %v4141
        %v4143 = vpop.f32.mrf.mxu0
        %v4144 = vadd.f32 %v4103, %v4143
        %4145 = vdwg.mxu0
        %v4146 = vand.u32 %v2361, 4294901760
        %4147 = vmatpush.msra.mxu0 %v4146
        %v4148 = vand.u32 %v2359, 4294901760
        %4149 = vmatpush.msra.mxu0 %v4148
        %v4150 = vand.u32 %v2357, 4294901760
        %4151 = vmatpush.msra.mxu0 %v4150
        %v4152 = vand.u32 %v2355, 4294901760
        %4153 = vmatpush.msra.mxu0 %v4152
        %v4154 = vand.u32 %v2353, 4294901760
        %4155 = vmatpush.msra.mxu0 %v4154
        %v4156 = vand.u32 %v2351, 4294901760
        %4157 = vmatpush.msra.mxu0 %v4156
        %v4158 = vand.u32 %v2349, 4294901760
        %4159 = vmatpush.msra.mxu0 %v4158
        %v4160 = vand.u32 %v2347, 4294901760
        %4161 = vmatpush.msra.mxu0 %v4160
        %v4162 = vand.u32 %v2345, 4294901760
        %4163 = vmatpush.msra.mxu0 %v4162
        %v4164 = vand.u32 %v2343, 4294901760
        %4165 = vmatpush.msra.mxu0 %v4164
        %v4166 = vand.u32 %v2341, 4294901760
        %4167 = vmatpush.msra.mxu0 %v4166
        %v4168 = vand.u32 %v2339, 4294901760
        %4169 = vmatpush.msra.mxu0 %v4168
        %v4170 = vand.u32 %v2337, 4294901760
        %4171 = vmatpush.msra.mxu0 %v4170
        %v4172 = vand.u32 %v2335, 4294901760
        %4173 = vmatpush.msra.mxu0 %v4172
        %v4174 = vand.u32 %v2333, 4294901760
        %4175 = vmatpush.msra.mxu0 %v4174
        %v4176 = vand.u32 %v2331, 4294901760
        %4177 = vmatpush.msra.mxu0 %v4176
        %v4178 = vand.u32 %v3319, 4294901760
        %v4179 = vsub.f32 %v3319, %v4178
        %v4180 = vand.u32 %v4179, 4294901760
        %v4181 = vsub.f32 %v4179, %v4180
        %v4182 = vand.u32 %v4181, 4294901760
        %4183 = vmatmul.f32.gmra.mxu0 %v4182
        %v4184 = vpop.f32.mrf.mxu0
        %v4185 = vadd.f32 0.0, %v4184
        %v4186 = vand.u32 %v3400, 4294901760
        %v4187 = vsub.f32 %v3400, %v4186
        %v4188 = vand.u32 %v4187, 4294901760
        %v4189 = vsub.f32 %v4187, %v4188
        %v4190 = vand.u32 %v4189, 4294901760
        %4191 = vmatmul.f32.gmra.mxu0 %v4190
        %v4192 = vpop.f32.mrf.mxu0
        %v4193 = vadd.f32 0.0, %v4192
        %4194 = vdwg.mxu0
        %v4195 = vand.u32 %v2361, 4294901760
        %v4196 = vsub.f32 %v2361, %v4195
        %v4197 = vand.u32 %v4196, 4294901760
        %v4198 = vsub.f32 %v4196, %v4197
        %v4199 = vand.u32 %v4198, 4294901760
        %4200 = vmatpush.msra.mxu0 %v4199
        %v4201 = vand.u32 %v2359, 4294901760
        %v4202 = vsub.f32 %v2359, %v4201
        %v4203 = vand.u32 %v4202, 4294901760
        %v4204 = vsub.f32 %v4202, %v4203
        %v4205 = vand.u32 %v4204, 4294901760
        %4206 = vmatpush.msra.mxu0 %v4205
        %v4207 = vand.u32 %v2357, 4294901760
        %v4208 = vsub.f32 %v2357, %v4207
        %v4209 = vand.u32 %v4208, 4294901760
        %v4210 = vsub.f32 %v4208, %v4209
        %v4211 = vand.u32 %v4210, 4294901760
        %4212 = vmatpush.msra.mxu0 %v4211
        %v4213 = vand.u32 %v2355, 4294901760
        %v4214 = vsub.f32 %v2355, %v4213
        %v4215 = vand.u32 %v4214, 4294901760
        %v4216 = vsub.f32 %v4214, %v4215
        %v4217 = vand.u32 %v4216, 4294901760
        %4218 = vmatpush.msra.mxu0 %v4217
        %v4219 = vand.u32 %v2353, 4294901760
        %v4220 = vsub.f32 %v2353, %v4219
        %v4221 = vand.u32 %v4220, 4294901760
        %v4222 = vsub.f32 %v4220, %v4221
        %v4223 = vand.u32 %v4222, 4294901760
        %4224 = vmatpush.msra.mxu0 %v4223
        %v4225 = vand.u32 %v2351, 4294901760
        %v4226 = vsub.f32 %v2351, %v4225
        %v4227 = vand.u32 %v4226, 4294901760
        %v4228 = vsub.f32 %v4226, %v4227
        %v4229 = vand.u32 %v4228, 4294901760
        %4230 = vmatpush.msra.mxu0 %v4229
        %v4231 = vand.u32 %v2349, 4294901760
        %v4232 = vsub.f32 %v2349, %v4231
        %v4233 = vand.u32 %v4232, 4294901760
        %v4234 = vsub.f32 %v4232, %v4233
        %v4235 = vand.u32 %v4234, 4294901760
        %4236 = vmatpush.msra.mxu0 %v4235
        %v4237 = vand.u32 %v2347, 4294901760
        %v4238 = vsub.f32 %v2347, %v4237
        %v4239 = vand.u32 %v4238, 4294901760
        %v4240 = vsub.f32 %v4238, %v4239
        %v4241 = vand.u32 %v4240, 4294901760
        %4242 = vmatpush.msra.mxu0 %v4241
        %v4243 = vand.u32 %v2345, 4294901760
        %v4244 = vsub.f32 %v2345, %v4243
        %v4245 = vand.u32 %v4244, 4294901760
        %v4246 = vsub.f32 %v4244, %v4245
        %v4247 = vand.u32 %v4246, 4294901760
        %4248 = vmatpush.msra.mxu0 %v4247
        %v4249 = vand.u32 %v2343, 4294901760
        %v4250 = vsub.f32 %v2343, %v4249
        %v4251 = vand.u32 %v4250, 4294901760
        %v4252 = vsub.f32 %v4250, %v4251
        %v4253 = vand.u32 %v4252, 4294901760
        %4254 = vmatpush.msra.mxu0 %v4253
        %v4255 = vand.u32 %v2341, 4294901760
        %v4256 = vsub.f32 %v2341, %v4255
        %v4257 = vand.u32 %v4256, 4294901760
        %v4258 = vsub.f32 %v4256, %v4257
        %v4259 = vand.u32 %v4258, 4294901760
        %4260 = vmatpush.msra.mxu0 %v4259
        %v4261 = vand.u32 %v2339, 4294901760
        %v4262 = vsub.f32 %v2339, %v4261
        %v4263 = vand.u32 %v4262, 4294901760
        %v4264 = vsub.f32 %v4262, %v4263
        %v4265 = vand.u32 %v4264, 4294901760
        %4266 = vmatpush.msra.mxu0 %v4265
        %v4267 = vand.u32 %v2337, 4294901760
        %v4268 = vsub.f32 %v2337, %v4267
        %v4269 = vand.u32 %v4268, 4294901760
        %v4270 = vsub.f32 %v4268, %v4269
        %v4271 = vand.u32 %v4270, 4294901760
        %4272 = vmatpush.msra.mxu0 %v4271
        %v4273 = vand.u32 %v2335, 4294901760
        %v4274 = vsub.f32 %v2335, %v4273
        %v4275 = vand.u32 %v4274, 4294901760
        %v4276 = vsub.f32 %v4274, %v4275
        %v4277 = vand.u32 %v4276, 4294901760
        %4278 = vmatpush.msra.mxu0 %v4277
        %v4279 = vand.u32 %v2333, 4294901760
        %v4280 = vsub.f32 %v2333, %v4279
        %v4281 = vand.u32 %v4280, 4294901760
        %v4282 = vsub.f32 %v4280, %v4281
        %v4283 = vand.u32 %v4282, 4294901760
        %4284 = vmatpush.msra.mxu0 %v4283
        %v4285 = vand.u32 %v2331, 4294901760
        %v4286 = vsub.f32 %v2331, %v4285
        %v4287 = vand.u32 %v4286, 4294901760
        %v4288 = vsub.f32 %v4286, %v4287
        %v4289 = vand.u32 %v4288, 4294901760
        %4290 = vmatpush.msra.mxu0 %v4289
        %v4291 = vand.u32 %v3319, 4294901760
        %4292 = vmatmul.f32.gmra.mxu0 %v4291
        %v4293 = vpop.f32.mrf.mxu0
        %v4294 = vadd.f32 %v4185, %v4293
        %v4295 = vand.u32 %v3400, 4294901760
        %4296 = vmatmul.f32.gmra.mxu0 %v4295
        %v4297 = vpop.f32.mrf.mxu0
        %v4298 = vadd.f32 %v4193, %v4297
        %4299 = vdwg.mxu0
        %v4300 = vand.u32 %v2361, 4294901760
        %v4301 = vsub.f32 %v2361, %v4300
        %4302 = vmatpush.msra.mxu0 %v4301
        %v4303 = vand.u32 %v2359, 4294901760
        %v4304 = vsub.f32 %v2359, %v4303
        %4305 = vmatpush.msra.mxu0 %v4304
        %v4306 = vand.u32 %v2357, 4294901760
        %v4307 = vsub.f32 %v2357, %v4306
        %4308 = vmatpush.msra.mxu0 %v4307
        %v4309 = vand.u32 %v2355, 4294901760
        %v4310 = vsub.f32 %v2355, %v4309
        %4311 = vmatpush.msra.mxu0 %v4310
        %v4312 = vand.u32 %v2353, 4294901760
        %v4313 = vsub.f32 %v2353, %v4312
        %4314 = vmatpush.msra.mxu0 %v4313
        %v4315 = vand.u32 %v2351, 4294901760
        %v4316 = vsub.f32 %v2351, %v4315
        %4317 = vmatpush.msra.mxu0 %v4316
        %v4318 = vand.u32 %v2349, 4294901760
        %v4319 = vsub.f32 %v2349, %v4318
        %4320 = vmatpush.msra.mxu0 %v4319
        %v4321 = vand.u32 %v2347, 4294901760
        %v4322 = vsub.f32 %v2347, %v4321
        %4323 = vmatpush.msra.mxu0 %v4322
        %v4324 = vand.u32 %v2345, 4294901760
        %v4325 = vsub.f32 %v2345, %v4324
        %4326 = vmatpush.msra.mxu0 %v4325
        %v4327 = vand.u32 %v2343, 4294901760
        %v4328 = vsub.f32 %v2343, %v4327
        %4329 = vmatpush.msra.mxu0 %v4328
        %v4330 = vand.u32 %v2341, 4294901760
        %v4331 = vsub.f32 %v2341, %v4330
        %4332 = vmatpush.msra.mxu0 %v4331
        %v4333 = vand.u32 %v2339, 4294901760
        %v4334 = vsub.f32 %v2339, %v4333
        %4335 = vmatpush.msra.mxu0 %v4334
        %v4336 = vand.u32 %v2337, 4294901760
        %v4337 = vsub.f32 %v2337, %v4336
        %4338 = vmatpush.msra.mxu0 %v4337
        %v4339 = vand.u32 %v2335, 4294901760
        %v4340 = vsub.f32 %v2335, %v4339
        %4341 = vmatpush.msra.mxu0 %v4340
        %v4342 = vand.u32 %v2333, 4294901760
        %v4343 = vsub.f32 %v2333, %v4342
        %4344 = vmatpush.msra.mxu0 %v4343
        %v4345 = vand.u32 %v2331, 4294901760
        %v4346 = vsub.f32 %v2331, %v4345
        %4347 = vmatpush.msra.mxu0 %v4346
        %v4348 = vand.u32 %v3319, 4294901760
        %v4349 = vsub.f32 %v3319, %v4348
        %4350 = vmatmul.f32.gmra.mxu0 %v4349
        %v4351 = vpop.f32.mrf.mxu0
        %v4352 = vadd.f32 %v4294, %v4351
        %v4353 = vand.u32 %v3400, 4294901760
        %v4354 = vsub.f32 %v3400, %v4353
        %4355 = vmatmul.f32.gmra.mxu0 %v4354
        %v4356 = vpop.f32.mrf.mxu0
        %v4357 = vadd.f32 %v4298, %v4356
        %4358 = vdwg.mxu0
        %v4359 = vand.u32 %v2361, 4294901760
        %4360 = vmatpush.msra.mxu0 %v4359
        %v4361 = vand.u32 %v2359, 4294901760
        %4362 = vmatpush.msra.mxu0 %v4361
        %v4363 = vand.u32 %v2357, 4294901760
        %4364 = vmatpush.msra.mxu0 %v4363
        %v4365 = vand.u32 %v2355, 4294901760
        %4366 = vmatpush.msra.mxu0 %v4365
        %v4367 = vand.u32 %v2353, 4294901760
        %4368 = vmatpush.msra.mxu0 %v4367
        %v4369 = vand.u32 %v2351, 4294901760
        %4370 = vmatpush.msra.mxu0 %v4369
        %v4371 = vand.u32 %v2349, 4294901760
        %4372 = vmatpush.msra.mxu0 %v4371
        %v4373 = vand.u32 %v2347, 4294901760
        %4374 = vmatpush.msra.mxu0 %v4373
        %v4375 = vand.u32 %v2345, 4294901760
        %4376 = vmatpush.msra.mxu0 %v4375
        %v4377 = vand.u32 %v2343, 4294901760
        %4378 = vmatpush.msra.mxu0 %v4377
        %v4379 = vand.u32 %v2341, 4294901760
        %4380 = vmatpush.msra.mxu0 %v4379
        %v4381 = vand.u32 %v2339, 4294901760
        %4382 = vmatpush.msra.mxu0 %v4381
        %v4383 = vand.u32 %v2337, 4294901760
        %4384 = vmatpush.msra.mxu0 %v4383
        %v4385 = vand.u32 %v2335, 4294901760
        %4386 = vmatpush.msra.mxu0 %v4385
        %v4387 = vand.u32 %v2333, 4294901760
        %4388 = vmatpush.msra.mxu0 %v4387
        %v4389 = vand.u32 %v2331, 4294901760
        %4390 = vmatpush.msra.mxu0 %v4389
        %v4391 = vand.u32 %v3319, 4294901760
        %v4392 = vsub.f32 %v3319, %v4391
        %v4393 = vand.u32 %v4392, 4294901760
        %4394 = vmatmul.f32.gmra.mxu0 %v4393
        %v4395 = vpop.f32.mrf.mxu0
        %v4396 = vadd.f32 %v4352, %v4395
        %v4397 = vand.u32 %v3400, 4294901760
        %v4398 = vsub.f32 %v3400, %v4397
        %v4399 = vand.u32 %v4398, 4294901760
        %4400 = vmatmul.f32.gmra.mxu0 %v4399
        %v4401 = vpop.f32.mrf.mxu0
        %v4402 = vadd.f32 %v4357, %v4401
        %4403 = vdwg.mxu0
        %v4404 = vand.u32 %v2361, 4294901760
        %v4405 = vsub.f32 %v2361, %v4404
        %v4406 = vand.u32 %v4405, 4294901760
        %4407 = vmatpush.msra.mxu0 %v4406
        %v4408 = vand.u32 %v2359, 4294901760
        %v4409 = vsub.f32 %v2359, %v4408
        %v4410 = vand.u32 %v4409, 4294901760
        %4411 = vmatpush.msra.mxu0 %v4410
        %v4412 = vand.u32 %v2357, 4294901760
        %v4413 = vsub.f32 %v2357, %v4412
        %v4414 = vand.u32 %v4413, 4294901760
        %4415 = vmatpush.msra.mxu0 %v4414
        %v4416 = vand.u32 %v2355, 4294901760
        %v4417 = vsub.f32 %v2355, %v4416
        %v4418 = vand.u32 %v4417, 4294901760
        %4419 = vmatpush.msra.mxu0 %v4418
        %v4420 = vand.u32 %v2353, 4294901760
        %v4421 = vsub.f32 %v2353, %v4420
        %v4422 = vand.u32 %v4421, 4294901760
        %4423 = vmatpush.msra.mxu0 %v4422
        %v4424 = vand.u32 %v2351, 4294901760
        %v4425 = vsub.f32 %v2351, %v4424
        %v4426 = vand.u32 %v4425, 4294901760
        %4427 = vmatpush.msra.mxu0 %v4426
        %v4428 = vand.u32 %v2349, 4294901760
        %v4429 = vsub.f32 %v2349, %v4428
        %v4430 = vand.u32 %v4429, 4294901760
        %4431 = vmatpush.msra.mxu0 %v4430
        %v4432 = vand.u32 %v2347, 4294901760
        %v4433 = vsub.f32 %v2347, %v4432
        %v4434 = vand.u32 %v4433, 4294901760
        %4435 = vmatpush.msra.mxu0 %v4434
        %v4436 = vand.u32 %v2345, 4294901760
        %v4437 = vsub.f32 %v2345, %v4436
        %v4438 = vand.u32 %v4437, 4294901760
        %4439 = vmatpush.msra.mxu0 %v4438
        %v4440 = vand.u32 %v2343, 4294901760
        %v4441 = vsub.f32 %v2343, %v4440
        %v4442 = vand.u32 %v4441, 4294901760
        %4443 = vmatpush.msra.mxu0 %v4442
        %v4444 = vand.u32 %v2341, 4294901760
        %v4445 = vsub.f32 %v2341, %v4444
        %v4446 = vand.u32 %v4445, 4294901760
        %4447 = vmatpush.msra.mxu0 %v4446
        %v4448 = vand.u32 %v2339, 4294901760
        %v4449 = vsub.f32 %v2339, %v4448
        %v4450 = vand.u32 %v4449, 4294901760
        %4451 = vmatpush.msra.mxu0 %v4450
        %v4452 = vand.u32 %v2337, 4294901760
        %v4453 = vsub.f32 %v2337, %v4452
        %v4454 = vand.u32 %v4453, 4294901760
        %4455 = vmatpush.msra.mxu0 %v4454
        %v4456 = vand.u32 %v2335, 4294901760
        %v4457 = vsub.f32 %v2335, %v4456
        %v4458 = vand.u32 %v4457, 4294901760
        %4459 = vmatpush.msra.mxu0 %v4458
        %v4460 = vand.u32 %v2333, 4294901760
        %v4461 = vsub.f32 %v2333, %v4460
        %v4462 = vand.u32 %v4461, 4294901760
        %4463 = vmatpush.msra.mxu0 %v4462
        %v4464 = vand.u32 %v2331, 4294901760
        %v4465 = vsub.f32 %v2331, %v4464
        %v4466 = vand.u32 %v4465, 4294901760
        %4467 = vmatpush.msra.mxu0 %v4466
        %v4468 = vand.u32 %v3319, 4294901760
        %4469 = vmatmul.f32.gmra.mxu0 %v4468
        %v4470 = vpop.f32.mrf.mxu0
        %v4471 = vadd.f32 %v4396, %v4470
        %v4472 = vand.u32 %v3400, 4294901760
        %4473 = vmatmul.f32.gmra.mxu0 %v4472
        %v4474 = vpop.f32.mrf.mxu0
        %v4475 = vadd.f32 %v4402, %v4474
        %4476 = vdwg.mxu0
        %v4477 = vand.u32 %v2361, 4294901760
        %4478 = vmatpush.msra.mxu0 %v4477
        %v4479 = vand.u32 %v2359, 4294901760
        %4480 = vmatpush.msra.mxu0 %v4479
        %v4481 = vand.u32 %v2357, 4294901760
        %4482 = vmatpush.msra.mxu0 %v4481
        %v4483 = vand.u32 %v2355, 4294901760
        %4484 = vmatpush.msra.mxu0 %v4483
        %v4485 = vand.u32 %v2353, 4294901760
        %4486 = vmatpush.msra.mxu0 %v4485
        %v4487 = vand.u32 %v2351, 4294901760
        %4488 = vmatpush.msra.mxu0 %v4487
        %v4489 = vand.u32 %v2349, 4294901760
        %4490 = vmatpush.msra.mxu0 %v4489
        %v4491 = vand.u32 %v2347, 4294901760
        %4492 = vmatpush.msra.mxu0 %v4491
        %v4493 = vand.u32 %v2345, 4294901760
        %4494 = vmatpush.msra.mxu0 %v4493
        %v4495 = vand.u32 %v2343, 4294901760
        %4496 = vmatpush.msra.mxu0 %v4495
        %v4497 = vand.u32 %v2341, 4294901760
        %4498 = vmatpush.msra.mxu0 %v4497
        %v4499 = vand.u32 %v2339, 4294901760
        %4500 = vmatpush.msra.mxu0 %v4499
        %v4501 = vand.u32 %v2337, 4294901760
        %4502 = vmatpush.msra.mxu0 %v4501
        %v4503 = vand.u32 %v2335, 4294901760
        %4504 = vmatpush.msra.mxu0 %v4503
        %v4505 = vand.u32 %v2333, 4294901760
        %4506 = vmatpush.msra.mxu0 %v4505
        %v4507 = vand.u32 %v2331, 4294901760
        %4508 = vmatpush.msra.mxu0 %v4507
        %v4509 = vand.u32 %v3319, 4294901760
        %4510 = vmatmul.f32.gmra.mxu0 %v4509
        %v4511 = vpop.f32.mrf.mxu0
        %v4512 = vadd.f32 %v4471, %v4511
        %v4513 = vand.u32 %v3400, 4294901760
        %4514 = vmatmul.f32.gmra.mxu0 %v4513
        %v4515 = vpop.f32.mrf.mxu0
        %v4516 = vadd.f32 %v4475, %v4515
        %4517 = vdwg.mxu0
        %v4518 = vand.u32 %v2393, 4294901760
        %4519 = vmatpush.msra.mxu0 %v4518
        %v4520 = vand.u32 %v2391, 4294901760
        %4521 = vmatpush.msra.mxu0 %v4520
        %v4522 = vand.u32 %v2389, 4294901760
        %4523 = vmatpush.msra.mxu0 %v4522
        %v4524 = vand.u32 %v2387, 4294901760
        %4525 = vmatpush.msra.mxu0 %v4524
        %v4526 = vand.u32 %v2385, 4294901760
        %4527 = vmatpush.msra.mxu0 %v4526
        %v4528 = vand.u32 %v2383, 4294901760
        %4529 = vmatpush.msra.mxu0 %v4528
        %v4530 = vand.u32 %v2381, 4294901760
        %4531 = vmatpush.msra.mxu0 %v4530
        %v4532 = vand.u32 %v2379, 4294901760
        %4533 = vmatpush.msra.mxu0 %v4532
        %v4534 = vand.u32 %v2377, 4294901760
        %4535 = vmatpush.msra.mxu0 %v4534
        %v4536 = vand.u32 %v2375, 4294901760
        %4537 = vmatpush.msra.mxu0 %v4536
        %v4538 = vand.u32 %v2373, 4294901760
        %4539 = vmatpush.msra.mxu0 %v4538
        %v4540 = vand.u32 %v2371, 4294901760
        %4541 = vmatpush.msra.mxu0 %v4540
        %v4542 = vand.u32 %v2369, 4294901760
        %4543 = vmatpush.msra.mxu0 %v4542
        %v4544 = vand.u32 %v2367, 4294901760
        %4545 = vmatpush.msra.mxu0 %v4544
        %v4546 = vand.u32 %v2365, 4294901760
        %4547 = vmatpush.msra.mxu0 %v4546
        %v4548 = vand.u32 %v2363, 4294901760
        %4549 = vmatpush.msra.mxu0 %v4548
        %v4550 = vand.u32 %v3397, 4294901760
        %v4551 = vsub.f32 %v3397, %v4550
        %v4552 = vand.u32 %v4551, 4294901760
        %v4553 = vsub.f32 %v4551, %v4552
        %v4554 = vand.u32 %v4553, 4294901760
        %4555 = vmatmul.f32.gmra.mxu0 %v4554
        %v4556 = vpop.f32.mrf.mxu0
        %v4557 = vadd.f32 %v4512, %v4556
        %v4558 = vand.u32 %v3401, 4294901760
        %v4559 = vsub.f32 %v3401, %v4558
        %v4560 = vand.u32 %v4559, 4294901760
        %v4561 = vsub.f32 %v4559, %v4560
        %v4562 = vand.u32 %v4561, 4294901760
        %4563 = vmatmul.f32.gmra.mxu0 %v4562
        %v4564 = vpop.f32.mrf.mxu0
        %v4565 = vadd.f32 %v4516, %v4564
        %4566 = vdwg.mxu0
        %v4567 = vand.u32 %v2393, 4294901760
        %v4568 = vsub.f32 %v2393, %v4567
        %v4569 = vand.u32 %v4568, 4294901760
        %v4570 = vsub.f32 %v4568, %v4569
        %v4571 = vand.u32 %v4570, 4294901760
        %4572 = vmatpush.msra.mxu0 %v4571
        %v4573 = vand.u32 %v2391, 4294901760
        %v4574 = vsub.f32 %v2391, %v4573
        %v4575 = vand.u32 %v4574, 4294901760
        %v4576 = vsub.f32 %v4574, %v4575
        %v4577 = vand.u32 %v4576, 4294901760
        %4578 = vmatpush.msra.mxu0 %v4577
        %v4579 = vand.u32 %v2389, 4294901760
        %v4580 = vsub.f32 %v2389, %v4579
        %v4581 = vand.u32 %v4580, 4294901760
        %v4582 = vsub.f32 %v4580, %v4581
        %v4583 = vand.u32 %v4582, 4294901760
        %4584 = vmatpush.msra.mxu0 %v4583
        %v4585 = vand.u32 %v2387, 4294901760
        %v4586 = vsub.f32 %v2387, %v4585
        %v4587 = vand.u32 %v4586, 4294901760
        %v4588 = vsub.f32 %v4586, %v4587
        %v4589 = vand.u32 %v4588, 4294901760
        %4590 = vmatpush.msra.mxu0 %v4589
        %v4591 = vand.u32 %v2385, 4294901760
        %v4592 = vsub.f32 %v2385, %v4591
        %v4593 = vand.u32 %v4592, 4294901760
        %v4594 = vsub.f32 %v4592, %v4593
        %v4595 = vand.u32 %v4594, 4294901760
        %4596 = vmatpush.msra.mxu0 %v4595
        %v4597 = vand.u32 %v2383, 4294901760
        %v4598 = vsub.f32 %v2383, %v4597
        %v4599 = vand.u32 %v4598, 4294901760
        %v4600 = vsub.f32 %v4598, %v4599
        %v4601 = vand.u32 %v4600, 4294901760
        %4602 = vmatpush.msra.mxu0 %v4601
        %v4603 = vand.u32 %v2381, 4294901760
        %v4604 = vsub.f32 %v2381, %v4603
        %v4605 = vand.u32 %v4604, 4294901760
        %v4606 = vsub.f32 %v4604, %v4605
        %v4607 = vand.u32 %v4606, 4294901760
        %4608 = vmatpush.msra.mxu0 %v4607
        %v4609 = vand.u32 %v2379, 4294901760
        %v4610 = vsub.f32 %v2379, %v4609
        %v4611 = vand.u32 %v4610, 4294901760
        %v4612 = vsub.f32 %v4610, %v4611
        %v4613 = vand.u32 %v4612, 4294901760
        %4614 = vmatpush.msra.mxu0 %v4613
        %v4615 = vand.u32 %v2377, 4294901760
        %v4616 = vsub.f32 %v2377, %v4615
        %v4617 = vand.u32 %v4616, 4294901760
        %v4618 = vsub.f32 %v4616, %v4617
        %v4619 = vand.u32 %v4618, 4294901760
        %4620 = vmatpush.msra.mxu0 %v4619
        %v4621 = vand.u32 %v2375, 4294901760
        %v4622 = vsub.f32 %v2375, %v4621
        %v4623 = vand.u32 %v4622, 4294901760
        %v4624 = vsub.f32 %v4622, %v4623
        %v4625 = vand.u32 %v4624, 4294901760
        %4626 = vmatpush.msra.mxu0 %v4625
        %v4627 = vand.u32 %v2373, 4294901760
        %v4628 = vsub.f32 %v2373, %v4627
        %v4629 = vand.u32 %v4628, 4294901760
        %v4630 = vsub.f32 %v4628, %v4629
        %v4631 = vand.u32 %v4630, 4294901760
        %4632 = vmatpush.msra.mxu0 %v4631
        %v4633 = vand.u32 %v2371, 4294901760
        %v4634 = vsub.f32 %v2371, %v4633
        %v4635 = vand.u32 %v4634, 4294901760
        %v4636 = vsub.f32 %v4634, %v4635
        %v4637 = vand.u32 %v4636, 4294901760
        %4638 = vmatpush.msra.mxu0 %v4637
        %v4639 = vand.u32 %v2369, 4294901760
        %v4640 = vsub.f32 %v2369, %v4639
        %v4641 = vand.u32 %v4640, 4294901760
        %v4642 = vsub.f32 %v4640, %v4641
        %v4643 = vand.u32 %v4642, 4294901760
        %4644 = vmatpush.msra.mxu0 %v4643
        %v4645 = vand.u32 %v2367, 4294901760
        %v4646 = vsub.f32 %v2367, %v4645
        %v4647 = vand.u32 %v4646, 4294901760
        %v4648 = vsub.f32 %v4646, %v4647
        %v4649 = vand.u32 %v4648, 4294901760
        %4650 = vmatpush.msra.mxu0 %v4649
        %v4651 = vand.u32 %v2365, 4294901760
        %v4652 = vsub.f32 %v2365, %v4651
        %v4653 = vand.u32 %v4652, 4294901760
        %v4654 = vsub.f32 %v4652, %v4653
        %v4655 = vand.u32 %v4654, 4294901760
        %4656 = vmatpush.msra.mxu0 %v4655
        %v4657 = vand.u32 %v2363, 4294901760
        %v4658 = vsub.f32 %v2363, %v4657
        %v4659 = vand.u32 %v4658, 4294901760
        %v4660 = vsub.f32 %v4658, %v4659
        %v4661 = vand.u32 %v4660, 4294901760
        %4662 = vmatpush.msra.mxu0 %v4661
        %v4663 = vand.u32 %v3397, 4294901760
        %4664 = vmatmul.f32.gmra.mxu0 %v4663
        %v4665 = vpop.f32.mrf.mxu0
        %v4666 = vadd.f32 %v4557, %v4665
        %v4667 = vand.u32 %v3401, 4294901760
        %4668 = vmatmul.f32.gmra.mxu0 %v4667
        %v4669 = vpop.f32.mrf.mxu0
        %v4670 = vadd.f32 %v4565, %v4669
        %4671 = vdwg.mxu0
        %v4672 = vand.u32 %v2393, 4294901760
        %v4673 = vsub.f32 %v2393, %v4672
        %4674 = vmatpush.msra.mxu0 %v4673
        %v4675 = vand.u32 %v2391, 4294901760
        %v4676 = vsub.f32 %v2391, %v4675
        %4677 = vmatpush.msra.mxu0 %v4676
        %v4678 = vand.u32 %v2389, 4294901760
        %v4679 = vsub.f32 %v2389, %v4678
        %4680 = vmatpush.msra.mxu0 %v4679
        %v4681 = vand.u32 %v2387, 4294901760
        %v4682 = vsub.f32 %v2387, %v4681
        %4683 = vmatpush.msra.mxu0 %v4682
        %v4684 = vand.u32 %v2385, 4294901760
        %v4685 = vsub.f32 %v2385, %v4684
        %4686 = vmatpush.msra.mxu0 %v4685
        %v4687 = vand.u32 %v2383, 4294901760
        %v4688 = vsub.f32 %v2383, %v4687
        %4689 = vmatpush.msra.mxu0 %v4688
        %v4690 = vand.u32 %v2381, 4294901760
        %v4691 = vsub.f32 %v2381, %v4690
        %4692 = vmatpush.msra.mxu0 %v4691
        %v4693 = vand.u32 %v2379, 4294901760
        %v4694 = vsub.f32 %v2379, %v4693
        %4695 = vmatpush.msra.mxu0 %v4694
        %v4696 = vand.u32 %v2377, 4294901760
        %v4697 = vsub.f32 %v2377, %v4696
        %4698 = vmatpush.msra.mxu0 %v4697
        %v4699 = vand.u32 %v2375, 4294901760
        %v4700 = vsub.f32 %v2375, %v4699
        %4701 = vmatpush.msra.mxu0 %v4700
        %v4702 = vand.u32 %v2373, 4294901760
        %v4703 = vsub.f32 %v2373, %v4702
        %4704 = vmatpush.msra.mxu0 %v4703
        %v4705 = vand.u32 %v2371, 4294901760
        %v4706 = vsub.f32 %v2371, %v4705
        %4707 = vmatpush.msra.mxu0 %v4706
        %v4708 = vand.u32 %v2369, 4294901760
        %v4709 = vsub.f32 %v2369, %v4708
        %4710 = vmatpush.msra.mxu0 %v4709
        %v4711 = vand.u32 %v2367, 4294901760
        %v4712 = vsub.f32 %v2367, %v4711
        %4713 = vmatpush.msra.mxu0 %v4712
        %v4714 = vand.u32 %v2365, 4294901760
        %v4715 = vsub.f32 %v2365, %v4714
        %4716 = vmatpush.msra.mxu0 %v4715
        %v4717 = vand.u32 %v2363, 4294901760
        %v4718 = vsub.f32 %v2363, %v4717
        %4719 = vmatpush.msra.mxu0 %v4718
        %v4720 = vand.u32 %v3397, 4294901760
        %v4721 = vsub.f32 %v3397, %v4720
        %4722 = vmatmul.f32.gmra.mxu0 %v4721
        %v4723 = vpop.f32.mrf.mxu0
        %v4724 = vadd.f32 %v4666, %v4723
        %v4725 = vand.u32 %v3401, 4294901760
        %v4726 = vsub.f32 %v3401, %v4725
        %4727 = vmatmul.f32.gmra.mxu0 %v4726
        %v4728 = vpop.f32.mrf.mxu0
        %v4729 = vadd.f32 %v4670, %v4728
        %4730 = vdwg.mxu0
        %v4731 = vand.u32 %v2393, 4294901760
        %4732 = vmatpush.msra.mxu0 %v4731
        %v4733 = vand.u32 %v2391, 4294901760
        %4734 = vmatpush.msra.mxu0 %v4733
        %v4735 = vand.u32 %v2389, 4294901760
        %4736 = vmatpush.msra.mxu0 %v4735
        %v4737 = vand.u32 %v2387, 4294901760
        %4738 = vmatpush.msra.mxu0 %v4737
        %v4739 = vand.u32 %v2385, 4294901760
        %4740 = vmatpush.msra.mxu0 %v4739
        %v4741 = vand.u32 %v2383, 4294901760
        %4742 = vmatpush.msra.mxu0 %v4741
        %v4743 = vand.u32 %v2381, 4294901760
        %4744 = vmatpush.msra.mxu0 %v4743
        %v4745 = vand.u32 %v2379, 4294901760
        %4746 = vmatpush.msra.mxu0 %v4745
        %v4747 = vand.u32 %v2377, 4294901760
        %4748 = vmatpush.msra.mxu0 %v4747
        %v4749 = vand.u32 %v2375, 4294901760
        %4750 = vmatpush.msra.mxu0 %v4749
        %v4751 = vand.u32 %v2373, 4294901760
        %4752 = vmatpush.msra.mxu0 %v4751
        %v4753 = vand.u32 %v2371, 4294901760
        %4754 = vmatpush.msra.mxu0 %v4753
        %v4755 = vand.u32 %v2369, 4294901760
        %4756 = vmatpush.msra.mxu0 %v4755
        %v4757 = vand.u32 %v2367, 4294901760
        %4758 = vmatpush.msra.mxu0 %v4757
        %v4759 = vand.u32 %v2365, 4294901760
        %4760 = vmatpush.msra.mxu0 %v4759
        %v4761 = vand.u32 %v2363, 4294901760
        %4762 = vmatpush.msra.mxu0 %v4761
        %v4763 = vand.u32 %v3397, 4294901760
        %v4764 = vsub.f32 %v3397, %v4763
        %v4765 = vand.u32 %v4764, 4294901760
        %4766 = vmatmul.f32.gmra.mxu0 %v4765
        %v4767 = vpop.f32.mrf.mxu0
        %v4768 = vadd.f32 %v4724, %v4767
        %v4769 = vand.u32 %v3401, 4294901760
        %v4770 = vsub.f32 %v3401, %v4769
        %v4771 = vand.u32 %v4770, 4294901760
        %4772 = vmatmul.f32.gmra.mxu0 %v4771
        %v4773 = vpop.f32.mrf.mxu0
        %v4774 = vadd.f32 %v4729, %v4773
        %4775 = vdwg.mxu0
        %v4776 = vand.u32 %v2393, 4294901760
        %v4777 = vsub.f32 %v2393, %v4776
        %v4778 = vand.u32 %v4777, 4294901760
        %4779 = vmatpush.msra.mxu0 %v4778
        %v4780 = vand.u32 %v2391, 4294901760
        %v4781 = vsub.f32 %v2391, %v4780
        %v4782 = vand.u32 %v4781, 4294901760
        %4783 = vmatpush.msra.mxu0 %v4782
        %v4784 = vand.u32 %v2389, 4294901760
        %v4785 = vsub.f32 %v2389, %v4784
        %v4786 = vand.u32 %v4785, 4294901760
        %4787 = vmatpush.msra.mxu0 %v4786
        %v4788 = vand.u32 %v2387, 4294901760
        %v4789 = vsub.f32 %v2387, %v4788
        %v4790 = vand.u32 %v4789, 4294901760
        %4791 = vmatpush.msra.mxu0 %v4790
        %v4792 = vand.u32 %v2385, 4294901760
        %v4793 = vsub.f32 %v2385, %v4792
        %v4794 = vand.u32 %v4793, 4294901760
        %4795 = vmatpush.msra.mxu0 %v4794
        %v4796 = vand.u32 %v2383, 4294901760
        %v4797 = vsub.f32 %v2383, %v4796
        %v4798 = vand.u32 %v4797, 4294901760
        %4799 = vmatpush.msra.mxu0 %v4798
        %v4800 = vand.u32 %v2381, 4294901760
        %v4801 = vsub.f32 %v2381, %v4800
        %v4802 = vand.u32 %v4801, 4294901760
        %4803 = vmatpush.msra.mxu0 %v4802
        %v4804 = vand.u32 %v2379, 4294901760
        %v4805 = vsub.f32 %v2379, %v4804
        %v4806 = vand.u32 %v4805, 4294901760
        %4807 = vmatpush.msra.mxu0 %v4806
        %v4808 = vand.u32 %v2377, 4294901760
        %v4809 = vsub.f32 %v2377, %v4808
        %v4810 = vand.u32 %v4809, 4294901760
        %4811 = vmatpush.msra.mxu0 %v4810
        %v4812 = vand.u32 %v2375, 4294901760
        %v4813 = vsub.f32 %v2375, %v4812
        %v4814 = vand.u32 %v4813, 4294901760
        %4815 = vmatpush.msra.mxu0 %v4814
        %v4816 = vand.u32 %v2373, 4294901760
        %v4817 = vsub.f32 %v2373, %v4816
        %v4818 = vand.u32 %v4817, 4294901760
        %4819 = vmatpush.msra.mxu0 %v4818
        %v4820 = vand.u32 %v2371, 4294901760
        %v4821 = vsub.f32 %v2371, %v4820
        %v4822 = vand.u32 %v4821, 4294901760
        %4823 = vmatpush.msra.mxu0 %v4822
        %v4824 = vand.u32 %v2369, 4294901760
        %v4825 = vsub.f32 %v2369, %v4824
        %v4826 = vand.u32 %v4825, 4294901760
        %4827 = vmatpush.msra.mxu0 %v4826
        %v4828 = vand.u32 %v2367, 4294901760
        %v4829 = vsub.f32 %v2367, %v4828
        %v4830 = vand.u32 %v4829, 4294901760
        %4831 = vmatpush.msra.mxu0 %v4830
        %v4832 = vand.u32 %v2365, 4294901760
        %v4833 = vsub.f32 %v2365, %v4832
        %v4834 = vand.u32 %v4833, 4294901760
        %4835 = vmatpush.msra.mxu0 %v4834
        %v4836 = vand.u32 %v2363, 4294901760
        %v4837 = vsub.f32 %v2363, %v4836
        %v4838 = vand.u32 %v4837, 4294901760
        %4839 = vmatpush.msra.mxu0 %v4838
        %v4840 = vand.u32 %v3397, 4294901760
        %4841 = vmatmul.f32.gmra.mxu0 %v4840
        %v4842 = vpop.f32.mrf.mxu0
        %v4843 = vadd.f32 %v4768, %v4842
        %v4844 = vand.u32 %v3401, 4294901760
        %4845 = vmatmul.f32.gmra.mxu0 %v4844
        %v4846 = vpop.f32.mrf.mxu0
        %v4847 = vadd.f32 %v4774, %v4846
        %4848 = vdwg.mxu0
        %v4849 = vand.u32 %v2393, 4294901760
        %4850 = vmatpush.msra.mxu0 %v4849
        %v4851 = vand.u32 %v2391, 4294901760
        %4852 = vmatpush.msra.mxu0 %v4851
        %v4853 = vand.u32 %v2389, 4294901760
        %4854 = vmatpush.msra.mxu0 %v4853
        %v4855 = vand.u32 %v2387, 4294901760
        %4856 = vmatpush.msra.mxu0 %v4855
        %v4857 = vand.u32 %v2385, 4294901760
        %4858 = vmatpush.msra.mxu0 %v4857
        %v4859 = vand.u32 %v2383, 4294901760
        %4860 = vmatpush.msra.mxu0 %v4859
        %v4861 = vand.u32 %v2381, 4294901760
        %4862 = vmatpush.msra.mxu0 %v4861
        %v4863 = vand.u32 %v2379, 4294901760
        %4864 = vmatpush.msra.mxu0 %v4863
        %v4865 = vand.u32 %v2377, 4294901760
        %4866 = vmatpush.msra.mxu0 %v4865
        %v4867 = vand.u32 %v2375, 4294901760
        %4868 = vmatpush.msra.mxu0 %v4867
        %v4869 = vand.u32 %v2373, 4294901760
        %4870 = vmatpush.msra.mxu0 %v4869
        %v4871 = vand.u32 %v2371, 4294901760
        %4872 = vmatpush.msra.mxu0 %v4871
        %v4873 = vand.u32 %v2369, 4294901760
        %4874 = vmatpush.msra.mxu0 %v4873
        %v4875 = vand.u32 %v2367, 4294901760
        %4876 = vmatpush.msra.mxu0 %v4875
        %v4877 = vand.u32 %v2365, 4294901760
        %4878 = vmatpush.msra.mxu0 %v4877
        %v4879 = vand.u32 %v2363, 4294901760
        %4880 = vmatpush.msra.mxu0 %v4879
        %v4881 = vand.u32 %v3397, 4294901760
        %4882 = vmatmul.f32.gmra.mxu0 %v4881
        %v4883 = vpop.f32.mrf.mxu0
        %v4884 = vadd.f32 %v4843, %v4883
        %v4885 = vand.u32 %v3401, 4294901760
        %4886 = vmatmul.f32.gmra.mxu0 %v4885
        %v4887 = vpop.f32.mrf.mxu0
        %v4888 = vadd.f32 %v4847, %v4887
        %4889 = vdwg.mxu0
        %v4890 = vmul.f32 %v4140, %v4140
        %v4891 = vmul.f32 %v4884, %v4884
        %v4892 = vsub.f32 %v4144, %v4890
        %v4893 = vsub.f32 %v4888, %v4891
        %v4894 = vmax.f32 %v4892, 0.0
        %v4895 = vmax.f32 %v4893, 0.0
        %v4896 = vsub.f32 %v3319, %v4140
        %v4897 = vsub.f32 %v3397, %v4884
        %v4898 = vadd.f32 %v4894, 1e-05
        %v4899 = vadd.f32 %v4895, 1e-05
        %v4900 = vrsqrt.pop %v4898
        %v4901 = vmul.f32 %v4900, %v4898
        %v4902 = vmul.f32 %v4901, %v4900
        %v4903 = vmul.f32 0.5, %v4902
        %v4904 = vsub.f32 1.5, %v4903
        %v4905 = vmul.f32 %v4900, %v4904
        %vm4906 = vweird.f32 %v4898
        %vm4907 = vweird.f32 %v4900
        %vm4908 = vmor %vm4906, %vm4907
        %v4909 = vsel %vm4908, %v4900, %v4905
        %v4910 = vrsqrt.pop %v4899
        %v4911 = vmul.f32 %v4910, %v4899
        %v4912 = vmul.f32 %v4911, %v4910
        %v4913 = vmul.f32 0.5, %v4912
        %v4914 = vsub.f32 1.5, %v4913
        %v4915 = vmul.f32 %v4910, %v4914
        %vm4916 = vweird.f32 %v4899
        %vm4917 = vweird.f32 %v4910
        %vm4918 = vmor %vm4916, %vm4917
        %v4919 = vsel %vm4918, %v4910, %v4915
        %v4920 = vmul.f32 %v4896, %v4909
        %v4921 = vmul.f32 %v4897, %v4919
        %v4923 = vperm.slane %v2396, 0
        %v4924 = vperm.slane %v2396, 1
        %v4927 = vmul.f32 %v4920, %v4923
        %v4928 = vmul.f32 %v4921, %v4924
        %v4930 = vperm.slane %v2397, 0
        %v4931 = vperm.slane %v2397, 1
        %v4934 = vadd.f32 %v4927, %v4930
        %v4935 = vadd.f32 %v4928, %v4931
        %vm4936 = vcmp.gt.f32.partialorder %v4934, 0.0
        %vm4937 = vcmp.gt.f32.partialorder %v4935, 0.0
        %v4938 = vmul.f32 %v4934, 0.2
        %v4939 = vmul.f32 %v4935, 0.2
        %v4940 = vsel %vm4936, %v4934, %v4938
        %v4941 = vsel %vm4937, %v4935, %v4939
        %v4942 = vadd.f32 %v2314, %v4940
        %v4943 = vadd.f32 %v2327, %v4941
        %s4944 = scalar_lea.vmem %s13, 1
        %v4945 = vld [vmem:[%s4944] ss:$2 sm:$0x3]
        %s4946 = scalar_lea.vmem %s14, 1
        %v4947 = vld [vmem:[%s4946] ss:$2 sm:$0x3]
        %s4948 = scalar_lea.vmem %s15, 1
        %v4949 = vld [vmem:[%s4948] ss:$2 sm:$0x3]
        %s4950 = scalar_lea.vmem %s16, 1
        %v4951 = vld [vmem:[%s4950] ss:$2 sm:$0x3]
        %v4952 = vpack.c.bf16 %v4942, %v4942
        %v4953 = vpack.c.bf16 %v4943, %v4943
        %s4954 = scalar_lea.vmem [#allocation12], 256
        %v4955 = vld [vmem:[%s4954] sm:$0xff]
        %v4956 = vld [vmem:[%s4954 + $0x8] sm:$0xff]
        %v4957 = vld [vmem:[%s4954 + $0x10] sm:$0xff]
        %v4958 = vld [vmem:[%s4954 + $0x18] sm:$0xff]
        %v4959 = vld [vmem:[%s4954 + $0x20] sm:$0xff]
        %v4960 = vld [vmem:[%s4954 + $0x28] sm:$0xff]
        %v4961 = vld [vmem:[%s4954 + $0x30] sm:$0xff]
        %v4962 = vld [vmem:[%s4954 + $0x38] sm:$0xff]
        %v4963 = vld [vmem:[%s4954 + $0x40] sm:$0xff]
        %v4964 = vld [vmem:[%s4954 + $0x48] sm:$0xff]
        %v4965 = vld [vmem:[%s4954 + $0x50] sm:$0xff]
        %v4966 = vld [vmem:[%s4954 + $0x58] sm:$0xff]
        %v4967 = vld [vmem:[%s4954 + $0x60] sm:$0xff]
        %v4968 = vld [vmem:[%s4954 + $0x68] sm:$0xff]
        %v4969 = vld [vmem:[%s4954 + $0x70] sm:$0xff]
        %v4970 = vld [vmem:[%s4954 + $0x78] sm:$0xff]
        %v4971 = vld [vmem:[%s4954 + $0x80] sm:$0xff]
        %v4972 = vld [vmem:[%s4954 + $0x88] sm:$0xff]
        %v4973 = vld [vmem:[%s4954 + $0x90] sm:$0xff]
        %v4974 = vld [vmem:[%s4954 + $0x98] sm:$0xff]
        %v4975 = vld [vmem:[%s4954 + $0xa0] sm:$0xff]
        %v4976 = vld [vmem:[%s4954 + $0xa8] sm:$0xff]
        %v4977 = vld [vmem:[%s4954 + $0xb0] sm:$0xff]
        %v4978 = vld [vmem:[%s4954 + $0xb8] sm:$0xff]
        %v4979 = vld [vmem:[%s4954 + $0xc0] sm:$0xff]
        %v4980 = vld [vmem:[%s4954 + $0xc8] sm:$0xff]
        %v4981 = vld [vmem:[%s4954 + $0xd0] sm:$0xff]
        %v4982 = vld [vmem:[%s4954 + $0xd8] sm:$0xff]
        %v4983 = vld [vmem:[%s4954 + $0xe0] sm:$0xff]
        %v4984 = vld [vmem:[%s4954 + $0xe8] sm:$0xff]
        %v4985 = vld [vmem:[%s4954 + $0xf0] sm:$0xff]
        %v4986 = vld [vmem:[%s4954 + $0xf8] sm:$0xff]
        %v4988 = vperm.slane %v4945, 0
        %v4989 = vperm.slane %v4945, 1
        %v5024 = vunpack.c.l.b16 %v4955
        %v5025 = vunpack.c.h.b16 %v4955
        %v5026 = vunpack.c.l.b16 %v4956
        %v5027 = vunpack.c.h.b16 %v4956
        %v5028 = vunpack.c.l.b16 %v4957
        %v5029 = vunpack.c.h.b16 %v4957
        %v5030 = vunpack.c.l.b16 %v4958
        %v5031 = vunpack.c.h.b16 %v4958
        %v5032 = vunpack.c.l.b16 %v4959
        %v5033 = vunpack.c.h.b16 %v4959
        %v5034 = vunpack.c.l.b16 %v4960
        %v5035 = vunpack.c.h.b16 %v4960
        %v5036 = vunpack.c.l.b16 %v4961
        %v5037 = vunpack.c.h.b16 %v4961
        %v5038 = vunpack.c.l.b16 %v4962
        %v5039 = vunpack.c.h.b16 %v4962
        %v5040 = vunpack.c.l.b16 %v4963
        %v5041 = vunpack.c.h.b16 %v4963
        %v5042 = vunpack.c.l.b16 %v4964
        %v5043 = vunpack.c.h.b16 %v4964
        %v5044 = vunpack.c.l.b16 %v4965
        %v5045 = vunpack.c.h.b16 %v4965
        %v5046 = vunpack.c.l.b16 %v4966
        %v5047 = vunpack.c.h.b16 %v4966
        %v5048 = vunpack.c.l.b16 %v4967
        %v5049 = vunpack.c.h.b16 %v4967
        %v5050 = vunpack.c.l.b16 %v4968
        %v5051 = vunpack.c.h.b16 %v4968
        %v5052 = vunpack.c.l.b16 %v4969
        %v5053 = vunpack.c.h.b16 %v4969
        %v5054 = vunpack.c.l.b16 %v4970
        %v5055 = vunpack.c.h.b16 %v4970
        %v5056 = vunpack.c.l.b16 %v4971
        %v5057 = vunpack.c.h.b16 %v4971
        %v5058 = vunpack.c.l.b16 %v4972
        %v5059 = vunpack.c.h.b16 %v4972
        %v5060 = vunpack.c.l.b16 %v4973
        %v5061 = vunpack.c.h.b16 %v4973
        %v5062 = vunpack.c.l.b16 %v4974
        %v5063 = vunpack.c.h.b16 %v4974
        %v5064 = vunpack.c.l.b16 %v4975
        %v5065 = vunpack.c.h.b16 %v4975
        %v5066 = vunpack.c.l.b16 %v4976
        %v5067 = vunpack.c.h.b16 %v4976
        %v5068 = vunpack.c.l.b16 %v4977
        %v5069 = vunpack.c.h.b16 %v4977
        %v5070 = vunpack.c.l.b16 %v4978
        %v5071 = vunpack.c.h.b16 %v4978
        %v5072 = vunpack.c.l.b16 %v4979
        %v5073 = vunpack.c.h.b16 %v4979
        %v5074 = vunpack.c.l.b16 %v4980
        %v5075 = vunpack.c.h.b16 %v4980
        %v5076 = vunpack.c.l.b16 %v4981
        %v5077 = vunpack.c.h.b16 %v4981
        %v5078 = vunpack.c.l.b16 %v4982
        %v5079 = vunpack.c.h.b16 %v4982
        %v5080 = vunpack.c.l.b16 %v4983
        %v5081 = vunpack.c.h.b16 %v4983
        %v5082 = vunpack.c.l.b16 %v4984
        %v5083 = vunpack.c.h.b16 %v4984
        %v5084 = vunpack.c.l.b16 %v4985
        %v5085 = vunpack.c.h.b16 %v4985
        %v5086 = vunpack.c.l.b16 %v4986
        %v5087 = vunpack.c.h.b16 %v4986
        %v5088 = vpack.c.b16 %v5026, %v5024
        %v5089 = vpack.c.b16 %v5027, %v5025
        %v5090 = vpack.c.b16 %v5030, %v5028
        %v5091 = vpack.c.b16 %v5031, %v5029
        %v5092 = vpack.c.b16 %v5034, %v5032
        %v5093 = vpack.c.b16 %v5035, %v5033
        %v5094 = vpack.c.b16 %v5038, %v5036
        %v5095 = vpack.c.b16 %v5039, %v5037
        %v5096 = vpack.c.b16 %v5042, %v5040
        %v5097 = vpack.c.b16 %v5043, %v5041
        %v5098 = vpack.c.b16 %v5046, %v5044
        %v5099 = vpack.c.b16 %v5047, %v5045
        %v5100 = vpack.c.b16 %v5050, %v5048
        %v5101 = vpack.c.b16 %v5051, %v5049
        %v5102 = vpack.c.b16 %v5054, %v5052
        %v5103 = vpack.c.b16 %v5055, %v5053
        %v5104 = vpack.c.b16 %v5058, %v5056
        %v5105 = vpack.c.b16 %v5059, %v5057
        %v5106 = vpack.c.b16 %v5062, %v5060
        %v5107 = vpack.c.b16 %v5063, %v5061
        %v5108 = vpack.c.b16 %v5066, %v5064
        %v5109 = vpack.c.b16 %v5067, %v5065
        %v5110 = vpack.c.b16 %v5070, %v5068
        %v5111 = vpack.c.b16 %v5071, %v5069
        %v5112 = vpack.c.b16 %v5074, %v5072
        %v5113 = vpack.c.b16 %v5075, %v5073
        %v5114 = vpack.c.b16 %v5078, %v5076
        %v5115 = vpack.c.b16 %v5079, %v5077
        %v5116 = vpack.c.b16 %v5082, %v5080
        %v5117 = vpack.c.b16 %v5083, %v5081
        %v5118 = vpack.c.b16 %v5086, %v5084
        %v5119 = vpack.c.b16 %v5087, %v5085
        %5152 = vmatpush.bf16.msra.mxu0 %v5102
        %5153 = vmatpush.bf16.msra.mxu0 %v5100
        %5154 = vmatpush.bf16.msra.mxu0 %v5098
        %5155 = vmatpush.bf16.msra.mxu0 %v5096
        %5156 = vmatpush.bf16.msra.mxu0 %v5094
        %5157 = vmatpush.bf16.msra.mxu0 %v5092
        %5158 = vmatpush.bf16.msra.mxu0 %v5090
        %5159 = vmatpush.bf16.msra.mxu0 %v5088
        %5160 = vmatmul.bf16.gmra.mxu0 %v4952
        %v5161 = vpop.f32.mrf.mxu0
        %v5162 = vadd.f32 %v4988, %v5161
        %v5163 = vpop.f32.mrf.mxu0
        %5164 = vdwg.mxu0
        %5165 = vmatpush.bf16.msra.mxu0 %v5118
        %5166 = vmatpush.bf16.msra.mxu0 %v5116
        %5167 = vmatpush.bf16.msra.mxu0 %v5114
        %5168 = vmatpush.bf16.msra.mxu0 %v5112
        %5169 = vmatpush.bf16.msra.mxu0 %v5110
        %5170 = vmatpush.bf16.msra.mxu0 %v5108
        %5171 = vmatpush.bf16.msra.mxu0 %v5106
        %5172 = vmatpush.bf16.msra.mxu0 %v5104
        %5173 = vmatmul.bf16.gmra.mxu0 %v4953
        %v5174 = vpop.f32.mrf.mxu0
        %v5175 = vadd.f32 %v5162, %v5174
        %v5176 = vpop.f32.mrf.mxu0
        %5177 = vdwg.mxu0
        %5178 = vmatpush.bf16.msra.mxu0 %v5103
        %5179 = vmatpush.bf16.msra.mxu0 %v5101
        %5180 = vmatpush.bf16.msra.mxu0 %v5099
        %5181 = vmatpush.bf16.msra.mxu0 %v5097
        %5182 = vmatpush.bf16.msra.mxu0 %v5095
        %5183 = vmatpush.bf16.msra.mxu0 %v5093
        %5184 = vmatpush.bf16.msra.mxu0 %v5091
        %5185 = vmatpush.bf16.msra.mxu0 %v5089
        %5186 = vmatmul.bf16.gmra.mxu0 %v4952
        %v5187 = vpop.f32.mrf.mxu0
        %v5188 = vadd.f32 %v4989, %v5187
        %v5189 = vpop.f32.mrf.mxu0
        %5190 = vdwg.mxu0
        %5191 = vmatpush.bf16.msra.mxu0 %v5119
        %5192 = vmatpush.bf16.msra.mxu0 %v5117
        %5193 = vmatpush.bf16.msra.mxu0 %v5115
        %5194 = vmatpush.bf16.msra.mxu0 %v5113
        %5195 = vmatpush.bf16.msra.mxu0 %v5111
        %5196 = vmatpush.bf16.msra.mxu0 %v5109
        %5197 = vmatpush.bf16.msra.mxu0 %v5107
        %5198 = vmatpush.bf16.msra.mxu0 %v5105
        %5199 = vmatmul.bf16.gmra.mxu0 %v4953
        %v5200 = vpop.f32.mrf.mxu0
        %v5201 = vadd.f32 %v5188, %v5200
        %v5202 = vpop.f32.mrf.mxu0
        %5203 = vdwg.mxu0
        %v5204 = vrot.slane %v5175, 7
        %v5205 = vrot.slane %v5201, 7
        %v5206 = vsel %vm763, %v5204, 0.0
        %v5207 = vsel %vm763, %v5205, 0.0
        %v5208 = vrot.slane %v5175, 1
        %v5209 = vrot.slane %v5201, 1
        %v5210 = vsel %vm766, %v5208, 0.0
        %v5211 = vsel %vm766, %v5209, 0.0
        %v5212 = vpack.c.bf16 %v5206, %v5206
        %v5213 = vpack.c.bf16 %v5207, %v5207
        %v5214 = vpack.c.bf16 %v5175, %v5175
        %v5215 = vpack.c.bf16 %v5201, %v5201
        %v5216 = vpack.c.bf16 %v5210, %v5210
        %v5217 = vpack.c.bf16 %v5211, %v5211
        %s5218 = scalar_lea.vmem [#allocation13], 768
        %v5219 = vld [vmem:[%s5218] sm:$0xff]
        %v5220 = vld [vmem:[%s5218 + $0x8] sm:$0xff]
        %v5221 = vld [vmem:[%s5218 + $0x10] sm:$0xff]
        %v5222 = vld [vmem:[%s5218 + $0x18] sm:$0xff]
        %v5223 = vld [vmem:[%s5218 + $0x20] sm:$0xff]
        %v5224 = vld [vmem:[%s5218 + $0x28] sm:$0xff]
        %v5225 = vld [vmem:[%s5218 + $0x30] sm:$0xff]
        %v5226 = vld [vmem:[%s5218 + $0x38] sm:$0xff]
        %v5227 = vld [vmem:[%s5218 + $0x40] sm:$0xff]
        %v5228 = vld [vmem:[%s5218 + $0x48] sm:$0xff]
        %v5229 = vld [vmem:[%s5218 + $0x50] sm:$0xff]
        %v5230 = vld [vmem:[%s5218 + $0x58] sm:$0xff]
        %v5231 = vld [vmem:[%s5218 + $0x60] sm:$0xff]
        %v5232 = vld [vmem:[%s5218 + $0x68] sm:$0xff]
        %v5233 = vld [vmem:[%s5218 + $0x70] sm:$0xff]
        %v5234 = vld [vmem:[%s5218 + $0x78] sm:$0xff]
        %v5235 = vld [vmem:[%s5218 + $0x80] sm:$0xff]
        %v5236 = vld [vmem:[%s5218 + $0x88] sm:$0xff]
        %v5237 = vld [vmem:[%s5218 + $0x90] sm:$0xff]
        %v5238 = vld [vmem:[%s5218 + $0x98] sm:$0xff]
        %v5239 = vld [vmem:[%s5218 + $0xa0] sm:$0xff]
        %v5240 = vld [vmem:[%s5218 + $0xa8] sm:$0xff]
        %v5241 = vld [vmem:[%s5218 + $0xb0] sm:$0xff]
        %v5242 = vld [vmem:[%s5218 + $0xb8] sm:$0xff]
        %v5243 = vld [vmem:[%s5218 + $0xc0] sm:$0xff]
        %v5244 = vld [vmem:[%s5218 + $0xc8] sm:$0xff]
        %v5245 = vld [vmem:[%s5218 + $0xd0] sm:$0xff]
        %v5246 = vld [vmem:[%s5218 + $0xd8] sm:$0xff]
        %v5247 = vld [vmem:[%s5218 + $0xe0] sm:$0xff]
        %v5248 = vld [vmem:[%s5218 + $0xe8] sm:$0xff]
        %v5249 = vld [vmem:[%s5218 + $0xf0] sm:$0xff]
        %v5250 = vld [vmem:[%s5218 + $0xf8] sm:$0xff]
        %v5251 = vld [vmem:[%s5218 + $0x100] sm:$0xff]
        %v5252 = vld [vmem:[%s5218 + $0x108] sm:$0xff]
        %v5253 = vld [vmem:[%s5218 + $0x110] sm:$0xff]
        %v5254 = vld [vmem:[%s5218 + $0x118] sm:$0xff]
        %v5255 = vld [vmem:[%s5218 + $0x120] sm:$0xff]
        %v5256 = vld [vmem:[%s5218 + $0x128] sm:$0xff]
        %v5257 = vld [vmem:[%s5218 + $0x130] sm:$0xff]
        %v5258 = vld [vmem:[%s5218 + $0x138] sm:$0xff]
        %v5259 = vld [vmem:[%s5218 + $0x140] sm:$0xff]
        %v5260 = vld [vmem:[%s5218 + $0x148] sm:$0xff]
        %v5261 = vld [vmem:[%s5218 + $0x150] sm:$0xff]
        %v5262 = vld [vmem:[%s5218 + $0x158] sm:$0xff]
        %v5263 = vld [vmem:[%s5218 + $0x160] sm:$0xff]
        %v5264 = vld [vmem:[%s5218 + $0x168] sm:$0xff]
        %v5265 = vld [vmem:[%s5218 + $0x170] sm:$0xff]
        %v5266 = vld [vmem:[%s5218 + $0x178] sm:$0xff]
        %v5267 = vld [vmem:[%s5218 + $0x180] sm:$0xff]
        %v5268 = vld [vmem:[%s5218 + $0x188] sm:$0xff]
        %v5269 = vld [vmem:[%s5218 + $0x190] sm:$0xff]
        %v5270 = vld [vmem:[%s5218 + $0x198] sm:$0xff]
        %v5271 = vld [vmem:[%s5218 + $0x1a0] sm:$0xff]
        %v5272 = vld [vmem:[%s5218 + $0x1a8] sm:$0xff]
        %v5273 = vld [vmem:[%s5218 + $0x1b0] sm:$0xff]
        %v5274 = vld [vmem:[%s5218 + $0x1b8] sm:$0xff]
        %v5275 = vld [vmem:[%s5218 + $0x1c0] sm:$0xff]
        %v5276 = vld [vmem:[%s5218 + $0x1c8] sm:$0xff]
        %v5277 = vld [vmem:[%s5218 + $0x1d0] sm:$0xff]
        %v5278 = vld [vmem:[%s5218 + $0x1d8] sm:$0xff]
        %v5279 = vld [vmem:[%s5218 + $0x1e0] sm:$0xff]
        %v5280 = vld [vmem:[%s5218 + $0x1e8] sm:$0xff]
        %v5281 = vld [vmem:[%s5218 + $0x1f0] sm:$0xff]
        %v5282 = vld [vmem:[%s5218 + $0x1f8] sm:$0xff]
        %v5283 = vld [vmem:[%s5218 + $0x200] sm:$0xff]
        %v5284 = vld [vmem:[%s5218 + $0x208] sm:$0xff]
        %v5285 = vld [vmem:[%s5218 + $0x210] sm:$0xff]
        %v5286 = vld [vmem:[%s5218 + $0x218] sm:$0xff]
        %v5287 = vld [vmem:[%s5218 + $0x220] sm:$0xff]
        %v5288 = vld [vmem:[%s5218 + $0x228] sm:$0xff]
        %v5289 = vld [vmem:[%s5218 + $0x230] sm:$0xff]
        %v5290 = vld [vmem:[%s5218 + $0x238] sm:$0xff]
        %v5291 = vld [vmem:[%s5218 + $0x240] sm:$0xff]
        %v5292 = vld [vmem:[%s5218 + $0x248] sm:$0xff]
        %v5293 = vld [vmem:[%s5218 + $0x250] sm:$0xff]
        %v5294 = vld [vmem:[%s5218 + $0x258] sm:$0xff]
        %v5295 = vld [vmem:[%s5218 + $0x260] sm:$0xff]
        %v5296 = vld [vmem:[%s5218 + $0x268] sm:$0xff]
        %v5297 = vld [vmem:[%s5218 + $0x270] sm:$0xff]
        %v5298 = vld [vmem:[%s5218 + $0x278] sm:$0xff]
        %v5299 = vld [vmem:[%s5218 + $0x280] sm:$0xff]
        %v5300 = vld [vmem:[%s5218 + $0x288] sm:$0xff]
        %v5301 = vld [vmem:[%s5218 + $0x290] sm:$0xff]
        %v5302 = vld [vmem:[%s5218 + $0x298] sm:$0xff]
        %v5303 = vld [vmem:[%s5218 + $0x2a0] sm:$0xff]
        %v5304 = vld [vmem:[%s5218 + $0x2a8] sm:$0xff]
        %v5305 = vld [vmem:[%s5218 + $0x2b0] sm:$0xff]
        %v5306 = vld [vmem:[%s5218 + $0x2b8] sm:$0xff]
        %v5307 = vld [vmem:[%s5218 + $0x2c0] sm:$0xff]
        %v5308 = vld [vmem:[%s5218 + $0x2c8] sm:$0xff]
        %v5309 = vld [vmem:[%s5218 + $0x2d0] sm:$0xff]
        %v5310 = vld [vmem:[%s5218 + $0x2d8] sm:$0xff]
        %v5311 = vld [vmem:[%s5218 + $0x2e0] sm:$0xff]
        %v5312 = vld [vmem:[%s5218 + $0x2e8] sm:$0xff]
        %v5313 = vld [vmem:[%s5218 + $0x2f0] sm:$0xff]
        %v5314 = vld [vmem:[%s5218 + $0x2f8] sm:$0xff]
        %v5316 = vperm.slane %v4947, 0
        %v5317 = vperm.slane %v4947, 1
        %v5416 = vunpack.c.l.b16 %v5219
        %v5417 = vunpack.c.h.b16 %v5219
        %v5418 = vunpack.c.l.b16 %v5220
        %v5419 = vunpack.c.h.b16 %v5220
        %v5420 = vunpack.c.l.b16 %v5221
        %v5421 = vunpack.c.h.b16 %v5221
        %v5422 = vunpack.c.l.b16 %v5222
        %v5423 = vunpack.c.h.b16 %v5222
        %v5424 = vunpack.c.l.b16 %v5223
        %v5425 = vunpack.c.h.b16 %v5223
        %v5426 = vunpack.c.l.b16 %v5224
        %v5427 = vunpack.c.h.b16 %v5224
        %v5428 = vunpack.c.l.b16 %v5225
        %v5429 = vunpack.c.h.b16 %v5225
        %v5430 = vunpack.c.l.b16 %v5226
        %v5431 = vunpack.c.h.b16 %v5226
        %v5432 = vunpack.c.l.b16 %v5227
        %v5433 = vunpack.c.h.b16 %v5227
        %v5434 = vunpack.c.l.b16 %v5228
        %v5435 = vunpack.c.h.b16 %v5228
        %v5436 = vunpack.c.l.b16 %v5229
        %v5437 = vunpack.c.h.b16 %v5229
        %v5438 = vunpack.c.l.b16 %v5230
        %v5439 = vunpack.c.h.b16 %v5230
        %v5440 = vunpack.c.l.b16 %v5231
        %v5441 = vunpack.c.h.b16 %v5231
        %v5442 = vunpack.c.l.b16 %v5232
        %v5443 = vunpack.c.h.b16 %v5232
        %v5444 = vunpack.c.l.b16 %v5233
        %v5445 = vunpack.c.h.b16 %v5233
        %v5446 = vunpack.c.l.b16 %v5234
        %v5447 = vunpack.c.h.b16 %v5234
        %v5448 = vunpack.c.l.b16 %v5235
        %v5449 = vunpack.c.h.b16 %v5235
        %v5450 = vunpack.c.l.b16 %v5236
        %v5451 = vunpack.c.h.b16 %v5236
        %v5452 = vunpack.c.l.b16 %v5237
        %v5453 = vunpack.c.h.b16 %v5237
        %v5454 = vunpack.c.l.b16 %v5238
        %v5455 = vunpack.c.h.b16 %v5238
        %v5456 = vunpack.c.l.b16 %v5239
        %v5457 = vunpack.c.h.b16 %v5239
        %v5458 = vunpack.c.l.b16 %v5240
        %v5459 = vunpack.c.h.b16 %v5240
        %v5460 = vunpack.c.l.b16 %v5241
        %v5461 = vunpack.c.h.b16 %v5241
        %v5462 = vunpack.c.l.b16 %v5242
        %v5463 = vunpack.c.h.b16 %v5242
        %v5464 = vunpack.c.l.b16 %v5243
        %v5465 = vunpack.c.h.b16 %v5243
        %v5466 = vunpack.c.l.b16 %v5244
        %v5467 = vunpack.c.h.b16 %v5244
        %v5468 = vunpack.c.l.b16 %v5245
        %v5469 = vunpack.c.h.b16 %v5245
        %v5470 = vunpack.c.l.b16 %v5246
        %v5471 = vunpack.c.h.b16 %v5246
        %v5472 = vunpack.c.l.b16 %v5247
        %v5473 = vunpack.c.h.b16 %v5247
        %v5474 = vunpack.c.l.b16 %v5248
        %v5475 = vunpack.c.h.b16 %v5248
        %v5476 = vunpack.c.l.b16 %v5249
        %v5477 = vunpack.c.h.b16 %v5249
        %v5478 = vunpack.c.l.b16 %v5250
        %v5479 = vunpack.c.h.b16 %v5250
        %v5480 = vunpack.c.l.b16 %v5251
        %v5481 = vunpack.c.h.b16 %v5251
        %v5482 = vunpack.c.l.b16 %v5252
        %v5483 = vunpack.c.h.b16 %v5252
        %v5484 = vunpack.c.l.b16 %v5253
        %v5485 = vunpack.c.h.b16 %v5253
        %v5486 = vunpack.c.l.b16 %v5254
        %v5487 = vunpack.c.h.b16 %v5254
        %v5488 = vunpack.c.l.b16 %v5255
        %v5489 = vunpack.c.h.b16 %v5255
        %v5490 = vunpack.c.l.b16 %v5256
        %v5491 = vunpack.c.h.b16 %v5256
        %v5492 = vunpack.c.l.b16 %v5257
        %v5493 = vunpack.c.h.b16 %v5257
        %v5494 = vunpack.c.l.b16 %v5258
        %v5495 = vunpack.c.h.b16 %v5258
        %v5496 = vunpack.c.l.b16 %v5259
        %v5497 = vunpack.c.h.b16 %v5259
        %v5498 = vunpack.c.l.b16 %v5260
        %v5499 = vunpack.c.h.b16 %v5260
        %v5500 = vunpack.c.l.b16 %v5261
        %v5501 = vunpack.c.h.b16 %v5261
        %v5502 = vunpack.c.l.b16 %v5262
        %v5503 = vunpack.c.h.b16 %v5262
        %v5504 = vunpack.c.l.b16 %v5263
        %v5505 = vunpack.c.h.b16 %v5263
        %v5506 = vunpack.c.l.b16 %v5264
        %v5507 = vunpack.c.h.b16 %v5264
        %v5508 = vunpack.c.l.b16 %v5265
        %v5509 = vunpack.c.h.b16 %v5265
        %v5510 = vunpack.c.l.b16 %v5266
        %v5511 = vunpack.c.h.b16 %v5266
        %v5512 = vunpack.c.l.b16 %v5267
        %v5513 = vunpack.c.h.b16 %v5267
        %v5514 = vunpack.c.l.b16 %v5268
        %v5515 = vunpack.c.h.b16 %v5268
        %v5516 = vunpack.c.l.b16 %v5269
        %v5517 = vunpack.c.h.b16 %v5269
        %v5518 = vunpack.c.l.b16 %v5270
        %v5519 = vunpack.c.h.b16 %v5270
        %v5520 = vunpack.c.l.b16 %v5271
        %v5521 = vunpack.c.h.b16 %v5271
        %v5522 = vunpack.c.l.b16 %v5272
        %v5523 = vunpack.c.h.b16 %v5272
        %v5524 = vunpack.c.l.b16 %v5273
        %v5525 = vunpack.c.h.b16 %v5273
        %v5526 = vunpack.c.l.b16 %v5274
        %v5527 = vunpack.c.h.b16 %v5274
        %v5528 = vunpack.c.l.b16 %v5275
        %v5529 = vunpack.c.h.b16 %v5275
        %v5530 = vunpack.c.l.b16 %v5276
        %v5531 = vunpack.c.h.b16 %v5276
        %v5532 = vunpack.c.l.b16 %v5277
        %v5533 = vunpack.c.h.b16 %v5277
        %v5534 = vunpack.c.l.b16 %v5278
        %v5535 = vunpack.c.h.b16 %v5278
        %v5536 = vunpack.c.l.b16 %v5279
        %v5537 = vunpack.c.h.b16 %v5279
        %v5538 = vunpack.c.l.b16 %v5280
        %v5539 = vunpack.c.h.b16 %v5280
        %v5540 = vunpack.c.l.b16 %v5281
        %v5541 = vunpack.c.h.b16 %v5281
        %v5542 = vunpack.c.l.b16 %v5282
        %v5543 = vunpack.c.h.b16 %v5282
        %v5544 = vunpack.c.l.b16 %v5283
        %v5545 = vunpack.c.h.b16 %v5283
        %v5546 = vunpack.c.l.b16 %v5284
        %v5547 = vunpack.c.h.b16 %v5284
        %v5548 = vunpack.c.l.b16 %v5285
        %v5549 = vunpack.c.h.b16 %v5285
        %v5550 = vunpack.c.l.b16 %v5286
        %v5551 = vunpack.c.h.b16 %v5286
        %v5552 = vunpack.c.l.b16 %v5287
        %v5553 = vunpack.c.h.b16 %v5287
        %v5554 = vunpack.c.l.b16 %v5288
        %v5555 = vunpack.c.h.b16 %v5288
        %v5556 = vunpack.c.l.b16 %v5289
        %v5557 = vunpack.c.h.b16 %v5289
        %v5558 = vunpack.c.l.b16 %v5290
        %v5559 = vunpack.c.h.b16 %v5290
        %v5560 = vunpack.c.l.b16 %v5291
        %v5561 = vunpack.c.h.b16 %v5291
        %v5562 = vunpack.c.l.b16 %v5292
        %v5563 = vunpack.c.h.b16 %v5292
        %v5564 = vunpack.c.l.b16 %v5293
        %v5565 = vunpack.c.h.b16 %v5293
        %v5566 = vunpack.c.l.b16 %v5294
        %v5567 = vunpack.c.h.b16 %v5294
        %v5568 = vunpack.c.l.b16 %v5295
        %v5569 = vunpack.c.h.b16 %v5295
        %v5570 = vunpack.c.l.b16 %v5296
        %v5571 = vunpack.c.h.b16 %v5296
        %v5572 = vunpack.c.l.b16 %v5297
        %v5573 = vunpack.c.h.b16 %v5297
        %v5574 = vunpack.c.l.b16 %v5298
        %v5575 = vunpack.c.h.b16 %v5298
        %v5576 = vunpack.c.l.b16 %v5299
        %v5577 = vunpack.c.h.b16 %v5299
        %v5578 = vunpack.c.l.b16 %v5300
        %v5579 = vunpack.c.h.b16 %v5300
        %v5580 = vunpack.c.l.b16 %v5301
        %v5581 = vunpack.c.h.b16 %v5301
        %v5582 = vunpack.c.l.b16 %v5302
        %v5583 = vunpack.c.h.b16 %v5302
        %v5584 = vunpack.c.l.b16 %v5303
        %v5585 = vunpack.c.h.b16 %v5303
        %v5586 = vunpack.c.l.b16 %v5304
        %v5587 = vunpack.c.h.b16 %v5304
        %v5588 = vunpack.c.l.b16 %v5305
        %v5589 = vunpack.c.h.b16 %v5305
        %v5590 = vunpack.c.l.b16 %v5306
        %v5591 = vunpack.c.h.b16 %v5306
        %v5592 = vunpack.c.l.b16 %v5307
        %v5593 = vunpack.c.h.b16 %v5307
        %v5594 = vunpack.c.l.b16 %v5308
        %v5595 = vunpack.c.h.b16 %v5308
        %v5596 = vunpack.c.l.b16 %v5309
        %v5597 = vunpack.c.h.b16 %v5309
        %v5598 = vunpack.c.l.b16 %v5310
        %v5599 = vunpack.c.h.b16 %v5310
        %v5600 = vunpack.c.l.b16 %v5311
        %v5601 = vunpack.c.h.b16 %v5311
        %v5602 = vunpack.c.l.b16 %v5312
        %v5603 = vunpack.c.h.b16 %v5312
        %v5604 = vunpack.c.l.b16 %v5313
        %v5605 = vunpack.c.h.b16 %v5313
        %v5606 = vunpack.c.l.b16 %v5314
        %v5607 = vunpack.c.h.b16 %v5314
        %v5608 = vpack.c.b16 %v5418, %v5416
        %v5609 = vpack.c.b16 %v5419, %v5417
        %v5610 = vpack.c.b16 %v5422, %v5420
        %v5611 = vpack.c.b16 %v5423, %v5421
        %v5612 = vpack.c.b16 %v5426, %v5424
        %v5613 = vpack.c.b16 %v5427, %v5425
        %v5614 = vpack.c.b16 %v5430, %v5428
        %v5615 = vpack.c.b16 %v5431, %v5429
        %v5616 = vpack.c.b16 %v5434, %v5432
        %v5617 = vpack.c.b16 %v5435, %v5433
        %v5618 = vpack.c.b16 %v5438, %v5436
        %v5619 = vpack.c.b16 %v5439, %v5437
        %v5620 = vpack.c.b16 %v5442, %v5440
        %v5621 = vpack.c.b16 %v5443, %v5441
        %v5622 = vpack.c.b16 %v5446, %v5444
        %v5623 = vpack.c.b16 %v5447, %v5445
        %v5624 = vpack.c.b16 %v5450, %v5448
        %v5625 = vpack.c.b16 %v5451, %v5449
        %v5626 = vpack.c.b16 %v5454, %v5452
        %v5627 = vpack.c.b16 %v5455, %v5453
        %v5628 = vpack.c.b16 %v5458, %v5456
        %v5629 = vpack.c.b16 %v5459, %v5457
        %v5630 = vpack.c.b16 %v5462, %v5460
        %v5631 = vpack.c.b16 %v5463, %v5461
        %v5632 = vpack.c.b16 %v5466, %v5464
        %v5633 = vpack.c.b16 %v5467, %v5465
        %v5634 = vpack.c.b16 %v5470, %v5468
        %v5635 = vpack.c.b16 %v5471, %v5469
        %v5636 = vpack.c.b16 %v5474, %v5472
        %v5637 = vpack.c.b16 %v5475, %v5473
        %v5638 = vpack.c.b16 %v5478, %v5476
        %v5639 = vpack.c.b16 %v5479, %v5477
        %v5640 = vpack.c.b16 %v5482, %v5480
        %v5641 = vpack.c.b16 %v5483, %v5481
        %v5642 = vpack.c.b16 %v5486, %v5484
        %v5643 = vpack.c.b16 %v5487, %v5485
        %v5644 = vpack.c.b16 %v5490, %v5488
        %v5645 = vpack.c.b16 %v5491, %v5489
        %v5646 = vpack.c.b16 %v5494, %v5492
        %v5647 = vpack.c.b16 %v5495, %v5493
        %v5648 = vpack.c.b16 %v5498, %v5496
        %v5649 = vpack.c.b16 %v5499, %v5497
        %v5650 = vpack.c.b16 %v5502, %v5500
        %v5651 = vpack.c.b16 %v5503, %v5501
        %v5652 = vpack.c.b16 %v5506, %v5504
        %v5653 = vpack.c.b16 %v5507, %v5505
        %v5654 = vpack.c.b16 %v5510, %v5508
        %v5655 = vpack.c.b16 %v5511, %v5509
        %v5656 = vpack.c.b16 %v5514, %v5512
        %v5657 = vpack.c.b16 %v5515, %v5513
        %v5658 = vpack.c.b16 %v5518, %v5516
        %v5659 = vpack.c.b16 %v5519, %v5517
        %v5660 = vpack.c.b16 %v5522, %v5520
        %v5661 = vpack.c.b16 %v5523, %v5521
        %v5662 = vpack.c.b16 %v5526, %v5524
        %v5663 = vpack.c.b16 %v5527, %v5525
        %v5664 = vpack.c.b16 %v5530, %v5528
        %v5665 = vpack.c.b16 %v5531, %v5529
        %v5666 = vpack.c.b16 %v5534, %v5532
        %v5667 = vpack.c.b16 %v5535, %v5533
        %v5668 = vpack.c.b16 %v5538, %v5536
        %v5669 = vpack.c.b16 %v5539, %v5537
        %v5670 = vpack.c.b16 %v5542, %v5540
        %v5671 = vpack.c.b16 %v5543, %v5541
        %v5672 = vpack.c.b16 %v5546, %v5544
        %v5673 = vpack.c.b16 %v5547, %v5545
        %v5674 = vpack.c.b16 %v5550, %v5548
        %v5675 = vpack.c.b16 %v5551, %v5549
        %v5676 = vpack.c.b16 %v5554, %v5552
        %v5677 = vpack.c.b16 %v5555, %v5553
        %v5678 = vpack.c.b16 %v5558, %v5556
        %v5679 = vpack.c.b16 %v5559, %v5557
        %v5680 = vpack.c.b16 %v5562, %v5560
        %v5681 = vpack.c.b16 %v5563, %v5561
        %v5682 = vpack.c.b16 %v5566, %v5564
        %v5683 = vpack.c.b16 %v5567, %v5565
        %v5684 = vpack.c.b16 %v5570, %v5568
        %v5685 = vpack.c.b16 %v5571, %v5569
        %v5686 = vpack.c.b16 %v5574, %v5572
        %v5687 = vpack.c.b16 %v5575, %v5573
        %v5688 = vpack.c.b16 %v5578, %v5576
        %v5689 = vpack.c.b16 %v5579, %v5577
        %v5690 = vpack.c.b16 %v5582, %v5580
        %v5691 = vpack.c.b16 %v5583, %v5581
        %v5692 = vpack.c.b16 %v5586, %v5584
        %v5693 = vpack.c.b16 %v5587, %v5585
        %v5694 = vpack.c.b16 %v5590, %v5588
        %v5695 = vpack.c.b16 %v5591, %v5589
        %v5696 = vpack.c.b16 %v5594, %v5592
        %v5697 = vpack.c.b16 %v5595, %v5593
        %v5698 = vpack.c.b16 %v5598, %v5596
        %v5699 = vpack.c.b16 %v5599, %v5597
        %v5700 = vpack.c.b16 %v5602, %v5600
        %v5701 = vpack.c.b16 %v5603, %v5601
        %v5702 = vpack.c.b16 %v5606, %v5604
        %v5703 = vpack.c.b16 %v5607, %v5605
        %5800 = vmatpush.bf16.msra.mxu0 %v5622
        %5801 = vmatpush.bf16.msra.mxu0 %v5620
        %5802 = vmatpush.bf16.msra.mxu0 %v5618
        %5803 = vmatpush.bf16.msra.mxu0 %v5616
        %5804 = vmatpush.bf16.msra.mxu0 %v5614
        %5805 = vmatpush.bf16.msra.mxu0 %v5612
        %5806 = vmatpush.bf16.msra.mxu0 %v5610
        %5807 = vmatpush.bf16.msra.mxu0 %v5608
        %5808 = vmatmul.bf16.gmra.mxu0 %v5212
        %v5809 = vpop.f32.mrf.mxu0
        %v5810 = vadd.f32 %v5316, %v5809
        %v5811 = vpop.f32.mrf.mxu0
        %5812 = vdwg.mxu0
        %5813 = vmatpush.bf16.msra.mxu0 %v5638
        %5814 = vmatpush.bf16.msra.mxu0 %v5636
        %5815 = vmatpush.bf16.msra.mxu0 %v5634
        %5816 = vmatpush.bf16.msra.mxu0 %v5632
        %5817 = vmatpush.bf16.msra.mxu0 %v5630
        %5818 = vmatpush.bf16.msra.mxu0 %v5628
        %5819 = vmatpush.bf16.msra.mxu0 %v5626
        %5820 = vmatpush.bf16.msra.mxu0 %v5624
        %5821 = vmatmul.bf16.gmra.mxu0 %v5213
        %v5822 = vpop.f32.mrf.mxu0
        %v5823 = vadd.f32 %v5810, %v5822
        %v5824 = vpop.f32.mrf.mxu0
        %5825 = vdwg.mxu0
        %5826 = vmatpush.bf16.msra.mxu0 %v5654
        %5827 = vmatpush.bf16.msra.mxu0 %v5652
        %5828 = vmatpush.bf16.msra.mxu0 %v5650
        %5829 = vmatpush.bf16.msra.mxu0 %v5648
        %5830 = vmatpush.bf16.msra.mxu0 %v5646
        %5831 = vmatpush.bf16.msra.mxu0 %v5644
        %5832 = vmatpush.bf16.msra.mxu0 %v5642
        %5833 = vmatpush.bf16.msra.mxu0 %v5640
        %5834 = vmatmul.bf16.gmra.mxu0 %v5214
        %v5835 = vpop.f32.mrf.mxu0
        %v5836 = vadd.f32 %v5823, %v5835
        %v5837 = vpop.f32.mrf.mxu0
        %5838 = vdwg.mxu0
        %5839 = vmatpush.bf16.msra.mxu0 %v5670
        %5840 = vmatpush.bf16.msra.mxu0 %v5668
        %5841 = vmatpush.bf16.msra.mxu0 %v5666
        %5842 = vmatpush.bf16.msra.mxu0 %v5664
        %5843 = vmatpush.bf16.msra.mxu0 %v5662
        %5844 = vmatpush.bf16.msra.mxu0 %v5660
        %5845 = vmatpush.bf16.msra.mxu0 %v5658
        %5846 = vmatpush.bf16.msra.mxu0 %v5656
        %5847 = vmatmul.bf16.gmra.mxu0 %v5215
        %v5848 = vpop.f32.mrf.mxu0
        %v5849 = vadd.f32 %v5836, %v5848
        %v5850 = vpop.f32.mrf.mxu0
        %5851 = vdwg.mxu0
        %5852 = vmatpush.bf16.msra.mxu0 %v5686
        %5853 = vmatpush.bf16.msra.mxu0 %v5684
        %5854 = vmatpush.bf16.msra.mxu0 %v5682
        %5855 = vmatpush.bf16.msra.mxu0 %v5680
        %5856 = vmatpush.bf16.msra.mxu0 %v5678
        %5857 = vmatpush.bf16.msra.mxu0 %v5676
        %5858 = vmatpush.bf16.msra.mxu0 %v5674
        %5859 = vmatpush.bf16.msra.mxu0 %v5672
        %5860 = vmatmul.bf16.gmra.mxu0 %v5216
        %v5861 = vpop.f32.mrf.mxu0
        %v5862 = vadd.f32 %v5849, %v5861
        %v5863 = vpop.f32.mrf.mxu0
        %5864 = vdwg.mxu0
        %5865 = vmatpush.bf16.msra.mxu0 %v5702
        %5866 = vmatpush.bf16.msra.mxu0 %v5700
        %5867 = vmatpush.bf16.msra.mxu0 %v5698
        %5868 = vmatpush.bf16.msra.mxu0 %v5696
        %5869 = vmatpush.bf16.msra.mxu0 %v5694
        %5870 = vmatpush.bf16.msra.mxu0 %v5692
        %5871 = vmatpush.bf16.msra.mxu0 %v5690
        %5872 = vmatpush.bf16.msra.mxu0 %v5688
        %5873 = vmatmul.bf16.gmra.mxu0 %v5217
        %v5874 = vpop.f32.mrf.mxu0
        %v5875 = vadd.f32 %v5862, %v5874
        %v5876 = vpop.f32.mrf.mxu0
        %5877 = vdwg.mxu0
        %5878 = vmatpush.bf16.msra.mxu0 %v5623
        %5879 = vmatpush.bf16.msra.mxu0 %v5621
        %5880 = vmatpush.bf16.msra.mxu0 %v5619
        %5881 = vmatpush.bf16.msra.mxu0 %v5617
        %5882 = vmatpush.bf16.msra.mxu0 %v5615
        %5883 = vmatpush.bf16.msra.mxu0 %v5613
        %5884 = vmatpush.bf16.msra.mxu0 %v5611
        %5885 = vmatpush.bf16.msra.mxu0 %v5609
        %5886 = vmatmul.bf16.gmra.mxu0 %v5212
        %v5887 = vpop.f32.mrf.mxu0
        %v5888 = vadd.f32 %v5317, %v5887
        %v5889 = vpop.f32.mrf.mxu0
        %5890 = vdwg.mxu0
        %5891 = vmatpush.bf16.msra.mxu0 %v5639
        %5892 = vmatpush.bf16.msra.mxu0 %v5637
        %5893 = vmatpush.bf16.msra.mxu0 %v5635
        %5894 = vmatpush.bf16.msra.mxu0 %v5633
        %5895 = vmatpush.bf16.msra.mxu0 %v5631
        %5896 = vmatpush.bf16.msra.mxu0 %v5629
        %5897 = vmatpush.bf16.msra.mxu0 %v5627
        %5898 = vmatpush.bf16.msra.mxu0 %v5625
        %5899 = vmatmul.bf16.gmra.mxu0 %v5213
        %v5900 = vpop.f32.mrf.mxu0
        %v5901 = vadd.f32 %v5888, %v5900
        %v5902 = vpop.f32.mrf.mxu0
        %5903 = vdwg.mxu0
        %5904 = vmatpush.bf16.msra.mxu0 %v5655
        %5905 = vmatpush.bf16.msra.mxu0 %v5653
        %5906 = vmatpush.bf16.msra.mxu0 %v5651
        %5907 = vmatpush.bf16.msra.mxu0 %v5649
        %5908 = vmatpush.bf16.msra.mxu0 %v5647
        %5909 = vmatpush.bf16.msra.mxu0 %v5645
        %5910 = vmatpush.bf16.msra.mxu0 %v5643
        %5911 = vmatpush.bf16.msra.mxu0 %v5641
        %5912 = vmatmul.bf16.gmra.mxu0 %v5214
        %v5913 = vpop.f32.mrf.mxu0
        %v5914 = vadd.f32 %v5901, %v5913
        %v5915 = vpop.f32.mrf.mxu0
        %5916 = vdwg.mxu0
        %5917 = vmatpush.bf16.msra.mxu0 %v5671
        %5918 = vmatpush.bf16.msra.mxu0 %v5669
        %5919 = vmatpush.bf16.msra.mxu0 %v5667
        %5920 = vmatpush.bf16.msra.mxu0 %v5665
        %5921 = vmatpush.bf16.msra.mxu0 %v5663
        %5922 = vmatpush.bf16.msra.mxu0 %v5661
        %5923 = vmatpush.bf16.msra.mxu0 %v5659
        %5924 = vmatpush.bf16.msra.mxu0 %v5657
        %5925 = vmatmul.bf16.gmra.mxu0 %v5215
        %v5926 = vpop.f32.mrf.mxu0
        %v5927 = vadd.f32 %v5914, %v5926
        %v5928 = vpop.f32.mrf.mxu0
        %5929 = vdwg.mxu0
        %5930 = vmatpush.bf16.msra.mxu0 %v5687
        %5931 = vmatpush.bf16.msra.mxu0 %v5685
        %5932 = vmatpush.bf16.msra.mxu0 %v5683
        %5933 = vmatpush.bf16.msra.mxu0 %v5681
        %5934 = vmatpush.bf16.msra.mxu0 %v5679
        %5935 = vmatpush.bf16.msra.mxu0 %v5677
        %5936 = vmatpush.bf16.msra.mxu0 %v5675
        %5937 = vmatpush.bf16.msra.mxu0 %v5673
        %5938 = vmatmul.bf16.gmra.mxu0 %v5216
        %v5939 = vpop.f32.mrf.mxu0
        %v5940 = vadd.f32 %v5927, %v5939
        %v5941 = vpop.f32.mrf.mxu0
        %5942 = vdwg.mxu0
        %5943 = vmatpush.bf16.msra.mxu0 %v5703
        %5944 = vmatpush.bf16.msra.mxu0 %v5701
        %5945 = vmatpush.bf16.msra.mxu0 %v5699
        %5946 = vmatpush.bf16.msra.mxu0 %v5697
        %5947 = vmatpush.bf16.msra.mxu0 %v5695
        %5948 = vmatpush.bf16.msra.mxu0 %v5693
        %5949 = vmatpush.bf16.msra.mxu0 %v5691
        %5950 = vmatpush.bf16.msra.mxu0 %v5689
        %5951 = vmatmul.bf16.gmra.mxu0 %v5217
        %v5952 = vpop.f32.mrf.mxu0
        %v5953 = vadd.f32 %v5940, %v5952
        %v5954 = vpop.f32.mrf.mxu0
        %5955 = vdwg.mxu0
        %v5956 = vmul.f32 %v5875, %v5875
        %v5957 = vmul.f32 %v5953, %v5953
        %v5958 = vand.u32 %v2360, 4294901760
        %5959 = vmatpush.msra.mxu0 %v5958
        %v5960 = vand.u32 %v2358, 4294901760
        %5961 = vmatpush.msra.mxu0 %v5960
        %v5962 = vand.u32 %v2356, 4294901760
        %5963 = vmatpush.msra.mxu0 %v5962
        %v5964 = vand.u32 %v2354, 4294901760
        %5965 = vmatpush.msra.mxu0 %v5964
        %v5966 = vand.u32 %v2352, 4294901760
        %5967 = vmatpush.msra.mxu0 %v5966
        %v5968 = vand.u32 %v2350, 4294901760
        %5969 = vmatpush.msra.mxu0 %v5968
        %v5970 = vand.u32 %v2348, 4294901760
        %5971 = vmatpush.msra.mxu0 %v5970
        %v5972 = vand.u32 %v2346, 4294901760
        %5973 = vmatpush.msra.mxu0 %v5972
        %v5974 = vand.u32 %v2344, 4294901760
        %5975 = vmatpush.msra.mxu0 %v5974
        %v5976 = vand.u32 %v2342, 4294901760
        %5977 = vmatpush.msra.mxu0 %v5976
        %v5978 = vand.u32 %v2340, 4294901760
        %5979 = vmatpush.msra.mxu0 %v5978
        %v5980 = vand.u32 %v2338, 4294901760
        %5981 = vmatpush.msra.mxu0 %v5980
        %v5982 = vand.u32 %v2336, 4294901760
        %5983 = vmatpush.msra.mxu0 %v5982
        %v5984 = vand.u32 %v2334, 4294901760
        %5985 = vmatpush.msra.mxu0 %v5984
        %v5986 = vand.u32 %v2332, 4294901760
        %5987 = vmatpush.msra.mxu0 %v5986
        %v5988 = vand.u32 %v2330, 4294901760
        %5989 = vmatpush.msra.mxu0 %v5988
        %v5990 = vand.u32 %v5875, 4294901760
        %v5991 = vsub.f32 %v5875, %v5990
        %v5992 = vand.u32 %v5991, 4294901760
        %v5993 = vsub.f32 %v5991, %v5992
        %v5994 = vand.u32 %v5993, 4294901760
        %5995 = vmatmul.f32.gmra.mxu0 %v5994
        %v5996 = vpop.f32.mrf.mxu0
        %v5997 = vadd.f32 0.0, %v5996
        %v5998 = vand.u32 %v5956, 4294901760
        %v5999 = vsub.f32 %v5956, %v5998
        %v6000 = vand.u32 %v5999, 4294901760
        %v6001 = vsub.f32 %v5999, %v6000
        %v6002 = vand.u32 %v6001, 4294901760
        %6003 = vmatmul.f32.gmra.mxu0 %v6002
        %v6004 = vpop.f32.mrf.mxu0
        %v6005 = vadd.f32 0.0, %v6004
        %6006 = vdwg.mxu0
        %v6007 = vand.u32 %v2360, 4294901760
        %v6008 = vsub.f32 %v2360, %v6007
        %v6009 = vand.u32 %v6008, 4294901760
        %v6010 = vsub.f32 %v6008, %v6009
        %v6011 = vand.u32 %v6010, 4294901760
        %6012 = vmatpush.msra.mxu0 %v6011
        %v6013 = vand.u32 %v2358, 4294901760
        %v6014 = vsub.f32 %v2358, %v6013
        %v6015 = vand.u32 %v6014, 4294901760
        %v6016 = vsub.f32 %v6014, %v6015
        %v6017 = vand.u32 %v6016, 4294901760
        %6018 = vmatpush.msra.mxu0 %v6017
        %v6019 = vand.u32 %v2356, 4294901760
        %v6020 = vsub.f32 %v2356, %v6019
        %v6021 = vand.u32 %v6020, 4294901760
        %v6022 = vsub.f32 %v6020, %v6021
        %v6023 = vand.u32 %v6022, 4294901760
        %6024 = vmatpush.msra.mxu0 %v6023
        %v6025 = vand.u32 %v2354, 4294901760
        %v6026 = vsub.f32 %v2354, %v6025
        %v6027 = vand.u32 %v6026, 4294901760
        %v6028 = vsub.f32 %v6026, %v6027
        %v6029 = vand.u32 %v6028, 4294901760
        %6030 = vmatpush.msra.mxu0 %v6029
        %v6031 = vand.u32 %v2352, 4294901760
        %v6032 = vsub.f32 %v2352, %v6031
        %v6033 = vand.u32 %v6032, 4294901760
        %v6034 = vsub.f32 %v6032, %v6033
        %v6035 = vand.u32 %v6034, 4294901760
        %6036 = vmatpush.msra.mxu0 %v6035
        %v6037 = vand.u32 %v2350, 4294901760
        %v6038 = vsub.f32 %v2350, %v6037
        %v6039 = vand.u32 %v6038, 4294901760
        %v6040 = vsub.f32 %v6038, %v6039
        %v6041 = vand.u32 %v6040, 4294901760
        %6042 = vmatpush.msra.mxu0 %v6041
        %v6043 = vand.u32 %v2348, 4294901760
        %v6044 = vsub.f32 %v2348, %v6043
        %v6045 = vand.u32 %v6044, 4294901760
        %v6046 = vsub.f32 %v6044, %v6045
        %v6047 = vand.u32 %v6046, 4294901760
        %6048 = vmatpush.msra.mxu0 %v6047
        %v6049 = vand.u32 %v2346, 4294901760
        %v6050 = vsub.f32 %v2346, %v6049
        %v6051 = vand.u32 %v6050, 4294901760
        %v6052 = vsub.f32 %v6050, %v6051
        %v6053 = vand.u32 %v6052, 4294901760
        %6054 = vmatpush.msra.mxu0 %v6053
        %v6055 = vand.u32 %v2344, 4294901760
        %v6056 = vsub.f32 %v2344, %v6055
        %v6057 = vand.u32 %v6056, 4294901760
        %v6058 = vsub.f32 %v6056, %v6057
        %v6059 = vand.u32 %v6058, 4294901760
        %6060 = vmatpush.msra.mxu0 %v6059
        %v6061 = vand.u32 %v2342, 4294901760
        %v6062 = vsub.f32 %v2342, %v6061
        %v6063 = vand.u32 %v6062, 4294901760
        %v6064 = vsub.f32 %v6062, %v6063
        %v6065 = vand.u32 %v6064, 4294901760
        %6066 = vmatpush.msra.mxu0 %v6065
        %v6067 = vand.u32 %v2340, 4294901760
        %v6068 = vsub.f32 %v2340, %v6067
        %v6069 = vand.u32 %v6068, 4294901760
        %v6070 = vsub.f32 %v6068, %v6069
        %v6071 = vand.u32 %v6070, 4294901760
        %6072 = vmatpush.msra.mxu0 %v6071
        %v6073 = vand.u32 %v2338, 4294901760
        %v6074 = vsub.f32 %v2338, %v6073
        %v6075 = vand.u32 %v6074, 4294901760
        %v6076 = vsub.f32 %v6074, %v6075
        %v6077 = vand.u32 %v6076, 4294901760
        %6078 = vmatpush.msra.mxu0 %v6077
        %v6079 = vand.u32 %v2336, 4294901760
        %v6080 = vsub.f32 %v2336, %v6079
        %v6081 = vand.u32 %v6080, 4294901760
        %v6082 = vsub.f32 %v6080, %v6081
        %v6083 = vand.u32 %v6082, 4294901760
        %6084 = vmatpush.msra.mxu0 %v6083
        %v6085 = vand.u32 %v2334, 4294901760
        %v6086 = vsub.f32 %v2334, %v6085
        %v6087 = vand.u32 %v6086, 4294901760
        %v6088 = vsub.f32 %v6086, %v6087
        %v6089 = vand.u32 %v6088, 4294901760
        %6090 = vmatpush.msra.mxu0 %v6089
        %v6091 = vand.u32 %v2332, 4294901760
        %v6092 = vsub.f32 %v2332, %v6091
        %v6093 = vand.u32 %v6092, 4294901760
        %v6094 = vsub.f32 %v6092, %v6093
        %v6095 = vand.u32 %v6094, 4294901760
        %6096 = vmatpush.msra.mxu0 %v6095
        %v6097 = vand.u32 %v2330, 4294901760
        %v6098 = vsub.f32 %v2330, %v6097
        %v6099 = vand.u32 %v6098, 4294901760
        %v6100 = vsub.f32 %v6098, %v6099
        %v6101 = vand.u32 %v6100, 4294901760
        %6102 = vmatpush.msra.mxu0 %v6101
        %v6103 = vand.u32 %v5875, 4294901760
        %6104 = vmatmul.f32.gmra.mxu0 %v6103
        %v6105 = vpop.f32.mrf.mxu0
        %v6106 = vadd.f32 %v5997, %v6105
        %v6107 = vand.u32 %v5956, 4294901760
        %6108 = vmatmul.f32.gmra.mxu0 %v6107
        %v6109 = vpop.f32.mrf.mxu0
        %v6110 = vadd.f32 %v6005, %v6109
        %6111 = vdwg.mxu0
        %v6112 = vand.u32 %v2360, 4294901760
        %v6113 = vsub.f32 %v2360, %v6112
        %6114 = vmatpush.msra.mxu0 %v6113
        %v6115 = vand.u32 %v2358, 4294901760
        %v6116 = vsub.f32 %v2358, %v6115
        %6117 = vmatpush.msra.mxu0 %v6116
        %v6118 = vand.u32 %v2356, 4294901760
        %v6119 = vsub.f32 %v2356, %v6118
        %6120 = vmatpush.msra.mxu0 %v6119
        %v6121 = vand.u32 %v2354, 4294901760
        %v6122 = vsub.f32 %v2354, %v6121
        %6123 = vmatpush.msra.mxu0 %v6122
        %v6124 = vand.u32 %v2352, 4294901760
        %v6125 = vsub.f32 %v2352, %v6124
        %6126 = vmatpush.msra.mxu0 %v6125
        %v6127 = vand.u32 %v2350, 4294901760
        %v6128 = vsub.f32 %v2350, %v6127
        %6129 = vmatpush.msra.mxu0 %v6128
        %v6130 = vand.u32 %v2348, 4294901760
        %v6131 = vsub.f32 %v2348, %v6130
        %6132 = vmatpush.msra.mxu0 %v6131
        %v6133 = vand.u32 %v2346, 4294901760
        %v6134 = vsub.f32 %v2346, %v6133
        %6135 = vmatpush.msra.mxu0 %v6134
        %v6136 = vand.u32 %v2344, 4294901760
        %v6137 = vsub.f32 %v2344, %v6136
        %6138 = vmatpush.msra.mxu0 %v6137
        %v6139 = vand.u32 %v2342, 4294901760
        %v6140 = vsub.f32 %v2342, %v6139
        %6141 = vmatpush.msra.mxu0 %v6140
        %v6142 = vand.u32 %v2340, 4294901760
        %v6143 = vsub.f32 %v2340, %v6142
        %6144 = vmatpush.msra.mxu0 %v6143
        %v6145 = vand.u32 %v2338, 4294901760
        %v6146 = vsub.f32 %v2338, %v6145
        %6147 = vmatpush.msra.mxu0 %v6146
        %v6148 = vand.u32 %v2336, 4294901760
        %v6149 = vsub.f32 %v2336, %v6148
        %6150 = vmatpush.msra.mxu0 %v6149
        %v6151 = vand.u32 %v2334, 4294901760
        %v6152 = vsub.f32 %v2334, %v6151
        %6153 = vmatpush.msra.mxu0 %v6152
        %v6154 = vand.u32 %v2332, 4294901760
        %v6155 = vsub.f32 %v2332, %v6154
        %6156 = vmatpush.msra.mxu0 %v6155
        %v6157 = vand.u32 %v2330, 4294901760
        %v6158 = vsub.f32 %v2330, %v6157
        %6159 = vmatpush.msra.mxu0 %v6158
        %v6160 = vand.u32 %v5875, 4294901760
        %v6161 = vsub.f32 %v5875, %v6160
        %6162 = vmatmul.f32.gmra.mxu0 %v6161
        %v6163 = vpop.f32.mrf.mxu0
        %v6164 = vadd.f32 %v6106, %v6163
        %v6165 = vand.u32 %v5956, 4294901760
        %v6166 = vsub.f32 %v5956, %v6165
        %6167 = vmatmul.f32.gmra.mxu0 %v6166
        %v6168 = vpop.f32.mrf.mxu0
        %v6169 = vadd.f32 %v6110, %v6168
        %6170 = vdwg.mxu0
        %v6171 = vand.u32 %v2360, 4294901760
        %6172 = vmatpush.msra.mxu0 %v6171
        %v6173 = vand.u32 %v2358, 4294901760
        %6174 = vmatpush.msra.mxu0 %v6173
        %v6175 = vand.u32 %v2356, 4294901760
        %6176 = vmatpush.msra.mxu0 %v6175
        %v6177 = vand.u32 %v2354, 4294901760
        %6178 = vmatpush.msra.mxu0 %v6177
        %v6179 = vand.u32 %v2352, 4294901760
        %6180 = vmatpush.msra.mxu0 %v6179
        %v6181 = vand.u32 %v2350, 4294901760
        %6182 = vmatpush.msra.mxu0 %v6181
        %v6183 = vand.u32 %v2348, 4294901760
        %6184 = vmatpush.msra.mxu0 %v6183
        %v6185 = vand.u32 %v2346, 4294901760
        %6186 = vmatpush.msra.mxu0 %v6185
        %v6187 = vand.u32 %v2344, 4294901760
        %6188 = vmatpush.msra.mxu0 %v6187
        %v6189 = vand.u32 %v2342, 4294901760
        %6190 = vmatpush.msra.mxu0 %v6189
        %v6191 = vand.u32 %v2340, 4294901760
        %6192 = vmatpush.msra.mxu0 %v6191
        %v6193 = vand.u32 %v2338, 4294901760
        %6194 = vmatpush.msra.mxu0 %v6193
        %v6195 = vand.u32 %v2336, 4294901760
        %6196 = vmatpush.msra.mxu0 %v6195
        %v6197 = vand.u32 %v2334, 4294901760
        %6198 = vmatpush.msra.mxu0 %v6197
        %v6199 = vand.u32 %v2332, 4294901760
        %6200 = vmatpush.msra.mxu0 %v6199
        %v6201 = vand.u32 %v2330, 4294901760
        %6202 = vmatpush.msra.mxu0 %v6201
        %v6203 = vand.u32 %v5875, 4294901760
        %v6204 = vsub.f32 %v5875, %v6203
        %v6205 = vand.u32 %v6204, 4294901760
        %6206 = vmatmul.f32.gmra.mxu0 %v6205
        %v6207 = vpop.f32.mrf.mxu0
        %v6208 = vadd.f32 %v6164, %v6207
        %v6209 = vand.u32 %v5956, 4294901760
        %v6210 = vsub.f32 %v5956, %v6209
        %v6211 = vand.u32 %v6210, 4294901760
        %6212 = vmatmul.f32.gmra.mxu0 %v6211
        %v6213 = vpop.f32.mrf.mxu0
        %v6214 = vadd.f32 %v6169, %v6213
        %6215 = vdwg.mxu0
        %v6216 = vand.u32 %v2360, 4294901760
        %v6217 = vsub.f32 %v2360, %v6216
        %v6218 = vand.u32 %v6217, 4294901760
        %6219 = vmatpush.msra.mxu0 %v6218
        %v6220 = vand.u32 %v2358, 4294901760
        %v6221 = vsub.f32 %v2358, %v6220
        %v6222 = vand.u32 %v6221, 4294901760
        %6223 = vmatpush.msra.mxu0 %v6222
        %v6224 = vand.u32 %v2356, 4294901760
        %v6225 = vsub.f32 %v2356, %v6224
        %v6226 = vand.u32 %v6225, 4294901760
        %6227 = vmatpush.msra.mxu0 %v6226
        %v6228 = vand.u32 %v2354, 4294901760
        %v6229 = vsub.f32 %v2354, %v6228
        %v6230 = vand.u32 %v6229, 4294901760
        %6231 = vmatpush.msra.mxu0 %v6230
        %v6232 = vand.u32 %v2352, 4294901760
        %v6233 = vsub.f32 %v2352, %v6232
        %v6234 = vand.u32 %v6233, 4294901760
        %6235 = vmatpush.msra.mxu0 %v6234
        %v6236 = vand.u32 %v2350, 4294901760
        %v6237 = vsub.f32 %v2350, %v6236
        %v6238 = vand.u32 %v6237, 4294901760
        %6239 = vmatpush.msra.mxu0 %v6238
        %v6240 = vand.u32 %v2348, 4294901760
        %v6241 = vsub.f32 %v2348, %v6240
        %v6242 = vand.u32 %v6241, 4294901760
        %6243 = vmatpush.msra.mxu0 %v6242
        %v6244 = vand.u32 %v2346, 4294901760
        %v6245 = vsub.f32 %v2346, %v6244
        %v6246 = vand.u32 %v6245, 4294901760
        %6247 = vmatpush.msra.mxu0 %v6246
        %v6248 = vand.u32 %v2344, 4294901760
        %v6249 = vsub.f32 %v2344, %v6248
        %v6250 = vand.u32 %v6249, 4294901760
        %6251 = vmatpush.msra.mxu0 %v6250
        %v6252 = vand.u32 %v2342, 4294901760
        %v6253 = vsub.f32 %v2342, %v6252
        %v6254 = vand.u32 %v6253, 4294901760
        %6255 = vmatpush.msra.mxu0 %v6254
        %v6256 = vand.u32 %v2340, 4294901760
        %v6257 = vsub.f32 %v2340, %v6256
        %v6258 = vand.u32 %v6257, 4294901760
        %6259 = vmatpush.msra.mxu0 %v6258
        %v6260 = vand.u32 %v2338, 4294901760
        %v6261 = vsub.f32 %v2338, %v6260
        %v6262 = vand.u32 %v6261, 4294901760
        %6263 = vmatpush.msra.mxu0 %v6262
        %v6264 = vand.u32 %v2336, 4294901760
        %v6265 = vsub.f32 %v2336, %v6264
        %v6266 = vand.u32 %v6265, 4294901760
        %6267 = vmatpush.msra.mxu0 %v6266
        %v6268 = vand.u32 %v2334, 4294901760
        %v6269 = vsub.f32 %v2334, %v6268
        %v6270 = vand.u32 %v6269, 4294901760
        %6271 = vmatpush.msra.mxu0 %v6270
        %v6272 = vand.u32 %v2332, 4294901760
        %v6273 = vsub.f32 %v2332, %v6272
        %v6274 = vand.u32 %v6273, 4294901760
        %6275 = vmatpush.msra.mxu0 %v6274
        %v6276 = vand.u32 %v2330, 4294901760
        %v6277 = vsub.f32 %v2330, %v6276
        %v6278 = vand.u32 %v6277, 4294901760
        %6279 = vmatpush.msra.mxu0 %v6278
        %v6280 = vand.u32 %v5875, 4294901760
        %6281 = vmatmul.f32.gmra.mxu0 %v6280
        %v6282 = vpop.f32.mrf.mxu0
        %v6283 = vadd.f32 %v6208, %v6282
        %v6284 = vand.u32 %v5956, 4294901760
        %6285 = vmatmul.f32.gmra.mxu0 %v6284
        %v6286 = vpop.f32.mrf.mxu0
        %v6287 = vadd.f32 %v6214, %v6286
        %6288 = vdwg.mxu0
        %v6289 = vand.u32 %v2360, 4294901760
        %6290 = vmatpush.msra.mxu0 %v6289
        %v6291 = vand.u32 %v2358, 4294901760
        %6292 = vmatpush.msra.mxu0 %v6291
        %v6293 = vand.u32 %v2356, 4294901760
        %6294 = vmatpush.msra.mxu0 %v6293
        %v6295 = vand.u32 %v2354, 4294901760
        %6296 = vmatpush.msra.mxu0 %v6295
        %v6297 = vand.u32 %v2352, 4294901760
        %6298 = vmatpush.msra.mxu0 %v6297
        %v6299 = vand.u32 %v2350, 4294901760
        %6300 = vmatpush.msra.mxu0 %v6299
        %v6301 = vand.u32 %v2348, 4294901760
        %6302 = vmatpush.msra.mxu0 %v6301
        %v6303 = vand.u32 %v2346, 4294901760
        %6304 = vmatpush.msra.mxu0 %v6303
        %v6305 = vand.u32 %v2344, 4294901760
        %6306 = vmatpush.msra.mxu0 %v6305
        %v6307 = vand.u32 %v2342, 4294901760
        %6308 = vmatpush.msra.mxu0 %v6307
        %v6309 = vand.u32 %v2340, 4294901760
        %6310 = vmatpush.msra.mxu0 %v6309
        %v6311 = vand.u32 %v2338, 4294901760
        %6312 = vmatpush.msra.mxu0 %v6311
        %v6313 = vand.u32 %v2336, 4294901760
        %6314 = vmatpush.msra.mxu0 %v6313
        %v6315 = vand.u32 %v2334, 4294901760
        %6316 = vmatpush.msra.mxu0 %v6315
        %v6317 = vand.u32 %v2332, 4294901760
        %6318 = vmatpush.msra.mxu0 %v6317
        %v6319 = vand.u32 %v2330, 4294901760
        %6320 = vmatpush.msra.mxu0 %v6319
        %v6321 = vand.u32 %v5875, 4294901760
        %6322 = vmatmul.f32.gmra.mxu0 %v6321
        %v6323 = vpop.f32.mrf.mxu0
        %v6324 = vadd.f32 %v6283, %v6323
        %v6325 = vand.u32 %v5956, 4294901760
        %6326 = vmatmul.f32.gmra.mxu0 %v6325
        %v6327 = vpop.f32.mrf.mxu0
        %v6328 = vadd.f32 %v6287, %v6327
        %6329 = vdwg.mxu0
        %v6330 = vand.u32 %v2392, 4294901760
        %6331 = vmatpush.msra.mxu0 %v6330
        %v6332 = vand.u32 %v2390, 4294901760
        %6333 = vmatpush.msra.mxu0 %v6332
        %v6334 = vand.u32 %v2388, 4294901760
        %6335 = vmatpush.msra.mxu0 %v6334
        %v6336 = vand.u32 %v2386, 4294901760
        %6337 = vmatpush.msra.mxu0 %v6336
        %v6338 = vand.u32 %v2384, 4294901760
        %6339 = vmatpush.msra.mxu0 %v6338
        %v6340 = vand.u32 %v2382, 4294901760
        %6341 = vmatpush.msra.mxu0 %v6340
        %v6342 = vand.u32 %v2380, 4294901760
        %6343 = vmatpush.msra.mxu0 %v6342
        %v6344 = vand.u32 %v2378, 4294901760
        %6345 = vmatpush.msra.mxu0 %v6344
        %v6346 = vand.u32 %v2376, 4294901760
        %6347 = vmatpush.msra.mxu0 %v6346
        %v6348 = vand.u32 %v2374, 4294901760
        %6349 = vmatpush.msra.mxu0 %v6348
        %v6350 = vand.u32 %v2372, 4294901760
        %6351 = vmatpush.msra.mxu0 %v6350
        %v6352 = vand.u32 %v2370, 4294901760
        %6353 = vmatpush.msra.mxu0 %v6352
        %v6354 = vand.u32 %v2368, 4294901760
        %6355 = vmatpush.msra.mxu0 %v6354
        %v6356 = vand.u32 %v2366, 4294901760
        %6357 = vmatpush.msra.mxu0 %v6356
        %v6358 = vand.u32 %v2364, 4294901760
        %6359 = vmatpush.msra.mxu0 %v6358
        %v6360 = vand.u32 %v2362, 4294901760
        %6361 = vmatpush.msra.mxu0 %v6360
        %v6362 = vand.u32 %v5953, 4294901760
        %v6363 = vsub.f32 %v5953, %v6362
        %v6364 = vand.u32 %v6363, 4294901760
        %v6365 = vsub.f32 %v6363, %v6364
        %v6366 = vand.u32 %v6365, 4294901760
        %6367 = vmatmul.f32.gmra.mxu0 %v6366
        %v6368 = vpop.f32.mrf.mxu0
        %v6369 = vadd.f32 %v6324, %v6368
        %v6370 = vand.u32 %v5957, 4294901760
        %v6371 = vsub.f32 %v5957, %v6370
        %v6372 = vand.u32 %v6371, 4294901760
        %v6373 = vsub.f32 %v6371, %v6372
        %v6374 = vand.u32 %v6373, 4294901760
        %6375 = vmatmul.f32.gmra.mxu0 %v6374
        %v6376 = vpop.f32.mrf.mxu0
        %v6377 = vadd.f32 %v6328, %v6376
        %6378 = vdwg.mxu0
        %v6379 = vand.u32 %v2392, 4294901760
        %v6380 = vsub.f32 %v2392, %v6379
        %v6381 = vand.u32 %v6380, 4294901760
        %v6382 = vsub.f32 %v6380, %v6381
        %v6383 = vand.u32 %v6382, 4294901760
        %6384 = vmatpush.msra.mxu0 %v6383
        %v6385 = vand.u32 %v2390, 4294901760
        %v6386 = vsub.f32 %v2390, %v6385
        %v6387 = vand.u32 %v6386, 4294901760
        %v6388 = vsub.f32 %v6386, %v6387
        %v6389 = vand.u32 %v6388, 4294901760
        %6390 = vmatpush.msra.mxu0 %v6389
        %v6391 = vand.u32 %v2388, 4294901760
        %v6392 = vsub.f32 %v2388, %v6391
        %v6393 = vand.u32 %v6392, 4294901760
        %v6394 = vsub.f32 %v6392, %v6393
        %v6395 = vand.u32 %v6394, 4294901760
        %6396 = vmatpush.msra.mxu0 %v6395
        %v6397 = vand.u32 %v2386, 4294901760
        %v6398 = vsub.f32 %v2386, %v6397
        %v6399 = vand.u32 %v6398, 4294901760
        %v6400 = vsub.f32 %v6398, %v6399
        %v6401 = vand.u32 %v6400, 4294901760
        %6402 = vmatpush.msra.mxu0 %v6401
        %v6403 = vand.u32 %v2384, 4294901760
        %v6404 = vsub.f32 %v2384, %v6403
        %v6405 = vand.u32 %v6404, 4294901760
        %v6406 = vsub.f32 %v6404, %v6405
        %v6407 = vand.u32 %v6406, 4294901760
        %6408 = vmatpush.msra.mxu0 %v6407
        %v6409 = vand.u32 %v2382, 4294901760
        %v6410 = vsub.f32 %v2382, %v6409
        %v6411 = vand.u32 %v6410, 4294901760
        %v6412 = vsub.f32 %v6410, %v6411
        %v6413 = vand.u32 %v6412, 4294901760
        %6414 = vmatpush.msra.mxu0 %v6413
        %v6415 = vand.u32 %v2380, 4294901760
        %v6416 = vsub.f32 %v2380, %v6415
        %v6417 = vand.u32 %v6416, 4294901760
        %v6418 = vsub.f32 %v6416, %v6417
        %v6419 = vand.u32 %v6418, 4294901760
        %6420 = vmatpush.msra.mxu0 %v6419
        %v6421 = vand.u32 %v2378, 4294901760
        %v6422 = vsub.f32 %v2378, %v6421
        %v6423 = vand.u32 %v6422, 4294901760
        %v6424 = vsub.f32 %v6422, %v6423
        %v6425 = vand.u32 %v6424, 4294901760
        %6426 = vmatpush.msra.mxu0 %v6425
        %v6427 = vand.u32 %v2376, 4294901760
        %v6428 = vsub.f32 %v2376, %v6427
        %v6429 = vand.u32 %v6428, 4294901760
        %v6430 = vsub.f32 %v6428, %v6429
        %v6431 = vand.u32 %v6430, 4294901760
        %6432 = vmatpush.msra.mxu0 %v6431
        %v6433 = vand.u32 %v2374, 4294901760
        %v6434 = vsub.f32 %v2374, %v6433
        %v6435 = vand.u32 %v6434, 4294901760
        %v6436 = vsub.f32 %v6434, %v6435
        %v6437 = vand.u32 %v6436, 4294901760
        %6438 = vmatpush.msra.mxu0 %v6437
        %v6439 = vand.u32 %v2372, 4294901760
        %v6440 = vsub.f32 %v2372, %v6439
        %v6441 = vand.u32 %v6440, 4294901760
        %v6442 = vsub.f32 %v6440, %v6441
        %v6443 = vand.u32 %v6442, 4294901760
        %6444 = vmatpush.msra.mxu0 %v6443
        %v6445 = vand.u32 %v2370, 4294901760
        %v6446 = vsub.f32 %v2370, %v6445
        %v6447 = vand.u32 %v6446, 4294901760
        %v6448 = vsub.f32 %v6446, %v6447
        %v6449 = vand.u32 %v6448, 4294901760
        %6450 = vmatpush.msra.mxu0 %v6449
        %v6451 = vand.u32 %v2368, 4294901760
        %v6452 = vsub.f32 %v2368, %v6451
        %v6453 = vand.u32 %v6452, 4294901760
        %v6454 = vsub.f32 %v6452, %v6453
        %v6455 = vand.u32 %v6454, 4294901760
        %6456 = vmatpush.msra.mxu0 %v6455
        %v6457 = vand.u32 %v2366, 4294901760
        %v6458 = vsub.f32 %v2366, %v6457
        %v6459 = vand.u32 %v6458, 4294901760
        %v6460 = vsub.f32 %v6458, %v6459
        %v6461 = vand.u32 %v6460, 4294901760
        %6462 = vmatpush.msra.mxu0 %v6461
        %v6463 = vand.u32 %v2364, 4294901760
        %v6464 = vsub.f32 %v2364, %v6463
        %v6465 = vand.u32 %v6464, 4294901760
        %v6466 = vsub.f32 %v6464, %v6465
        %v6467 = vand.u32 %v6466, 4294901760
        %6468 = vmatpush.msra.mxu0 %v6467
        %v6469 = vand.u32 %v2362, 4294901760
        %v6470 = vsub.f32 %v2362, %v6469
        %v6471 = vand.u32 %v6470, 4294901760
        %v6472 = vsub.f32 %v6470, %v6471
        %v6473 = vand.u32 %v6472, 4294901760
        %6474 = vmatpush.msra.mxu0 %v6473
        %v6475 = vand.u32 %v5953, 4294901760
        %6476 = vmatmul.f32.gmra.mxu0 %v6475
        %v6477 = vpop.f32.mrf.mxu0
        %v6478 = vadd.f32 %v6369, %v6477
        %v6479 = vand.u32 %v5957, 4294901760
        %6480 = vmatmul.f32.gmra.mxu0 %v6479
        %v6481 = vpop.f32.mrf.mxu0
        %v6482 = vadd.f32 %v6377, %v6481
        %6483 = vdwg.mxu0
        %v6484 = vand.u32 %v2392, 4294901760
        %v6485 = vsub.f32 %v2392, %v6484
        %6486 = vmatpush.msra.mxu0 %v6485
        %v6487 = vand.u32 %v2390, 4294901760
        %v6488 = vsub.f32 %v2390, %v6487
        %6489 = vmatpush.msra.mxu0 %v6488
        %v6490 = vand.u32 %v2388, 4294901760
        %v6491 = vsub.f32 %v2388, %v6490
        %6492 = vmatpush.msra.mxu0 %v6491
        %v6493 = vand.u32 %v2386, 4294901760
        %v6494 = vsub.f32 %v2386, %v6493
        %6495 = vmatpush.msra.mxu0 %v6494
        %v6496 = vand.u32 %v2384, 4294901760
        %v6497 = vsub.f32 %v2384, %v6496
        %6498 = vmatpush.msra.mxu0 %v6497
        %v6499 = vand.u32 %v2382, 4294901760
        %v6500 = vsub.f32 %v2382, %v6499
        %6501 = vmatpush.msra.mxu0 %v6500
        %v6502 = vand.u32 %v2380, 4294901760
        %v6503 = vsub.f32 %v2380, %v6502
        %6504 = vmatpush.msra.mxu0 %v6503
        %v6505 = vand.u32 %v2378, 4294901760
        %v6506 = vsub.f32 %v2378, %v6505
        %6507 = vmatpush.msra.mxu0 %v6506
        %v6508 = vand.u32 %v2376, 4294901760
        %v6509 = vsub.f32 %v2376, %v6508
        %6510 = vmatpush.msra.mxu0 %v6509
        %v6511 = vand.u32 %v2374, 4294901760
        %v6512 = vsub.f32 %v2374, %v6511
        %6513 = vmatpush.msra.mxu0 %v6512
        %v6514 = vand.u32 %v2372, 4294901760
        %v6515 = vsub.f32 %v2372, %v6514
        %6516 = vmatpush.msra.mxu0 %v6515
        %v6517 = vand.u32 %v2370, 4294901760
        %v6518 = vsub.f32 %v2370, %v6517
        %6519 = vmatpush.msra.mxu0 %v6518
        %v6520 = vand.u32 %v2368, 4294901760
        %v6521 = vsub.f32 %v2368, %v6520
        %6522 = vmatpush.msra.mxu0 %v6521
        %v6523 = vand.u32 %v2366, 4294901760
        %v6524 = vsub.f32 %v2366, %v6523
        %6525 = vmatpush.msra.mxu0 %v6524
        %v6526 = vand.u32 %v2364, 4294901760
        %v6527 = vsub.f32 %v2364, %v6526
        %6528 = vmatpush.msra.mxu0 %v6527
        %v6529 = vand.u32 %v2362, 4294901760
        %v6530 = vsub.f32 %v2362, %v6529
        %6531 = vmatpush.msra.mxu0 %v6530
        %v6532 = vand.u32 %v5953, 4294901760
        %v6533 = vsub.f32 %v5953, %v6532
        %6534 = vmatmul.f32.gmra.mxu0 %v6533
        %v6535 = vpop.f32.mrf.mxu0
        %v6536 = vadd.f32 %v6478, %v6535
        %v6537 = vand.u32 %v5957, 4294901760
        %v6538 = vsub.f32 %v5957, %v6537
        %6539 = vmatmul.f32.gmra.mxu0 %v6538
        %v6540 = vpop.f32.mrf.mxu0
        %v6541 = vadd.f32 %v6482, %v6540
        %6542 = vdwg.mxu0
        %v6543 = vand.u32 %v2392, 4294901760
        %6544 = vmatpush.msra.mxu0 %v6543
        %v6545 = vand.u32 %v2390, 4294901760
        %6546 = vmatpush.msra.mxu0 %v6545
        %v6547 = vand.u32 %v2388, 4294901760
        %6548 = vmatpush.msra.mxu0 %v6547
        %v6549 = vand.u32 %v2386, 4294901760
        %6550 = vmatpush.msra.mxu0 %v6549
        %v6551 = vand.u32 %v2384, 4294901760
        %6552 = vmatpush.msra.mxu0 %v6551
        %v6553 = vand.u32 %v2382, 4294901760
        %6554 = vmatpush.msra.mxu0 %v6553
        %v6555 = vand.u32 %v2380, 4294901760
        %6556 = vmatpush.msra.mxu0 %v6555
        %v6557 = vand.u32 %v2378, 4294901760
        %6558 = vmatpush.msra.mxu0 %v6557
        %v6559 = vand.u32 %v2376, 4294901760
        %6560 = vmatpush.msra.mxu0 %v6559
        %v6561 = vand.u32 %v2374, 4294901760
        %6562 = vmatpush.msra.mxu0 %v6561
        %v6563 = vand.u32 %v2372, 4294901760
        %6564 = vmatpush.msra.mxu0 %v6563
        %v6565 = vand.u32 %v2370, 4294901760
        %6566 = vmatpush.msra.mxu0 %v6565
        %v6567 = vand.u32 %v2368, 4294901760
        %6568 = vmatpush.msra.mxu0 %v6567
        %v6569 = vand.u32 %v2366, 4294901760
        %6570 = vmatpush.msra.mxu0 %v6569
        %v6571 = vand.u32 %v2364, 4294901760
        %6572 = vmatpush.msra.mxu0 %v6571
        %v6573 = vand.u32 %v2362, 4294901760
        %6574 = vmatpush.msra.mxu0 %v6573
        %v6575 = vand.u32 %v5953, 4294901760
        %v6576 = vsub.f32 %v5953, %v6575
        %v6577 = vand.u32 %v6576, 4294901760
        %6578 = vmatmul.f32.gmra.mxu0 %v6577
        %v6579 = vpop.f32.mrf.mxu0
        %v6580 = vadd.f32 %v6536, %v6579
        %v6581 = vand.u32 %v5957, 4294901760
        %v6582 = vsub.f32 %v5957, %v6581
        %v6583 = vand.u32 %v6582, 4294901760
        %6584 = vmatmul.f32.gmra.mxu0 %v6583
        %v6585 = vpop.f32.mrf.mxu0
        %v6586 = vadd.f32 %v6541, %v6585
        %6587 = vdwg.mxu0
        %v6588 = vand.u32 %v2392, 4294901760
        %v6589 = vsub.f32 %v2392, %v6588
        %v6590 = vand.u32 %v6589, 4294901760
        %6591 = vmatpush.msra.mxu0 %v6590
        %v6592 = vand.u32 %v2390, 4294901760
        %v6593 = vsub.f32 %v2390, %v6592
        %v6594 = vand.u32 %v6593, 4294901760
        %6595 = vmatpush.msra.mxu0 %v6594
        %v6596 = vand.u32 %v2388, 4294901760
        %v6597 = vsub.f32 %v2388, %v6596
        %v6598 = vand.u32 %v6597, 4294901760
        %6599 = vmatpush.msra.mxu0 %v6598
        %v6600 = vand.u32 %v2386, 4294901760
        %v6601 = vsub.f32 %v2386, %v6600
        %v6602 = vand.u32 %v6601, 4294901760
        %6603 = vmatpush.msra.mxu0 %v6602
        %v6604 = vand.u32 %v2384, 4294901760
        %v6605 = vsub.f32 %v2384, %v6604
        %v6606 = vand.u32 %v6605, 4294901760
        %6607 = vmatpush.msra.mxu0 %v6606
        %v6608 = vand.u32 %v2382, 4294901760
        %v6609 = vsub.f32 %v2382, %v6608
        %v6610 = vand.u32 %v6609, 4294901760
        %6611 = vmatpush.msra.mxu0 %v6610
        %v6612 = vand.u32 %v2380, 4294901760
        %v6613 = vsub.f32 %v2380, %v6612
        %v6614 = vand.u32 %v6613, 4294901760
        %6615 = vmatpush.msra.mxu0 %v6614
        %v6616 = vand.u32 %v2378, 4294901760
        %v6617 = vsub.f32 %v2378, %v6616
        %v6618 = vand.u32 %v6617, 4294901760
        %6619 = vmatpush.msra.mxu0 %v6618
        %v6620 = vand.u32 %v2376, 4294901760
        %v6621 = vsub.f32 %v2376, %v6620
        %v6622 = vand.u32 %v6621, 4294901760
        %6623 = vmatpush.msra.mxu0 %v6622
        %v6624 = vand.u32 %v2374, 4294901760
        %v6625 = vsub.f32 %v2374, %v6624
        %v6626 = vand.u32 %v6625, 4294901760
        %6627 = vmatpush.msra.mxu0 %v6626
        %v6628 = vand.u32 %v2372, 4294901760
        %v6629 = vsub.f32 %v2372, %v6628
        %v6630 = vand.u32 %v6629, 4294901760
        %6631 = vmatpush.msra.mxu0 %v6630
        %v6632 = vand.u32 %v2370, 4294901760
        %v6633 = vsub.f32 %v2370, %v6632
        %v6634 = vand.u32 %v6633, 4294901760
        %6635 = vmatpush.msra.mxu0 %v6634
        %v6636 = vand.u32 %v2368, 4294901760
        %v6637 = vsub.f32 %v2368, %v6636
        %v6638 = vand.u32 %v6637, 4294901760
        %6639 = vmatpush.msra.mxu0 %v6638
        %v6640 = vand.u32 %v2366, 4294901760
        %v6641 = vsub.f32 %v2366, %v6640
        %v6642 = vand.u32 %v6641, 4294901760
        %6643 = vmatpush.msra.mxu0 %v6642
        %v6644 = vand.u32 %v2364, 4294901760
        %v6645 = vsub.f32 %v2364, %v6644
        %v6646 = vand.u32 %v6645, 4294901760
        %6647 = vmatpush.msra.mxu0 %v6646
        %v6648 = vand.u32 %v2362, 4294901760
        %v6649 = vsub.f32 %v2362, %v6648
        %v6650 = vand.u32 %v6649, 4294901760
        %6651 = vmatpush.msra.mxu0 %v6650
        %v6652 = vand.u32 %v5953, 4294901760
        %6653 = vmatmul.f32.gmra.mxu0 %v6652
        %v6654 = vpop.f32.mrf.mxu0
        %v6655 = vadd.f32 %v6580, %v6654
        %v6656 = vand.u32 %v5957, 4294901760
        %6657 = vmatmul.f32.gmra.mxu0 %v6656
        %v6658 = vpop.f32.mrf.mxu0
        %v6659 = vadd.f32 %v6586, %v6658
        %6660 = vdwg.mxu0
        %v6661 = vand.u32 %v2392, 4294901760
        %6662 = vmatpush.msra.mxu0 %v6661
        %v6663 = vand.u32 %v2390, 4294901760
        %6664 = vmatpush.msra.mxu0 %v6663
        %v6665 = vand.u32 %v2388, 4294901760
        %6666 = vmatpush.msra.mxu0 %v6665
        %v6667 = vand.u32 %v2386, 4294901760
        %6668 = vmatpush.msra.mxu0 %v6667
        %v6669 = vand.u32 %v2384, 4294901760
        %6670 = vmatpush.msra.mxu0 %v6669
        %v6671 = vand.u32 %v2382, 4294901760
        %6672 = vmatpush.msra.mxu0 %v6671
        %v6673 = vand.u32 %v2380, 4294901760
        %6674 = vmatpush.msra.mxu0 %v6673
        %v6675 = vand.u32 %v2378, 4294901760
        %6676 = vmatpush.msra.mxu0 %v6675
        %v6677 = vand.u32 %v2376, 4294901760
        %6678 = vmatpush.msra.mxu0 %v6677
        %v6679 = vand.u32 %v2374, 4294901760
        %6680 = vmatpush.msra.mxu0 %v6679
        %v6681 = vand.u32 %v2372, 4294901760
        %6682 = vmatpush.msra.mxu0 %v6681
        %v6683 = vand.u32 %v2370, 4294901760
        %6684 = vmatpush.msra.mxu0 %v6683
        %v6685 = vand.u32 %v2368, 4294901760
        %6686 = vmatpush.msra.mxu0 %v6685
        %v6687 = vand.u32 %v2366, 4294901760
        %6688 = vmatpush.msra.mxu0 %v6687
        %v6689 = vand.u32 %v2364, 4294901760
        %6690 = vmatpush.msra.mxu0 %v6689
        %v6691 = vand.u32 %v2362, 4294901760
        %6692 = vmatpush.msra.mxu0 %v6691
        %v6693 = vand.u32 %v5953, 4294901760
        %6694 = vmatmul.f32.gmra.mxu0 %v6693
        %v6695 = vpop.f32.mrf.mxu0
        %v6696 = vadd.f32 %v6655, %v6695
        %v6697 = vand.u32 %v5957, 4294901760
        %6698 = vmatmul.f32.gmra.mxu0 %v6697
        %v6699 = vpop.f32.mrf.mxu0
        %v6700 = vadd.f32 %v6659, %v6699
        %6701 = vdwg.mxu0
        %v6702 = vand.u32 %v2361, 4294901760
        %6703 = vmatpush.msra.mxu0 %v6702
        %v6704 = vand.u32 %v2359, 4294901760
        %6705 = vmatpush.msra.mxu0 %v6704
        %v6706 = vand.u32 %v2357, 4294901760
        %6707 = vmatpush.msra.mxu0 %v6706
        %v6708 = vand.u32 %v2355, 4294901760
        %6709 = vmatpush.msra.mxu0 %v6708
        %v6710 = vand.u32 %v2353, 4294901760
        %6711 = vmatpush.msra.mxu0 %v6710
        %v6712 = vand.u32 %v2351, 4294901760
        %6713 = vmatpush.msra.mxu0 %v6712
        %v6714 = vand.u32 %v2349, 4294901760
        %6715 = vmatpush.msra.mxu0 %v6714
        %v6716 = vand.u32 %v2347, 4294901760
        %6717 = vmatpush.msra.mxu0 %v6716
        %v6718 = vand.u32 %v2345, 4294901760
        %6719 = vmatpush.msra.mxu0 %v6718
        %v6720 = vand.u32 %v2343, 4294901760
        %6721 = vmatpush.msra.mxu0 %v6720
        %v6722 = vand.u32 %v2341, 4294901760
        %6723 = vmatpush.msra.mxu0 %v6722
        %v6724 = vand.u32 %v2339, 4294901760
        %6725 = vmatpush.msra.mxu0 %v6724
        %v6726 = vand.u32 %v2337, 4294901760
        %6727 = vmatpush.msra.mxu0 %v6726
        %v6728 = vand.u32 %v2335, 4294901760
        %6729 = vmatpush.msra.mxu0 %v6728
        %v6730 = vand.u32 %v2333, 4294901760
        %6731 = vmatpush.msra.mxu0 %v6730
        %v6732 = vand.u32 %v2331, 4294901760
        %6733 = vmatpush.msra.mxu0 %v6732
        %v6734 = vand.u32 %v5875, 4294901760
        %v6735 = vsub.f32 %v5875, %v6734
        %v6736 = vand.u32 %v6735, 4294901760
        %v6737 = vsub.f32 %v6735, %v6736
        %v6738 = vand.u32 %v6737, 4294901760
        %6739 = vmatmul.f32.gmra.mxu0 %v6738
        %v6740 = vpop.f32.mrf.mxu0
        %v6741 = vadd.f32 0.0, %v6740
        %v6742 = vand.u32 %v5956, 4294901760
        %v6743 = vsub.f32 %v5956, %v6742
        %v6744 = vand.u32 %v6743, 4294901760
        %v6745 = vsub.f32 %v6743, %v6744
        %v6746 = vand.u32 %v6745, 4294901760
        %6747 = vmatmul.f32.gmra.mxu0 %v6746
        %v6748 = vpop.f32.mrf.mxu0
        %v6749 = vadd.f32 0.0, %v6748
        %6750 = vdwg.mxu0
        %v6751 = vand.u32 %v2361, 4294901760
        %v6752 = vsub.f32 %v2361, %v6751
        %v6753 = vand.u32 %v6752, 4294901760
        %v6754 = vsub.f32 %v6752, %v6753
        %v6755 = vand.u32 %v6754, 4294901760
        %6756 = vmatpush.msra.mxu0 %v6755
        %v6757 = vand.u32 %v2359, 4294901760
        %v6758 = vsub.f32 %v2359, %v6757
        %v6759 = vand.u32 %v6758, 4294901760
        %v6760 = vsub.f32 %v6758, %v6759
        %v6761 = vand.u32 %v6760, 4294901760
        %6762 = vmatpush.msra.mxu0 %v6761
        %v6763 = vand.u32 %v2357, 4294901760
        %v6764 = vsub.f32 %v2357, %v6763
        %v6765 = vand.u32 %v6764, 4294901760
        %v6766 = vsub.f32 %v6764, %v6765
        %v6767 = vand.u32 %v6766, 4294901760
        %6768 = vmatpush.msra.mxu0 %v6767
        %v6769 = vand.u32 %v2355, 4294901760
        %v6770 = vsub.f32 %v2355, %v6769
        %v6771 = vand.u32 %v6770, 4294901760
        %v6772 = vsub.f32 %v6770, %v6771
        %v6773 = vand.u32 %v6772, 4294901760
        %6774 = vmatpush.msra.mxu0 %v6773
        %v6775 = vand.u32 %v2353, 4294901760
        %v6776 = vsub.f32 %v2353, %v6775
        %v6777 = vand.u32 %v6776, 4294901760
        %v6778 = vsub.f32 %v6776, %v6777
        %v6779 = vand.u32 %v6778, 4294901760
        %6780 = vmatpush.msra.mxu0 %v6779
        %v6781 = vand.u32 %v2351, 4294901760
        %v6782 = vsub.f32 %v2351, %v6781
        %v6783 = vand.u32 %v6782, 4294901760
        %v6784 = vsub.f32 %v6782, %v6783
        %v6785 = vand.u32 %v6784, 4294901760
        %6786 = vmatpush.msra.mxu0 %v6785
        %v6787 = vand.u32 %v2349, 4294901760
        %v6788 = vsub.f32 %v2349, %v6787
        %v6789 = vand.u32 %v6788, 4294901760
        %v6790 = vsub.f32 %v6788, %v6789
        %v6791 = vand.u32 %v6790, 4294901760
        %6792 = vmatpush.msra.mxu0 %v6791
        %v6793 = vand.u32 %v2347, 4294901760
        %v6794 = vsub.f32 %v2347, %v6793
        %v6795 = vand.u32 %v6794, 4294901760
        %v6796 = vsub.f32 %v6794, %v6795
        %v6797 = vand.u32 %v6796, 4294901760
        %6798 = vmatpush.msra.mxu0 %v6797
        %v6799 = vand.u32 %v2345, 4294901760
        %v6800 = vsub.f32 %v2345, %v6799
        %v6801 = vand.u32 %v6800, 4294901760
        %v6802 = vsub.f32 %v6800, %v6801
        %v6803 = vand.u32 %v6802, 4294901760
        %6804 = vmatpush.msra.mxu0 %v6803
        %v6805 = vand.u32 %v2343, 4294901760
        %v6806 = vsub.f32 %v2343, %v6805
        %v6807 = vand.u32 %v6806, 4294901760
        %v6808 = vsub.f32 %v6806, %v6807
        %v6809 = vand.u32 %v6808, 4294901760
        %6810 = vmatpush.msra.mxu0 %v6809
        %v6811 = vand.u32 %v2341, 4294901760
        %v6812 = vsub.f32 %v2341, %v6811
        %v6813 = vand.u32 %v6812, 4294901760
        %v6814 = vsub.f32 %v6812, %v6813
        %v6815 = vand.u32 %v6814, 4294901760
        %6816 = vmatpush.msra.mxu0 %v6815
        %v6817 = vand.u32 %v2339, 4294901760
        %v6818 = vsub.f32 %v2339, %v6817
        %v6819 = vand.u32 %v6818, 4294901760
        %v6820 = vsub.f32 %v6818, %v6819
        %v6821 = vand.u32 %v6820, 4294901760
        %6822 = vmatpush.msra.mxu0 %v6821
        %v6823 = vand.u32 %v2337, 4294901760
        %v6824 = vsub.f32 %v2337, %v6823
        %v6825 = vand.u32 %v6824, 4294901760
        %v6826 = vsub.f32 %v6824, %v6825
        %v6827 = vand.u32 %v6826, 4294901760
        %6828 = vmatpush.msra.mxu0 %v6827
        %v6829 = vand.u32 %v2335, 4294901760
        %v6830 = vsub.f32 %v2335, %v6829
        %v6831 = vand.u32 %v6830, 4294901760
        %v6832 = vsub.f32 %v6830, %v6831
        %v6833 = vand.u32 %v6832, 4294901760
        %6834 = vmatpush.msra.mxu0 %v6833
        %v6835 = vand.u32 %v2333, 4294901760
        %v6836 = vsub.f32 %v2333, %v6835
        %v6837 = vand.u32 %v6836, 4294901760
        %v6838 = vsub.f32 %v6836, %v6837
        %v6839 = vand.u32 %v6838, 4294901760
        %6840 = vmatpush.msra.mxu0 %v6839
        %v6841 = vand.u32 %v2331, 4294901760
        %v6842 = vsub.f32 %v2331, %v6841
        %v6843 = vand.u32 %v6842, 4294901760
        %v6844 = vsub.f32 %v6842, %v6843
        %v6845 = vand.u32 %v6844, 4294901760
        %6846 = vmatpush.msra.mxu0 %v6845
        %v6847 = vand.u32 %v5875, 4294901760
        %6848 = vmatmul.f32.gmra.mxu0 %v6847
        %v6849 = vpop.f32.mrf.mxu0
        %v6850 = vadd.f32 %v6741, %v6849
        %v6851 = vand.u32 %v5956, 4294901760
        %6852 = vmatmul.f32.gmra.mxu0 %v6851
        %v6853 = vpop.f32.mrf.mxu0
        %v6854 = vadd.f32 %v6749, %v6853
        %6855 = vdwg.mxu0
        %v6856 = vand.u32 %v2361, 4294901760
        %v6857 = vsub.f32 %v2361, %v6856
        %6858 = vmatpush.msra.mxu0 %v6857
        %v6859 = vand.u32 %v2359, 4294901760
        %v6860 = vsub.f32 %v2359, %v6859
        %6861 = vmatpush.msra.mxu0 %v6860
        %v6862 = vand.u32 %v2357, 4294901760
        %v6863 = vsub.f32 %v2357, %v6862
        %6864 = vmatpush.msra.mxu0 %v6863
        %v6865 = vand.u32 %v2355, 4294901760
        %v6866 = vsub.f32 %v2355, %v6865
        %6867 = vmatpush.msra.mxu0 %v6866
        %v6868 = vand.u32 %v2353, 4294901760
        %v6869 = vsub.f32 %v2353, %v6868
        %6870 = vmatpush.msra.mxu0 %v6869
        %v6871 = vand.u32 %v2351, 4294901760
        %v6872 = vsub.f32 %v2351, %v6871
        %6873 = vmatpush.msra.mxu0 %v6872
        %v6874 = vand.u32 %v2349, 4294901760
        %v6875 = vsub.f32 %v2349, %v6874
        %6876 = vmatpush.msra.mxu0 %v6875
        %v6877 = vand.u32 %v2347, 4294901760
        %v6878 = vsub.f32 %v2347, %v6877
        %6879 = vmatpush.msra.mxu0 %v6878
        %v6880 = vand.u32 %v2345, 4294901760
        %v6881 = vsub.f32 %v2345, %v6880
        %6882 = vmatpush.msra.mxu0 %v6881
        %v6883 = vand.u32 %v2343, 4294901760
        %v6884 = vsub.f32 %v2343, %v6883
        %6885 = vmatpush.msra.mxu0 %v6884
        %v6886 = vand.u32 %v2341, 4294901760
        %v6887 = vsub.f32 %v2341, %v6886
        %6888 = vmatpush.msra.mxu0 %v6887
        %v6889 = vand.u32 %v2339, 4294901760
        %v6890 = vsub.f32 %v2339, %v6889
        %6891 = vmatpush.msra.mxu0 %v6890
        %v6892 = vand.u32 %v2337, 4294901760
        %v6893 = vsub.f32 %v2337, %v6892
        %6894 = vmatpush.msra.mxu0 %v6893
        %v6895 = vand.u32 %v2335, 4294901760
        %v6896 = vsub.f32 %v2335, %v6895
        %6897 = vmatpush.msra.mxu0 %v6896
        %v6898 = vand.u32 %v2333, 4294901760
        %v6899 = vsub.f32 %v2333, %v6898
        %6900 = vmatpush.msra.mxu0 %v6899
        %v6901 = vand.u32 %v2331, 4294901760
        %v6902 = vsub.f32 %v2331, %v6901
        %6903 = vmatpush.msra.mxu0 %v6902
        %v6904 = vand.u32 %v5875, 4294901760
        %v6905 = vsub.f32 %v5875, %v6904
        %6906 = vmatmul.f32.gmra.mxu0 %v6905
        %v6907 = vpop.f32.mrf.mxu0
        %v6908 = vadd.f32 %v6850, %v6907
        %v6909 = vand.u32 %v5956, 4294901760
        %v6910 = vsub.f32 %v5956, %v6909
        %6911 = vmatmul.f32.gmra.mxu0 %v6910
        %v6912 = vpop.f32.mrf.mxu0
        %v6913 = vadd.f32 %v6854, %v6912
        %6914 = vdwg.mxu0
        %v6915 = vand.u32 %v2361, 4294901760
        %6916 = vmatpush.msra.mxu0 %v6915
        %v6917 = vand.u32 %v2359, 4294901760
        %6918 = vmatpush.msra.mxu0 %v6917
        %v6919 = vand.u32 %v2357, 4294901760
        %6920 = vmatpush.msra.mxu0 %v6919
        %v6921 = vand.u32 %v2355, 4294901760
        %6922 = vmatpush.msra.mxu0 %v6921
        %v6923 = vand.u32 %v2353, 4294901760
        %6924 = vmatpush.msra.mxu0 %v6923
        %v6925 = vand.u32 %v2351, 4294901760
        %6926 = vmatpush.msra.mxu0 %v6925
        %v6927 = vand.u32 %v2349, 4294901760
        %6928 = vmatpush.msra.mxu0 %v6927
        %v6929 = vand.u32 %v2347, 4294901760
        %6930 = vmatpush.msra.mxu0 %v6929
        %v6931 = vand.u32 %v2345, 4294901760
        %6932 = vmatpush.msra.mxu0 %v6931
        %v6933 = vand.u32 %v2343, 4294901760
        %6934 = vmatpush.msra.mxu0 %v6933
        %v6935 = vand.u32 %v2341, 4294901760
        %6936 = vmatpush.msra.mxu0 %v6935
        %v6937 = vand.u32 %v2339, 4294901760
        %6938 = vmatpush.msra.mxu0 %v6937
        %v6939 = vand.u32 %v2337, 4294901760
        %6940 = vmatpush.msra.mxu0 %v6939
        %v6941 = vand.u32 %v2335, 4294901760
        %6942 = vmatpush.msra.mxu0 %v6941
        %v6943 = vand.u32 %v2333, 4294901760
        %6944 = vmatpush.msra.mxu0 %v6943
        %v6945 = vand.u32 %v2331, 4294901760
        %6946 = vmatpush.msra.mxu0 %v6945
        %v6947 = vand.u32 %v5875, 4294901760
        %v6948 = vsub.f32 %v5875, %v6947
        %v6949 = vand.u32 %v6948, 4294901760
        %6950 = vmatmul.f32.gmra.mxu0 %v6949
        %v6951 = vpop.f32.mrf.mxu0
        %v6952 = vadd.f32 %v6908, %v6951
        %v6953 = vand.u32 %v5956, 4294901760
        %v6954 = vsub.f32 %v5956, %v6953
        %v6955 = vand.u32 %v6954, 4294901760
        %6956 = vmatmul.f32.gmra.mxu0 %v6955
        %v6957 = vpop.f32.mrf.mxu0
        %v6958 = vadd.f32 %v6913, %v6957
        %6959 = vdwg.mxu0
        %v6960 = vand.u32 %v2361, 4294901760
        %v6961 = vsub.f32 %v2361, %v6960
        %v6962 = vand.u32 %v6961, 4294901760
        %6963 = vmatpush.msra.mxu0 %v6962
        %v6964 = vand.u32 %v2359, 4294901760
        %v6965 = vsub.f32 %v2359, %v6964
        %v6966 = vand.u32 %v6965, 4294901760
        %6967 = vmatpush.msra.mxu0 %v6966
        %v6968 = vand.u32 %v2357, 4294901760
        %v6969 = vsub.f32 %v2357, %v6968
        %v6970 = vand.u32 %v6969, 4294901760
        %6971 = vmatpush.msra.mxu0 %v6970
        %v6972 = vand.u32 %v2355, 4294901760
        %v6973 = vsub.f32 %v2355, %v6972
        %v6974 = vand.u32 %v6973, 4294901760
        %6975 = vmatpush.msra.mxu0 %v6974
        %v6976 = vand.u32 %v2353, 4294901760
        %v6977 = vsub.f32 %v2353, %v6976
        %v6978 = vand.u32 %v6977, 4294901760
        %6979 = vmatpush.msra.mxu0 %v6978
        %v6980 = vand.u32 %v2351, 4294901760
        %v6981 = vsub.f32 %v2351, %v6980
        %v6982 = vand.u32 %v6981, 4294901760
        %6983 = vmatpush.msra.mxu0 %v6982
        %v6984 = vand.u32 %v2349, 4294901760
        %v6985 = vsub.f32 %v2349, %v6984
        %v6986 = vand.u32 %v6985, 4294901760
        %6987 = vmatpush.msra.mxu0 %v6986
        %v6988 = vand.u32 %v2347, 4294901760
        %v6989 = vsub.f32 %v2347, %v6988
        %v6990 = vand.u32 %v6989, 4294901760
        %6991 = vmatpush.msra.mxu0 %v6990
        %v6992 = vand.u32 %v2345, 4294901760
        %v6993 = vsub.f32 %v2345, %v6992
        %v6994 = vand.u32 %v6993, 4294901760
        %6995 = vmatpush.msra.mxu0 %v6994
        %v6996 = vand.u32 %v2343, 4294901760
        %v6997 = vsub.f32 %v2343, %v6996
        %v6998 = vand.u32 %v6997, 4294901760
        %6999 = vmatpush.msra.mxu0 %v6998
        %v7000 = vand.u32 %v2341, 4294901760
        %v7001 = vsub.f32 %v2341, %v7000
        %v7002 = vand.u32 %v7001, 4294901760
        %7003 = vmatpush.msra.mxu0 %v7002
        %v7004 = vand.u32 %v2339, 4294901760
        %v7005 = vsub.f32 %v2339, %v7004
        %v7006 = vand.u32 %v7005, 4294901760
        %7007 = vmatpush.msra.mxu0 %v7006
        %v7008 = vand.u32 %v2337, 4294901760
        %v7009 = vsub.f32 %v2337, %v7008
        %v7010 = vand.u32 %v7009, 4294901760
        %7011 = vmatpush.msra.mxu0 %v7010
        %v7012 = vand.u32 %v2335, 4294901760
        %v7013 = vsub.f32 %v2335, %v7012
        %v7014 = vand.u32 %v7013, 4294901760
        %7015 = vmatpush.msra.mxu0 %v7014
        %v7016 = vand.u32 %v2333, 4294901760
        %v7017 = vsub.f32 %v2333, %v7016
        %v7018 = vand.u32 %v7017, 4294901760
        %7019 = vmatpush.msra.mxu0 %v7018
        %v7020 = vand.u32 %v2331, 4294901760
        %v7021 = vsub.f32 %v2331, %v7020
        %v7022 = vand.u32 %v7021, 4294901760
        %7023 = vmatpush.msra.mxu0 %v7022
        %v7024 = vand.u32 %v5875, 4294901760
        %7025 = vmatmul.f32.gmra.mxu0 %v7024
        %v7026 = vpop.f32.mrf.mxu0
        %v7027 = vadd.f32 %v6952, %v7026
        %v7028 = vand.u32 %v5956, 4294901760
        %7029 = vmatmul.f32.gmra.mxu0 %v7028
        %v7030 = vpop.f32.mrf.mxu0
        %v7031 = vadd.f32 %v6958, %v7030
        %7032 = vdwg.mxu0
        %v7033 = vand.u32 %v2361, 4294901760
        %7034 = vmatpush.msra.mxu0 %v7033
        %v7035 = vand.u32 %v2359, 4294901760
        %7036 = vmatpush.msra.mxu0 %v7035
        %v7037 = vand.u32 %v2357, 4294901760
        %7038 = vmatpush.msra.mxu0 %v7037
        %v7039 = vand.u32 %v2355, 4294901760
        %7040 = vmatpush.msra.mxu0 %v7039
        %v7041 = vand.u32 %v2353, 4294901760
        %7042 = vmatpush.msra.mxu0 %v7041
        %v7043 = vand.u32 %v2351, 4294901760
        %7044 = vmatpush.msra.mxu0 %v7043
        %v7045 = vand.u32 %v2349, 4294901760
        %7046 = vmatpush.msra.mxu0 %v7045
        %v7047 = vand.u32 %v2347, 4294901760
        %7048 = vmatpush.msra.mxu0 %v7047
        %v7049 = vand.u32 %v2345, 4294901760
        %7050 = vmatpush.msra.mxu0 %v7049
        %v7051 = vand.u32 %v2343, 4294901760
        %7052 = vmatpush.msra.mxu0 %v7051
        %v7053 = vand.u32 %v2341, 4294901760
        %7054 = vmatpush.msra.mxu0 %v7053
        %v7055 = vand.u32 %v2339, 4294901760
        %7056 = vmatpush.msra.mxu0 %v7055
        %v7057 = vand.u32 %v2337, 4294901760
        %7058 = vmatpush.msra.mxu0 %v7057
        %v7059 = vand.u32 %v2335, 4294901760
        %7060 = vmatpush.msra.mxu0 %v7059
        %v7061 = vand.u32 %v2333, 4294901760
        %7062 = vmatpush.msra.mxu0 %v7061
        %v7063 = vand.u32 %v2331, 4294901760
        %7064 = vmatpush.msra.mxu0 %v7063
        %v7065 = vand.u32 %v5875, 4294901760
        %7066 = vmatmul.f32.gmra.mxu0 %v7065
        %v7067 = vpop.f32.mrf.mxu0
        %v7068 = vadd.f32 %v7027, %v7067
        %v7069 = vand.u32 %v5956, 4294901760
        %7070 = vmatmul.f32.gmra.mxu0 %v7069
        %v7071 = vpop.f32.mrf.mxu0
        %v7072 = vadd.f32 %v7031, %v7071
        %7073 = vdwg.mxu0
        %v7074 = vand.u32 %v2393, 4294901760
        %7075 = vmatpush.msra.mxu0 %v7074
        %v7076 = vand.u32 %v2391, 4294901760
        %7077 = vmatpush.msra.mxu0 %v7076
        %v7078 = vand.u32 %v2389, 4294901760
        %7079 = vmatpush.msra.mxu0 %v7078
        %v7080 = vand.u32 %v2387, 4294901760
        %7081 = vmatpush.msra.mxu0 %v7080
        %v7082 = vand.u32 %v2385, 4294901760
        %7083 = vmatpush.msra.mxu0 %v7082
        %v7084 = vand.u32 %v2383, 4294901760
        %7085 = vmatpush.msra.mxu0 %v7084
        %v7086 = vand.u32 %v2381, 4294901760
        %7087 = vmatpush.msra.mxu0 %v7086
        %v7088 = vand.u32 %v2379, 4294901760
        %7089 = vmatpush.msra.mxu0 %v7088
        %v7090 = vand.u32 %v2377, 4294901760
        %7091 = vmatpush.msra.mxu0 %v7090
        %v7092 = vand.u32 %v2375, 4294901760
        %7093 = vmatpush.msra.mxu0 %v7092
        %v7094 = vand.u32 %v2373, 4294901760
        %7095 = vmatpush.msra.mxu0 %v7094
        %v7096 = vand.u32 %v2371, 4294901760
        %7097 = vmatpush.msra.mxu0 %v7096
        %v7098 = vand.u32 %v2369, 4294901760
        %7099 = vmatpush.msra.mxu0 %v7098
        %v7100 = vand.u32 %v2367, 4294901760
        %7101 = vmatpush.msra.mxu0 %v7100
        %v7102 = vand.u32 %v2365, 4294901760
        %7103 = vmatpush.msra.mxu0 %v7102
        %v7104 = vand.u32 %v2363, 4294901760
        %7105 = vmatpush.msra.mxu0 %v7104
        %v7106 = vand.u32 %v5953, 4294901760
        %v7107 = vsub.f32 %v5953, %v7106
        %v7108 = vand.u32 %v7107, 4294901760
        %v7109 = vsub.f32 %v7107, %v7108
        %v7110 = vand.u32 %v7109, 4294901760
        %7111 = vmatmul.f32.gmra.mxu0 %v7110
        %v7112 = vpop.f32.mrf.mxu0
        %v7113 = vadd.f32 %v7068, %v7112
        %v7114 = vand.u32 %v5957, 4294901760
        %v7115 = vsub.f32 %v5957, %v7114
        %v7116 = vand.u32 %v7115, 4294901760
        %v7117 = vsub.f32 %v7115, %v7116
        %v7118 = vand.u32 %v7117, 4294901760
        %7119 = vmatmul.f32.gmra.mxu0 %v7118
        %v7120 = vpop.f32.mrf.mxu0
        %v7121 = vadd.f32 %v7072, %v7120
        %7122 = vdwg.mxu0
        %v7123 = vand.u32 %v2393, 4294901760
        %v7124 = vsub.f32 %v2393, %v7123
        %v7125 = vand.u32 %v7124, 4294901760
        %v7126 = vsub.f32 %v7124, %v7125
        %v7127 = vand.u32 %v7126, 4294901760
        %7128 = vmatpush.msra.mxu0 %v7127
        %v7129 = vand.u32 %v2391, 4294901760
        %v7130 = vsub.f32 %v2391, %v7129
        %v7131 = vand.u32 %v7130, 4294901760
        %v7132 = vsub.f32 %v7130, %v7131
        %v7133 = vand.u32 %v7132, 4294901760
        %7134 = vmatpush.msra.mxu0 %v7133
        %v7135 = vand.u32 %v2389, 4294901760
        %v7136 = vsub.f32 %v2389, %v7135
        %v7137 = vand.u32 %v7136, 4294901760
        %v7138 = vsub.f32 %v7136, %v7137
        %v7139 = vand.u32 %v7138, 4294901760
        %7140 = vmatpush.msra.mxu0 %v7139
        %v7141 = vand.u32 %v2387, 4294901760
        %v7142 = vsub.f32 %v2387, %v7141
        %v7143 = vand.u32 %v7142, 4294901760
        %v7144 = vsub.f32 %v7142, %v7143
        %v7145 = vand.u32 %v7144, 4294901760
        %7146 = vmatpush.msra.mxu0 %v7145
        %v7147 = vand.u32 %v2385, 4294901760
        %v7148 = vsub.f32 %v2385, %v7147
        %v7149 = vand.u32 %v7148, 4294901760
        %v7150 = vsub.f32 %v7148, %v7149
        %v7151 = vand.u32 %v7150, 4294901760
        %7152 = vmatpush.msra.mxu0 %v7151
        %v7153 = vand.u32 %v2383, 4294901760
        %v7154 = vsub.f32 %v2383, %v7153
        %v7155 = vand.u32 %v7154, 4294901760
        %v7156 = vsub.f32 %v7154, %v7155
        %v7157 = vand.u32 %v7156, 4294901760
        %7158 = vmatpush.msra.mxu0 %v7157
        %v7159 = vand.u32 %v2381, 4294901760
        %v7160 = vsub.f32 %v2381, %v7159
        %v7161 = vand.u32 %v7160, 4294901760
        %v7162 = vsub.f32 %v7160, %v7161
        %v7163 = vand.u32 %v7162, 4294901760
        %7164 = vmatpush.msra.mxu0 %v7163
        %v7165 = vand.u32 %v2379, 4294901760
        %v7166 = vsub.f32 %v2379, %v7165
        %v7167 = vand.u32 %v7166, 4294901760
        %v7168 = vsub.f32 %v7166, %v7167
        %v7169 = vand.u32 %v7168, 4294901760
        %7170 = vmatpush.msra.mxu0 %v7169
        %v7171 = vand.u32 %v2377, 4294901760
        %v7172 = vsub.f32 %v2377, %v7171
        %v7173 = vand.u32 %v7172, 4294901760
        %v7174 = vsub.f32 %v7172, %v7173
        %v7175 = vand.u32 %v7174, 4294901760
        %7176 = vmatpush.msra.mxu0 %v7175
        %v7177 = vand.u32 %v2375, 4294901760
        %v7178 = vsub.f32 %v2375, %v7177
        %v7179 = vand.u32 %v7178, 4294901760
        %v7180 = vsub.f32 %v7178, %v7179
        %v7181 = vand.u32 %v7180, 4294901760
        %7182 = vmatpush.msra.mxu0 %v7181
        %v7183 = vand.u32 %v2373, 4294901760
        %v7184 = vsub.f32 %v2373, %v7183
        %v7185 = vand.u32 %v7184, 4294901760
        %v7186 = vsub.f32 %v7184, %v7185
        %v7187 = vand.u32 %v7186, 4294901760
        %7188 = vmatpush.msra.mxu0 %v7187
        %v7189 = vand.u32 %v2371, 4294901760
        %v7190 = vsub.f32 %v2371, %v7189
        %v7191 = vand.u32 %v7190, 4294901760
        %v7192 = vsub.f32 %v7190, %v7191
        %v7193 = vand.u32 %v7192, 4294901760
        %7194 = vmatpush.msra.mxu0 %v7193
        %v7195 = vand.u32 %v2369, 4294901760
        %v7196 = vsub.f32 %v2369, %v7195
        %v7197 = vand.u32 %v7196, 4294901760
        %v7198 = vsub.f32 %v7196, %v7197
        %v7199 = vand.u32 %v7198, 4294901760
        %7200 = vmatpush.msra.mxu0 %v7199
        %v7201 = vand.u32 %v2367, 4294901760
        %v7202 = vsub.f32 %v2367, %v7201
        %v7203 = vand.u32 %v7202, 4294901760
        %v7204 = vsub.f32 %v7202, %v7203
        %v7205 = vand.u32 %v7204, 4294901760
        %7206 = vmatpush.msra.mxu0 %v7205
        %v7207 = vand.u32 %v2365, 4294901760
        %v7208 = vsub.f32 %v2365, %v7207
        %v7209 = vand.u32 %v7208, 4294901760
        %v7210 = vsub.f32 %v7208, %v7209
        %v7211 = vand.u32 %v7210, 4294901760
        %7212 = vmatpush.msra.mxu0 %v7211
        %v7213 = vand.u32 %v2363, 4294901760
        %v7214 = vsub.f32 %v2363, %v7213
        %v7215 = vand.u32 %v7214, 4294901760
        %v7216 = vsub.f32 %v7214, %v7215
        %v7217 = vand.u32 %v7216, 4294901760
        %7218 = vmatpush.msra.mxu0 %v7217
        %v7219 = vand.u32 %v5953, 4294901760
        %7220 = vmatmul.f32.gmra.mxu0 %v7219
        %v7221 = vpop.f32.mrf.mxu0
        %v7222 = vadd.f32 %v7113, %v7221
        %v7223 = vand.u32 %v5957, 4294901760
        %7224 = vmatmul.f32.gmra.mxu0 %v7223
        %v7225 = vpop.f32.mrf.mxu0
        %v7226 = vadd.f32 %v7121, %v7225
        %7227 = vdwg.mxu0
        %v7228 = vand.u32 %v2393, 4294901760
        %v7229 = vsub.f32 %v2393, %v7228
        %7230 = vmatpush.msra.mxu0 %v7229
        %v7231 = vand.u32 %v2391, 4294901760
        %v7232 = vsub.f32 %v2391, %v7231
        %7233 = vmatpush.msra.mxu0 %v7232
        %v7234 = vand.u32 %v2389, 4294901760
        %v7235 = vsub.f32 %v2389, %v7234
        %7236 = vmatpush.msra.mxu0 %v7235
        %v7237 = vand.u32 %v2387, 4294901760
        %v7238 = vsub.f32 %v2387, %v7237
        %7239 = vmatpush.msra.mxu0 %v7238
        %v7240 = vand.u32 %v2385, 4294901760
        %v7241 = vsub.f32 %v2385, %v7240
        %7242 = vmatpush.msra.mxu0 %v7241
        %v7243 = vand.u32 %v2383, 4294901760
        %v7244 = vsub.f32 %v2383, %v7243
        %7245 = vmatpush.msra.mxu0 %v7244
        %v7246 = vand.u32 %v2381, 4294901760
        %v7247 = vsub.f32 %v2381, %v7246
        %7248 = vmatpush.msra.mxu0 %v7247
        %v7249 = vand.u32 %v2379, 4294901760
        %v7250 = vsub.f32 %v2379, %v7249
        %7251 = vmatpush.msra.mxu0 %v7250
        %v7252 = vand.u32 %v2377, 4294901760
        %v7253 = vsub.f32 %v2377, %v7252
        %7254 = vmatpush.msra.mxu0 %v7253
        %v7255 = vand.u32 %v2375, 4294901760
        %v7256 = vsub.f32 %v2375, %v7255
        %7257 = vmatpush.msra.mxu0 %v7256
        %v7258 = vand.u32 %v2373, 4294901760
        %v7259 = vsub.f32 %v2373, %v7258
        %7260 = vmatpush.msra.mxu0 %v7259
        %v7261 = vand.u32 %v2371, 4294901760
        %v7262 = vsub.f32 %v2371, %v7261
        %7263 = vmatpush.msra.mxu0 %v7262
        %v7264 = vand.u32 %v2369, 4294901760
        %v7265 = vsub.f32 %v2369, %v7264
        %7266 = vmatpush.msra.mxu0 %v7265
        %v7267 = vand.u32 %v2367, 4294901760
        %v7268 = vsub.f32 %v2367, %v7267
        %7269 = vmatpush.msra.mxu0 %v7268
        %v7270 = vand.u32 %v2365, 4294901760
        %v7271 = vsub.f32 %v2365, %v7270
        %7272 = vmatpush.msra.mxu0 %v7271
        %v7273 = vand.u32 %v2363, 4294901760
        %v7274 = vsub.f32 %v2363, %v7273
        %7275 = vmatpush.msra.mxu0 %v7274
        %v7276 = vand.u32 %v5953, 4294901760
        %v7277 = vsub.f32 %v5953, %v7276
        %7278 = vmatmul.f32.gmra.mxu0 %v7277
        %v7279 = vpop.f32.mrf.mxu0
        %v7280 = vadd.f32 %v7222, %v7279
        %v7281 = vand.u32 %v5957, 4294901760
        %v7282 = vsub.f32 %v5957, %v7281
        %7283 = vmatmul.f32.gmra.mxu0 %v7282
        %v7284 = vpop.f32.mrf.mxu0
        %v7285 = vadd.f32 %v7226, %v7284
        %7286 = vdwg.mxu0
        %v7287 = vand.u32 %v2393, 4294901760
        %7288 = vmatpush.msra.mxu0 %v7287
        %v7289 = vand.u32 %v2391, 4294901760
        %7290 = vmatpush.msra.mxu0 %v7289
        %v7291 = vand.u32 %v2389, 4294901760
        %7292 = vmatpush.msra.mxu0 %v7291
        %v7293 = vand.u32 %v2387, 4294901760
        %7294 = vmatpush.msra.mxu0 %v7293
        %v7295 = vand.u32 %v2385, 4294901760
        %7296 = vmatpush.msra.mxu0 %v7295
        %v7297 = vand.u32 %v2383, 4294901760
        %7298 = vmatpush.msra.mxu0 %v7297
        %v7299 = vand.u32 %v2381, 4294901760
        %7300 = vmatpush.msra.mxu0 %v7299
        %v7301 = vand.u32 %v2379, 4294901760
        %7302 = vmatpush.msra.mxu0 %v7301
        %v7303 = vand.u32 %v2377, 4294901760
        %7304 = vmatpush.msra.mxu0 %v7303
        %v7305 = vand.u32 %v2375, 4294901760
        %7306 = vmatpush.msra.mxu0 %v7305
        %v7307 = vand.u32 %v2373, 4294901760
        %7308 = vmatpush.msra.mxu0 %v7307
        %v7309 = vand.u32 %v2371, 4294901760
        %7310 = vmatpush.msra.mxu0 %v7309
        %v7311 = vand.u32 %v2369, 4294901760
        %7312 = vmatpush.msra.mxu0 %v7311
        %v7313 = vand.u32 %v2367, 4294901760
        %7314 = vmatpush.msra.mxu0 %v7313
        %v7315 = vand.u32 %v2365, 4294901760
        %7316 = vmatpush.msra.mxu0 %v7315
        %v7317 = vand.u32 %v2363, 4294901760
        %7318 = vmatpush.msra.mxu0 %v7317
        %v7319 = vand.u32 %v5953, 4294901760
        %v7320 = vsub.f32 %v5953, %v7319
        %v7321 = vand.u32 %v7320, 4294901760
        %7322 = vmatmul.f32.gmra.mxu0 %v7321
        %v7323 = vpop.f32.mrf.mxu0
        %v7324 = vadd.f32 %v7280, %v7323
        %v7325 = vand.u32 %v5957, 4294901760
        %v7326 = vsub.f32 %v5957, %v7325
        %v7327 = vand.u32 %v7326, 4294901760
        %7328 = vmatmul.f32.gmra.mxu0 %v7327
        %v7329 = vpop.f32.mrf.mxu0
        %v7330 = vadd.f32 %v7285, %v7329
        %7331 = vdwg.mxu0
        %v7332 = vand.u32 %v2393, 4294901760
        %v7333 = vsub.f32 %v2393, %v7332
        %v7334 = vand.u32 %v7333, 4294901760
        %7335 = vmatpush.msra.mxu0 %v7334
        %v7336 = vand.u32 %v2391, 4294901760
        %v7337 = vsub.f32 %v2391, %v7336
        %v7338 = vand.u32 %v7337, 4294901760
        %7339 = vmatpush.msra.mxu0 %v7338
        %v7340 = vand.u32 %v2389, 4294901760
        %v7341 = vsub.f32 %v2389, %v7340
        %v7342 = vand.u32 %v7341, 4294901760
        %7343 = vmatpush.msra.mxu0 %v7342
        %v7344 = vand.u32 %v2387, 4294901760
        %v7345 = vsub.f32 %v2387, %v7344
        %v7346 = vand.u32 %v7345, 4294901760
        %7347 = vmatpush.msra.mxu0 %v7346
        %v7348 = vand.u32 %v2385, 4294901760
        %v7349 = vsub.f32 %v2385, %v7348
        %v7350 = vand.u32 %v7349, 4294901760
        %7351 = vmatpush.msra.mxu0 %v7350
        %v7352 = vand.u32 %v2383, 4294901760
        %v7353 = vsub.f32 %v2383, %v7352
        %v7354 = vand.u32 %v7353, 4294901760
        %7355 = vmatpush.msra.mxu0 %v7354
        %v7356 = vand.u32 %v2381, 4294901760
        %v7357 = vsub.f32 %v2381, %v7356
        %v7358 = vand.u32 %v7357, 4294901760
        %7359 = vmatpush.msra.mxu0 %v7358
        %v7360 = vand.u32 %v2379, 4294901760
        %v7361 = vsub.f32 %v2379, %v7360
        %v7362 = vand.u32 %v7361, 4294901760
        %7363 = vmatpush.msra.mxu0 %v7362
        %v7364 = vand.u32 %v2377, 4294901760
        %v7365 = vsub.f32 %v2377, %v7364
        %v7366 = vand.u32 %v7365, 4294901760
        %7367 = vmatpush.msra.mxu0 %v7366
        %v7368 = vand.u32 %v2375, 4294901760
        %v7369 = vsub.f32 %v2375, %v7368
        %v7370 = vand.u32 %v7369, 4294901760
        %7371 = vmatpush.msra.mxu0 %v7370
        %v7372 = vand.u32 %v2373, 4294901760
        %v7373 = vsub.f32 %v2373, %v7372
        %v7374 = vand.u32 %v7373, 4294901760
        %7375 = vmatpush.msra.mxu0 %v7374
        %v7376 = vand.u32 %v2371, 4294901760
        %v7377 = vsub.f32 %v2371, %v7376
        %v7378 = vand.u32 %v7377, 4294901760
        %7379 = vmatpush.msra.mxu0 %v7378
        %v7380 = vand.u32 %v2369, 4294901760
        %v7381 = vsub.f32 %v2369, %v7380
        %v7382 = vand.u32 %v7381, 4294901760
        %7383 = vmatpush.msra.mxu0 %v7382
        %v7384 = vand.u32 %v2367, 4294901760
        %v7385 = vsub.f32 %v2367, %v7384
        %v7386 = vand.u32 %v7385, 4294901760
        %7387 = vmatpush.msra.mxu0 %v7386
        %v7388 = vand.u32 %v2365, 4294901760
        %v7389 = vsub.f32 %v2365, %v7388
        %v7390 = vand.u32 %v7389, 4294901760
        %7391 = vmatpush.msra.mxu0 %v7390
        %v7392 = vand.u32 %v2363, 4294901760
        %v7393 = vsub.f32 %v2363, %v7392
        %v7394 = vand.u32 %v7393, 4294901760
        %7395 = vmatpush.msra.mxu0 %v7394
        %v7396 = vand.u32 %v5953, 4294901760
        %7397 = vmatmul.f32.gmra.mxu0 %v7396
        %v7398 = vpop.f32.mrf.mxu0
        %v7399 = vadd.f32 %v7324, %v7398
        %v7400 = vand.u32 %v5957, 4294901760
        %7401 = vmatmul.f32.gmra.mxu0 %v7400
        %v7402 = vpop.f32.mrf.mxu0
        %v7403 = vadd.f32 %v7330, %v7402
        %7404 = vdwg.mxu0
        %v7405 = vand.u32 %v2393, 4294901760
        %7406 = vmatpush.msra.mxu0 %v7405
        %v7407 = vand.u32 %v2391, 4294901760
        %7408 = vmatpush.msra.mxu0 %v7407
        %v7409 = vand.u32 %v2389, 4294901760
        %7410 = vmatpush.msra.mxu0 %v7409
        %v7411 = vand.u32 %v2387, 4294901760
        %7412 = vmatpush.msra.mxu0 %v7411
        %v7413 = vand.u32 %v2385, 4294901760
        %7414 = vmatpush.msra.mxu0 %v7413
        %v7415 = vand.u32 %v2383, 4294901760
        %7416 = vmatpush.msra.mxu0 %v7415
        %v7417 = vand.u32 %v2381, 4294901760
        %7418 = vmatpush.msra.mxu0 %v7417
        %v7419 = vand.u32 %v2379, 4294901760
        %7420 = vmatpush.msra.mxu0 %v7419
        %v7421 = vand.u32 %v2377, 4294901760
        %7422 = vmatpush.msra.mxu0 %v7421
        %v7423 = vand.u32 %v2375, 4294901760
        %7424 = vmatpush.msra.mxu0 %v7423
        %v7425 = vand.u32 %v2373, 4294901760
        %7426 = vmatpush.msra.mxu0 %v7425
        %v7427 = vand.u32 %v2371, 4294901760
        %7428 = vmatpush.msra.mxu0 %v7427
        %v7429 = vand.u32 %v2369, 4294901760
        %7430 = vmatpush.msra.mxu0 %v7429
        %v7431 = vand.u32 %v2367, 4294901760
        %7432 = vmatpush.msra.mxu0 %v7431
        %v7433 = vand.u32 %v2365, 4294901760
        %7434 = vmatpush.msra.mxu0 %v7433
        %v7435 = vand.u32 %v2363, 4294901760
        %7436 = vmatpush.msra.mxu0 %v7435
        %v7437 = vand.u32 %v5953, 4294901760
        %7438 = vmatmul.f32.gmra.mxu0 %v7437
        %v7439 = vpop.f32.mrf.mxu0
        %v7440 = vadd.f32 %v7399, %v7439
        %v7441 = vand.u32 %v5957, 4294901760
        %7442 = vmatmul.f32.gmra.mxu0 %v7441
        %v7443 = vpop.f32.mrf.mxu0
        %v7444 = vadd.f32 %v7403, %v7443
        %7445 = vdwg.mxu0
        %v7446 = vmul.f32 %v6696, %v6696
        %v7447 = vmul.f32 %v7440, %v7440
        %v7448 = vsub.f32 %v6700, %v7446
        %v7449 = vsub.f32 %v7444, %v7447
        %v7450 = vmax.f32 %v7448, 0.0
        %v7451 = vmax.f32 %v7449, 0.0
        %v7452 = vsub.f32 %v5875, %v6696
        %v7453 = vsub.f32 %v5953, %v7440
        %v7454 = vadd.f32 %v7450, 1e-05
        %v7455 = vadd.f32 %v7451, 1e-05
        %v7456 = vrsqrt.pop %v7454
        %v7457 = vmul.f32 %v7456, %v7454
        %v7458 = vmul.f32 %v7457, %v7456
        %v7459 = vmul.f32 0.5, %v7458
        %v7460 = vsub.f32 1.5, %v7459
        %v7461 = vmul.f32 %v7456, %v7460
        %vm7462 = vweird.f32 %v7454
        %vm7463 = vweird.f32 %v7456
        %vm7464 = vmor %vm7462, %vm7463
        %v7465 = vsel %vm7464, %v7456, %v7461
        %v7466 = vrsqrt.pop %v7455
        %v7467 = vmul.f32 %v7466, %v7455
        %v7468 = vmul.f32 %v7467, %v7466
        %v7469 = vmul.f32 0.5, %v7468
        %v7470 = vsub.f32 1.5, %v7469
        %v7471 = vmul.f32 %v7466, %v7470
        %vm7472 = vweird.f32 %v7455
        %vm7473 = vweird.f32 %v7466
        %vm7474 = vmor %vm7472, %vm7473
        %v7475 = vsel %vm7474, %v7466, %v7471
        %v7476 = vmul.f32 %v7452, %v7465
        %v7477 = vmul.f32 %v7453, %v7475
        %v7479 = vperm.slane %v4949, 0
        %v7480 = vperm.slane %v4949, 1
        %v7483 = vmul.f32 %v7476, %v7479
        %v7484 = vmul.f32 %v7477, %v7480
        %v7486 = vperm.slane %v4951, 0
        %v7487 = vperm.slane %v4951, 1
        %v7490 = vadd.f32 %v7483, %v7486
        %v7491 = vadd.f32 %v7484, %v7487
        %vm7492 = vcmp.gt.f32.partialorder %v7490, 0.0
        %vm7493 = vcmp.gt.f32.partialorder %v7491, 0.0
        %v7494 = vmul.f32 %v7490, 0.2
        %v7495 = vmul.f32 %v7491, 0.2
        %v7496 = vsel %vm7492, %v7490, %v7494
        %v7497 = vsel %vm7493, %v7491, %v7495
        %v7498 = vadd.f32 %v4942, %v7496
        %v7499 = vadd.f32 %v4943, %v7497
        %7500 = vst [vmem:[%s690] sm:$0xff] %v7498
        %7501 = vst [vmem:[%s690 + $0x8] sm:$0xff] %v7499
        %p7502 = scmp.lt.s32.totalorder %s33, 1
        %s7503 = scalar_select %p7502, %s33, 1
        %s7504 = smul.addr %s7503, 2
        %s7505 = smul.addr %s7504, 8
        %s7506 = scalar_lea.vmem %s17, %s7505
        // Predicated region
        $region125: #{_decoder_forward.1} parent=87 // pred_check
          %p7507 = pneg %p413
        $region126: #{_decoder_forward.1} parent=87 // pred_check_branch
          %7509 = sbr.rel (%p7507) target = $region128
        $region127: #{_decoder_forward.1} parent=87 // pred_region
          _
        $region128: #{_decoder_forward.1} parent=87 // pred_fallthru
          _
      $region88: #{_decoder_forward.1} parent=5 // pred_fallthru
        _
      %p7510 = scmp.le.s32.totalorder 2, %s28
      // Predicated region
      $region129: #{_decoder_forward.1} parent=5 // pred_check
        %p7511 = pneg %p7510
      $region130: #{_decoder_forward.1} parent=5 // pred_check_branch
        %7513 = sbr.rel (%p7511) target = $region132
      $region131: #{_decoder_forward.1} parent=5 // pred_region
        %s7514 = ssub.s32 %s28, 2
        // Predicated region
        $region133: #{_decoder_forward.1} parent=131 // pred_check
          %p7515 = pneg %p419
        $region134: #{_decoder_forward.1} parent=131 // pred_check_branch
          %7517 = sbr.rel (%p7515) target = $region136
        $region135: #{_decoder_forward.1} parent=131 // pred_region
          %p7518 = scmp.lt.s32.totalorder %s34, 1
          %s7519 = scalar_select %p7518, %s34, 1
          %s7520 = smul.addr %s7519, 2
          %s7521 = smul.addr %s7520, 8
          %s7522 = scalar_lea.vmem %s17, %s7521
        $region136: #{_decoder_forward.1} parent=131 // pred_fallthru
          _
      $region132: #{_decoder_forward.1} parent=5 // pred_fallthru
        _
    $region6: #{_decoder_forward.1} parent=1 // loop_footer
      %s32 = sadd.s32 1, %s28
    $region7: #{_decoder_forward.1} parent=1 // loop_footer_branch
      %27 = sbr.rel target = $region3
    $region8: #{_decoder_forward.1} parent=1 // loop_exit
      _
    %7523 = vsyncpa [#allocation3], 1
    %s7524 = scalar_lea.sflag [#allocation3], 1
    %7525 = vsyncpa %s7524, 1
    %7526 = vsyncpa [#allocation5], 1
    %7527 = vsyncpa [#allocation8], 1
    %7528 = vsyncpa [#allocation11], 1
    %7529 = vsyncpa [#allocation14], 1

</llo_original>
